<compile_context>
chip_gen: v5e
topology: v5e:2x2
jax: 0.10.0
libtpu: 0.0.40
codegen_flags: <defaults>
</compile_context>

<pallas_src>
import jax
import jax.numpy as jnp
from jax.experimental import pallas as pl
from jax.experimental.pallas import tpu as pltpu

IN_FEATURES = 20
HIDDEN = 2000
HIDDEN_PAD = 2048                    # next multiple of 128 (lane-dense tiles)
N_CORES = 2                          # v7x megacore split; harmless (2 sequential steps) elsewhere
TILE_N = 1024                        # fc1 output-column tile (4 MiB bf16 per tile)
N_TILES = HIDDEN_PAD // TILE_N       # 2
N_INNER = N_TILES // N_CORES         # 1


def _mlp_kernel(x_ref, w0_ref, b0_ref, w1_ref, b1_ref, w2_ref, o_ref, h0_ref):
    j = pl.program_id(1)

    # fc0 runs once per core (trivially cheap); its (B, HIDDEN_PAD) bf16 result stays
    # resident in VMEM scratch.  Also zero this core's fc2 partial accumulator.
    @pl.when(j == 0)
    def _init():
        x = x_ref[...].astype(jnp.bfloat16)
        h0 = jnp.dot(x, w0_ref[...], preferred_element_type=jnp.float32) + b0_ref[...]
        h0_ref[...] = h0.astype(jnp.bfloat16)
        o_ref[...] = jnp.zeros_like(o_ref)

    # fc1 column-tile:  (B, HIDDEN_PAD) @ (HIDDEN_PAD, TILE_N) -> (B, TILE_N)
    h1 = jnp.dot(h0_ref[...], w1_ref[...], preferred_element_type=jnp.float32) + b1_ref[...]
    # fc2 partial sum over the matching row-tile of w2 (b2 is added outside the kernel).
    o_ref[...] += jnp.dot(h1.astype(jnp.bfloat16), w2_ref[...],
                          preferred_element_type=jnp.float32)


def net2_forward(x, prep):
    """x: (B, 20) float32. prep: output of prepare_params (pre-transposed/padded/tiled/bf16)."""
    B, in_f = x.shape
    n_tiles, hp, tile_n = prep["w1t"].shape     # (N_TILES, HIDDEN_PAD, TILE_N)
    act_dim = prep["w2t"].shape[1]
    n_inner = n_tiles // N_CORES

    cost = pl.CostEstimate(
        flops=2 * B * (in_f * hp + hp * hp + hp * act_dim),
        transcendentals=0,
        bytes_accessed=(x.size * 4
                        + prep["w0t"].size * 2 + prep["b0"].size * 4
                        + prep["w1t"].size * 2 + prep["b1"].size * 4
                        + prep["w2t"].size * 2 + prep["b2"].size * 4
                        + N_CORES * B * act_dim * 4),
    )

    partials = pl.pallas_call(
        _mlp_kernel,
        out_shape=jax.ShapeDtypeStruct((N_CORES, B, act_dim), jnp.float32),
        grid_spec=pltpu.PrefetchScalarGridSpec(
            num_scalar_prefetch=0,
            grid=(N_CORES, n_inner),
            in_specs=[
                pl.BlockSpec((B, in_f), lambda i, j: (0, 0)),          # x       (fetched once)
                pl.BlockSpec((in_f, hp), lambda i, j: (0, 0)),         # w0t     (fetched once)
                pl.BlockSpec((1, hp), lambda i, j: (0, 0)),            # b0      (fetched once)
                pl.BlockSpec((None, hp, tile_n),                       # w1t tile: one contiguous
                             lambda i, j: (i * n_inner + j, 0, 0)),    #   4 MiB DMA per step
                pl.BlockSpec((1, tile_n),                              # b1 tile
                             lambda i, j: (0, i * n_inner + j)),
                pl.BlockSpec((tile_n, act_dim),                        # w2t row-tile
                             lambda i, j: (i * n_inner + j, 0)),
            ],
            # Per-core partial output block; resident across the inner (reduction) axis.
            out_specs=pl.BlockSpec((None, B, act_dim), lambda i, j: (i, 0, 0)),
            scratch_shapes=[pltpu.VMEM((B, hp), jnp.bfloat16)],        # fc0 output (per core)
        ),
        compiler_params=pltpu.CompilerParams(
            # axis 0: independent column halves -> megacore-shardable on v7x;
            # axis 1: fc2 reduction -> arbitrary.
            dimension_semantics=("parallel", "arbitrary"),
        ),
        cost_estimate=cost,
    )(x, prep["w0t"], prep["b0"], prep["w1t"], prep["b1"], prep["w2t"])

    # Combine per-core partials and add the fc2 bias (tiny (B, act_dim) op).
    return partials.sum(axis=0) + prep["b2"]


def init_params(key, act_dim):
    """Deterministic init matching PyTorch nn.Linear default (uniform +-1/sqrt(fan_in)),
    in PyTorch layout (out_features, in_features)."""
    def linear(k, fan_in, fan_out):
        kw, kb = jax.random.split(k)
        bound = 1.0 / jnp.sqrt(fan_in)
        w = jax.random.uniform(kw, (fan_out, fan_in), jnp.float32, -bound, bound)
        b = jax.random.uniform(kb, (fan_out,), jnp.float32, -bound, bound)
        return w, b

    k0, k1, k2 = jax.random.split(key, 3)
    w0, b0 = linear(k0, IN_FEATURES, HIDDEN)
    w1, b1 = linear(k1, HIDDEN, HIDDEN)
    w2, b2 = linear(k2, HIDDEN, act_dim)
    return {"w0": w0, "b0": b0, "w1": w1, "b1": b1, "w2": w2, "b2": b2}


def prepare_params(params):
    """One-time layout prep: transpose to (in, out), zero-pad hidden 2000->2048, cast weights to
    bf16 (biases stay f32), and pre-split w1 into contiguous column tiles.  Done once, NOT per call."""
    pad = HIDDEN_PAD - HIDDEN
    w0t = jnp.pad(params["w0"].T, ((0, 0), (0, pad))).astype(jnp.bfloat16)          # (20, 2048)
    b0 = jnp.pad(params["b0"], (0, pad)).reshape(1, HIDDEN_PAD).astype(jnp.float32)
    w1t_full = jnp.pad(params["w1"].T, ((0, pad), (0, pad))).astype(jnp.bfloat16)    # (2048, 2048)
    # Pre-split into (N_TILES, 2048, TILE_N) so each streamed tile is a single dense DMA.
    w1t = w1t_full.reshape(HIDDEN_PAD, N_TILES, TILE_N).transpose(1, 0, 2)
    b1 = jnp.pad(params["b1"], (0, pad)).reshape(1, HIDDEN_PAD).astype(jnp.float32)
    w2t = jnp.pad(params["w2"].T, ((0, pad), (0, 0))).astype(jnp.bfloat16)           # (2048, act_dim)
    b2 = params["b2"].reshape(1, -1).astype(jnp.float32)
    return {"w0t": w0t, "b0": b0, "w1t": w1t, "b1": b1, "w2t": w2t, "b2": b2}


def net2_reference_bf16(x, prep):
    """Plain-JAX reference with the same bf16-weight / f32-accumulate math as the kernel."""
    w1t_full = prep["w1t"].transpose(1, 0, 2).reshape(HIDDEN_PAD, HIDDEN_PAD)
    h0 = jnp.dot(x.astype(jnp.bfloat16), prep["w0t"],
                 preferred_element_type=jnp.float32) + prep["b0"]
    h1 = jnp.dot(h0.astype(jnp.bfloat16), w1t_full,
                 preferred_element_type=jnp.float32) + prep["b1"]
    return jnp.dot(h1.astype(jnp.bfloat16), prep["w2t"],
                   preferred_element_type=jnp.float32) + prep["b2"]


if __name__ == "__main__":
    act_dim = 4
    batch = 8

    key = jax.random.PRNGKey(0)
    kp, kx = jax.random.split(key)
    params = init_params(kp, act_dim)          # PyTorch-layout f32 params
    prep = prepare_params(params)              # one-time transpose/pad/tile/bf16 cast
    x = jax.random.normal(kx, (batch, IN_FEATURES), jnp.float32)

    out = net2_forward(x, prep)
    out = jax.block_until_ready(out)
    assert out.shape == (batch, act_dim)

    # Reference with matching (bf16 weight) precision -> tight tolerance.
    ref_bf16 = net2_reference_bf16(x, prep)
    assert jnp.allclose(out, ref_bf16, atol=1e-2, rtol=1e-2)

    # Sanity check against the original full-f32 PyTorch math (loose tolerance, bf16 weights).
    ref_f32 = x @ params["w0"].T + params["b0"]
    ref_f32 = ref_f32 @ params["w1"].T + params["b1"]
    ref_f32 = ref_f32 @ params["w2"].T + params["b2"]
    assert jnp.allclose(out, ref_f32, atol=1e-1, rtol=1e-1)

    print("KERNEL_OK")
</pallas_src>

<mosaic_0001>
module attributes {stable_mosaic.version = 11 : i64} {
  func.func @_mlp_kernel(%arg0: i32, %arg1: i32, %arg2: memref<8x20xf32, #tpu.memory_space<vmem>>, %arg3: memref<20x2048xbf16, #tpu.memory_space<vmem>>, %arg4: memref<1x2048xf32, #tpu.memory_space<vmem>>, %arg5: memref<1x2048x1024xbf16, #tpu.memory_space<vmem>>, %arg6: memref<1x1024xf32, #tpu.memory_space<vmem>>, %arg7: memref<1024x4xbf16, #tpu.memory_space<vmem>>, %arg8: memref<1x8x4xf32, #tpu.memory_space<vmem>>, %arg9: memref<8x2048xbf16, #tpu.memory_space<vmem>>) attributes {dimension_semantics = [#tpu.dimension_semantics<parallel>, #tpu.dimension_semantics<arbitrary>], iteration_bounds = array<i64: 2, 1>, scalar_prefetch = 0 : i64, scratch_operands = 1 : i64, tpu.core_type = #tpu.core_type<tc>, window_params = [{pipeline_mode = #tpu.pipeline_mode<synchronous>, transform_indices = @transform_0, window_bounds = array<i64: 8, 20>}, {pipeline_mode = #tpu.pipeline_mode<synchronous>, transform_indices = @transform_1, window_bounds = array<i64: 20, 2048>}, {pipeline_mode = #tpu.pipeline_mode<synchronous>, transform_indices = @transform_2, window_bounds = array<i64: 1, 2048>}, {transform_indices = @transform_3, window_bounds = array<i64: 1, 2048, 1024>}, {transform_indices = @transform_4, window_bounds = array<i64: 1, 1024>}, {transform_indices = @transform_5, window_bounds = array<i64: 1024, 4>}, {transform_indices = @transform_6, window_bounds = array<i64: 1, 8, 4>}]} {
    %c0_i32 = arith.constant 0 : i32
    %0 = arith.cmpi eq, %arg1, %c0_i32 : i32
    %1 = arith.extui %0 : i1 to i32
    %c0_i32_0 = arith.constant 0 : i32
    %2 = arith.cmpi ne, %1, %c0_i32_0 : i32
    scf.if %2 {
      %c0_16 = arith.constant 0 : index
      %c0_17 = arith.constant 0 : index
      %19 = vector.load %arg2[%c0_16, %c0_17] : memref<8x20xf32, #tpu.memory_space<vmem>>, vector<8x20xf32>
      %20 = arith.truncf %19 : vector<8x20xf32> to vector<8x20xbf16>
      %c0_18 = arith.constant 0 : index
      %c0_19 = arith.constant 0 : index
      %21 = vector.load %arg3[%c0_18, %c0_19] : memref<20x2048xbf16, #tpu.memory_space<vmem>>, vector<20x2048xbf16>
      %cst_20 = arith.constant dense<0.000000e+00> : vector<8x2048xf32>
      %22 = tpu.matmul %20, %21, %cst_20 {dimension_numbers = #tpu.dot_dimension_numbers<[1], [0], [0], [1], [0, 0, 1, 1], [], []>} : vector<8x20xbf16>, vector<20x2048xbf16>, vector<8x2048xf32> -> vector<8x2048xf32>
      %c0_21 = arith.constant 0 : index
      %c0_22 = arith.constant 0 : index
      %23 = vector.load %arg4[%c0_21, %c0_22] : memref<1x2048xf32, #tpu.memory_space<vmem>>, vector<1x2048xf32>
      %24 = vector.broadcast %23 : vector<1x2048xf32> to vector<8x2048xf32>
      %25 = arith.addf %22, %24 : vector<8x2048xf32>
      %26 = arith.truncf %25 : vector<8x2048xf32> to vector<8x2048xbf16>
      %c0_23 = arith.constant 0 : index
      %c0_24 = arith.constant 0 : index
      %27 = vector.load %arg9[%c0_23, %c0_24] : memref<8x2048xbf16, #tpu.memory_space<vmem>>, vector<8x2048xbf16>
      tpu.vector_store %arg9[%c0_23, %c0_24], %26 {strides = array<i32>} : memref<8x2048xbf16, #tpu.memory_space<vmem>>, vector<8x2048xbf16>,
      %cst_25 = arith.constant 0.000000e+00 : f32
      %28 = vector.broadcast %cst_25 : f32 to vector<8x4xf32>
      %c0_26 = arith.constant 0 : index
      %c0_27 = arith.constant 0 : index
      %c0_28 = arith.constant 0 : index
      %29 = vector.load %arg8[%c0_26, %c0_27, %c0_28] : memref<1x8x4xf32, #tpu.memory_space<vmem>>, vector<1x8x4xf32>
      %30 = vector.shape_cast %29 : vector<1x8x4xf32> to vector<8x4xf32>
      %31 = vector.shape_cast %28 : vector<8x4xf32> to vector<1x8x4xf32>
      tpu.vector_store %arg8[%c0_26, %c0_27, %c0_28], %31 {strides = array<i32>} : memref<1x8x4xf32, #tpu.memory_space<vmem>>, vector<1x8x4xf32>,
    } else {
    }
    %c0 = arith.constant 0 : index
    %c0_1 = arith.constant 0 : index
    %3 = vector.load %arg9[%c0, %c0_1] : memref<8x2048xbf16, #tpu.memory_space<vmem>>, vector<8x2048xbf16>
    %c0_2 = arith.constant 0 : index
    %c0_3 = arith.constant 0 : index
    %c0_4 = arith.constant 0 : index
    %4 = vector.load %arg5[%c0_2, %c0_3, %c0_4] : memref<1x2048x1024xbf16, #tpu.memory_space<vmem>>, vector<1x2048x1024xbf16>
    %5 = vector.shape_cast %4 : vector<1x2048x1024xbf16> to vector<2048x1024xbf16>
    %cst = arith.constant dense<0.000000e+00> : vector<8x1024xf32>
    %6 = tpu.matmul %3, %5, %cst {dimension_numbers = #tpu.dot_dimension_numbers<[1], [0], [0], [1], [0, 0, 1, 1], [], []>} : vector<8x2048xbf16>, vector<2048x1024xbf16>, vector<8x1024xf32> -> vector<8x1024xf32>
    %c0_5 = arith.constant 0 : index
    %c0_6 = arith.constant 0 : index
    %7 = vector.load %arg6[%c0_5, %c0_6] : memref<1x1024xf32, #tpu.memory_space<vmem>>, vector<1x1024xf32>
    %8 = vector.broadcast %7 : vector<1x1024xf32> to vector<8x1024xf32>
    %9 = arith.addf %6, %8 : vector<8x1024xf32>
    %c0_7 = arith.constant 0 : index
    %c0_8 = arith.constant 0 : index
    %c0_9 = arith.constant 0 : index
    %10 = vector.load %arg8[%c0_7, %c0_8, %c0_9] : memref<1x8x4xf32, #tpu.memory_space<vmem>>, vector<1x8x4xf32>
    %11 = vector.shape_cast %10 : vector<1x8x4xf32> to vector<8x4xf32>
    %12 = arith.truncf %9 : vector<8x1024xf32> to vector<8x1024xbf16>
    %c0_10 = arith.constant 0 : index
    %c0_11 = arith.constant 0 : index
    %13 = vector.load %arg7[%c0_10, %c0_11] : memref<1024x4xbf16, #tpu.memory_space<vmem>>, vector<1024x4xbf16>
    %cst_12 = arith.constant dense<0.000000e+00> : vector<8x4xf32>
    %14 = tpu.matmul %12, %13, %cst_12 {dimension_numbers = #tpu.dot_dimension_numbers<[1], [0], [0], [1], [0, 0, 1, 1], [], []>} : vector<8x1024xbf16>, vector<1024x4xbf16>, vector<8x4xf32> -> vector<8x4xf32>
    %15 = arith.addf %11, %14 : vector<8x4xf32>
    %c0_13 = arith.constant 0 : index
    %c0_14 = arith.constant 0 : index
    %c0_15 = arith.constant 0 : index
    %16 = vector.load %arg8[%c0_13, %c0_14, %c0_15] : memref<1x8x4xf32, #tpu.memory_space<vmem>>, vector<1x8x4xf32>
    %17 = vector.shape_cast %16 : vector<1x8x4xf32> to vector<8x4xf32>
    %18 = vector.shape_cast %15 : vector<8x4xf32> to vector<1x8x4xf32>
    tpu.vector_store %arg8[%c0_13, %c0_14, %c0_15], %18 {strides = array<i32>} : memref<1x8x4xf32, #tpu.memory_space<vmem>>, vector<1x8x4xf32>,
    return
  }
  func.func @transform_0(%arg0: i32, %arg1: i32) -> (i32, i32) {
    %c0_i32 = arith.constant 0 : i32
    %c0_i32_0 = arith.constant 0 : i32
    %c0_i32_1 = arith.constant 0 : i32
    return %c0_i32, %c0_i32_0 : i32, i32
  }
  func.func @transform_1(%arg0: i32, %arg1: i32) -> (i32, i32) {
    %c0_i32 = arith.constant 0 : i32
    %c0_i32_0 = arith.constant 0 : i32
    %c0_i32_1 = arith.constant 0 : i32
    return %c0_i32, %c0_i32_0 : i32, i32
  }
  func.func @transform_2(%arg0: i32, %arg1: i32) -> (i32, i32) {
    %c0_i32 = arith.constant 0 : i32
    %c0_i32_0 = arith.constant 0 : i32
    %c0_i32_1 = arith.constant 0 : i32
    return %c0_i32, %c0_i32_0 : i32, i32
  }
  func.func @transform_3(%arg0: i32, %arg1: i32) -> (i32, i32, i32) {
    %c1_i32 = arith.constant 1 : i32
    %0 = arith.muli %arg0, %c1_i32 : i32
    %1 = arith.addi %0, %arg1 : i32
    %c0_i32 = arith.constant 0 : i32
    %c0_i32_0 = arith.constant 0 : i32
    %c0_i32_1 = arith.constant 0 : i32
    return %1, %c0_i32, %c0_i32_0 : i32, i32, i32
  }
  func.func @transform_4(%arg0: i32, %arg1: i32) -> (i32, i32) {
    %c1_i32 = arith.constant 1 : i32
    %0 = arith.muli %arg0, %c1_i32 : i32
    %1 = arith.addi %0, %arg1 : i32
    %c0_i32 = arith.constant 0 : i32
    %c0_i32_0 = arith.constant 0 : i32
    return %c0_i32, %1 : i32, i32
  }
  func.func @transform_5(%arg0: i32, %arg1: i32) -> (i32, i32) {
    %c1_i32 = arith.constant 1 : i32
    %0 = arith.muli %arg0, %c1_i32 : i32
    %1 = arith.addi %0, %arg1 : i32
    %c0_i32 = arith.constant 0 : i32
    %c0_i32_0 = arith.constant 0 : i32
    return %1, %c0_i32 : i32, i32
  }
  func.func @transform_6(%arg0: i32, %arg1: i32) -> (i32, i32, i32) {
    %c0_i32 = arith.constant 0 : i32
    %c0_i32_0 = arith.constant 0 : i32
    %c0_i32_1 = arith.constant 0 : i32
    return %arg0, %c0_i32, %c0_i32_0 : i32, i32, i32
  }
}

</mosaic_0001>

<llo_original>
// kernel: tpu_custom_call.1
$region0: #{tpu_custom_call.1}
  #allocation0 [shape = 'u32[]', space=smem, size = 0x4, offset = 0x4, fixed_abs, tag = 'smem constant byte address 0x4 - core index']
  #allocation1 [shape = 'u32[72,128]{1,0:T(1,128)}', space=vmem, size = 0x9000, scoped, tag = 'internal scratch']
  #allocation2 [shape = 'bf16[8,2048]{1,0:T(8,128)(2,1)}', space=vmem, size = 0x8000, scoped, tag = 'scratch operand']
  %s0 = inlined_call_operand.hbm [shape: f32[8,20], index: 0, kind: input, shape index: {}]
  %s1 = inlined_call_operand.hbm [shape: bf16[20,2048], index: 1, kind: input, shape index: {}]
  %s2 = inlined_call_operand.hbm [shape: f32[1,2048], index: 2, kind: input, shape index: {}]
  %s3 = inlined_call_operand.hbm [shape: bf16[2,2048,1024], index: 3, kind: input, shape index: {}]
  %s4 = inlined_call_operand.hbm [shape: f32[1,2048], index: 4, kind: input, shape index: {}]
  %s5 = inlined_call_operand.vmem [shape: bf16[2048,4], index: 5, kind: input, shape index: {}]
  %s6 = inlined_call_operand.vmem [shape: f32[2,8,4], index: 6, kind: output, shape index: {}]
  %s7 = sld [smem:[#allocation0]]
  $region81: #{tpu_custom_call.1} parent=0
    _
  %s9 = ssub.s32 1, %s7
  %s10 = scalar_select 0, %s9, %s7
  $region1: #{tpu_custom_call.1} parent=0
    #allocation3 [shape = 'u8[4096]{0}', space=vmem, size = 0x1000, scoped, tag = 'input window, operand 0, single buffered']
    #allocation4 [shape = 's32[2]{0}', space=sflag, size = 0x8, scoped, tag = 'scoped memory for tpu_custom_call.1']
    #allocation5 [shape = 'u8[98304]{0}', space=vmem, size = 0x18000, scoped, tag = 'input window, operand 1, single buffered']
    #allocation6 [shape = 's32[1]{0}', space=sflag, size = 0x4, scoped, tag = 'scoped memory for tpu_custom_call.1']
    #allocation7 [shape = 'u8[8192]{0}', space=vmem, size = 0x2000, scoped, tag = 'input window, operand 2, single buffered']
    #allocation8 [shape = 'u8[8388608]{0}', space=vmem, size = 0x800000, scoped, tag = 'input window, operand 3']
    #allocation9 [shape = 's32[2]{0}', space=sflag, size = 0x8, scoped, tag = 'scoped memory for tpu_custom_call.1']
    #allocation10 [shape = 'u8[8192]{0}', space=vmem, size = 0x2000, scoped, tag = 'input window, operand 4']
    %11 = vsyncpa [#allocation4], 0
    %12 = vsyncpa [#allocation6], 0
    %13 = vsyncpa [#allocation9], 0
    %s14 = scalar_lea.sflag [#allocation9], 1
    %15 = vsyncpa %s14, 0
    loop: start=0, step=1, limit=4
    $region2: #{tpu_custom_call.1} parent=1 // loop_pre_header
      _
    $region3: #{tpu_custom_call.1} parent=1 // loop_header
      %s17 = sphi 0, %s21
      %p18 = scmp.ge.s32.totalorder %s17, 4
      %s24 = sphi 0, %s36
      %s25 = sphi 0, %s32
      %s26 = sphi 0, %s24
      %s27 = sphi 0, %s25
      %s28 = sphi 0, %s26
      %s29 = sphi 0, %s27
      %s37 = sphi 0, %s37
      %s39 = sphi 0, %s37
      %s40 = sphi 0, %s39
      %s54 = sphi 0, %s40
      %s58 = sphi 0, %s58
      %s60 = sphi 0, %s58
      %s61 = sphi 0, %s60
      %s75 = sphi 0, %s61
      %s79 = sphi 0, %s79
      %s81 = sphi 0, %s79
      %s82 = sphi 0, %s81
      %s96 = sphi 0, %s82
      %s104 = sphi 0, %s106
      %s107 = sphi 0, %s104
      %s108 = sphi 0, %s107
      %s124 = sphi 0, %s108
      %s132 = sphi 0, %s134
      %s135 = sphi 0, %s132
      %s136 = sphi 0, %s135
      %s152 = sphi 0, %s136
      %s160 = sphi 0, %s162
      %s163 = sphi 0, %s160
      %s164 = sphi 0, %s163
      %s180 = sphi 0, %s164
      %s186 = sphi 0, %s188
      %s189 = sphi 0, %s186
      %s190 = sphi 0, %s189
      %s206 = sphi 0, %s190
    $region4: #{tpu_custom_call.1} parent=1 // loop_header_branch
      %20 = sbr.rel (%p18) target = $region8
    $region5: #{tpu_custom_call.1} parent=1 // loop_body
      %s22 = ssub.s32 %s17, 1
      %s23 = ssub.s32 %s17, 2
      %s30 = sadd.s32 1, %s25
      %p31 = scmp.ge.s32.totalorder %s30, 1
      %s32 = scalar_select %p31, 0, %s30
      %s33 = sadd.s32 1, %s24
      %s34 = scalar_select %p31, %s33, %s24
      %p35 = scmp.ge.s32.totalorder %s34, 2
      %s36 = scalar_select %p35, 0, %s34
      %s38 = sadd.s32 %s37, 1
      %p41 = scmp.eq.s32.totalorder %s17, 1
      %p42 = scmp.ne.s32.totalorder %s37, %s39
      %p43 = scmp.eq.s32.totalorder %s17, 0
      %p44 = por %p42, %p43
      %p45 = scmp.ne.s32.totalorder %s37, %s39
      %p46 = scmp.eq.s32.totalorder %s22, 1
      %p47 = por %p45, %p46
      %p48 = scmp.ne.s32.totalorder %s39, %s40
      %p49 = scmp.eq.s32.totalorder %s22, 0
      %p50 = por %p48, %p49
      %p51 = scmp.ne.s32.totalorder %s39, %s40
      %p52 = scmp.eq.s32.totalorder %s23, 1
      %p53 = por %p51, %p52
      %p55 = scmp.ne.s32.totalorder %s40, %s54
      %p56 = scmp.eq.s32.totalorder %s23, 0
      %p57 = por %p55, %p56
      %s59 = sadd.s32 %s58, 1
      %p62 = scmp.eq.s32.totalorder %s17, 1
      %p63 = scmp.ne.s32.totalorder %s58, %s60
      %p64 = scmp.eq.s32.totalorder %s17, 0
      %p65 = por %p63, %p64
      %p66 = scmp.ne.s32.totalorder %s58, %s60
      %p67 = scmp.eq.s32.totalorder %s22, 1
      %p68 = por %p66, %p67
      %p69 = scmp.ne.s32.totalorder %s60, %s61
      %p70 = scmp.eq.s32.totalorder %s22, 0
      %p71 = por %p69, %p70
      %p72 = scmp.ne.s32.totalorder %s60, %s61
      %p73 = scmp.eq.s32.totalorder %s23, 1
      %p74 = por %p72, %p73
      %p76 = scmp.ne.s32.totalorder %s61, %s75
      %p77 = scmp.eq.s32.totalorder %s23, 0
      %p78 = por %p76, %p77
      %s80 = sadd.s32 %s79, 1
      %p83 = scmp.eq.s32.totalorder %s17, 1
      %p84 = scmp.ne.s32.totalorder %s79, %s81
      %p85 = scmp.eq.s32.totalorder %s17, 0
      %p86 = por %p84, %p85
      %p87 = scmp.ne.s32.totalorder %s79, %s81
      %p88 = scmp.eq.s32.totalorder %s22, 1
      %p89 = por %p87, %p88
      %p90 = scmp.ne.s32.totalorder %s81, %s82
      %p91 = scmp.eq.s32.totalorder %s22, 0
      %p92 = por %p90, %p91
      %p93 = scmp.ne.s32.totalorder %s81, %s82
      %p94 = scmp.eq.s32.totalorder %s23, 1
      %p95 = por %p93, %p94
      %p97 = scmp.ne.s32.totalorder %s82, %s96
      %p98 = scmp.eq.s32.totalorder %s23, 0
      %p99 = por %p97, %p98
      %s100 = sadd.s32 %s24, %s25
      %s101 = sadd.s32 %s36, %s32
      %s102 = ssub.s32 %s100, %s101
      %p103 = scmp.eq.s32.totalorder %s102, 0
      %s105 = sadd.s32 %s104, 1
      %s106 = scalar_select %p103, %s104, %s105
      %p109 = pneg %p103
      %p110 = scmp.eq.s32.totalorder %s17, 1
      %p111 = por %p109, %p110
      %p112 = scmp.ne.s32.totalorder %s104, %s107
      %p113 = scmp.eq.s32.totalorder %s17, 0
      %p114 = por %p112, %p113
      %p115 = scmp.ne.s32.totalorder %s104, %s107
      %p116 = scmp.eq.s32.totalorder %s22, 1
      %p117 = por %p115, %p116
      %p118 = scmp.ne.s32.totalorder %s107, %s108
      %p119 = scmp.eq.s32.totalorder %s22, 0
      %p120 = por %p118, %p119
      %p121 = scmp.ne.s32.totalorder %s107, %s108
      %p122 = scmp.eq.s32.totalorder %s23, 1
      %p123 = por %p121, %p122
      %p125 = scmp.ne.s32.totalorder %s108, %s124
      %p126 = scmp.eq.s32.totalorder %s23, 0
      %p127 = por %p125, %p126
      %s128 = sadd.s32 %s24, %s25
      %s129 = sadd.s32 %s36, %s32
      %s130 = ssub.s32 %s128, %s129
      %p131 = scmp.eq.s32.totalorder %s130, 0
      %s133 = sadd.s32 %s132, 1
      %s134 = scalar_select %p131, %s132, %s133
      %p137 = pneg %p131
      %p138 = scmp.eq.s32.totalorder %s17, 1
      %p139 = por %p137, %p138
      %p140 = scmp.ne.s32.totalorder %s132, %s135
      %p141 = scmp.eq.s32.totalorder %s17, 0
      %p142 = por %p140, %p141
      %p143 = scmp.ne.s32.totalorder %s132, %s135
      %p144 = scmp.eq.s32.totalorder %s22, 1
      %p145 = por %p143, %p144
      %p146 = scmp.ne.s32.totalorder %s135, %s136
      %p147 = scmp.eq.s32.totalorder %s22, 0
      %p148 = por %p146, %p147
      %p149 = scmp.ne.s32.totalorder %s135, %s136
      %p150 = scmp.eq.s32.totalorder %s23, 1
      %p151 = por %p149, %p150
      %p153 = scmp.ne.s32.totalorder %s136, %s152
      %p154 = scmp.eq.s32.totalorder %s23, 0
      %p155 = por %p153, %p154
      %s156 = sadd.s32 %s24, %s25
      %s157 = sadd.s32 %s36, %s32
      %s158 = ssub.s32 %s156, %s157
      %p159 = scmp.eq.s32.totalorder %s158, 0
      %s161 = sadd.s32 %s160, 1
      %s162 = scalar_select %p159, %s160, %s161
      %p165 = pneg %p159
      %p166 = scmp.eq.s32.totalorder %s17, 1
      %p167 = por %p165, %p166
      %p168 = scmp.ne.s32.totalorder %s160, %s163
      %p169 = scmp.eq.s32.totalorder %s17, 0
      %p170 = por %p168, %p169
      %p171 = scmp.ne.s32.totalorder %s160, %s163
      %p172 = scmp.eq.s32.totalorder %s22, 1
      %p173 = por %p171, %p172
      %p174 = scmp.ne.s32.totalorder %s163, %s164
      %p175 = scmp.eq.s32.totalorder %s22, 0
      %p176 = por %p174, %p175
      %p177 = scmp.ne.s32.totalorder %s163, %s164
      %p178 = scmp.eq.s32.totalorder %s23, 1
      %p179 = por %p177, %p178
      %p181 = scmp.ne.s32.totalorder %s164, %s180
      %p182 = scmp.eq.s32.totalorder %s23, 0
      %p183 = por %p181, %p182
      %s184 = ssub.s32 %s24, %s36
      %p185 = scmp.eq.s32.totalorder %s184, 0
      %s187 = sadd.s32 %s186, 1
      %s188 = scalar_select %p185, %s186, %s187
      %p191 = pneg %p185
      %p192 = scmp.eq.s32.totalorder %s17, 1
      %p193 = por %p191, %p192
      %p194 = scmp.ne.s32.totalorder %s186, %s189
      %p195 = scmp.eq.s32.totalorder %s17, 0
      %p196 = por %p194, %p195
      %p197 = scmp.ne.s32.totalorder %s186, %s189
      %p198 = scmp.eq.s32.totalorder %s22, 1
      %p199 = por %p197, %p198
      %p200 = scmp.ne.s32.totalorder %s189, %s190
      %p201 = scmp.eq.s32.totalorder %s22, 0
      %p202 = por %p200, %p201
      %p203 = scmp.ne.s32.totalorder %s189, %s190
      %p204 = scmp.eq.s32.totalorder %s23, 1
      %p205 = por %p203, %p204
      %p207 = scmp.ne.s32.totalorder %s190, %s206
      %p208 = scmp.eq.s32.totalorder %s23, 0
      %p209 = por %p207, %p208
      %p210 = scmp.le.s32.totalorder 1, %s17
      %p211 = scmp.lt.s32.totalorder %s17, 3
      %p212 = pnand %p210, %p211
      %p213 = pneg %p212
      // Predicated region
      $region9: #{tpu_custom_call.1} parent=5 // pred_check
        _
      $region10: #{tpu_custom_call.1} parent=5 // pred_check_branch
        %215 = sbr.rel (%p212) target = $region12
      $region11: #{tpu_custom_call.1} parent=5 // pred_region
        %s216 = ssub.s32 %s17, 1
        // Predicated region
        $region13: #{tpu_custom_call.1} parent=11 // pred_check
          %p217 = pneg %p50
        $region14: #{tpu_custom_call.1} parent=11 // pred_check_branch
          %219 = sbr.rel (%p217) target = $region16
        $region15: #{tpu_custom_call.1} parent=11 // pred_region
          %221 = vsyncadd [#allocation4], 0
          %s223 = sshll.u32 %s0, 4
          %s224 = int_to_ptr.hbm [resolvable:$true] %s223
          %s225 = sshll.u32 [#allocation3], 4
          %s226 = int_to_ptr.vmem [resolvable:$true] %s225
          %228 = dma.hbm_to_vmem [thread:$0]  %s224, 128, %s226, [#allocation4]
        $region16: #{tpu_custom_call.1} parent=11 // pred_fallthru
          _
        // Predicated region
        $region17: #{tpu_custom_call.1} parent=11 // pred_check
          %p229 = pneg %p71
        $region18: #{tpu_custom_call.1} parent=11 // pred_check_branch
          %231 = sbr.rel (%p229) target = $region20
        $region19: #{tpu_custom_call.1} parent=11 // pred_region
          %233 = vsyncadd [#allocation6], 0
          %s234 = sshll.u32 %s1, 4
          %s235 = int_to_ptr.hbm [resolvable:$true] %s234
          %s236 = sshll.u32 [#allocation5], 4
          %s237 = int_to_ptr.vmem [resolvable:$true] %s236
          %242 = dma.hbm_to_vmem [thread:$0]  %s235, 3072, %s237, [#allocation6], 1024, 1024, 64
        $region20: #{tpu_custom_call.1} parent=11 // pred_fallthru
          _
        // Predicated region
        $region21: #{tpu_custom_call.1} parent=11 // pred_check
          %p243 = pneg %p92
        $region22: #{tpu_custom_call.1} parent=11 // pred_check_branch
          %245 = sbr.rel (%p243) target = $region24
        $region23: #{tpu_custom_call.1} parent=11 // pred_region
          %247 = vsyncadd [#allocation6], 0
          %s249 = sshll.u32 %s2, 4
          %s250 = int_to_ptr.hbm [resolvable:$true] %s249
          %s251 = sshll.u32 [#allocation7], 4
          %s252 = int_to_ptr.vmem [resolvable:$true] %s251
          %254 = dma.hbm_to_vmem [thread:$0]  %s250, 256, %s252, [#allocation6]
        $region24: #{tpu_custom_call.1} parent=11 // pred_fallthru
          _
      $region12: #{tpu_custom_call.1} parent=5 // pred_fallthru
        _
      %p255 = scmp.lt.s32.totalorder %s17, 2
      // Predicated region
      $region25: #{tpu_custom_call.1} parent=5 // pred_check
        %p256 = pneg %p255
      $region26: #{tpu_custom_call.1} parent=5 // pred_check_branch
        %258 = sbr.rel (%p256) target = $region28
      $region27: #{tpu_custom_call.1} parent=5 // pred_region
        // Predicated region
        $region29: #{tpu_custom_call.1} parent=27 // pred_check
          %p259 = pneg %p114
        $region30: #{tpu_custom_call.1} parent=27 // pred_check_branch
          %261 = sbr.rel (%p259) target = $region32
        $region31: #{tpu_custom_call.1} parent=27 // pred_region
          %s262 = sand.u32 %s17, 1
          %s263 = scalar_lea.sflag [#allocation9], %s262
          %s264 = sand.u32 %s104, 1
          %s265 = smul.addr %s264, 8192
          %s266 = scalar_lea.vmem [#allocation8], %s265
          %s267 = sadd.s32 %s24, %s25
          %269 = vsyncadd %s263, 0
          %s270 = smul.addr %s267, 2048
          %s271 = smul.addr %s270, 4
          %s272 = scalar_lea.hbm %s3, %s271
          %s273 = sshll.u32 %s272, 4
          %s274 = int_to_ptr.hbm [resolvable:$true] %s273
          %s275 = sshll.u32 %s266, 4
          %s276 = int_to_ptr.vmem [resolvable:$true] %s275
          %281 = dma.hbm_to_vmem [thread:$0]  %s274, 131072, %s276, %s263, 512, 512, 32
        $region32: #{tpu_custom_call.1} parent=27 // pred_fallthru
          _
        // Predicated region
        $region33: #{tpu_custom_call.1} parent=27 // pred_check
          %p282 = pneg %p142
        $region34: #{tpu_custom_call.1} parent=27 // pred_check_branch
          %284 = sbr.rel (%p282) target = $region36
        $region35: #{tpu_custom_call.1} parent=27 // pred_region
          %s285 = sand.u32 %s17, 1
          %s286 = scalar_lea.sflag [#allocation9], %s285
          %s287 = sand.u32 %s132, 1
          %s288 = smul.addr %s287, 8
          %s289 = scalar_lea.vmem [#allocation10], %s288
          %s290 = sadd.s32 %s24, %s25
          %s291 = smul.u32 8, %s290
          %293 = vsyncadd %s286, 0
          %s294 = scalar_lea.hbm %s4, %s291
          %s296 = sshll.u32 %s294, 4
          %s297 = int_to_ptr.hbm [resolvable:$true] %s296
          %s298 = sshll.u32 %s289, 4
          %s299 = int_to_ptr.vmem [resolvable:$true] %s298
          %301 = dma.hbm_to_vmem [thread:$0]  %s297, 128, %s299, %s286
        $region36: #{tpu_custom_call.1} parent=27 // pred_fallthru
          _
        // Predicated region
        $region37: #{tpu_custom_call.1} parent=27 // pred_check
          %p302 = pneg %p170
        $region38: #{tpu_custom_call.1} parent=27 // pred_check_branch
          %304 = sbr.rel (%p302) target = $region40
        $region39: #{tpu_custom_call.1} parent=27 // pred_region
          %s305 = sadd.s32 %s24, %s25
          %s306 = smul.u32 128, %s305
          %p307 = scmp.lt.s32.totalorder %s306, 255
          %s308 = scalar_select %p307, %s306, 255
          %s309 = smul.addr %s308, 4
          %s310 = scalar_lea.vmem %s5, %s309
          %s311 = sadd.s32 %s24, %s25
          %s312 = smul.u32 128, %s311
        $region40: #{tpu_custom_call.1} parent=27 // pred_fallthru
          _
      $region28: #{tpu_custom_call.1} parent=5 // pred_fallthru
        _
      %p313 = scmp.le.s32.totalorder 1, %s17
      %p314 = scmp.lt.s32.totalorder %s17, 3
      %p315 = pnand %p313, %p314
      %p316 = pneg %p315
      // Predicated region
      $region41: #{tpu_custom_call.1} parent=5 // pred_check
        _
      $region42: #{tpu_custom_call.1} parent=5 // pred_check_branch
        %318 = sbr.rel (%p315) target = $region44
      $region43: #{tpu_custom_call.1} parent=5 // pred_region
        %s319 = ssub.s32 %s17, 1
        // Predicated region
        $region45: #{tpu_custom_call.1} parent=43 // pred_check
          %p320 = pneg %p50
        $region46: #{tpu_custom_call.1} parent=43 // pred_check_branch
          %322 = sbr.rel (%p320) target = $region48
        $region47: #{tpu_custom_call.1} parent=43 // pred_region
          %324 = dma.done [#allocation4], 128
        $region48: #{tpu_custom_call.1} parent=43 // pred_fallthru
          _
        // Predicated region
        $region49: #{tpu_custom_call.1} parent=43 // pred_check
          %p325 = pneg %p71
        $region50: #{tpu_custom_call.1} parent=43 // pred_check_branch
          %327 = sbr.rel (%p325) target = $region52
        $region51: #{tpu_custom_call.1} parent=43 // pred_region
          %329 = dma.done [#allocation6], 3072
        $region52: #{tpu_custom_call.1} parent=43 // pred_fallthru
          _
        // Predicated region
        $region53: #{tpu_custom_call.1} parent=43 // pred_check
          %p330 = pneg %p92
        $region54: #{tpu_custom_call.1} parent=43 // pred_check_branch
          %332 = sbr.rel (%p330) target = $region56
        $region55: #{tpu_custom_call.1} parent=43 // pred_region
          %334 = dma.done [#allocation6], 256
        $region56: #{tpu_custom_call.1} parent=43 // pred_fallthru
          _
        %s335 = sand.u32 %s22, 1
        %s336 = scalar_lea.sflag [#allocation9], %s335
        %s337 = sand.u32 %s107, 1
        %s338 = smul.addr %s337, 8192
        %s339 = scalar_lea.vmem [#allocation8], %s338
        // Predicated region
        $region57: #{tpu_custom_call.1} parent=43 // pred_check
          %p340 = pneg %p120
        $region58: #{tpu_custom_call.1} parent=43 // pred_check_branch
          %342 = sbr.rel (%p340) target = $region60
        $region59: #{tpu_custom_call.1} parent=43 // pred_region
          %344 = dma.done %s336, 131072
        $region60: #{tpu_custom_call.1} parent=43 // pred_fallthru
          _
        %s345 = sand.u32 %s22, 1
        %s346 = scalar_lea.sflag [#allocation9], %s345
        %s347 = sand.u32 %s135, 1
        %s348 = smul.addr %s347, 8
        %s349 = scalar_lea.vmem [#allocation10], %s348
        // Predicated region
        $region61: #{tpu_custom_call.1} parent=43 // pred_check
          %p350 = pneg %p148
        $region62: #{tpu_custom_call.1} parent=43 // pred_check_branch
          %352 = sbr.rel (%p350) target = $region64
        $region63: #{tpu_custom_call.1} parent=43 // pred_region
          %354 = dma.done %s346, 128
        $region64: #{tpu_custom_call.1} parent=43 // pred_fallthru
          _
        %p355 = pneg %p50
        %p356 = pneg %p47
        %p357 = pneg %p71
        %p358 = pneg %p68
        %p359 = pneg %p92
        %p360 = pneg %p89
        %s361 = sand.u32 %s22, 1
        %s362 = scalar_lea.sflag [#allocation9], %s361
        %s363 = sand.u32 %s107, 1
        %s364 = smul.addr %s363, 8192
        %s365 = scalar_lea.vmem [#allocation8], %s364
        %p366 = pneg %p120
        %p367 = pneg %p117
        %s368 = sand.u32 %s22, 1
        %s369 = scalar_lea.sflag [#allocation9], %s368
        %s370 = sand.u32 %s135, 1
        %s371 = smul.addr %s370, 8
        %s372 = scalar_lea.vmem [#allocation10], %s371
        %p373 = pneg %p148
        %p374 = pneg %p145
        %s375 = sadd.s32 %s26, %s27
        %s376 = smul.u32 128, %s375
        %p377 = scmp.lt.s32.totalorder %s376, 255
        %s378 = scalar_select %p377, %s376, 255
        %s379 = smul.addr %s378, 4
        %s380 = scalar_lea.vmem %s5, %s379
        %p381 = pneg %p176
        %p382 = pneg %p173
        %p383 = pneg %p202
        %p384 = pneg %p199
        %p385 = scmp.lt.s32.totalorder %s26, 1
        %s386 = scalar_select %p385, %s26, 1
        %s387 = smul.addr %s386, 8
        %s388 = scalar_lea.vmem %s6, %s387
        %s389 = sadd.s32 %s26, %s27
        %s390 = sadd.s32 %s26, %s27
        %s391 = smul.u32 8, %s390
        %s392 = sadd.s32 %s26, %s27
        %s393 = smul.u32 128, %s392
        %p394 = scmp.lt.s32.totalorder %s393, 255
        %s395 = scalar_select %p394, %s393, 255
        %s396 = smul.addr %s395, 4
        %s397 = scalar_lea.vmem %s5, %s396
        %s398 = sadd.s32 %s26, %s27
        %s399 = smul.u32 128, %s398
        %p400 = scmp.lt.s32.totalorder %s26, 1
        %s401 = scalar_select %p400, %s26, 1
        %s402 = smul.addr %s401, 8
        %s403 = scalar_lea.vmem %s6, %s402
        %p405 = scmp.eq.s32.totalorder %s27, 0
        // Predicated region
        $region65: #{tpu_custom_call.1} parent=43 // pred_check
          %p406 = pneg %p405
        $region66: #{tpu_custom_call.1} parent=43 // pred_check_branch
          %408 = sbr.rel (%p406) target = $region68
        $region67: #{tpu_custom_call.1} parent=43 // pred_region
          %v409 = vld [vmem:[#allocation3] sm:$0xff]
          %v410 = vpack.c.bf16 %v409, %v409
          %v411 = vld [vmem:[#allocation5] sm:$0xff]
          %v412 = vld [vmem:[#allocation5 + $0x8] sm:$0xff]
          %v413 = vld [vmem:[#allocation5 + $0x10] sm:$0xff]
          %v414 = vld [vmem:[#allocation5 + $0x18] sm:$0xff]
          %v415 = vld [vmem:[#allocation5 + $0x20] sm:$0xff]
          %v416 = vld [vmem:[#allocation5 + $0x28] sm:$0xff]
          %v417 = vld [vmem:[#allocation5 + $0x30] sm:$0xff]
          %v418 = vld [vmem:[#allocation5 + $0x38] sm:$0xff]
          %v419 = vld [vmem:[#allocation5 + $0x40] sm:$0xff]
          %v420 = vld [vmem:[#allocation5 + $0x48] sm:$0xff]
          %v421 = vld [vmem:[#allocation5 + $0x50] sm:$0xff]
          %v422 = vld [vmem:[#allocation5 + $0x58] sm:$0xff]
          %v423 = vld [vmem:[#allocation5 + $0x60] sm:$0xff]
          %v424 = vld [vmem:[#allocation5 + $0x68] sm:$0xff]
          %v425 = vld [vmem:[#allocation5 + $0x70] sm:$0xff]
          %v426 = vld [vmem:[#allocation5 + $0x78] sm:$0xff]
          %v427 = vld [vmem:[#allocation5 + $0x80] sm:$0x33]
          %v428 = vld [vmem:[#allocation5 + $0x88] sm:$0x33]
          %v429 = vld [vmem:[#allocation5 + $0x90] sm:$0x33]
          %v430 = vld [vmem:[#allocation5 + $0x98] sm:$0x33]
          %v431 = vld [vmem:[#allocation5 + $0xa0] sm:$0x33]
          %v432 = vld [vmem:[#allocation5 + $0xa8] sm:$0x33]
          %v433 = vld [vmem:[#allocation5 + $0xb0] sm:$0x33]
          %v434 = vld [vmem:[#allocation5 + $0xb8] sm:$0x33]
          %v435 = vld [vmem:[#allocation7] sm:$0xff]
          %v436 = vld [vmem:[#allocation7 + $0x8] sm:$0xff]
          %v439 = vperm.slane %v435, 0
          %v440 = vperm.slane %v435, 1
          %v441 = vperm.slane %v435, 2
          %v442 = vperm.slane %v435, 3
          %v443 = vperm.slane %v435, 4
          %v444 = vperm.slane %v435, 5
          %v445 = vperm.slane %v435, 6
          %v446 = vperm.slane %v435, 7
          %v447 = vperm.slane %v436, 0
          %v448 = vperm.slane %v436, 1
          %v449 = vperm.slane %v436, 2
          %v450 = vperm.slane %v436, 3
          %v451 = vperm.slane %v436, 4
          %v452 = vperm.slane %v436, 5
          %v453 = vperm.slane %v436, 6
          %v454 = vperm.slane %v436, 7
          %v495 = vunpack.c.l.b16 %v411
          %v496 = vunpack.c.h.b16 %v411
          %v497 = vunpack.c.l.b16 %v412
          %v498 = vunpack.c.h.b16 %v412
          %v499 = vunpack.c.l.b16 %v413
          %v500 = vunpack.c.h.b16 %v413
          %v501 = vunpack.c.l.b16 %v414
          %v502 = vunpack.c.h.b16 %v414
          %v503 = vunpack.c.l.b16 %v415
          %v504 = vunpack.c.h.b16 %v415
          %v505 = vunpack.c.l.b16 %v416
          %v506 = vunpack.c.h.b16 %v416
          %v507 = vunpack.c.l.b16 %v417
          %v508 = vunpack.c.h.b16 %v417
          %v509 = vunpack.c.l.b16 %v418
          %v510 = vunpack.c.h.b16 %v418
          %v511 = vunpack.c.l.b16 %v419
          %v512 = vunpack.c.h.b16 %v419
          %v513 = vunpack.c.l.b16 %v420
          %v514 = vunpack.c.h.b16 %v420
          %v515 = vunpack.c.l.b16 %v421
          %v516 = vunpack.c.h.b16 %v421
          %v517 = vunpack.c.l.b16 %v422
          %v518 = vunpack.c.h.b16 %v422
          %v519 = vunpack.c.l.b16 %v423
          %v520 = vunpack.c.h.b16 %v423
          %v521 = vunpack.c.l.b16 %v424
          %v522 = vunpack.c.h.b16 %v424
          %v523 = vunpack.c.l.b16 %v425
          %v524 = vunpack.c.h.b16 %v425
          %v525 = vunpack.c.l.b16 %v426
          %v526 = vunpack.c.h.b16 %v426
          %v527 = vunpack.c.l.b16 %v427
          %v528 = vunpack.c.h.b16 %v427
          %v529 = vunpack.c.l.b16 %v428
          %v530 = vunpack.c.h.b16 %v428
          %v531 = vunpack.c.l.b16 %v429
          %v532 = vunpack.c.h.b16 %v429
          %v533 = vunpack.c.l.b16 %v430
          %v534 = vunpack.c.h.b16 %v430
          %v535 = vunpack.c.l.b16 %v431
          %v536 = vunpack.c.h.b16 %v431
          %v537 = vunpack.c.l.b16 %v432
          %v538 = vunpack.c.h.b16 %v432
          %v539 = vunpack.c.l.b16 %v433
          %v540 = vunpack.c.h.b16 %v433
          %v541 = vunpack.c.l.b16 %v434
          %v542 = vunpack.c.h.b16 %v434
          %v543 = vpack.c.b16 %v511, %v495
          %v544 = vpack.c.b16 %v512, %v496
          %v545 = vpack.c.b16 %v513, %v497
          %v546 = vpack.c.b16 %v514, %v498
          %v547 = vpack.c.b16 %v515, %v499
          %v548 = vpack.c.b16 %v516, %v500
          %v549 = vpack.c.b16 %v517, %v501
          %v550 = vpack.c.b16 %v518, %v502
          %v551 = vpack.c.b16 %v519, %v503
          %v552 = vpack.c.b16 %v520, %v504
          %v553 = vpack.c.b16 %v521, %v505
          %v554 = vpack.c.b16 %v522, %v506
          %v555 = vpack.c.b16 %v523, %v507
          %v556 = vpack.c.b16 %v524, %v508
          %v557 = vpack.c.b16 %v525, %v509
          %v558 = vpack.c.b16 %v526, %v510
          %v559 = vpack.c.b16 %v527, %v527
          %v560 = vpack.c.b16 %v528, %v528
          %v561 = vpack.c.b16 %v529, %v529
          %v562 = vpack.c.b16 %v530, %v530
          %v563 = vpack.c.b16 %v531, %v531
          %v564 = vpack.c.b16 %v532, %v532
          %v565 = vpack.c.b16 %v533, %v533
          %v566 = vpack.c.b16 %v534, %v534
          %v567 = vpack.c.b16 %v535, %v535
          %v568 = vpack.c.b16 %v536, %v536
          %v569 = vpack.c.b16 %v537, %v537
          %v570 = vpack.c.b16 %v538, %v538
          %v571 = vpack.c.b16 %v539, %v539
          %v572 = vpack.c.b16 %v540, %v540
          %v573 = vpack.c.b16 %v541, %v541
          %v574 = vpack.c.b16 %v542, %v542
          %vm591 = vcmask 162816
          %v593 = vsel %vm591, %v410, 0
          %vm595 = vcmask 1041408
          %v597 = vsel %vm595, %v559, 0
          %v600 = vsel %vm595, %v560, 0
          %v603 = vsel %vm595, %v561, 0
          %v606 = vsel %vm595, %v562, 0
          %v609 = vsel %vm595, %v563, 0
          %v612 = vsel %vm595, %v564, 0
          %v615 = vsel %vm595, %v565, 0
          %v618 = vsel %vm595, %v566, 0
          %v621 = vsel %vm595, %v567, 0
          %v624 = vsel %vm595, %v568, 0
          %v627 = vsel %vm595, %v569, 0
          %v630 = vsel %vm595, %v570, 0
          %v633 = vsel %vm595, %v571, 0
          %v636 = vsel %vm595, %v572, 0
          %v639 = vsel %vm595, %v573, 0
          %v642 = vsel %vm595, %v574, 0
          %644 = vmatpush.bf16.msra.mxu0 0
          %645 = vmatpush.bf16.msra.mxu0 0
          %646 = vmatpush.bf16.msra.mxu0 0
          %647 = vmatpush.bf16.msra.mxu0 0
          %648 = vmatpush.bf16.msra.mxu0 0
          %649 = vmatpush.bf16.msra.mxu0 0
          %650 = vmatpush.bf16.msra.mxu0 %v597
          %651 = vmatpush.bf16.msra.mxu0 %v543
          %652 = vmatmul.bf16.gmra.mxu0 %v593
          %v653 = vpop.f32.mrf.mxu0
          %v654 = vadd.f32 %v439, %v653
          %v655 = vpop.f32.mrf.mxu0
          %656 = vdwg.mxu0
          %657 = vmatpush.bf16.msra.mxu0 0
          %658 = vmatpush.bf16.msra.mxu0 0
          %659 = vmatpush.bf16.msra.mxu0 0
          %660 = vmatpush.bf16.msra.mxu0 0
          %661 = vmatpush.bf16.msra.mxu0 0
          %662 = vmatpush.bf16.msra.mxu0 0
          %663 = vmatpush.bf16.msra.mxu0 %v600
          %664 = vmatpush.bf16.msra.mxu0 %v544
          %665 = vmatmul.bf16.gmra.mxu0 %v593
          %v666 = vpop.f32.mrf.mxu0
          %v667 = vadd.f32 %v440, %v666
          %v668 = vpop.f32.mrf.mxu0
          %669 = vdwg.mxu0
          %670 = vmatpush.bf16.msra.mxu0 0
          %671 = vmatpush.bf16.msra.mxu0 0
          %672 = vmatpush.bf16.msra.mxu0 0
          %673 = vmatpush.bf16.msra.mxu0 0
          %674 = vmatpush.bf16.msra.mxu0 0
          %675 = vmatpush.bf16.msra.mxu0 0
          %676 = vmatpush.bf16.msra.mxu0 %v603
          %677 = vmatpush.bf16.msra.mxu0 %v545
          %678 = vmatmul.bf16.gmra.mxu0 %v593
          %v679 = vpop.f32.mrf.mxu0
          %v680 = vadd.f32 %v441, %v679
          %v681 = vpop.f32.mrf.mxu0
          %682 = vdwg.mxu0
          %683 = vmatpush.bf16.msra.mxu0 0
          %684 = vmatpush.bf16.msra.mxu0 0
          %685 = vmatpush.bf16.msra.mxu0 0
          %686 = vmatpush.bf16.msra.mxu0 0
          %687 = vmatpush.bf16.msra.mxu0 0
          %688 = vmatpush.bf16.msra.mxu0 0
          %689 = vmatpush.bf16.msra.mxu0 %v606
          %690 = vmatpush.bf16.msra.mxu0 %v546
          %691 = vmatmul.bf16.gmra.mxu0 %v593
          %v692 = vpop.f32.mrf.mxu0
          %v693 = vadd.f32 %v442, %v692
          %v694 = vpop.f32.mrf.mxu0
          %695 = vdwg.mxu0
          %696 = vmatpush.bf16.msra.mxu0 0
          %697 = vmatpush.bf16.msra.mxu0 0
          %698 = vmatpush.bf16.msra.mxu0 0
          %699 = vmatpush.bf16.msra.mxu0 0
          %700 = vmatpush.bf16.msra.mxu0 0
          %701 = vmatpush.bf16.msra.mxu0 0
          %702 = vmatpush.bf16.msra.mxu0 %v609
          %703 = vmatpush.bf16.msra.mxu0 %v547
          %704 = vmatmul.bf16.gmra.mxu0 %v593
          %v705 = vpop.f32.mrf.mxu0
          %v706 = vadd.f32 %v443, %v705
          %v707 = vpop.f32.mrf.mxu0
          %708 = vdwg.mxu0
          %709 = vmatpush.bf16.msra.mxu0 0
          %710 = vmatpush.bf16.msra.mxu0 0
          %711 = vmatpush.bf16.msra.mxu0 0
          %712 = vmatpush.bf16.msra.mxu0 0
          %713 = vmatpush.bf16.msra.mxu0 0
          %714 = vmatpush.bf16.msra.mxu0 0
          %715 = vmatpush.bf16.msra.mxu0 %v612
          %716 = vmatpush.bf16.msra.mxu0 %v548
          %717 = vmatmul.bf16.gmra.mxu0 %v593
          %v718 = vpop.f32.mrf.mxu0
          %v719 = vadd.f32 %v444, %v718
          %v720 = vpop.f32.mrf.mxu0
          %721 = vdwg.mxu0
          %722 = vmatpush.bf16.msra.mxu0 0
          %723 = vmatpush.bf16.msra.mxu0 0
          %724 = vmatpush.bf16.msra.mxu0 0
          %725 = vmatpush.bf16.msra.mxu0 0
          %726 = vmatpush.bf16.msra.mxu0 0
          %727 = vmatpush.bf16.msra.mxu0 0
          %728 = vmatpush.bf16.msra.mxu0 %v615
          %729 = vmatpush.bf16.msra.mxu0 %v549
          %730 = vmatmul.bf16.gmra.mxu0 %v593
          %v731 = vpop.f32.mrf.mxu0
          %v732 = vadd.f32 %v445, %v731
          %v733 = vpop.f32.mrf.mxu0
          %734 = vdwg.mxu0
          %735 = vmatpush.bf16.msra.mxu0 0
          %736 = vmatpush.bf16.msra.mxu0 0
          %737 = vmatpush.bf16.msra.mxu0 0
          %738 = vmatpush.bf16.msra.mxu0 0
          %739 = vmatpush.bf16.msra.mxu0 0
          %740 = vmatpush.bf16.msra.mxu0 0
          %741 = vmatpush.bf16.msra.mxu0 %v618
          %742 = vmatpush.bf16.msra.mxu0 %v550
          %743 = vmatmul.bf16.gmra.mxu0 %v593
          %v744 = vpop.f32.mrf.mxu0
          %v745 = vadd.f32 %v446, %v744
          %v746 = vpop.f32.mrf.mxu0
          %747 = vdwg.mxu0
          %748 = vmatpush.bf16.msra.mxu0 0
          %749 = vmatpush.bf16.msra.mxu0 0
          %750 = vmatpush.bf16.msra.mxu0 0
          %751 = vmatpush.bf16.msra.mxu0 0
          %752 = vmatpush.bf16.msra.mxu0 0
          %753 = vmatpush.bf16.msra.mxu0 0
          %754 = vmatpush.bf16.msra.mxu0 %v621
          %755 = vmatpush.bf16.msra.mxu0 %v551
          %756 = vmatmul.bf16.gmra.mxu0 %v593
          %v757 = vpop.f32.mrf.mxu0
          %v758 = vadd.f32 %v447, %v757
          %v759 = vpop.f32.mrf.mxu0
          %760 = vdwg.mxu0
          %761 = vmatpush.bf16.msra.mxu0 0
          %762 = vmatpush.bf16.msra.mxu0 0
          %763 = vmatpush.bf16.msra.mxu0 0
          %764 = vmatpush.bf16.msra.mxu0 0
          %765 = vmatpush.bf16.msra.mxu0 0
          %766 = vmatpush.bf16.msra.mxu0 0
          %767 = vmatpush.bf16.msra.mxu0 %v624
          %768 = vmatpush.bf16.msra.mxu0 %v552
          %769 = vmatmul.bf16.gmra.mxu0 %v593
          %v770 = vpop.f32.mrf.mxu0
          %v771 = vadd.f32 %v448, %v770
          %v772 = vpop.f32.mrf.mxu0
          %773 = vdwg.mxu0
          %774 = vmatpush.bf16.msra.mxu0 0
          %775 = vmatpush.bf16.msra.mxu0 0
          %776 = vmatpush.bf16.msra.mxu0 0
          %777 = vmatpush.bf16.msra.mxu0 0
          %778 = vmatpush.bf16.msra.mxu0 0
          %779 = vmatpush.bf16.msra.mxu0 0
          %780 = vmatpush.bf16.msra.mxu0 %v627
          %781 = vmatpush.bf16.msra.mxu0 %v553
          %782 = vmatmul.bf16.gmra.mxu0 %v593
          %v783 = vpop.f32.mrf.mxu0
          %v784 = vadd.f32 %v449, %v783
          %v785 = vpop.f32.mrf.mxu0
          %786 = vdwg.mxu0
          %787 = vmatpush.bf16.msra.mxu0 0
          %788 = vmatpush.bf16.msra.mxu0 0
          %789 = vmatpush.bf16.msra.mxu0 0
          %790 = vmatpush.bf16.msra.mxu0 0
          %791 = vmatpush.bf16.msra.mxu0 0
          %792 = vmatpush.bf16.msra.mxu0 0
          %793 = vmatpush.bf16.msra.mxu0 %v630
          %794 = vmatpush.bf16.msra.mxu0 %v554
          %795 = vmatmul.bf16.gmra.mxu0 %v593
          %v796 = vpop.f32.mrf.mxu0
          %v797 = vadd.f32 %v450, %v796
          %v798 = vpop.f32.mrf.mxu0
          %799 = vdwg.mxu0
          %800 = vmatpush.bf16.msra.mxu0 0
          %801 = vmatpush.bf16.msra.mxu0 0
          %802 = vmatpush.bf16.msra.mxu0 0
          %803 = vmatpush.bf16.msra.mxu0 0
          %804 = vmatpush.bf16.msra.mxu0 0
          %805 = vmatpush.bf16.msra.mxu0 0
          %806 = vmatpush.bf16.msra.mxu0 %v633
          %807 = vmatpush.bf16.msra.mxu0 %v555
          %808 = vmatmul.bf16.gmra.mxu0 %v593
          %v809 = vpop.f32.mrf.mxu0
          %v810 = vadd.f32 %v451, %v809
          %v811 = vpop.f32.mrf.mxu0
          %812 = vdwg.mxu0
          %813 = vmatpush.bf16.msra.mxu0 0
          %814 = vmatpush.bf16.msra.mxu0 0
          %815 = vmatpush.bf16.msra.mxu0 0
          %816 = vmatpush.bf16.msra.mxu0 0
          %817 = vmatpush.bf16.msra.mxu0 0
          %818 = vmatpush.bf16.msra.mxu0 0
          %819 = vmatpush.bf16.msra.mxu0 %v636
          %820 = vmatpush.bf16.msra.mxu0 %v556
          %821 = vmatmul.bf16.gmra.mxu0 %v593
          %v822 = vpop.f32.mrf.mxu0
          %v823 = vadd.f32 %v452, %v822
          %v824 = vpop.f32.mrf.mxu0
          %825 = vdwg.mxu0
          %826 = vmatpush.bf16.msra.mxu0 0
          %827 = vmatpush.bf16.msra.mxu0 0
          %828 = vmatpush.bf16.msra.mxu0 0
          %829 = vmatpush.bf16.msra.mxu0 0
          %830 = vmatpush.bf16.msra.mxu0 0
          %831 = vmatpush.bf16.msra.mxu0 0
          %832 = vmatpush.bf16.msra.mxu0 %v639
          %833 = vmatpush.bf16.msra.mxu0 %v557
          %834 = vmatmul.bf16.gmra.mxu0 %v593
          %v835 = vpop.f32.mrf.mxu0
          %v836 = vadd.f32 %v453, %v835
          %v837 = vpop.f32.mrf.mxu0
          %838 = vdwg.mxu0
          %839 = vmatpush.bf16.msra.mxu0 0
          %840 = vmatpush.bf16.msra.mxu0 0
          %841 = vmatpush.bf16.msra.mxu0 0
          %842 = vmatpush.bf16.msra.mxu0 0
          %843 = vmatpush.bf16.msra.mxu0 0
          %844 = vmatpush.bf16.msra.mxu0 0
          %845 = vmatpush.bf16.msra.mxu0 %v642
          %846 = vmatpush.bf16.msra.mxu0 %v558
          %847 = vmatmul.bf16.gmra.mxu0 %v593
          %v848 = vpop.f32.mrf.mxu0
          %v849 = vadd.f32 %v454, %v848
          %v850 = vpop.f32.mrf.mxu0
          %851 = vdwg.mxu0
          %v852 = vpack.c.bf16 %v667, %v654
          %v853 = vpack.c.bf16 %v693, %v680
          %v854 = vpack.c.bf16 %v719, %v706
          %v855 = vpack.c.bf16 %v745, %v732
          %v856 = vpack.c.bf16 %v771, %v758
          %v857 = vpack.c.bf16 %v797, %v784
          %v858 = vpack.c.bf16 %v823, %v810
          %v859 = vpack.c.bf16 %v849, %v836
          %860 = vst [vmem:[#allocation2] sm:$0xff] %v852
          %861 = vst [vmem:[#allocation2 + $0x8] sm:$0xff] %v853
          %862 = vst [vmem:[#allocation2 + $0x10] sm:$0xff] %v854
          %863 = vst [vmem:[#allocation2 + $0x18] sm:$0xff] %v855
          %864 = vst [vmem:[#allocation2 + $0x20] sm:$0xff] %v856
          %865 = vst [vmem:[#allocation2 + $0x28] sm:$0xff] %v857
          %866 = vst [vmem:[#allocation2 + $0x30] sm:$0xff] %v858
          %867 = vst [vmem:[#allocation2 + $0x38] sm:$0xff] %v859
          %vm868 = vcmask 31744
          %869 = vst.msk [vmem:[%s403] sm:$0xff] %vm868, 0.0
        $region68: #{tpu_custom_call.1} parent=43 // pred_fallthru
          _
        %v870 = vld [vmem:[#allocation2] sm:$0xff]
        %v871 = vld [vmem:[#allocation2 + $0x8] sm:$0xff]
        %v872 = vld [vmem:[#allocation2 + $0x10] sm:$0xff]
        %v873 = vld [vmem:[#allocation2 + $0x18] sm:$0xff]
        %v874 = vld [vmem:[#allocation2 + $0x20] sm:$0xff]
        %v875 = vld [vmem:[#allocation2 + $0x28] sm:$0xff]
        %v876 = vld [vmem:[#allocation2 + $0x30] sm:$0xff]
        %v877 = vld [vmem:[#allocation2 + $0x38] sm:$0xff]
        %v878 = vld [vmem:[%s339] sm:$0xff]
        %v879 = vld [vmem:[%s339 + $0x8] sm:$0xff]
        %v880 = vld [vmem:[%s339 + $0x10] sm:$0xff]
        %v881 = vld [vmem:[%s339 + $0x18] sm:$0xff]
        %v882 = vld [vmem:[%s339 + $0x20] sm:$0xff]
        %v883 = vld [vmem:[%s339 + $0x28] sm:$0xff]
        %v884 = vld [vmem:[%s339 + $0x30] sm:$0xff]
        %v885 = vld [vmem:[%s339 + $0x38] sm:$0xff]
        %v886 = vld [vmem:[%s339 + $0x40] sm:$0xff]
        %v887 = vld [vmem:[%s339 + $0x48] sm:$0xff]
        %v888 = vld [vmem:[%s339 + $0x50] sm:$0xff]
        %v889 = vld [vmem:[%s339 + $0x58] sm:$0xff]
        %v890 = vld [vmem:[%s339 + $0x60] sm:$0xff]
        %v891 = vld [vmem:[%s339 + $0x68] sm:$0xff]
        %v892 = vld [vmem:[%s339 + $0x70] sm:$0xff]
        %v893 = vld [vmem:[%s339 + $0x78] sm:$0xff]
        %v894 = vld [vmem:[%s339 + $0x80] sm:$0xff]
        %v895 = vld [vmem:[%s339 + $0x88] sm:$0xff]
        %v896 = vld [vmem:[%s339 + $0x90] sm:$0xff]
        %v897 = vld [vmem:[%s339 + $0x98] sm:$0xff]
        %v898 = vld [vmem:[%s339 + $0xa0] sm:$0xff]
        %v899 = vld [vmem:[%s339 + $0xa8] sm:$0xff]
        %v900 = vld [vmem:[%s339 + $0xb0] sm:$0xff]
        %v901 = vld [vmem:[%s339 + $0xb8] sm:$0xff]
        %v902 = vld [vmem:[%s339 + $0xc0] sm:$0xff]
        %v903 = vld [vmem:[%s339 + $0xc8] sm:$0xff]
        %v904 = vld [vmem:[%s339 + $0xd0] sm:$0xff]
        %v905 = vld [vmem:[%s339 + $0xd8] sm:$0xff]
        %v906 = vld [vmem:[%s339 + $0xe0] sm:$0xff]
        %v907 = vld [vmem:[%s339 + $0xe8] sm:$0xff]
        %v908 = vld [vmem:[%s339 + $0xf0] sm:$0xff]
        %v909 = vld [vmem:[%s339 + $0xf8] sm:$0xff]
        %v910 = vld [vmem:[%s339 + $0x100] sm:$0xff]
        %v911 = vld [vmem:[%s339 + $0x108] sm:$0xff]
        %v912 = vld [vmem:[%s339 + $0x110] sm:$0xff]
        %v913 = vld [vmem:[%s339 + $0x118] sm:$0xff]
        %v914 = vld [vmem:[%s339 + $0x120] sm:$0xff]
        %v915 = vld [vmem:[%s339 + $0x128] sm:$0xff]
        %v916 = vld [vmem:[%s339 + $0x130] sm:$0xff]
        %v917 = vld [vmem:[%s339 + $0x138] sm:$0xff]
        %v918 = vld [vmem:[%s339 + $0x140] sm:$0xff]
        %v919 = vld [vmem:[%s339 + $0x148] sm:$0xff]
        %v920 = vld [vmem:[%s339 + $0x150] sm:$0xff]
        %v921 = vld [vmem:[%s339 + $0x158] sm:$0xff]
        %v922 = vld [vmem:[%s339 + $0x160] sm:$0xff]
        %v923 = vld [vmem:[%s339 + $0x168] sm:$0xff]
        %v924 = vld [vmem:[%s339 + $0x170] sm:$0xff]
        %v925 = vld [vmem:[%s339 + $0x178] sm:$0xff]
        %v926 = vld [vmem:[%s339 + $0x180] sm:$0xff]
        %v927 = vld [vmem:[%s339 + $0x188] sm:$0xff]
        %v928 = vld [vmem:[%s339 + $0x190] sm:$0xff]
        %v929 = vld [vmem:[%s339 + $0x198] sm:$0xff]
        %v930 = vld [vmem:[%s339 + $0x1a0] sm:$0xff]
        %v931 = vld [vmem:[%s339 + $0x1a8] sm:$0xff]
        %v932 = vld [vmem:[%s339 + $0x1b0] sm:$0xff]
        %v933 = vld [vmem:[%s339 + $0x1b8] sm:$0xff]
        %v934 = vld [vmem:[%s339 + $0x1c0] sm:$0xff]
        %v935 = vld [vmem:[%s339 + $0x1c8] sm:$0xff]
        %v936 = vld [vmem:[%s339 + $0x1d0] sm:$0xff]
        %v937 = vld [vmem:[%s339 + $0x1d8] sm:$0xff]
        %v938 = vld [vmem:[%s339 + $0x1e0] sm:$0xff]
        %v939 = vld [vmem:[%s339 + $0x1e8] sm:$0xff]
        %v940 = vld [vmem:[%s339 + $0x1f0] sm:$0xff]
        %v941 = vld [vmem:[%s339 + $0x1f8] sm:$0xff]
        %v942 = vld [vmem:[%s339 + $0x200] sm:$0xff]
        %v943 = vld [vmem:[%s339 + $0x208] sm:$0xff]
        %v944 = vld [vmem:[%s339 + $0x210] sm:$0xff]
        %v945 = vld [vmem:[%s339 + $0x218] sm:$0xff]
        %v946 = vld [vmem:[%s339 + $0x220] sm:$0xff]
        %v947 = vld [vmem:[%s339 + $0x228] sm:$0xff]
        %v948 = vld [vmem:[%s339 + $0x230] sm:$0xff]
        %v949 = vld [vmem:[%s339 + $0x238] sm:$0xff]
        %v950 = vld [vmem:[%s339 + $0x240] sm:$0xff]
        %v951 = vld [vmem:[%s339 + $0x248] sm:$0xff]
        %v952 = vld [vmem:[%s339 + $0x250] sm:$0xff]
        %v953 = vld [vmem:[%s339 + $0x258] sm:$0xff]
        %v954 = vld [vmem:[%s339 + $0x260] sm:$0xff]
        %v955 = vld [vmem:[%s339 + $0x268] sm:$0xff]
        %v956 = vld [vmem:[%s339 + $0x270] sm:$0xff]
        %v957 = vld [vmem:[%s339 + $0x278] sm:$0xff]
        %v958 = vld [vmem:[%s339 + $0x280] sm:$0xff]
        %v959 = vld [vmem:[%s339 + $0x288] sm:$0xff]
        %v960 = vld [vmem:[%s339 + $0x290] sm:$0xff]
        %v961 = vld [vmem:[%s339 + $0x298] sm:$0xff]
        %v962 = vld [vmem:[%s339 + $0x2a0] sm:$0xff]
        %v963 = vld [vmem:[%s339 + $0x2a8] sm:$0xff]
        %v964 = vld [vmem:[%s339 + $0x2b0] sm:$0xff]
        %v965 = vld [vmem:[%s339 + $0x2b8] sm:$0xff]
        %v966 = vld [vmem:[%s339 + $0x2c0] sm:$0xff]
        %v967 = vld [vmem:[%s339 + $0x2c8] sm:$0xff]
        %v968 = vld [vmem:[%s339 + $0x2d0] sm:$0xff]
        %v969 = vld [vmem:[%s339 + $0x2d8] sm:$0xff]
        %v970 = vld [vmem:[%s339 + $0x2e0] sm:$0xff]
        %v971 = vld [vmem:[%s339 + $0x2e8] sm:$0xff]
        %v972 = vld [vmem:[%s339 + $0x2f0] sm:$0xff]
        %v973 = vld [vmem:[%s339 + $0x2f8] sm:$0xff]
        %v974 = vld [vmem:[%s339 + $0x300] sm:$0xff]
        %v975 = vld [vmem:[%s339 + $0x308] sm:$0xff]
        %v976 = vld [vmem:[%s339 + $0x310] sm:$0xff]
        %v977 = vld [vmem:[%s339 + $0x318] sm:$0xff]
        %v978 = vld [vmem:[%s339 + $0x320] sm:$0xff]
        %v979 = vld [vmem:[%s339 + $0x328] sm:$0xff]
        %v980 = vld [vmem:[%s339 + $0x330] sm:$0xff]
        %v981 = vld [vmem:[%s339 + $0x338] sm:$0xff]
        %v982 = vld [vmem:[%s339 + $0x340] sm:$0xff]
        %v983 = vld [vmem:[%s339 + $0x348] sm:$0xff]
        %v984 = vld [vmem:[%s339 + $0x350] sm:$0xff]
        %v985 = vld [vmem:[%s339 + $0x358] sm:$0xff]
        %v986 = vld [vmem:[%s339 + $0x360] sm:$0xff]
        %v987 = vld [vmem:[%s339 + $0x368] sm:$0xff]
        %v988 = vld [vmem:[%s339 + $0x370] sm:$0xff]
        %v989 = vld [vmem:[%s339 + $0x378] sm:$0xff]
        %v990 = vld [vmem:[%s339 + $0x380] sm:$0xff]
        %v991 = vld [vmem:[%s339 + $0x388] sm:$0xff]
        %v992 = vld [vmem:[%s339 + $0x390] sm:$0xff]
        %v993 = vld [vmem:[%s339 + $0x398] sm:$0xff]
        %v994 = vld [vmem:[%s339 + $0x3a0] sm:$0xff]
        %v995 = vld [vmem:[%s339 + $0x3a8] sm:$0xff]
        %v996 = vld [vmem:[%s339 + $0x3b0] sm:$0xff]
        %v997 = vld [vmem:[%s339 + $0x3b8] sm:$0xff]
        %v998 = vld [vmem:[%s339 + $0x3c0] sm:$0xff]
        %v999 = vld [vmem:[%s339 + $0x3c8] sm:$0xff]
        %v1000 = vld [vmem:[%s339 + $0x3d0] sm:$0xff]
        %v1001 = vld [vmem:[%s339 + $0x3d8] sm:$0xff]
        %v1002 = vld [vmem:[%s339 + $0x3e0] sm:$0xff]
        %v1003 = vld [vmem:[%s339 + $0x3e8] sm:$0xff]
        %v1004 = vld [vmem:[%s339 + $0x3f0] sm:$0xff]
        %v1005 = vld [vmem:[%s339 + $0x3f8] sm:$0xff]
        %v1006 = vld [vmem:[%s339 + $0x400] sm:$0xff]
        %v1007 = vld [vmem:[%s339 + $0x408] sm:$0xff]
        %v1008 = vld [vmem:[%s339 + $0x410] sm:$0xff]
        %v1009 = vld [vmem:[%s339 + $0x418] sm:$0xff]
        %v1010 = vld [vmem:[%s339 + $0x420] sm:$0xff]
        %v1011 = vld [vmem:[%s339 + $0x428] sm:$0xff]
        %v1012 = vld [vmem:[%s339 + $0x430] sm:$0xff]
        %v1013 = vld [vmem:[%s339 + $0x438] sm:$0xff]
        %v1014 = vld [vmem:[%s339 + $0x440] sm:$0xff]
        %v1015 = vld [vmem:[%s339 + $0x448] sm:$0xff]
        %v1016 = vld [vmem:[%s339 + $0x450] sm:$0xff]
        %v1017 = vld [vmem:[%s339 + $0x458] sm:$0xff]
        %v1018 = vld [vmem:[%s339 + $0x460] sm:$0xff]
        %v1019 = vld [vmem:[%s339 + $0x468] sm:$0xff]
        %v1020 = vld [vmem:[%s339 + $0x470] sm:$0xff]
        %v1021 = vld [vmem:[%s339 + $0x478] sm:$0xff]
        %v1022 = vld [vmem:[%s339 + $0x480] sm:$0xff]
        %v1023 = vld [vmem:[%s339 + $0x488] sm:$0xff]
        %v1024 = vld [vmem:[%s339 + $0x490] sm:$0xff]
        %v1025 = vld [vmem:[%s339 + $0x498] sm:$0xff]
        %v1026 = vld [vmem:[%s339 + $0x4a0] sm:$0xff]
        %v1027 = vld [vmem:[%s339 + $0x4a8] sm:$0xff]
        %v1028 = vld [vmem:[%s339 + $0x4b0] sm:$0xff]
        %v1029 = vld [vmem:[%s339 + $0x4b8] sm:$0xff]
        %v1030 = vld [vmem:[%s339 + $0x4c0] sm:$0xff]
        %v1031 = vld [vmem:[%s339 + $0x4c8] sm:$0xff]
        %v1032 = vld [vmem:[%s339 + $0x4d0] sm:$0xff]
        %v1033 = vld [vmem:[%s339 + $0x4d8] sm:$0xff]
        %v1034 = vld [vmem:[%s339 + $0x4e0] sm:$0xff]
        %v1035 = vld [vmem:[%s339 + $0x4e8] sm:$0xff]
        %v1036 = vld [vmem:[%s339 + $0x4f0] sm:$0xff]
        %v1037 = vld [vmem:[%s339 + $0x4f8] sm:$0xff]
        %v1038 = vld [vmem:[%s339 + $0x500] sm:$0xff]
        %v1039 = vld [vmem:[%s339 + $0x508] sm:$0xff]
        %v1040 = vld [vmem:[%s339 + $0x510] sm:$0xff]
        %v1041 = vld [vmem:[%s339 + $0x518] sm:$0xff]
        %v1042 = vld [vmem:[%s339 + $0x520] sm:$0xff]
        %v1043 = vld [vmem:[%s339 + $0x528] sm:$0xff]
        %v1044 = vld [vmem:[%s339 + $0x530] sm:$0xff]
        %v1045 = vld [vmem:[%s339 + $0x538] sm:$0xff]
        %v1046 = vld [vmem:[%s339 + $0x540] sm:$0xff]
        %v1047 = vld [vmem:[%s339 + $0x548] sm:$0xff]
        %v1048 = vld [vmem:[%s339 + $0x550] sm:$0xff]
        %v1049 = vld [vmem:[%s339 + $0x558] sm:$0xff]
        %v1050 = vld [vmem:[%s339 + $0x560] sm:$0xff]
        %v1051 = vld [vmem:[%s339 + $0x568] sm:$0xff]
        %v1052 = vld [vmem:[%s339 + $0x570] sm:$0xff]
        %v1053 = vld [vmem:[%s339 + $0x578] sm:$0xff]
        %v1054 = vld [vmem:[%s339 + $0x580] sm:$0xff]
        %v1055 = vld [vmem:[%s339 + $0x588] sm:$0xff]
        %v1056 = vld [vmem:[%s339 + $0x590] sm:$0xff]
        %v1057 = vld [vmem:[%s339 + $0x598] sm:$0xff]
        %v1058 = vld [vmem:[%s339 + $0x5a0] sm:$0xff]
        %v1059 = vld [vmem:[%s339 + $0x5a8] sm:$0xff]
        %v1060 = vld [vmem:[%s339 + $0x5b0] sm:$0xff]
        %v1061 = vld [vmem:[%s339 + $0x5b8] sm:$0xff]
        %v1062 = vld [vmem:[%s339 + $0x5c0] sm:$0xff]
        %v1063 = vld [vmem:[%s339 + $0x5c8] sm:$0xff]
        %v1064 = vld [vmem:[%s339 + $0x5d0] sm:$0xff]
        %v1065 = vld [vmem:[%s339 + $0x5d8] sm:$0xff]
        %v1066 = vld [vmem:[%s339 + $0x5e0] sm:$0xff]
        %v1067 = vld [vmem:[%s339 + $0x5e8] sm:$0xff]
        %v1068 = vld [vmem:[%s339 + $0x5f0] sm:$0xff]
        %v1069 = vld [vmem:[%s339 + $0x5f8] sm:$0xff]
        %v1070 = vld [vmem:[%s339 + $0x600] sm:$0xff]
        %v1071 = vld [vmem:[%s339 + $0x608] sm:$0xff]
        %v1072 = vld [vmem:[%s339 + $0x610] sm:$0xff]
        %v1073 = vld [vmem:[%s339 + $0x618] sm:$0xff]
        %v1074 = vld [vmem:[%s339 + $0x620] sm:$0xff]
        %v1075 = vld [vmem:[%s339 + $0x628] sm:$0xff]
        %v1076 = vld [vmem:[%s339 + $0x630] sm:$0xff]
        %v1077 = vld [vmem:[%s339 + $0x638] sm:$0xff]
        %v1078 = vld [vmem:[%s339 + $0x640] sm:$0xff]
        %v1079 = vld [vmem:[%s339 + $0x648] sm:$0xff]
        %v1080 = vld [vmem:[%s339 + $0x650] sm:$0xff]
        %v1081 = vld [vmem:[%s339 + $0x658] sm:$0xff]
        %v1082 = vld [vmem:[%s339 + $0x660] sm:$0xff]
        %v1083 = vld [vmem:[%s339 + $0x668] sm:$0xff]
        %v1084 = vld [vmem:[%s339 + $0x670] sm:$0xff]
        %v1085 = vld [vmem:[%s339 + $0x678] sm:$0xff]
        %v1086 = vld [vmem:[%s339 + $0x680] sm:$0xff]
        %v1087 = vld [vmem:[%s339 + $0x688] sm:$0xff]
        %v1088 = vld [vmem:[%s339 + $0x690] sm:$0xff]
        %v1089 = vld [vmem:[%s339 + $0x698] sm:$0xff]
        %v1090 = vld [vmem:[%s339 + $0x6a0] sm:$0xff]
        %v1091 = vld [vmem:[%s339 + $0x6a8] sm:$0xff]
        %v1092 = vld [vmem:[%s339 + $0x6b0] sm:$0xff]
        %v1093 = vld [vmem:[%s339 + $0x6b8] sm:$0xff]
        %v1094 = vld [vmem:[%s339 + $0x6c0] sm:$0xff]
        %v1095 = vld [vmem:[%s339 + $0x6c8] sm:$0xff]
        %v1096 = vld [vmem:[%s339 + $0x6d0] sm:$0xff]
        %v1097 = vld [vmem:[%s339 + $0x6d8] sm:$0xff]
        %v1098 = vld [vmem:[%s339 + $0x6e0] sm:$0xff]
        %v1099 = vld [vmem:[%s339 + $0x6e8] sm:$0xff]
        %v1100 = vld [vmem:[%s339 + $0x6f0] sm:$0xff]
        %v1101 = vld [vmem:[%s339 + $0x6f8] sm:$0xff]
        %v1102 = vld [vmem:[%s339 + $0x700] sm:$0xff]
        %v1103 = vld [vmem:[%s339 + $0x708] sm:$0xff]
        %v1104 = vld [vmem:[%s339 + $0x710] sm:$0xff]
        %v1105 = vld [vmem:[%s339 + $0x718] sm:$0xff]
        %v1106 = vld [vmem:[%s339 + $0x720] sm:$0xff]
        %v1107 = vld [vmem:[%s339 + $0x728] sm:$0xff]
        %v1108 = vld [vmem:[%s339 + $0x730] sm:$0xff]
        %v1109 = vld [vmem:[%s339 + $0x738] sm:$0xff]
        %v1110 = vld [vmem:[%s339 + $0x740] sm:$0xff]
        %v1111 = vld [vmem:[%s339 + $0x748] sm:$0xff]
        %v1112 = vld [vmem:[%s339 + $0x750] sm:$0xff]
        %v1113 = vld [vmem:[%s339 + $0x758] sm:$0xff]
        %v1114 = vld [vmem:[%s339 + $0x760] sm:$0xff]
        %v1115 = vld [vmem:[%s339 + $0x768] sm:$0xff]
        %v1116 = vld [vmem:[%s339 + $0x770] sm:$0xff]
        %v1117 = vld [vmem:[%s339 + $0x778] sm:$0xff]
        %v1118 = vld [vmem:[%s339 + $0x780] sm:$0xff]
        %v1119 = vld [vmem:[%s339 + $0x788] sm:$0xff]
        %v1120 = vld [vmem:[%s339 + $0x790] sm:$0xff]
        %v1121 = vld [vmem:[%s339 + $0x798] sm:$0xff]
        %v1122 = vld [vmem:[%s339 + $0x7a0] sm:$0xff]
        %v1123 = vld [vmem:[%s339 + $0x7a8] sm:$0xff]
        %v1124 = vld [vmem:[%s339 + $0x7b0] sm:$0xff]
        %v1125 = vld [vmem:[%s339 + $0x7b8] sm:$0xff]
        %v1126 = vld [vmem:[%s339 + $0x7c0] sm:$0xff]
        %v1127 = vld [vmem:[%s339 + $0x7c8] sm:$0xff]
        %v1128 = vld [vmem:[%s339 + $0x7d0] sm:$0xff]
        %v1129 = vld [vmem:[%s339 + $0x7d8] sm:$0xff]
        %v1130 = vld [vmem:[%s339 + $0x7e0] sm:$0xff]
        %v1131 = vld [vmem:[%s339 + $0x7e8] sm:$0xff]
        %v1132 = vld [vmem:[%s339 + $0x7f0] sm:$0xff]
        %v1133 = vld [vmem:[%s339 + $0x7f8] sm:$0xff]
        %v1134 = vld [vmem:[%s339 + $0x800] sm:$0xff]
        %v1135 = vld [vmem:[%s339 + $0x808] sm:$0xff]
        %v1136 = vld [vmem:[%s339 + $0x810] sm:$0xff]
        %v1137 = vld [vmem:[%s339 + $0x818] sm:$0xff]
        %v1138 = vld [vmem:[%s339 + $0x820] sm:$0xff]
        %v1139 = vld [vmem:[%s339 + $0x828] sm:$0xff]
        %v1140 = vld [vmem:[%s339 + $0x830] sm:$0xff]
        %v1141 = vld [vmem:[%s339 + $0x838] sm:$0xff]
        %v1142 = vld [vmem:[%s339 + $0x840] sm:$0xff]
        %v1143 = vld [vmem:[%s339 + $0x848] sm:$0xff]
        %v1144 = vld [vmem:[%s339 + $0x850] sm:$0xff]
        %v1145 = vld [vmem:[%s339 + $0x858] sm:$0xff]
        %v1146 = vld [vmem:[%s339 + $0x860] sm:$0xff]
        %v1147 = vld [vmem:[%s339 + $0x868] sm:$0xff]
        %v1148 = vld [vmem:[%s339 + $0x870] sm:$0xff]
        %v1149 = vld [vmem:[%s339 + $0x878] sm:$0xff]
        %v1150 = vld [vmem:[%s339 + $0x880] sm:$0xff]
        %v1151 = vld [vmem:[%s339 + $0x888] sm:$0xff]
        %v1152 = vld [vmem:[%s339 + $0x890] sm:$0xff]
        %v1153 = vld [vmem:[%s339 + $0x898] sm:$0xff]
        %v1154 = vld [vmem:[%s339 + $0x8a0] sm:$0xff]
        %v1155 = vld [vmem:[%s339 + $0x8a8] sm:$0xff]
        %v1156 = vld [vmem:[%s339 + $0x8b0] sm:$0xff]
        %v1157 = vld [vmem:[%s339 + $0x8b8] sm:$0xff]
        %v1158 = vld [vmem:[%s339 + $0x8c0] sm:$0xff]
        %v1159 = vld [vmem:[%s339 + $0x8c8] sm:$0xff]
        %v1160 = vld [vmem:[%s339 + $0x8d0] sm:$0xff]
        %v1161 = vld [vmem:[%s339 + $0x8d8] sm:$0xff]
        %v1162 = vld [vmem:[%s339 + $0x8e0] sm:$0xff]
        %v1163 = vld [vmem:[%s339 + $0x8e8] sm:$0xff]
        %v1164 = vld [vmem:[%s339 + $0x8f0] sm:$0xff]
        %v1165 = vld [vmem:[%s339 + $0x8f8] sm:$0xff]
        %v1166 = vld [vmem:[%s339 + $0x900] sm:$0xff]
        %v1167 = vld [vmem:[%s339 + $0x908] sm:$0xff]
        %v1168 = vld [vmem:[%s339 + $0x910] sm:$0xff]
        %v1169 = vld [vmem:[%s339 + $0x918] sm:$0xff]
        %v1170 = vld [vmem:[%s339 + $0x920] sm:$0xff]
        %v1171 = vld [vmem:[%s339 + $0x928] sm:$0xff]
        %v1172 = vld [vmem:[%s339 + $0x930] sm:$0xff]
        %v1173 = vld [vmem:[%s339 + $0x938] sm:$0xff]
        %v1174 = vld [vmem:[%s339 + $0x940] sm:$0xff]
        %v1175 = vld [vmem:[%s339 + $0x948] sm:$0xff]
        %v1176 = vld [vmem:[%s339 + $0x950] sm:$0xff]
        %v1177 = vld [vmem:[%s339 + $0x958] sm:$0xff]
        %v1178 = vld [vmem:[%s339 + $0x960] sm:$0xff]
        %v1179 = vld [vmem:[%s339 + $0x968] sm:$0xff]
        %v1180 = vld [vmem:[%s339 + $0x970] sm:$0xff]
        %v1181 = vld [vmem:[%s339 + $0x978] sm:$0xff]
        %v1182 = vld [vmem:[%s339 + $0x980] sm:$0xff]
        %v1183 = vld [vmem:[%s339 + $0x988] sm:$0xff]
        %v1184 = vld [vmem:[%s339 + $0x990] sm:$0xff]
        %v1185 = vld [vmem:[%s339 + $0x998] sm:$0xff]
        %v1186 = vld [vmem:[%s339 + $0x9a0] sm:$0xff]
        %v1187 = vld [vmem:[%s339 + $0x9a8] sm:$0xff]
        %v1188 = vld [vmem:[%s339 + $0x9b0] sm:$0xff]
        %v1189 = vld [vmem:[%s339 + $0x9b8] sm:$0xff]
        %v1190 = vld [vmem:[%s339 + $0x9c0] sm:$0xff]
        %v1191 = vld [vmem:[%s339 + $0x9c8] sm:$0xff]
        %v1192 = vld [vmem:[%s339 + $0x9d0] sm:$0xff]
        %v1193 = vld [vmem:[%s339 + $0x9d8] sm:$0xff]
        %v1194 = vld [vmem:[%s339 + $0x9e0] sm:$0xff]
        %v1195 = vld [vmem:[%s339 + $0x9e8] sm:$0xff]
        %v1196 = vld [vmem:[%s339 + $0x9f0] sm:$0xff]
        %v1197 = vld [vmem:[%s339 + $0x9f8] sm:$0xff]
        %v1198 = vld [vmem:[%s339 + $0xa00] sm:$0xff]
        %v1199 = vld [vmem:[%s339 + $0xa08] sm:$0xff]
        %v1200 = vld [vmem:[%s339 + $0xa10] sm:$0xff]
        %v1201 = vld [vmem:[%s339 + $0xa18] sm:$0xff]
        %v1202 = vld [vmem:[%s339 + $0xa20] sm:$0xff]
        %v1203 = vld [vmem:[%s339 + $0xa28] sm:$0xff]
        %v1204 = vld [vmem:[%s339 + $0xa30] sm:$0xff]
        %v1205 = vld [vmem:[%s339 + $0xa38] sm:$0xff]
        %v1206 = vld [vmem:[%s339 + $0xa40] sm:$0xff]
        %v1207 = vld [vmem:[%s339 + $0xa48] sm:$0xff]
        %v1208 = vld [vmem:[%s339 + $0xa50] sm:$0xff]
        %v1209 = vld [vmem:[%s339 + $0xa58] sm:$0xff]
        %v1210 = vld [vmem:[%s339 + $0xa60] sm:$0xff]
        %v1211 = vld [vmem:[%s339 + $0xa68] sm:$0xff]
        %v1212 = vld [vmem:[%s339 + $0xa70] sm:$0xff]
        %v1213 = vld [vmem:[%s339 + $0xa78] sm:$0xff]
        %v1214 = vld [vmem:[%s339 + $0xa80] sm:$0xff]
        %v1215 = vld [vmem:[%s339 + $0xa88] sm:$0xff]
        %v1216 = vld [vmem:[%s339 + $0xa90] sm:$0xff]
        %v1217 = vld [vmem:[%s339 + $0xa98] sm:$0xff]
        %v1218 = vld [vmem:[%s339 + $0xaa0] sm:$0xff]
        %v1219 = vld [vmem:[%s339 + $0xaa8] sm:$0xff]
        %v1220 = vld [vmem:[%s339 + $0xab0] sm:$0xff]
        %v1221 = vld [vmem:[%s339 + $0xab8] sm:$0xff]
        %v1222 = vld [vmem:[%s339 + $0xac0] sm:$0xff]
        %v1223 = vld [vmem:[%s339 + $0xac8] sm:$0xff]
        %v1224 = vld [vmem:[%s339 + $0xad0] sm:$0xff]
        %v1225 = vld [vmem:[%s339 + $0xad8] sm:$0xff]
        %v1226 = vld [vmem:[%s339 + $0xae0] sm:$0xff]
        %v1227 = vld [vmem:[%s339 + $0xae8] sm:$0xff]
        %v1228 = vld [vmem:[%s339 + $0xaf0] sm:$0xff]
        %v1229 = vld [vmem:[%s339 + $0xaf8] sm:$0xff]
        %v1230 = vld [vmem:[%s339 + $0xb00] sm:$0xff]
        %v1231 = vld [vmem:[%s339 + $0xb08] sm:$0xff]
        %v1232 = vld [vmem:[%s339 + $0xb10] sm:$0xff]
        %v1233 = vld [vmem:[%s339 + $0xb18] sm:$0xff]
        %v1234 = vld [vmem:[%s339 + $0xb20] sm:$0xff]
        %v1235 = vld [vmem:[%s339 + $0xb28] sm:$0xff]
        %v1236 = vld [vmem:[%s339 + $0xb30] sm:$0xff]
        %v1237 = vld [vmem:[%s339 + $0xb38] sm:$0xff]
        %v1238 = vld [vmem:[%s339 + $0xb40] sm:$0xff]
        %v1239 = vld [vmem:[%s339 + $0xb48] sm:$0xff]
        %v1240 = vld [vmem:[%s339 + $0xb50] sm:$0xff]
        %v1241 = vld [vmem:[%s339 + $0xb58] sm:$0xff]
        %v1242 = vld [vmem:[%s339 + $0xb60] sm:$0xff]
        %v1243 = vld [vmem:[%s339 + $0xb68] sm:$0xff]
        %v1244 = vld [vmem:[%s339 + $0xb70] sm:$0xff]
        %v1245 = vld [vmem:[%s339 + $0xb78] sm:$0xff]
        %v1246 = vld [vmem:[%s339 + $0xb80] sm:$0xff]
        %v1247 = vld [vmem:[%s339 + $0xb88] sm:$0xff]
        %v1248 = vld [vmem:[%s339 + $0xb90] sm:$0xff]
        %v1249 = vld [vmem:[%s339 + $0xb98] sm:$0xff]
        %v1250 = vld [vmem:[%s339 + $0xba0] sm:$0xff]
        %v1251 = vld [vmem:[%s339 + $0xba8] sm:$0xff]
        %v1252 = vld [vmem:[%s339 + $0xbb0] sm:$0xff]
        %v1253 = vld [vmem:[%s339 + $0xbb8] sm:$0xff]
        %v1254 = vld [vmem:[%s339 + $0xbc0] sm:$0xff]
        %v1255 = vld [vmem:[%s339 + $0xbc8] sm:$0xff]
        %v1256 = vld [vmem:[%s339 + $0xbd0] sm:$0xff]
        %v1257 = vld [vmem:[%s339 + $0xbd8] sm:$0xff]
        %v1258 = vld [vmem:[%s339 + $0xbe0] sm:$0xff]
        %v1259 = vld [vmem:[%s339 + $0xbe8] sm:$0xff]
        %v1260 = vld [vmem:[%s339 + $0xbf0] sm:$0xff]
        %v1261 = vld [vmem:[%s339 + $0xbf8] sm:$0xff]
        %v1262 = vld [vmem:[%s339 + $0xc00] sm:$0xff]
        %v1263 = vld [vmem:[%s339 + $0xc08] sm:$0xff]
        %v1264 = vld [vmem:[%s339 + $0xc10] sm:$0xff]
        %v1265 = vld [vmem:[%s339 + $0xc18] sm:$0xff]
        %v1266 = vld [vmem:[%s339 + $0xc20] sm:$0xff]
        %v1267 = vld [vmem:[%s339 + $0xc28] sm:$0xff]
        %v1268 = vld [vmem:[%s339 + $0xc30] sm:$0xff]
        %v1269 = vld [vmem:[%s339 + $0xc38] sm:$0xff]
        %v1270 = vld [vmem:[%s339 + $0xc40] sm:$0xff]
        %v1271 = vld [vmem:[%s339 + $0xc48] sm:$0xff]
        %v1272 = vld [vmem:[%s339 + $0xc50] sm:$0xff]
        %v1273 = vld [vmem:[%s339 + $0xc58] sm:$0xff]
        %v1274 = vld [vmem:[%s339 + $0xc60] sm:$0xff]
        %v1275 = vld [vmem:[%s339 + $0xc68] sm:$0xff]
        %v1276 = vld [vmem:[%s339 + $0xc70] sm:$0xff]
        %v1277 = vld [vmem:[%s339 + $0xc78] sm:$0xff]
        %v1278 = vld [vmem:[%s339 + $0xc80] sm:$0xff]
        %v1279 = vld [vmem:[%s339 + $0xc88] sm:$0xff]
        %v1280 = vld [vmem:[%s339 + $0xc90] sm:$0xff]
        %v1281 = vld [vmem:[%s339 + $0xc98] sm:$0xff]
        %v1282 = vld [vmem:[%s339 + $0xca0] sm:$0xff]
        %v1283 = vld [vmem:[%s339 + $0xca8] sm:$0xff]
        %v1284 = vld [vmem:[%s339 + $0xcb0] sm:$0xff]
        %v1285 = vld [vmem:[%s339 + $0xcb8] sm:$0xff]
        %v1286 = vld [vmem:[%s339 + $0xcc0] sm:$0xff]
        %v1287 = vld [vmem:[%s339 + $0xcc8] sm:$0xff]
        %v1288 = vld [vmem:[%s339 + $0xcd0] sm:$0xff]
        %v1289 = vld [vmem:[%s339 + $0xcd8] sm:$0xff]
        %v1290 = vld [vmem:[%s339 + $0xce0] sm:$0xff]
        %v1291 = vld [vmem:[%s339 + $0xce8] sm:$0xff]
        %v1292 = vld [vmem:[%s339 + $0xcf0] sm:$0xff]
        %v1293 = vld [vmem:[%s339 + $0xcf8] sm:$0xff]
        %v1294 = vld [vmem:[%s339 + $0xd00] sm:$0xff]
        %v1295 = vld [vmem:[%s339 + $0xd08] sm:$0xff]
        %v1296 = vld [vmem:[%s339 + $0xd10] sm:$0xff]
        %v1297 = vld [vmem:[%s339 + $0xd18] sm:$0xff]
        %v1298 = vld [vmem:[%s339 + $0xd20] sm:$0xff]
        %v1299 = vld [vmem:[%s339 + $0xd28] sm:$0xff]
        %v1300 = vld [vmem:[%s339 + $0xd30] sm:$0xff]
        %v1301 = vld [vmem:[%s339 + $0xd38] sm:$0xff]
        %v1302 = vld [vmem:[%s339 + $0xd40] sm:$0xff]
        %v1303 = vld [vmem:[%s339 + $0xd48] sm:$0xff]
        %v1304 = vld [vmem:[%s339 + $0xd50] sm:$0xff]
        %v1305 = vld [vmem:[%s339 + $0xd58] sm:$0xff]
        %v1306 = vld [vmem:[%s339 + $0xd60] sm:$0xff]
        %v1307 = vld [vmem:[%s339 + $0xd68] sm:$0xff]
        %v1308 = vld [vmem:[%s339 + $0xd70] sm:$0xff]
        %v1309 = vld [vmem:[%s339 + $0xd78] sm:$0xff]
        %v1310 = vld [vmem:[%s339 + $0xd80] sm:$0xff]
        %v1311 = vld [vmem:[%s339 + $0xd88] sm:$0xff]
        %v1312 = vld [vmem:[%s339 + $0xd90] sm:$0xff]
        %v1313 = vld [vmem:[%s339 + $0xd98] sm:$0xff]
        %v1314 = vld [vmem:[%s339 + $0xda0] sm:$0xff]
        %v1315 = vld [vmem:[%s339 + $0xda8] sm:$0xff]
        %v1316 = vld [vmem:[%s339 + $0xdb0] sm:$0xff]
        %v1317 = vld [vmem:[%s339 + $0xdb8] sm:$0xff]
        %v1318 = vld [vmem:[%s339 + $0xdc0] sm:$0xff]
        %v1319 = vld [vmem:[%s339 + $0xdc8] sm:$0xff]
        %v1320 = vld [vmem:[%s339 + $0xdd0] sm:$0xff]
        %v1321 = vld [vmem:[%s339 + $0xdd8] sm:$0xff]
        %v1322 = vld [vmem:[%s339 + $0xde0] sm:$0xff]
        %v1323 = vld [vmem:[%s339 + $0xde8] sm:$0xff]
        %v1324 = vld [vmem:[%s339 + $0xdf0] sm:$0xff]
        %v1325 = vld [vmem:[%s339 + $0xdf8] sm:$0xff]
        %v1326 = vld [vmem:[%s339 + $0xe00] sm:$0xff]
        %v1327 = vld [vmem:[%s339 + $0xe08] sm:$0xff]
        %v1328 = vld [vmem:[%s339 + $0xe10] sm:$0xff]
        %v1329 = vld [vmem:[%s339 + $0xe18] sm:$0xff]
        %v1330 = vld [vmem:[%s339 + $0xe20] sm:$0xff]
        %v1331 = vld [vmem:[%s339 + $0xe28] sm:$0xff]
        %v1332 = vld [vmem:[%s339 + $0xe30] sm:$0xff]
        %v1333 = vld [vmem:[%s339 + $0xe38] sm:$0xff]
        %v1334 = vld [vmem:[%s339 + $0xe40] sm:$0xff]
        %v1335 = vld [vmem:[%s339 + $0xe48] sm:$0xff]
        %v1336 = vld [vmem:[%s339 + $0xe50] sm:$0xff]
        %v1337 = vld [vmem:[%s339 + $0xe58] sm:$0xff]
        %v1338 = vld [vmem:[%s339 + $0xe60] sm:$0xff]
        %v1339 = vld [vmem:[%s339 + $0xe68] sm:$0xff]
        %v1340 = vld [vmem:[%s339 + $0xe70] sm:$0xff]
        %v1341 = vld [vmem:[%s339 + $0xe78] sm:$0xff]
        %v1342 = vld [vmem:[%s339 + $0xe80] sm:$0xff]
        %v1343 = vld [vmem:[%s339 + $0xe88] sm:$0xff]
        %v1344 = vld [vmem:[%s339 + $0xe90] sm:$0xff]
        %v1345 = vld [vmem:[%s339 + $0xe98] sm:$0xff]
        %v1346 = vld [vmem:[%s339 + $0xea0] sm:$0xff]
        %v1347 = vld [vmem:[%s339 + $0xea8] sm:$0xff]
        %v1348 = vld [vmem:[%s339 + $0xeb0] sm:$0xff]
        %v1349 = vld [vmem:[%s339 + $0xeb8] sm:$0xff]
        %v1350 = vld [vmem:[%s339 + $0xec0] sm:$0xff]
        %v1351 = vld [vmem:[%s339 + $0xec8] sm:$0xff]
        %v1352 = vld [vmem:[%s339 + $0xed0] sm:$0xff]
        %v1353 = vld [vmem:[%s339 + $0xed8] sm:$0xff]
        %v1354 = vld [vmem:[%s339 + $0xee0] sm:$0xff]
        %v1355 = vld [vmem:[%s339 + $0xee8] sm:$0xff]
        %v1356 = vld [vmem:[%s339 + $0xef0] sm:$0xff]
        %v1357 = vld [vmem:[%s339 + $0xef8] sm:$0xff]
        %v1358 = vld [vmem:[%s339 + $0xf00] sm:$0xff]
        %v1359 = vld [vmem:[%s339 + $0xf08] sm:$0xff]
        %v1360 = vld [vmem:[%s339 + $0xf10] sm:$0xff]
        %v1361 = vld [vmem:[%s339 + $0xf18] sm:$0xff]
        %v1362 = vld [vmem:[%s339 + $0xf20] sm:$0xff]
        %v1363 = vld [vmem:[%s339 + $0xf28] sm:$0xff]
        %v1364 = vld [vmem:[%s339 + $0xf30] sm:$0xff]
        %v1365 = vld [vmem:[%s339 + $0xf38] sm:$0xff]
        %v1366 = vld [vmem:[%s339 + $0xf40] sm:$0xff]
        %v1367 = vld [vmem:[%s339 + $0xf48] sm:$0xff]
        %v1368 = vld [vmem:[%s339 + $0xf50] sm:$0xff]
        %v1369 = vld [vmem:[%s339 + $0xf58] sm:$0xff]
        %v1370 = vld [vmem:[%s339 + $0xf60] sm:$0xff]
        %v1371 = vld [vmem:[%s339 + $0xf68] sm:$0xff]
        %v1372 = vld [vmem:[%s339 + $0xf70] sm:$0xff]
        %v1373 = vld [vmem:[%s339 + $0xf78] sm:$0xff]
        %v1374 = vld [vmem:[%s339 + $0xf80] sm:$0xff]
        %v1375 = vld [vmem:[%s339 + $0xf88] sm:$0xff]
        %v1376 = vld [vmem:[%s339 + $0xf90] sm:$0xff]
        %v1377 = vld [vmem:[%s339 + $0xf98] sm:$0xff]
        %v1378 = vld [vmem:[%s339 + $0xfa0] sm:$0xff]
        %v1379 = vld [vmem:[%s339 + $0xfa8] sm:$0xff]
        %v1380 = vld [vmem:[%s339 + $0xfb0] sm:$0xff]
        %v1381 = vld [vmem:[%s339 + $0xfb8] sm:$0xff]
        %v1382 = vld [vmem:[%s339 + $0xfc0] sm:$0xff]
        %v1383 = vld [vmem:[%s339 + $0xfc8] sm:$0xff]
        %v1384 = vld [vmem:[%s339 + $0xfd0] sm:$0xff]
        %v1385 = vld [vmem:[%s339 + $0xfd8] sm:$0xff]
        %v1386 = vld [vmem:[%s339 + $0xfe0] sm:$0xff]
        %v1387 = vld [vmem:[%s339 + $0xfe8] sm:$0xff]
        %v1388 = vld [vmem:[%s339 + $0xff0] sm:$0xff]
        %v1389 = vld [vmem:[%s339 + $0xff8] sm:$0xff]
        %v1390 = vld [vmem:[%s339 + $0x1000] sm:$0xff]
        %v1391 = vld [vmem:[%s339 + $0x1008] sm:$0xff]
        %v1392 = vld [vmem:[%s339 + $0x1010] sm:$0xff]
        %v1393 = vld [vmem:[%s339 + $0x1018] sm:$0xff]
        %v1394 = vld [vmem:[%s339 + $0x1020] sm:$0xff]
        %v1395 = vld [vmem:[%s339 + $0x1028] sm:$0xff]
        %v1396 = vld [vmem:[%s339 + $0x1030] sm:$0xff]
        %v1397 = vld [vmem:[%s339 + $0x1038] sm:$0xff]
        %v1398 = vld [vmem:[%s339 + $0x1040] sm:$0xff]
        %v1399 = vld [vmem:[%s339 + $0x1048] sm:$0xff]
        %v1400 = vld [vmem:[%s339 + $0x1050] sm:$0xff]
        %v1401 = vld [vmem:[%s339 + $0x1058] sm:$0xff]
        %v1402 = vld [vmem:[%s339 + $0x1060] sm:$0xff]
        %v1403 = vld [vmem:[%s339 + $0x1068] sm:$0xff]
        %v1404 = vld [vmem:[%s339 + $0x1070] sm:$0xff]
        %v1405 = vld [vmem:[%s339 + $0x1078] sm:$0xff]
        %v1406 = vld [vmem:[%s339 + $0x1080] sm:$0xff]
        %v1407 = vld [vmem:[%s339 + $0x1088] sm:$0xff]
        %v1408 = vld [vmem:[%s339 + $0x1090] sm:$0xff]
        %v1409 = vld [vmem:[%s339 + $0x1098] sm:$0xff]
        %v1410 = vld [vmem:[%s339 + $0x10a0] sm:$0xff]
        %v1411 = vld [vmem:[%s339 + $0x10a8] sm:$0xff]
        %v1412 = vld [vmem:[%s339 + $0x10b0] sm:$0xff]
        %v1413 = vld [vmem:[%s339 + $0x10b8] sm:$0xff]
        %v1414 = vld [vmem:[%s339 + $0x10c0] sm:$0xff]
        %v1415 = vld [vmem:[%s339 + $0x10c8] sm:$0xff]
        %v1416 = vld [vmem:[%s339 + $0x10d0] sm:$0xff]
        %v1417 = vld [vmem:[%s339 + $0x10d8] sm:$0xff]
        %v1418 = vld [vmem:[%s339 + $0x10e0] sm:$0xff]
        %v1419 = vld [vmem:[%s339 + $0x10e8] sm:$0xff]
        %v1420 = vld [vmem:[%s339 + $0x10f0] sm:$0xff]
        %v1421 = vld [vmem:[%s339 + $0x10f8] sm:$0xff]
        %v1422 = vld [vmem:[%s339 + $0x1100] sm:$0xff]
        %v1423 = vld [vmem:[%s339 + $0x1108] sm:$0xff]
        %v1424 = vld [vmem:[%s339 + $0x1110] sm:$0xff]
        %v1425 = vld [vmem:[%s339 + $0x1118] sm:$0xff]
        %v1426 = vld [vmem:[%s339 + $0x1120] sm:$0xff]
        %v1427 = vld [vmem:[%s339 + $0x1128] sm:$0xff]
        %v1428 = vld [vmem:[%s339 + $0x1130] sm:$0xff]
        %v1429 = vld [vmem:[%s339 + $0x1138] sm:$0xff]
        %v1430 = vld [vmem:[%s339 + $0x1140] sm:$0xff]
        %v1431 = vld [vmem:[%s339 + $0x1148] sm:$0xff]
        %v1432 = vld [vmem:[%s339 + $0x1150] sm:$0xff]
        %v1433 = vld [vmem:[%s339 + $0x1158] sm:$0xff]
        %v1434 = vld [vmem:[%s339 + $0x1160] sm:$0xff]
        %v1435 = vld [vmem:[%s339 + $0x1168] sm:$0xff]
        %v1436 = vld [vmem:[%s339 + $0x1170] sm:$0xff]
        %v1437 = vld [vmem:[%s339 + $0x1178] sm:$0xff]
        %v1438 = vld [vmem:[%s339 + $0x1180] sm:$0xff]
        %v1439 = vld [vmem:[%s339 + $0x1188] sm:$0xff]
        %v1440 = vld [vmem:[%s339 + $0x1190] sm:$0xff]
        %v1441 = vld [vmem:[%s339 + $0x1198] sm:$0xff]
        %v1442 = vld [vmem:[%s339 + $0x11a0] sm:$0xff]
        %v1443 = vld [vmem:[%s339 + $0x11a8] sm:$0xff]
        %v1444 = vld [vmem:[%s339 + $0x11b0] sm:$0xff]
        %v1445 = vld [vmem:[%s339 + $0x11b8] sm:$0xff]
        %v1446 = vld [vmem:[%s339 + $0x11c0] sm:$0xff]
        %v1447 = vld [vmem:[%s339 + $0x11c8] sm:$0xff]
        %v1448 = vld [vmem:[%s339 + $0x11d0] sm:$0xff]
        %v1449 = vld [vmem:[%s339 + $0x11d8] sm:$0xff]
        %v1450 = vld [vmem:[%s339 + $0x11e0] sm:$0xff]
        %v1451 = vld [vmem:[%s339 + $0x11e8] sm:$0xff]
        %v1452 = vld [vmem:[%s339 + $0x11f0] sm:$0xff]
        %v1453 = vld [vmem:[%s339 + $0x11f8] sm:$0xff]
        %v1454 = vld [vmem:[%s339 + $0x1200] sm:$0xff]
        %v1455 = vld [vmem:[%s339 + $0x1208] sm:$0xff]
        %v1456 = vld [vmem:[%s339 + $0x1210] sm:$0xff]
        %v1457 = vld [vmem:[%s339 + $0x1218] sm:$0xff]
        %v1458 = vld [vmem:[%s339 + $0x1220] sm:$0xff]
        %v1459 = vld [vmem:[%s339 + $0x1228] sm:$0xff]
        %v1460 = vld [vmem:[%s339 + $0x1230] sm:$0xff]
        %v1461 = vld [vmem:[%s339 + $0x1238] sm:$0xff]
        %v1462 = vld [vmem:[%s339 + $0x1240] sm:$0xff]
        %v1463 = vld [vmem:[%s339 + $0x1248] sm:$0xff]
        %v1464 = vld [vmem:[%s339 + $0x1250] sm:$0xff]
        %v1465 = vld [vmem:[%s339 + $0x1258] sm:$0xff]
        %v1466 = vld [vmem:[%s339 + $0x1260] sm:$0xff]
        %v1467 = vld [vmem:[%s339 + $0x1268] sm:$0xff]
        %v1468 = vld [vmem:[%s339 + $0x1270] sm:$0xff]
        %v1469 = vld [vmem:[%s339 + $0x1278] sm:$0xff]
        %v1470 = vld [vmem:[%s339 + $0x1280] sm:$0xff]
        %v1471 = vld [vmem:[%s339 + $0x1288] sm:$0xff]
        %v1472 = vld [vmem:[%s339 + $0x1290] sm:$0xff]
        %v1473 = vld [vmem:[%s339 + $0x1298] sm:$0xff]
        %v1474 = vld [vmem:[%s339 + $0x12a0] sm:$0xff]
        %v1475 = vld [vmem:[%s339 + $0x12a8] sm:$0xff]
        %v1476 = vld [vmem:[%s339 + $0x12b0] sm:$0xff]
        %v1477 = vld [vmem:[%s339 + $0x12b8] sm:$0xff]
        %v1478 = vld [vmem:[%s339 + $0x12c0] sm:$0xff]
        %v1479 = vld [vmem:[%s339 + $0x12c8] sm:$0xff]
        %v1480 = vld [vmem:[%s339 + $0x12d0] sm:$0xff]
        %v1481 = vld [vmem:[%s339 + $0x12d8] sm:$0xff]
        %v1482 = vld [vmem:[%s339 + $0x12e0] sm:$0xff]
        %v1483 = vld [vmem:[%s339 + $0x12e8] sm:$0xff]
        %v1484 = vld [vmem:[%s339 + $0x12f0] sm:$0xff]
        %v1485 = vld [vmem:[%s339 + $0x12f8] sm:$0xff]
        %v1486 = vld [vmem:[%s339 + $0x1300] sm:$0xff]
        %v1487 = vld [vmem:[%s339 + $0x1308] sm:$0xff]
        %v1488 = vld [vmem:[%s339 + $0x1310] sm:$0xff]
        %v1489 = vld [vmem:[%s339 + $0x1318] sm:$0xff]
        %v1490 = vld [vmem:[%s339 + $0x1320] sm:$0xff]
        %v1491 = vld [vmem:[%s339 + $0x1328] sm:$0xff]
        %v1492 = vld [vmem:[%s339 + $0x1330] sm:$0xff]
        %v1493 = vld [vmem:[%s339 + $0x1338] sm:$0xff]
        %v1494 = vld [vmem:[%s339 + $0x1340] sm:$0xff]
        %v1495 = vld [vmem:[%s339 + $0x1348] sm:$0xff]
        %v1496 = vld [vmem:[%s339 + $0x1350] sm:$0xff]
        %v1497 = vld [vmem:[%s339 + $0x1358] sm:$0xff]
        %v1498 = vld [vmem:[%s339 + $0x1360] sm:$0xff]
        %v1499 = vld [vmem:[%s339 + $0x1368] sm:$0xff]
        %v1500 = vld [vmem:[%s339 + $0x1370] sm:$0xff]
        %v1501 = vld [vmem:[%s339 + $0x1378] sm:$0xff]
        %v1502 = vld [vmem:[%s339 + $0x1380] sm:$0xff]
        %v1503 = vld [vmem:[%s339 + $0x1388] sm:$0xff]
        %v1504 = vld [vmem:[%s339 + $0x1390] sm:$0xff]
        %v1505 = vld [vmem:[%s339 + $0x1398] sm:$0xff]
        %v1506 = vld [vmem:[%s339 + $0x13a0] sm:$0xff]
        %v1507 = vld [vmem:[%s339 + $0x13a8] sm:$0xff]
        %v1508 = vld [vmem:[%s339 + $0x13b0] sm:$0xff]
        %v1509 = vld [vmem:[%s339 + $0x13b8] sm:$0xff]
        %v1510 = vld [vmem:[%s339 + $0x13c0] sm:$0xff]
        %v1511 = vld [vmem:[%s339 + $0x13c8] sm:$0xff]
        %v1512 = vld [vmem:[%s339 + $0x13d0] sm:$0xff]
        %v1513 = vld [vmem:[%s339 + $0x13d8] sm:$0xff]
        %v1514 = vld [vmem:[%s339 + $0x13e0] sm:$0xff]
        %v1515 = vld [vmem:[%s339 + $0x13e8] sm:$0xff]
        %v1516 = vld [vmem:[%s339 + $0x13f0] sm:$0xff]
        %v1517 = vld [vmem:[%s339 + $0x13f8] sm:$0xff]
        %v1518 = vld [vmem:[%s339 + $0x1400] sm:$0xff]
        %v1519 = vld [vmem:[%s339 + $0x1408] sm:$0xff]
        %v1520 = vld [vmem:[%s339 + $0x1410] sm:$0xff]
        %v1521 = vld [vmem:[%s339 + $0x1418] sm:$0xff]
        %v1522 = vld [vmem:[%s339 + $0x1420] sm:$0xff]
        %v1523 = vld [vmem:[%s339 + $0x1428] sm:$0xff]
        %v1524 = vld [vmem:[%s339 + $0x1430] sm:$0xff]
        %v1525 = vld [vmem:[%s339 + $0x1438] sm:$0xff]
        %v1526 = vld [vmem:[%s339 + $0x1440] sm:$0xff]
        %v1527 = vld [vmem:[%s339 + $0x1448] sm:$0xff]
        %v1528 = vld [vmem:[%s339 + $0x1450] sm:$0xff]
        %v1529 = vld [vmem:[%s339 + $0x1458] sm:$0xff]
        %v1530 = vld [vmem:[%s339 + $0x1460] sm:$0xff]
        %v1531 = vld [vmem:[%s339 + $0x1468] sm:$0xff]
        %v1532 = vld [vmem:[%s339 + $0x1470] sm:$0xff]
        %v1533 = vld [vmem:[%s339 + $0x1478] sm:$0xff]
        %v1534 = vld [vmem:[%s339 + $0x1480] sm:$0xff]
        %v1535 = vld [vmem:[%s339 + $0x1488] sm:$0xff]
        %v1536 = vld [vmem:[%s339 + $0x1490] sm:$0xff]
        %v1537 = vld [vmem:[%s339 + $0x1498] sm:$0xff]
        %v1538 = vld [vmem:[%s339 + $0x14a0] sm:$0xff]
        %v1539 = vld [vmem:[%s339 + $0x14a8] sm:$0xff]
        %v1540 = vld [vmem:[%s339 + $0x14b0] sm:$0xff]
        %v1541 = vld [vmem:[%s339 + $0x14b8] sm:$0xff]
        %v1542 = vld [vmem:[%s339 + $0x14c0] sm:$0xff]
        %v1543 = vld [vmem:[%s339 + $0x14c8] sm:$0xff]
        %v1544 = vld [vmem:[%s339 + $0x14d0] sm:$0xff]
        %v1545 = vld [vmem:[%s339 + $0x14d8] sm:$0xff]
        %v1546 = vld [vmem:[%s339 + $0x14e0] sm:$0xff]
        %v1547 = vld [vmem:[%s339 + $0x14e8] sm:$0xff]
        %v1548 = vld [vmem:[%s339 + $0x14f0] sm:$0xff]
        %v1549 = vld [vmem:[%s339 + $0x14f8] sm:$0xff]
        %v1550 = vld [vmem:[%s339 + $0x1500] sm:$0xff]
        %v1551 = vld [vmem:[%s339 + $0x1508] sm:$0xff]
        %v1552 = vld [vmem:[%s339 + $0x1510] sm:$0xff]
        %v1553 = vld [vmem:[%s339 + $0x1518] sm:$0xff]
        %v1554 = vld [vmem:[%s339 + $0x1520] sm:$0xff]
        %v1555 = vld [vmem:[%s339 + $0x1528] sm:$0xff]
        %v1556 = vld [vmem:[%s339 + $0x1530] sm:$0xff]
        %v1557 = vld [vmem:[%s339 + $0x1538] sm:$0xff]
        %v1558 = vld [vmem:[%s339 + $0x1540] sm:$0xff]
        %v1559 = vld [vmem:[%s339 + $0x1548] sm:$0xff]
        %v1560 = vld [vmem:[%s339 + $0x1550] sm:$0xff]
        %v1561 = vld [vmem:[%s339 + $0x1558] sm:$0xff]
        %v1562 = vld [vmem:[%s339 + $0x1560] sm:$0xff]
        %v1563 = vld [vmem:[%s339 + $0x1568] sm:$0xff]
        %v1564 = vld [vmem:[%s339 + $0x1570] sm:$0xff]
        %v1565 = vld [vmem:[%s339 + $0x1578] sm:$0xff]
        %v1566 = vld [vmem:[%s339 + $0x1580] sm:$0xff]
        %v1567 = vld [vmem:[%s339 + $0x1588] sm:$0xff]
        %v1568 = vld [vmem:[%s339 + $0x1590] sm:$0xff]
        %v1569 = vld [vmem:[%s339 + $0x1598] sm:$0xff]
        %v1570 = vld [vmem:[%s339 + $0x15a0] sm:$0xff]
        %v1571 = vld [vmem:[%s339 + $0x15a8] sm:$0xff]
        %v1572 = vld [vmem:[%s339 + $0x15b0] sm:$0xff]
        %v1573 = vld [vmem:[%s339 + $0x15b8] sm:$0xff]
        %v1574 = vld [vmem:[%s339 + $0x15c0] sm:$0xff]
        %v1575 = vld [vmem:[%s339 + $0x15c8] sm:$0xff]
        %v1576 = vld [vmem:[%s339 + $0x15d0] sm:$0xff]
        %v1577 = vld [vmem:[%s339 + $0x15d8] sm:$0xff]
        %v1578 = vld [vmem:[%s339 + $0x15e0] sm:$0xff]
        %v1579 = vld [vmem:[%s339 + $0x15e8] sm:$0xff]
        %v1580 = vld [vmem:[%s339 + $0x15f0] sm:$0xff]
        %v1581 = vld [vmem:[%s339 + $0x15f8] sm:$0xff]
        %v1582 = vld [vmem:[%s339 + $0x1600] sm:$0xff]
        %v1583 = vld [vmem:[%s339 + $0x1608] sm:$0xff]
        %v1584 = vld [vmem:[%s339 + $0x1610] sm:$0xff]
        %v1585 = vld [vmem:[%s339 + $0x1618] sm:$0xff]
        %v1586 = vld [vmem:[%s339 + $0x1620] sm:$0xff]
        %v1587 = vld [vmem:[%s339 + $0x1628] sm:$0xff]
        %v1588 = vld [vmem:[%s339 + $0x1630] sm:$0xff]
        %v1589 = vld [vmem:[%s339 + $0x1638] sm:$0xff]
        %v1590 = vld [vmem:[%s339 + $0x1640] sm:$0xff]
        %v1591 = vld [vmem:[%s339 + $0x1648] sm:$0xff]
        %v1592 = vld [vmem:[%s339 + $0x1650] sm:$0xff]
        %v1593 = vld [vmem:[%s339 + $0x1658] sm:$0xff]
        %v1594 = vld [vmem:[%s339 + $0x1660] sm:$0xff]
        %v1595 = vld [vmem:[%s339 + $0x1668] sm:$0xff]
        %v1596 = vld [vmem:[%s339 + $0x1670] sm:$0xff]
        %v1597 = vld [vmem:[%s339 + $0x1678] sm:$0xff]
        %v1598 = vld [vmem:[%s339 + $0x1680] sm:$0xff]
        %v1599 = vld [vmem:[%s339 + $0x1688] sm:$0xff]
        %v1600 = vld [vmem:[%s339 + $0x1690] sm:$0xff]
        %v1601 = vld [vmem:[%s339 + $0x1698] sm:$0xff]
        %v1602 = vld [vmem:[%s339 + $0x16a0] sm:$0xff]
        %v1603 = vld [vmem:[%s339 + $0x16a8] sm:$0xff]
        %v1604 = vld [vmem:[%s339 + $0x16b0] sm:$0xff]
        %v1605 = vld [vmem:[%s339 + $0x16b8] sm:$0xff]
        %v1606 = vld [vmem:[%s339 + $0x16c0] sm:$0xff]
        %v1607 = vld [vmem:[%s339 + $0x16c8] sm:$0xff]
        %v1608 = vld [vmem:[%s339 + $0x16d0] sm:$0xff]
        %v1609 = vld [vmem:[%s339 + $0x16d8] sm:$0xff]
        %v1610 = vld [vmem:[%s339 + $0x16e0] sm:$0xff]
        %v1611 = vld [vmem:[%s339 + $0x16e8] sm:$0xff]
        %v1612 = vld [vmem:[%s339 + $0x16f0] sm:$0xff]
        %v1613 = vld [vmem:[%s339 + $0x16f8] sm:$0xff]
        %v1614 = vld [vmem:[%s339 + $0x1700] sm:$0xff]
        %v1615 = vld [vmem:[%s339 + $0x1708] sm:$0xff]
        %v1616 = vld [vmem:[%s339 + $0x1710] sm:$0xff]
        %v1617 = vld [vmem:[%s339 + $0x1718] sm:$0xff]
        %v1618 = vld [vmem:[%s339 + $0x1720] sm:$0xff]
        %v1619 = vld [vmem:[%s339 + $0x1728] sm:$0xff]
        %v1620 = vld [vmem:[%s339 + $0x1730] sm:$0xff]
        %v1621 = vld [vmem:[%s339 + $0x1738] sm:$0xff]
        %v1622 = vld [vmem:[%s339 + $0x1740] sm:$0xff]
        %v1623 = vld [vmem:[%s339 + $0x1748] sm:$0xff]
        %v1624 = vld [vmem:[%s339 + $0x1750] sm:$0xff]
        %v1625 = vld [vmem:[%s339 + $0x1758] sm:$0xff]
        %v1626 = vld [vmem:[%s339 + $0x1760] sm:$0xff]
        %v1627 = vld [vmem:[%s339 + $0x1768] sm:$0xff]
        %v1628 = vld [vmem:[%s339 + $0x1770] sm:$0xff]
        %v1629 = vld [vmem:[%s339 + $0x1778] sm:$0xff]
        %v1630 = vld [vmem:[%s339 + $0x1780] sm:$0xff]
        %v1631 = vld [vmem:[%s339 + $0x1788] sm:$0xff]
        %v1632 = vld [vmem:[%s339 + $0x1790] sm:$0xff]
        %v1633 = vld [vmem:[%s339 + $0x1798] sm:$0xff]
        %v1634 = vld [vmem:[%s339 + $0x17a0] sm:$0xff]
        %v1635 = vld [vmem:[%s339 + $0x17a8] sm:$0xff]
        %v1636 = vld [vmem:[%s339 + $0x17b0] sm:$0xff]
        %v1637 = vld [vmem:[%s339 + $0x17b8] sm:$0xff]
        %v1638 = vld [vmem:[%s339 + $0x17c0] sm:$0xff]
        %v1639 = vld [vmem:[%s339 + $0x17c8] sm:$0xff]
        %v1640 = vld [vmem:[%s339 + $0x17d0] sm:$0xff]
        %v1641 = vld [vmem:[%s339 + $0x17d8] sm:$0xff]
        %v1642 = vld [vmem:[%s339 + $0x17e0] sm:$0xff]
        %v1643 = vld [vmem:[%s339 + $0x17e8] sm:$0xff]
        %v1644 = vld [vmem:[%s339 + $0x17f0] sm:$0xff]
        %v1645 = vld [vmem:[%s339 + $0x17f8] sm:$0xff]
        %v1646 = vld [vmem:[%s339 + $0x1800] sm:$0xff]
        %v1647 = vld [vmem:[%s339 + $0x1808] sm:$0xff]
        %v1648 = vld [vmem:[%s339 + $0x1810] sm:$0xff]
        %v1649 = vld [vmem:[%s339 + $0x1818] sm:$0xff]
        %v1650 = vld [vmem:[%s339 + $0x1820] sm:$0xff]
        %v1651 = vld [vmem:[%s339 + $0x1828] sm:$0xff]
        %v1652 = vld [vmem:[%s339 + $0x1830] sm:$0xff]
        %v1653 = vld [vmem:[%s339 + $0x1838] sm:$0xff]
        %v1654 = vld [vmem:[%s339 + $0x1840] sm:$0xff]
        %v1655 = vld [vmem:[%s339 + $0x1848] sm:$0xff]
        %v1656 = vld [vmem:[%s339 + $0x1850] sm:$0xff]
        %v1657 = vld [vmem:[%s339 + $0x1858] sm:$0xff]
        %v1658 = vld [vmem:[%s339 + $0x1860] sm:$0xff]
        %v1659 = vld [vmem:[%s339 + $0x1868] sm:$0xff]
        %v1660 = vld [vmem:[%s339 + $0x1870] sm:$0xff]
        %v1661 = vld [vmem:[%s339 + $0x1878] sm:$0xff]
        %v1662 = vld [vmem:[%s339 + $0x1880] sm:$0xff]
        %v1663 = vld [vmem:[%s339 + $0x1888] sm:$0xff]
        %v1664 = vld [vmem:[%s339 + $0x1890] sm:$0xff]
        %v1665 = vld [vmem:[%s339 + $0x1898] sm:$0xff]
        %v1666 = vld [vmem:[%s339 + $0x18a0] sm:$0xff]
        %v1667 = vld [vmem:[%s339 + $0x18a8] sm:$0xff]
        %v1668 = vld [vmem:[%s339 + $0x18b0] sm:$0xff]
        %v1669 = vld [vmem:[%s339 + $0x18b8] sm:$0xff]
        %v1670 = vld [vmem:[%s339 + $0x18c0] sm:$0xff]
        %v1671 = vld [vmem:[%s339 + $0x18c8] sm:$0xff]
        %v1672 = vld [vmem:[%s339 + $0x18d0] sm:$0xff]
        %v1673 = vld [vmem:[%s339 + $0x18d8] sm:$0xff]
        %v1674 = vld [vmem:[%s339 + $0x18e0] sm:$0xff]
        %v1675 = vld [vmem:[%s339 + $0x18e8] sm:$0xff]
        %v1676 = vld [vmem:[%s339 + $0x18f0] sm:$0xff]
        %v1677 = vld [vmem:[%s339 + $0x18f8] sm:$0xff]
        %v1678 = vld [vmem:[%s339 + $0x1900] sm:$0xff]
        %v1679 = vld [vmem:[%s339 + $0x1908] sm:$0xff]
        %v1680 = vld [vmem:[%s339 + $0x1910] sm:$0xff]
        %v1681 = vld [vmem:[%s339 + $0x1918] sm:$0xff]
        %v1682 = vld [vmem:[%s339 + $0x1920] sm:$0xff]
        %v1683 = vld [vmem:[%s339 + $0x1928] sm:$0xff]
        %v1684 = vld [vmem:[%s339 + $0x1930] sm:$0xff]
        %v1685 = vld [vmem:[%s339 + $0x1938] sm:$0xff]
        %v1686 = vld [vmem:[%s339 + $0x1940] sm:$0xff]
        %v1687 = vld [vmem:[%s339 + $0x1948] sm:$0xff]
        %v1688 = vld [vmem:[%s339 + $0x1950] sm:$0xff]
        %v1689 = vld [vmem:[%s339 + $0x1958] sm:$0xff]
        %v1690 = vld [vmem:[%s339 + $0x1960] sm:$0xff]
        %v1691 = vld [vmem:[%s339 + $0x1968] sm:$0xff]
        %v1692 = vld [vmem:[%s339 + $0x1970] sm:$0xff]
        %v1693 = vld [vmem:[%s339 + $0x1978] sm:$0xff]
        %v1694 = vld [vmem:[%s339 + $0x1980] sm:$0xff]
        %v1695 = vld [vmem:[%s339 + $0x1988] sm:$0xff]
        %v1696 = vld [vmem:[%s339 + $0x1990] sm:$0xff]
        %v1697 = vld [vmem:[%s339 + $0x1998] sm:$0xff]
        %v1698 = vld [vmem:[%s339 + $0x19a0] sm:$0xff]
        %v1699 = vld [vmem:[%s339 + $0x19a8] sm:$0xff]
        %v1700 = vld [vmem:[%s339 + $0x19b0] sm:$0xff]
        %v1701 = vld [vmem:[%s339 + $0x19b8] sm:$0xff]
        %v1702 = vld [vmem:[%s339 + $0x19c0] sm:$0xff]
        %v1703 = vld [vmem:[%s339 + $0x19c8] sm:$0xff]
        %v1704 = vld [vmem:[%s339 + $0x19d0] sm:$0xff]
        %v1705 = vld [vmem:[%s339 + $0x19d8] sm:$0xff]
        %v1706 = vld [vmem:[%s339 + $0x19e0] sm:$0xff]
        %v1707 = vld [vmem:[%s339 + $0x19e8] sm:$0xff]
        %v1708 = vld [vmem:[%s339 + $0x19f0] sm:$0xff]
        %v1709 = vld [vmem:[%s339 + $0x19f8] sm:$0xff]
        %v1710 = vld [vmem:[%s339 + $0x1a00] sm:$0xff]
        %v1711 = vld [vmem:[%s339 + $0x1a08] sm:$0xff]
        %v1712 = vld [vmem:[%s339 + $0x1a10] sm:$0xff]
        %v1713 = vld [vmem:[%s339 + $0x1a18] sm:$0xff]
        %v1714 = vld [vmem:[%s339 + $0x1a20] sm:$0xff]
        %v1715 = vld [vmem:[%s339 + $0x1a28] sm:$0xff]
        %v1716 = vld [vmem:[%s339 + $0x1a30] sm:$0xff]
        %v1717 = vld [vmem:[%s339 + $0x1a38] sm:$0xff]
        %v1718 = vld [vmem:[%s339 + $0x1a40] sm:$0xff]
        %v1719 = vld [vmem:[%s339 + $0x1a48] sm:$0xff]
        %v1720 = vld [vmem:[%s339 + $0x1a50] sm:$0xff]
        %v1721 = vld [vmem:[%s339 + $0x1a58] sm:$0xff]
        %v1722 = vld [vmem:[%s339 + $0x1a60] sm:$0xff]
        %v1723 = vld [vmem:[%s339 + $0x1a68] sm:$0xff]
        %v1724 = vld [vmem:[%s339 + $0x1a70] sm:$0xff]
        %v1725 = vld [vmem:[%s339 + $0x1a78] sm:$0xff]
        %v1726 = vld [vmem:[%s339 + $0x1a80] sm:$0xff]
        %v1727 = vld [vmem:[%s339 + $0x1a88] sm:$0xff]
        %v1728 = vld [vmem:[%s339 + $0x1a90] sm:$0xff]
        %v1729 = vld [vmem:[%s339 + $0x1a98] sm:$0xff]
        %v1730 = vld [vmem:[%s339 + $0x1aa0] sm:$0xff]
        %v1731 = vld [vmem:[%s339 + $0x1aa8] sm:$0xff]
        %v1732 = vld [vmem:[%s339 + $0x1ab0] sm:$0xff]
        %v1733 = vld [vmem:[%s339 + $0x1ab8] sm:$0xff]
        %v1734 = vld [vmem:[%s339 + $0x1ac0] sm:$0xff]
        %v1735 = vld [vmem:[%s339 + $0x1ac8] sm:$0xff]
        %v1736 = vld [vmem:[%s339 + $0x1ad0] sm:$0xff]
        %v1737 = vld [vmem:[%s339 + $0x1ad8] sm:$0xff]
        %v1738 = vld [vmem:[%s339 + $0x1ae0] sm:$0xff]
        %v1739 = vld [vmem:[%s339 + $0x1ae8] sm:$0xff]
        %v1740 = vld [vmem:[%s339 + $0x1af0] sm:$0xff]
        %v1741 = vld [vmem:[%s339 + $0x1af8] sm:$0xff]
        %v1742 = vld [vmem:[%s339 + $0x1b00] sm:$0xff]
        %v1743 = vld [vmem:[%s339 + $0x1b08] sm:$0xff]
        %v1744 = vld [vmem:[%s339 + $0x1b10] sm:$0xff]
        %v1745 = vld [vmem:[%s339 + $0x1b18] sm:$0xff]
        %v1746 = vld [vmem:[%s339 + $0x1b20] sm:$0xff]
        %v1747 = vld [vmem:[%s339 + $0x1b28] sm:$0xff]
        %v1748 = vld [vmem:[%s339 + $0x1b30] sm:$0xff]
        %v1749 = vld [vmem:[%s339 + $0x1b38] sm:$0xff]
        %v1750 = vld [vmem:[%s339 + $0x1b40] sm:$0xff]
        %v1751 = vld [vmem:[%s339 + $0x1b48] sm:$0xff]
        %v1752 = vld [vmem:[%s339 + $0x1b50] sm:$0xff]
        %v1753 = vld [vmem:[%s339 + $0x1b58] sm:$0xff]
        %v1754 = vld [vmem:[%s339 + $0x1b60] sm:$0xff]
        %v1755 = vld [vmem:[%s339 + $0x1b68] sm:$0xff]
        %v1756 = vld [vmem:[%s339 + $0x1b70] sm:$0xff]
        %v1757 = vld [vmem:[%s339 + $0x1b78] sm:$0xff]
        %v1758 = vld [vmem:[%s339 + $0x1b80] sm:$0xff]
        %v1759 = vld [vmem:[%s339 + $0x1b88] sm:$0xff]
        %v1760 = vld [vmem:[%s339 + $0x1b90] sm:$0xff]
        %v1761 = vld [vmem:[%s339 + $0x1b98] sm:$0xff]
        %v1762 = vld [vmem:[%s339 + $0x1ba0] sm:$0xff]
        %v1763 = vld [vmem:[%s339 + $0x1ba8] sm:$0xff]
        %v1764 = vld [vmem:[%s339 + $0x1bb0] sm:$0xff]
        %v1765 = vld [vmem:[%s339 + $0x1bb8] sm:$0xff]
        %v1766 = vld [vmem:[%s339 + $0x1bc0] sm:$0xff]
        %v1767 = vld [vmem:[%s339 + $0x1bc8] sm:$0xff]
        %v1768 = vld [vmem:[%s339 + $0x1bd0] sm:$0xff]
        %v1769 = vld [vmem:[%s339 + $0x1bd8] sm:$0xff]
        %v1770 = vld [vmem:[%s339 + $0x1be0] sm:$0xff]
        %v1771 = vld [vmem:[%s339 + $0x1be8] sm:$0xff]
        %v1772 = vld [vmem:[%s339 + $0x1bf0] sm:$0xff]
        %v1773 = vld [vmem:[%s339 + $0x1bf8] sm:$0xff]
        %v1774 = vld [vmem:[%s339 + $0x1c00] sm:$0xff]
        %v1775 = vld [vmem:[%s339 + $0x1c08] sm:$0xff]
        %v1776 = vld [vmem:[%s339 + $0x1c10] sm:$0xff]
        %v1777 = vld [vmem:[%s339 + $0x1c18] sm:$0xff]
        %v1778 = vld [vmem:[%s339 + $0x1c20] sm:$0xff]
        %v1779 = vld [vmem:[%s339 + $0x1c28] sm:$0xff]
        %v1780 = vld [vmem:[%s339 + $0x1c30] sm:$0xff]
        %v1781 = vld [vmem:[%s339 + $0x1c38] sm:$0xff]
        %v1782 = vld [vmem:[%s339 + $0x1c40] sm:$0xff]
        %v1783 = vld [vmem:[%s339 + $0x1c48] sm:$0xff]
        %v1784 = vld [vmem:[%s339 + $0x1c50] sm:$0xff]
        %v1785 = vld [vmem:[%s339 + $0x1c58] sm:$0xff]
        %v1786 = vld [vmem:[%s339 + $0x1c60] sm:$0xff]
        %v1787 = vld [vmem:[%s339 + $0x1c68] sm:$0xff]
        %v1788 = vld [vmem:[%s339 + $0x1c70] sm:$0xff]
        %v1789 = vld [vmem:[%s339 + $0x1c78] sm:$0xff]
        %v1790 = vld [vmem:[%s339 + $0x1c80] sm:$0xff]
        %v1791 = vld [vmem:[%s339 + $0x1c88] sm:$0xff]
        %v1792 = vld [vmem:[%s339 + $0x1c90] sm:$0xff]
        %v1793 = vld [vmem:[%s339 + $0x1c98] sm:$0xff]
        %v1794 = vld [vmem:[%s339 + $0x1ca0] sm:$0xff]
        %v1795 = vld [vmem:[%s339 + $0x1ca8] sm:$0xff]
        %v1796 = vld [vmem:[%s339 + $0x1cb0] sm:$0xff]
        %v1797 = vld [vmem:[%s339 + $0x1cb8] sm:$0xff]
        %v1798 = vld [vmem:[%s339 + $0x1cc0] sm:$0xff]
        %v1799 = vld [vmem:[%s339 + $0x1cc8] sm:$0xff]
        %v1800 = vld [vmem:[%s339 + $0x1cd0] sm:$0xff]
        %v1801 = vld [vmem:[%s339 + $0x1cd8] sm:$0xff]
        %v1802 = vld [vmem:[%s339 + $0x1ce0] sm:$0xff]
        %v1803 = vld [vmem:[%s339 + $0x1ce8] sm:$0xff]
        %v1804 = vld [vmem:[%s339 + $0x1cf0] sm:$0xff]
        %v1805 = vld [vmem:[%s339 + $0x1cf8] sm:$0xff]
        %v1806 = vld [vmem:[%s339 + $0x1d00] sm:$0xff]
        %v1807 = vld [vmem:[%s339 + $0x1d08] sm:$0xff]
        %v1808 = vld [vmem:[%s339 + $0x1d10] sm:$0xff]
        %v1809 = vld [vmem:[%s339 + $0x1d18] sm:$0xff]
        %v1810 = vld [vmem:[%s339 + $0x1d20] sm:$0xff]
        %v1811 = vld [vmem:[%s339 + $0x1d28] sm:$0xff]
        %v1812 = vld [vmem:[%s339 + $0x1d30] sm:$0xff]
        %v1813 = vld [vmem:[%s339 + $0x1d38] sm:$0xff]
        %v1814 = vld [vmem:[%s339 + $0x1d40] sm:$0xff]
        %v1815 = vld [vmem:[%s339 + $0x1d48] sm:$0xff]
        %v1816 = vld [vmem:[%s339 + $0x1d50] sm:$0xff]
        %v1817 = vld [vmem:[%s339 + $0x1d58] sm:$0xff]
        %v1818 = vld [vmem:[%s339 + $0x1d60] sm:$0xff]
        %v1819 = vld [vmem:[%s339 + $0x1d68] sm:$0xff]
        %v1820 = vld [vmem:[%s339 + $0x1d70] sm:$0xff]
        %v1821 = vld [vmem:[%s339 + $0x1d78] sm:$0xff]
        %v1822 = vld [vmem:[%s339 + $0x1d80] sm:$0xff]
        %v1823 = vld [vmem:[%s339 + $0x1d88] sm:$0xff]
        %v1824 = vld [vmem:[%s339 + $0x1d90] sm:$0xff]
        %v1825 = vld [vmem:[%s339 + $0x1d98] sm:$0xff]
        %v1826 = vld [vmem:[%s339 + $0x1da0] sm:$0xff]
        %v1827 = vld [vmem:[%s339 + $0x1da8] sm:$0xff]
        %v1828 = vld [vmem:[%s339 + $0x1db0] sm:$0xff]
        %v1829 = vld [vmem:[%s339 + $0x1db8] sm:$0xff]
        %v1830 = vld [vmem:[%s339 + $0x1dc0] sm:$0xff]
        %v1831 = vld [vmem:[%s339 + $0x1dc8] sm:$0xff]
        %v1832 = vld [vmem:[%s339 + $0x1dd0] sm:$0xff]
        %v1833 = vld [vmem:[%s339 + $0x1dd8] sm:$0xff]
        %v1834 = vld [vmem:[%s339 + $0x1de0] sm:$0xff]
        %v1835 = vld [vmem:[%s339 + $0x1de8] sm:$0xff]
        %v1836 = vld [vmem:[%s339 + $0x1df0] sm:$0xff]
        %v1837 = vld [vmem:[%s339 + $0x1df8] sm:$0xff]
        %v1838 = vld [vmem:[%s339 + $0x1e00] sm:$0xff]
        %v1839 = vld [vmem:[%s339 + $0x1e08] sm:$0xff]
        %v1840 = vld [vmem:[%s339 + $0x1e10] sm:$0xff]
        %v1841 = vld [vmem:[%s339 + $0x1e18] sm:$0xff]
        %v1842 = vld [vmem:[%s339 + $0x1e20] sm:$0xff]
        %v1843 = vld [vmem:[%s339 + $0x1e28] sm:$0xff]
        %v1844 = vld [vmem:[%s339 + $0x1e30] sm:$0xff]
        %v1845 = vld [vmem:[%s339 + $0x1e38] sm:$0xff]
        %v1846 = vld [vmem:[%s339 + $0x1e40] sm:$0xff]
        %v1847 = vld [vmem:[%s339 + $0x1e48] sm:$0xff]
        %v1848 = vld [vmem:[%s339 + $0x1e50] sm:$0xff]
        %v1849 = vld [vmem:[%s339 + $0x1e58] sm:$0xff]
        %v1850 = vld [vmem:[%s339 + $0x1e60] sm:$0xff]
        %v1851 = vld [vmem:[%s339 + $0x1e68] sm:$0xff]
        %v1852 = vld [vmem:[%s339 + $0x1e70] sm:$0xff]
        %v1853 = vld [vmem:[%s339 + $0x1e78] sm:$0xff]
        %v1854 = vld [vmem:[%s339 + $0x1e80] sm:$0xff]
        %v1855 = vld [vmem:[%s339 + $0x1e88] sm:$0xff]
        %v1856 = vld [vmem:[%s339 + $0x1e90] sm:$0xff]
        %v1857 = vld [vmem:[%s339 + $0x1e98] sm:$0xff]
        %v1858 = vld [vmem:[%s339 + $0x1ea0] sm:$0xff]
        %v1859 = vld [vmem:[%s339 + $0x1ea8] sm:$0xff]
        %v1860 = vld [vmem:[%s339 + $0x1eb0] sm:$0xff]
        %v1861 = vld [vmem:[%s339 + $0x1eb8] sm:$0xff]
        %v1862 = vld [vmem:[%s339 + $0x1ec0] sm:$0xff]
        %v1863 = vld [vmem:[%s339 + $0x1ec8] sm:$0xff]
        %v1864 = vld [vmem:[%s339 + $0x1ed0] sm:$0xff]
        %v1865 = vld [vmem:[%s339 + $0x1ed8] sm:$0xff]
        %v1866 = vld [vmem:[%s339 + $0x1ee0] sm:$0xff]
        %v1867 = vld [vmem:[%s339 + $0x1ee8] sm:$0xff]
        %v1868 = vld [vmem:[%s339 + $0x1ef0] sm:$0xff]
        %v1869 = vld [vmem:[%s339 + $0x1ef8] sm:$0xff]
        %v1870 = vld [vmem:[%s339 + $0x1f00] sm:$0xff]
        %v1871 = vld [vmem:[%s339 + $0x1f08] sm:$0xff]
        %v1872 = vld [vmem:[%s339 + $0x1f10] sm:$0xff]
        %v1873 = vld [vmem:[%s339 + $0x1f18] sm:$0xff]
        %v1874 = vld [vmem:[%s339 + $0x1f20] sm:$0xff]
        %v1875 = vld [vmem:[%s339 + $0x1f28] sm:$0xff]
        %v1876 = vld [vmem:[%s339 + $0x1f30] sm:$0xff]
        %v1877 = vld [vmem:[%s339 + $0x1f38] sm:$0xff]
        %v1878 = vld [vmem:[%s339 + $0x1f40] sm:$0xff]
        %v1879 = vld [vmem:[%s339 + $0x1f48] sm:$0xff]
        %v1880 = vld [vmem:[%s339 + $0x1f50] sm:$0xff]
        %v1881 = vld [vmem:[%s339 + $0x1f58] sm:$0xff]
        %v1882 = vld [vmem:[%s339 + $0x1f60] sm:$0xff]
        %v1883 = vld [vmem:[%s339 + $0x1f68] sm:$0xff]
        %v1884 = vld [vmem:[%s339 + $0x1f70] sm:$0xff]
        %v1885 = vld [vmem:[%s339 + $0x1f78] sm:$0xff]
        %v1886 = vld [vmem:[%s339 + $0x1f80] sm:$0xff]
        %v1887 = vld [vmem:[%s339 + $0x1f88] sm:$0xff]
        %v1888 = vld [vmem:[%s339 + $0x1f90] sm:$0xff]
        %v1889 = vld [vmem:[%s339 + $0x1f98] sm:$0xff]
        %v1890 = vld [vmem:[%s339 + $0x1fa0] sm:$0xff]
        %v1891 = vld [vmem:[%s339 + $0x1fa8] sm:$0xff]
        %v1892 = vld [vmem:[%s339 + $0x1fb0] sm:$0xff]
        %v1893 = vld [vmem:[%s339 + $0x1fb8] sm:$0xff]
        %v1894 = vld [vmem:[%s339 + $0x1fc0] sm:$0xff]
        %v1895 = vld [vmem:[%s339 + $0x1fc8] sm:$0xff]
        %v1896 = vld [vmem:[%s339 + $0x1fd0] sm:$0xff]
        %v1897 = vld [vmem:[%s339 + $0x1fd8] sm:$0xff]
        %v1898 = vld [vmem:[%s339 + $0x1fe0] sm:$0xff]
        %v1899 = vld [vmem:[%s339 + $0x1fe8] sm:$0xff]
        %v1900 = vld [vmem:[%s339 + $0x1ff0] sm:$0xff]
        %v1901 = vld [vmem:[%s339 + $0x1ff8] sm:$0xff]
        %v1902 = vld [vmem:[%s349] sm:$0xff]
        %v1904 = vperm.slane %v1902, 0
        %v1905 = vperm.slane %v1902, 1
        %v1906 = vperm.slane %v1902, 2
        %v1907 = vperm.slane %v1902, 3
        %v1908 = vperm.slane %v1902, 4
        %v1909 = vperm.slane %v1902, 5
        %v1910 = vperm.slane %v1902, 6
        %v1911 = vperm.slane %v1902, 7
        %v1928 = vunpack.c.l.b16 %v870
        %v1929 = vunpack.c.h.b16 %v870
        %v1930 = vunpack.c.l.b16 %v871
        %v1931 = vunpack.c.h.b16 %v871
        %v1932 = vunpack.c.l.b16 %v872
        %v1933 = vunpack.c.h.b16 %v872
        %v1934 = vunpack.c.l.b16 %v873
        %v1935 = vunpack.c.h.b16 %v873
        %v1936 = vunpack.c.l.b16 %v874
        %v1937 = vunpack.c.h.b16 %v874
        %v1938 = vunpack.c.l.b16 %v875
        %v1939 = vunpack.c.h.b16 %v875
        %v1940 = vunpack.c.l.b16 %v876
        %v1941 = vunpack.c.h.b16 %v876
        %v1942 = vunpack.c.l.b16 %v877
        %v1943 = vunpack.c.h.b16 %v877
        %v1944 = vpack.c.b16 %v1928, %v1928
        %v1945 = vpack.c.b16 %v1929, %v1929
        %v1946 = vpack.c.b16 %v1930, %v1930
        %v1947 = vpack.c.b16 %v1931, %v1931
        %v1948 = vpack.c.b16 %v1932, %v1932
        %v1949 = vpack.c.b16 %v1933, %v1933
        %v1950 = vpack.c.b16 %v1934, %v1934
        %v1951 = vpack.c.b16 %v1935, %v1935
        %v1952 = vpack.c.b16 %v1936, %v1936
        %v1953 = vpack.c.b16 %v1937, %v1937
        %v1954 = vpack.c.b16 %v1938, %v1938
        %v1955 = vpack.c.b16 %v1939, %v1939
        %v1956 = vpack.c.b16 %v1940, %v1940
        %v1957 = vpack.c.b16 %v1941, %v1941
        %v1958 = vpack.c.b16 %v1942, %v1942
        %v1959 = vpack.c.b16 %v1943, %v1943
        %v3000 = vunpack.c.l.b16 %v878
        %v3001 = vunpack.c.h.b16 %v878
        %v3002 = vunpack.c.l.b16 %v879
        %v3003 = vunpack.c.h.b16 %v879
        %v3004 = vunpack.c.l.b16 %v880
        %v3005 = vunpack.c.h.b16 %v880
        %v3006 = vunpack.c.l.b16 %v881
        %v3007 = vunpack.c.h.b16 %v881
        %v3008 = vunpack.c.l.b16 %v882
        %v3009 = vunpack.c.h.b16 %v882
        %v3010 = vunpack.c.l.b16 %v883
        %v3011 = vunpack.c.h.b16 %v883
        %v3012 = vunpack.c.l.b16 %v884
        %v3013 = vunpack.c.h.b16 %v884
        %v3014 = vunpack.c.l.b16 %v885
        %v3015 = vunpack.c.h.b16 %v885
        %v3016 = vunpack.c.l.b16 %v886
        %v3017 = vunpack.c.h.b16 %v886
        %v3018 = vunpack.c.l.b16 %v887
        %v3019 = vunpack.c.h.b16 %v887
        %v3020 = vunpack.c.l.b16 %v888
        %v3021 = vunpack.c.h.b16 %v888
        %v3022 = vunpack.c.l.b16 %v889
        %v3023 = vunpack.c.h.b16 %v889
        %v3024 = vunpack.c.l.b16 %v890
        %v3025 = vunpack.c.h.b16 %v890
        %v3026 = vunpack.c.l.b16 %v891
        %v3027 = vunpack.c.h.b16 %v891
        %v3028 = vunpack.c.l.b16 %v892
        %v3029 = vunpack.c.h.b16 %v892
        %v3030 = vunpack.c.l.b16 %v893
        %v3031 = vunpack.c.h.b16 %v893
        %v3032 = vunpack.c.l.b16 %v894
        %v3033 = vunpack.c.h.b16 %v894
        %v3034 = vunpack.c.l.b16 %v895
        %v3035 = vunpack.c.h.b16 %v895
        %v3036 = vunpack.c.l.b16 %v896
        %v3037 = vunpack.c.h.b16 %v896
        %v3038 = vunpack.c.l.b16 %v897
        %v3039 = vunpack.c.h.b16 %v897
        %v3040 = vunpack.c.l.b16 %v898
        %v3041 = vunpack.c.h.b16 %v898
        %v3042 = vunpack.c.l.b16 %v899
        %v3043 = vunpack.c.h.b16 %v899
        %v3044 = vunpack.c.l.b16 %v900
        %v3045 = vunpack.c.h.b16 %v900
        %v3046 = vunpack.c.l.b16 %v901
        %v3047 = vunpack.c.h.b16 %v901
        %v3048 = vunpack.c.l.b16 %v902
        %v3049 = vunpack.c.h.b16 %v902
        %v3050 = vunpack.c.l.b16 %v903
        %v3051 = vunpack.c.h.b16 %v903
        %v3052 = vunpack.c.l.b16 %v904
        %v3053 = vunpack.c.h.b16 %v904
        %v3054 = vunpack.c.l.b16 %v905
        %v3055 = vunpack.c.h.b16 %v905
        %v3056 = vunpack.c.l.b16 %v906
        %v3057 = vunpack.c.h.b16 %v906
        %v3058 = vunpack.c.l.b16 %v907
        %v3059 = vunpack.c.h.b16 %v907
        %v3060 = vunpack.c.l.b16 %v908
        %v3061 = vunpack.c.h.b16 %v908
        %v3062 = vunpack.c.l.b16 %v909
        %v3063 = vunpack.c.h.b16 %v909
        %v3064 = vunpack.c.l.b16 %v910
        %v3065 = vunpack.c.h.b16 %v910
        %v3066 = vunpack.c.l.b16 %v911
        %v3067 = vunpack.c.h.b16 %v911
        %v3068 = vunpack.c.l.b16 %v912
        %v3069 = vunpack.c.h.b16 %v912
        %v3070 = vunpack.c.l.b16 %v913
        %v3071 = vunpack.c.h.b16 %v913
        %v3072 = vunpack.c.l.b16 %v914
        %v3073 = vunpack.c.h.b16 %v914
        %v3074 = vunpack.c.l.b16 %v915
        %v3075 = vunpack.c.h.b16 %v915
        %v3076 = vunpack.c.l.b16 %v916
        %v3077 = vunpack.c.h.b16 %v916
        %v3078 = vunpack.c.l.b16 %v917
        %v3079 = vunpack.c.h.b16 %v917
        %v3080 = vunpack.c.l.b16 %v918
        %v3081 = vunpack.c.h.b16 %v918
        %v3082 = vunpack.c.l.b16 %v919
        %v3083 = vunpack.c.h.b16 %v919
        %v3084 = vunpack.c.l.b16 %v920
        %v3085 = vunpack.c.h.b16 %v920
        %v3086 = vunpack.c.l.b16 %v921
        %v3087 = vunpack.c.h.b16 %v921
        %v3088 = vunpack.c.l.b16 %v922
        %v3089 = vunpack.c.h.b16 %v922
        %v3090 = vunpack.c.l.b16 %v923
        %v3091 = vunpack.c.h.b16 %v923
        %v3092 = vunpack.c.l.b16 %v924
        %v3093 = vunpack.c.h.b16 %v924
        %v3094 = vunpack.c.l.b16 %v925
        %v3095 = vunpack.c.h.b16 %v925
        %v3096 = vunpack.c.l.b16 %v926
        %v3097 = vunpack.c.h.b16 %v926
        %v3098 = vunpack.c.l.b16 %v927
        %v3099 = vunpack.c.h.b16 %v927
        %v3100 = vunpack.c.l.b16 %v928
        %v3101 = vunpack.c.h.b16 %v928
        %v3102 = vunpack.c.l.b16 %v929
        %v3103 = vunpack.c.h.b16 %v929
        %v3104 = vunpack.c.l.b16 %v930
        %v3105 = vunpack.c.h.b16 %v930
        %v3106 = vunpack.c.l.b16 %v931
        %v3107 = vunpack.c.h.b16 %v931
        %v3108 = vunpack.c.l.b16 %v932
        %v3109 = vunpack.c.h.b16 %v932
        %v3110 = vunpack.c.l.b16 %v933
        %v3111 = vunpack.c.h.b16 %v933
        %v3112 = vunpack.c.l.b16 %v934
        %v3113 = vunpack.c.h.b16 %v934
        %v3114 = vunpack.c.l.b16 %v935
        %v3115 = vunpack.c.h.b16 %v935
        %v3116 = vunpack.c.l.b16 %v936
        %v3117 = vunpack.c.h.b16 %v936
        %v3118 = vunpack.c.l.b16 %v937
        %v3119 = vunpack.c.h.b16 %v937
        %v3120 = vunpack.c.l.b16 %v938
        %v3121 = vunpack.c.h.b16 %v938
        %v3122 = vunpack.c.l.b16 %v939
        %v3123 = vunpack.c.h.b16 %v939
        %v3124 = vunpack.c.l.b16 %v940
        %v3125 = vunpack.c.h.b16 %v940
        %v3126 = vunpack.c.l.b16 %v941
        %v3127 = vunpack.c.h.b16 %v941
        %v3128 = vunpack.c.l.b16 %v942
        %v3129 = vunpack.c.h.b16 %v942
        %v3130 = vunpack.c.l.b16 %v943
        %v3131 = vunpack.c.h.b16 %v943
        %v3132 = vunpack.c.l.b16 %v944
        %v3133 = vunpack.c.h.b16 %v944
        %v3134 = vunpack.c.l.b16 %v945
        %v3135 = vunpack.c.h.b16 %v945
        %v3136 = vunpack.c.l.b16 %v946
        %v3137 = vunpack.c.h.b16 %v946
        %v3138 = vunpack.c.l.b16 %v947
        %v3139 = vunpack.c.h.b16 %v947
        %v3140 = vunpack.c.l.b16 %v948
        %v3141 = vunpack.c.h.b16 %v948
        %v3142 = vunpack.c.l.b16 %v949
        %v3143 = vunpack.c.h.b16 %v949
        %v3144 = vunpack.c.l.b16 %v950
        %v3145 = vunpack.c.h.b16 %v950
        %v3146 = vunpack.c.l.b16 %v951
        %v3147 = vunpack.c.h.b16 %v951
        %v3148 = vunpack.c.l.b16 %v952
        %v3149 = vunpack.c.h.b16 %v952
        %v3150 = vunpack.c.l.b16 %v953
        %v3151 = vunpack.c.h.b16 %v953
        %v3152 = vunpack.c.l.b16 %v954
        %v3153 = vunpack.c.h.b16 %v954
        %v3154 = vunpack.c.l.b16 %v955
        %v3155 = vunpack.c.h.b16 %v955
        %v3156 = vunpack.c.l.b16 %v956
        %v3157 = vunpack.c.h.b16 %v956
        %v3158 = vunpack.c.l.b16 %v957
        %v3159 = vunpack.c.h.b16 %v957
        %v3160 = vunpack.c.l.b16 %v958
        %v3161 = vunpack.c.h.b16 %v958
        %v3162 = vunpack.c.l.b16 %v959
        %v3163 = vunpack.c.h.b16 %v959
        %v3164 = vunpack.c.l.b16 %v960
        %v3165 = vunpack.c.h.b16 %v960
        %v3166 = vunpack.c.l.b16 %v961
        %v3167 = vunpack.c.h.b16 %v961
        %v3168 = vunpack.c.l.b16 %v962
        %v3169 = vunpack.c.h.b16 %v962
        %v3170 = vunpack.c.l.b16 %v963
        %v3171 = vunpack.c.h.b16 %v963
        %v3172 = vunpack.c.l.b16 %v964
        %v3173 = vunpack.c.h.b16 %v964
        %v3174 = vunpack.c.l.b16 %v965
        %v3175 = vunpack.c.h.b16 %v965
        %v3176 = vunpack.c.l.b16 %v966
        %v3177 = vunpack.c.h.b16 %v966
        %v3178 = vunpack.c.l.b16 %v967
        %v3179 = vunpack.c.h.b16 %v967
        %v3180 = vunpack.c.l.b16 %v968
        %v3181 = vunpack.c.h.b16 %v968
        %v3182 = vunpack.c.l.b16 %v969
        %v3183 = vunpack.c.h.b16 %v969
        %v3184 = vunpack.c.l.b16 %v970
        %v3185 = vunpack.c.h.b16 %v970
        %v3186 = vunpack.c.l.b16 %v971
        %v3187 = vunpack.c.h.b16 %v971
        %v3188 = vunpack.c.l.b16 %v972
        %v3189 = vunpack.c.h.b16 %v972
        %v3190 = vunpack.c.l.b16 %v973
        %v3191 = vunpack.c.h.b16 %v973
        %v3192 = vunpack.c.l.b16 %v974
        %v3193 = vunpack.c.h.b16 %v974
        %v3194 = vunpack.c.l.b16 %v975
        %v3195 = vunpack.c.h.b16 %v975
        %v3196 = vunpack.c.l.b16 %v976
        %v3197 = vunpack.c.h.b16 %v976
        %v3198 = vunpack.c.l.b16 %v977
        %v3199 = vunpack.c.h.b16 %v977
        %v3200 = vunpack.c.l.b16 %v978
        %v3201 = vunpack.c.h.b16 %v978
        %v3202 = vunpack.c.l.b16 %v979
        %v3203 = vunpack.c.h.b16 %v979
        %v3204 = vunpack.c.l.b16 %v980
        %v3205 = vunpack.c.h.b16 %v980
        %v3206 = vunpack.c.l.b16 %v981
        %v3207 = vunpack.c.h.b16 %v981
        %v3208 = vunpack.c.l.b16 %v982
        %v3209 = vunpack.c.h.b16 %v982
        %v3210 = vunpack.c.l.b16 %v983
        %v3211 = vunpack.c.h.b16 %v983
        %v3212 = vunpack.c.l.b16 %v984
        %v3213 = vunpack.c.h.b16 %v984
        %v3214 = vunpack.c.l.b16 %v985
        %v3215 = vunpack.c.h.b16 %v985
        %v3216 = vunpack.c.l.b16 %v986
        %v3217 = vunpack.c.h.b16 %v986
        %v3218 = vunpack.c.l.b16 %v987
        %v3219 = vunpack.c.h.b16 %v987
        %v3220 = vunpack.c.l.b16 %v988
        %v3221 = vunpack.c.h.b16 %v988
        %v3222 = vunpack.c.l.b16 %v989
        %v3223 = vunpack.c.h.b16 %v989
        %v3224 = vunpack.c.l.b16 %v990
        %v3225 = vunpack.c.h.b16 %v990
        %v3226 = vunpack.c.l.b16 %v991
        %v3227 = vunpack.c.h.b16 %v991
        %v3228 = vunpack.c.l.b16 %v992
        %v3229 = vunpack.c.h.b16 %v992
        %v3230 = vunpack.c.l.b16 %v993
        %v3231 = vunpack.c.h.b16 %v993
        %v3232 = vunpack.c.l.b16 %v994
        %v3233 = vunpack.c.h.b16 %v994
        %v3234 = vunpack.c.l.b16 %v995
        %v3235 = vunpack.c.h.b16 %v995
        %v3236 = vunpack.c.l.b16 %v996
        %v3237 = vunpack.c.h.b16 %v996
        %v3238 = vunpack.c.l.b16 %v997
        %v3239 = vunpack.c.h.b16 %v997
        %v3240 = vunpack.c.l.b16 %v998
        %v3241 = vunpack.c.h.b16 %v998
        %v3242 = vunpack.c.l.b16 %v999
        %v3243 = vunpack.c.h.b16 %v999
        %v3244 = vunpack.c.l.b16 %v1000
        %v3245 = vunpack.c.h.b16 %v1000
        %v3246 = vunpack.c.l.b16 %v1001
        %v3247 = vunpack.c.h.b16 %v1001
        %v3248 = vunpack.c.l.b16 %v1002
        %v3249 = vunpack.c.h.b16 %v1002
        %v3250 = vunpack.c.l.b16 %v1003
        %v3251 = vunpack.c.h.b16 %v1003
        %v3252 = vunpack.c.l.b16 %v1004
        %v3253 = vunpack.c.h.b16 %v1004
        %v3254 = vunpack.c.l.b16 %v1005
        %v3255 = vunpack.c.h.b16 %v1005
        %v3256 = vunpack.c.l.b16 %v1006
        %v3257 = vunpack.c.h.b16 %v1006
        %v3258 = vunpack.c.l.b16 %v1007
        %v3259 = vunpack.c.h.b16 %v1007
        %v3260 = vunpack.c.l.b16 %v1008
        %v3261 = vunpack.c.h.b16 %v1008
        %v3262 = vunpack.c.l.b16 %v1009
        %v3263 = vunpack.c.h.b16 %v1009
        %v3264 = vunpack.c.l.b16 %v1010
        %v3265 = vunpack.c.h.b16 %v1010
        %v3266 = vunpack.c.l.b16 %v1011
        %v3267 = vunpack.c.h.b16 %v1011
        %v3268 = vunpack.c.l.b16 %v1012
        %v3269 = vunpack.c.h.b16 %v1012
        %v3270 = vunpack.c.l.b16 %v1013
        %v3271 = vunpack.c.h.b16 %v1013
        %v3272 = vunpack.c.l.b16 %v1014
        %v3273 = vunpack.c.h.b16 %v1014
        %v3274 = vunpack.c.l.b16 %v1015
        %v3275 = vunpack.c.h.b16 %v1015
        %v3276 = vunpack.c.l.b16 %v1016
        %v3277 = vunpack.c.h.b16 %v1016
        %v3278 = vunpack.c.l.b16 %v1017
        %v3279 = vunpack.c.h.b16 %v1017
        %v3280 = vunpack.c.l.b16 %v1018
        %v3281 = vunpack.c.h.b16 %v1018
        %v3282 = vunpack.c.l.b16 %v1019
        %v3283 = vunpack.c.h.b16 %v1019
        %v3284 = vunpack.c.l.b16 %v1020
        %v3285 = vunpack.c.h.b16 %v1020
        %v3286 = vunpack.c.l.b16 %v1021
        %v3287 = vunpack.c.h.b16 %v1021
        %v3288 = vunpack.c.l.b16 %v1022
        %v3289 = vunpack.c.h.b16 %v1022
        %v3290 = vunpack.c.l.b16 %v1023
        %v3291 = vunpack.c.h.b16 %v1023
        %v3292 = vunpack.c.l.b16 %v1024
        %v3293 = vunpack.c.h.b16 %v1024
        %v3294 = vunpack.c.l.b16 %v1025
        %v3295 = vunpack.c.h.b16 %v1025
        %v3296 = vunpack.c.l.b16 %v1026
        %v3297 = vunpack.c.h.b16 %v1026
        %v3298 = vunpack.c.l.b16 %v1027
        %v3299 = vunpack.c.h.b16 %v1027
        %v3300 = vunpack.c.l.b16 %v1028
        %v3301 = vunpack.c.h.b16 %v1028
        %v3302 = vunpack.c.l.b16 %v1029
        %v3303 = vunpack.c.h.b16 %v1029
        %v3304 = vunpack.c.l.b16 %v1030
        %v3305 = vunpack.c.h.b16 %v1030
        %v3306 = vunpack.c.l.b16 %v1031
        %v3307 = vunpack.c.h.b16 %v1031
        %v3308 = vunpack.c.l.b16 %v1032
        %v3309 = vunpack.c.h.b16 %v1032
        %v3310 = vunpack.c.l.b16 %v1033
        %v3311 = vunpack.c.h.b16 %v1033
        %v3312 = vunpack.c.l.b16 %v1034
        %v3313 = vunpack.c.h.b16 %v1034
        %v3314 = vunpack.c.l.b16 %v1035
        %v3315 = vunpack.c.h.b16 %v1035
        %v3316 = vunpack.c.l.b16 %v1036
        %v3317 = vunpack.c.h.b16 %v1036
        %v3318 = vunpack.c.l.b16 %v1037
        %v3319 = vunpack.c.h.b16 %v1037
        %v3320 = vunpack.c.l.b16 %v1038
        %v3321 = vunpack.c.h.b16 %v1038
        %v3322 = vunpack.c.l.b16 %v1039
        %v3323 = vunpack.c.h.b16 %v1039
        %v3324 = vunpack.c.l.b16 %v1040
        %v3325 = vunpack.c.h.b16 %v1040
        %v3326 = vunpack.c.l.b16 %v1041
        %v3327 = vunpack.c.h.b16 %v1041
        %v3328 = vunpack.c.l.b16 %v1042
        %v3329 = vunpack.c.h.b16 %v1042
        %v3330 = vunpack.c.l.b16 %v1043
        %v3331 = vunpack.c.h.b16 %v1043
        %v3332 = vunpack.c.l.b16 %v1044
        %v3333 = vunpack.c.h.b16 %v1044
        %v3334 = vunpack.c.l.b16 %v1045
        %v3335 = vunpack.c.h.b16 %v1045
        %v3336 = vunpack.c.l.b16 %v1046
        %v3337 = vunpack.c.h.b16 %v1046
        %v3338 = vunpack.c.l.b16 %v1047
        %v3339 = vunpack.c.h.b16 %v1047
        %v3340 = vunpack.c.l.b16 %v1048
        %v3341 = vunpack.c.h.b16 %v1048
        %v3342 = vunpack.c.l.b16 %v1049
        %v3343 = vunpack.c.h.b16 %v1049
        %v3344 = vunpack.c.l.b16 %v1050
        %v3345 = vunpack.c.h.b16 %v1050
        %v3346 = vunpack.c.l.b16 %v1051
        %v3347 = vunpack.c.h.b16 %v1051
        %v3348 = vunpack.c.l.b16 %v1052
        %v3349 = vunpack.c.h.b16 %v1052
        %v3350 = vunpack.c.l.b16 %v1053
        %v3351 = vunpack.c.h.b16 %v1053
        %v3352 = vunpack.c.l.b16 %v1054
        %v3353 = vunpack.c.h.b16 %v1054
        %v3354 = vunpack.c.l.b16 %v1055
        %v3355 = vunpack.c.h.b16 %v1055
        %v3356 = vunpack.c.l.b16 %v1056
        %v3357 = vunpack.c.h.b16 %v1056
        %v3358 = vunpack.c.l.b16 %v1057
        %v3359 = vunpack.c.h.b16 %v1057
        %v3360 = vunpack.c.l.b16 %v1058
        %v3361 = vunpack.c.h.b16 %v1058
        %v3362 = vunpack.c.l.b16 %v1059
        %v3363 = vunpack.c.h.b16 %v1059
        %v3364 = vunpack.c.l.b16 %v1060
        %v3365 = vunpack.c.h.b16 %v1060
        %v3366 = vunpack.c.l.b16 %v1061
        %v3367 = vunpack.c.h.b16 %v1061
        %v3368 = vunpack.c.l.b16 %v1062
        %v3369 = vunpack.c.h.b16 %v1062
        %v3370 = vunpack.c.l.b16 %v1063
        %v3371 = vunpack.c.h.b16 %v1063
        %v3372 = vunpack.c.l.b16 %v1064
        %v3373 = vunpack.c.h.b16 %v1064
        %v3374 = vunpack.c.l.b16 %v1065
        %v3375 = vunpack.c.h.b16 %v1065
        %v3376 = vunpack.c.l.b16 %v1066
        %v3377 = vunpack.c.h.b16 %v1066
        %v3378 = vunpack.c.l.b16 %v1067
        %v3379 = vunpack.c.h.b16 %v1067
        %v3380 = vunpack.c.l.b16 %v1068
        %v3381 = vunpack.c.h.b16 %v1068
        %v3382 = vunpack.c.l.b16 %v1069
        %v3383 = vunpack.c.h.b16 %v1069
        %v3384 = vunpack.c.l.b16 %v1070
        %v3385 = vunpack.c.h.b16 %v1070
        %v3386 = vunpack.c.l.b16 %v1071
        %v3387 = vunpack.c.h.b16 %v1071
        %v3388 = vunpack.c.l.b16 %v1072
        %v3389 = vunpack.c.h.b16 %v1072
        %v3390 = vunpack.c.l.b16 %v1073
        %v3391 = vunpack.c.h.b16 %v1073
        %v3392 = vunpack.c.l.b16 %v1074
        %v3393 = vunpack.c.h.b16 %v1074
        %v3394 = vunpack.c.l.b16 %v1075
        %v3395 = vunpack.c.h.b16 %v1075
        %v3396 = vunpack.c.l.b16 %v1076
        %v3397 = vunpack.c.h.b16 %v1076
        %v3398 = vunpack.c.l.b16 %v1077
        %v3399 = vunpack.c.h.b16 %v1077
        %v3400 = vunpack.c.l.b16 %v1078
        %v3401 = vunpack.c.h.b16 %v1078
        %v3402 = vunpack.c.l.b16 %v1079
        %v3403 = vunpack.c.h.b16 %v1079
        %v3404 = vunpack.c.l.b16 %v1080
        %v3405 = vunpack.c.h.b16 %v1080
        %v3406 = vunpack.c.l.b16 %v1081
        %v3407 = vunpack.c.h.b16 %v1081
        %v3408 = vunpack.c.l.b16 %v1082
        %v3409 = vunpack.c.h.b16 %v1082
        %v3410 = vunpack.c.l.b16 %v1083
        %v3411 = vunpack.c.h.b16 %v1083
        %v3412 = vunpack.c.l.b16 %v1084
        %v3413 = vunpack.c.h.b16 %v1084
        %v3414 = vunpack.c.l.b16 %v1085
        %v3415 = vunpack.c.h.b16 %v1085
        %v3416 = vunpack.c.l.b16 %v1086
        %v3417 = vunpack.c.h.b16 %v1086
        %v3418 = vunpack.c.l.b16 %v1087
        %v3419 = vunpack.c.h.b16 %v1087
        %v3420 = vunpack.c.l.b16 %v1088
        %v3421 = vunpack.c.h.b16 %v1088
        %v3422 = vunpack.c.l.b16 %v1089
        %v3423 = vunpack.c.h.b16 %v1089
        %v3424 = vunpack.c.l.b16 %v1090
        %v3425 = vunpack.c.h.b16 %v1090
        %v3426 = vunpack.c.l.b16 %v1091
        %v3427 = vunpack.c.h.b16 %v1091
        %v3428 = vunpack.c.l.b16 %v1092
        %v3429 = vunpack.c.h.b16 %v1092
        %v3430 = vunpack.c.l.b16 %v1093
        %v3431 = vunpack.c.h.b16 %v1093
        %v3432 = vunpack.c.l.b16 %v1094
        %v3433 = vunpack.c.h.b16 %v1094
        %v3434 = vunpack.c.l.b16 %v1095
        %v3435 = vunpack.c.h.b16 %v1095
        %v3436 = vunpack.c.l.b16 %v1096
        %v3437 = vunpack.c.h.b16 %v1096
        %v3438 = vunpack.c.l.b16 %v1097
        %v3439 = vunpack.c.h.b16 %v1097
        %v3440 = vunpack.c.l.b16 %v1098
        %v3441 = vunpack.c.h.b16 %v1098
        %v3442 = vunpack.c.l.b16 %v1099
        %v3443 = vunpack.c.h.b16 %v1099
        %v3444 = vunpack.c.l.b16 %v1100
        %v3445 = vunpack.c.h.b16 %v1100
        %v3446 = vunpack.c.l.b16 %v1101
        %v3447 = vunpack.c.h.b16 %v1101
        %v3448 = vunpack.c.l.b16 %v1102
        %v3449 = vunpack.c.h.b16 %v1102
        %v3450 = vunpack.c.l.b16 %v1103
        %v3451 = vunpack.c.h.b16 %v1103
        %v3452 = vunpack.c.l.b16 %v1104
        %v3453 = vunpack.c.h.b16 %v1104
        %v3454 = vunpack.c.l.b16 %v1105
        %v3455 = vunpack.c.h.b16 %v1105
        %v3456 = vunpack.c.l.b16 %v1106
        %v3457 = vunpack.c.h.b16 %v1106
        %v3458 = vunpack.c.l.b16 %v1107
        %v3459 = vunpack.c.h.b16 %v1107
        %v3460 = vunpack.c.l.b16 %v1108
        %v3461 = vunpack.c.h.b16 %v1108
        %v3462 = vunpack.c.l.b16 %v1109
        %v3463 = vunpack.c.h.b16 %v1109
        %v3464 = vunpack.c.l.b16 %v1110
        %v3465 = vunpack.c.h.b16 %v1110
        %v3466 = vunpack.c.l.b16 %v1111
        %v3467 = vunpack.c.h.b16 %v1111
        %v3468 = vunpack.c.l.b16 %v1112
        %v3469 = vunpack.c.h.b16 %v1112
        %v3470 = vunpack.c.l.b16 %v1113
        %v3471 = vunpack.c.h.b16 %v1113
        %v3472 = vunpack.c.l.b16 %v1114
        %v3473 = vunpack.c.h.b16 %v1114
        %v3474 = vunpack.c.l.b16 %v1115
        %v3475 = vunpack.c.h.b16 %v1115
        %v3476 = vunpack.c.l.b16 %v1116
        %v3477 = vunpack.c.h.b16 %v1116
        %v3478 = vunpack.c.l.b16 %v1117
        %v3479 = vunpack.c.h.b16 %v1117
        %v3480 = vunpack.c.l.b16 %v1118
        %v3481 = vunpack.c.h.b16 %v1118
        %v3482 = vunpack.c.l.b16 %v1119
        %v3483 = vunpack.c.h.b16 %v1119
        %v3484 = vunpack.c.l.b16 %v1120
        %v3485 = vunpack.c.h.b16 %v1120
        %v3486 = vunpack.c.l.b16 %v1121
        %v3487 = vunpack.c.h.b16 %v1121
        %v3488 = vunpack.c.l.b16 %v1122
        %v3489 = vunpack.c.h.b16 %v1122
        %v3490 = vunpack.c.l.b16 %v1123
        %v3491 = vunpack.c.h.b16 %v1123
        %v3492 = vunpack.c.l.b16 %v1124
        %v3493 = vunpack.c.h.b16 %v1124
        %v3494 = vunpack.c.l.b16 %v1125
        %v3495 = vunpack.c.h.b16 %v1125
        %v3496 = vunpack.c.l.b16 %v1126
        %v3497 = vunpack.c.h.b16 %v1126
        %v3498 = vunpack.c.l.b16 %v1127
        %v3499 = vunpack.c.h.b16 %v1127
        %v3500 = vunpack.c.l.b16 %v1128
        %v3501 = vunpack.c.h.b16 %v1128
        %v3502 = vunpack.c.l.b16 %v1129
        %v3503 = vunpack.c.h.b16 %v1129
        %v3504 = vunpack.c.l.b16 %v1130
        %v3505 = vunpack.c.h.b16 %v1130
        %v3506 = vunpack.c.l.b16 %v1131
        %v3507 = vunpack.c.h.b16 %v1131
        %v3508 = vunpack.c.l.b16 %v1132
        %v3509 = vunpack.c.h.b16 %v1132
        %v3510 = vunpack.c.l.b16 %v1133
        %v3511 = vunpack.c.h.b16 %v1133
        %v3512 = vunpack.c.l.b16 %v1134
        %v3513 = vunpack.c.h.b16 %v1134
        %v3514 = vunpack.c.l.b16 %v1135
        %v3515 = vunpack.c.h.b16 %v1135
        %v3516 = vunpack.c.l.b16 %v1136
        %v3517 = vunpack.c.h.b16 %v1136
        %v3518 = vunpack.c.l.b16 %v1137
        %v3519 = vunpack.c.h.b16 %v1137
        %v3520 = vunpack.c.l.b16 %v1138
        %v3521 = vunpack.c.h.b16 %v1138
        %v3522 = vunpack.c.l.b16 %v1139
        %v3523 = vunpack.c.h.b16 %v1139
        %v3524 = vunpack.c.l.b16 %v1140
        %v3525 = vunpack.c.h.b16 %v1140
        %v3526 = vunpack.c.l.b16 %v1141
        %v3527 = vunpack.c.h.b16 %v1141
        %v3528 = vunpack.c.l.b16 %v1142
        %v3529 = vunpack.c.h.b16 %v1142
        %v3530 = vunpack.c.l.b16 %v1143
        %v3531 = vunpack.c.h.b16 %v1143
        %v3532 = vunpack.c.l.b16 %v1144
        %v3533 = vunpack.c.h.b16 %v1144
        %v3534 = vunpack.c.l.b16 %v1145
        %v3535 = vunpack.c.h.b16 %v1145
        %v3536 = vunpack.c.l.b16 %v1146
        %v3537 = vunpack.c.h.b16 %v1146
        %v3538 = vunpack.c.l.b16 %v1147
        %v3539 = vunpack.c.h.b16 %v1147
        %v3540 = vunpack.c.l.b16 %v1148
        %v3541 = vunpack.c.h.b16 %v1148
        %v3542 = vunpack.c.l.b16 %v1149
        %v3543 = vunpack.c.h.b16 %v1149
        %v3544 = vunpack.c.l.b16 %v1150
        %v3545 = vunpack.c.h.b16 %v1150
        %v3546 = vunpack.c.l.b16 %v1151
        %v3547 = vunpack.c.h.b16 %v1151
        %v3548 = vunpack.c.l.b16 %v1152
        %v3549 = vunpack.c.h.b16 %v1152
        %v3550 = vunpack.c.l.b16 %v1153
        %v3551 = vunpack.c.h.b16 %v1153
        %v3552 = vunpack.c.l.b16 %v1154
        %v3553 = vunpack.c.h.b16 %v1154
        %v3554 = vunpack.c.l.b16 %v1155
        %v3555 = vunpack.c.h.b16 %v1155
        %v3556 = vunpack.c.l.b16 %v1156
        %v3557 = vunpack.c.h.b16 %v1156
        %v3558 = vunpack.c.l.b16 %v1157
        %v3559 = vunpack.c.h.b16 %v1157
        %v3560 = vunpack.c.l.b16 %v1158
        %v3561 = vunpack.c.h.b16 %v1158
        %v3562 = vunpack.c.l.b16 %v1159
        %v3563 = vunpack.c.h.b16 %v1159
        %v3564 = vunpack.c.l.b16 %v1160
        %v3565 = vunpack.c.h.b16 %v1160
        %v3566 = vunpack.c.l.b16 %v1161
        %v3567 = vunpack.c.h.b16 %v1161
        %v3568 = vunpack.c.l.b16 %v1162
        %v3569 = vunpack.c.h.b16 %v1162
        %v3570 = vunpack.c.l.b16 %v1163
        %v3571 = vunpack.c.h.b16 %v1163
        %v3572 = vunpack.c.l.b16 %v1164
        %v3573 = vunpack.c.h.b16 %v1164
        %v3574 = vunpack.c.l.b16 %v1165
        %v3575 = vunpack.c.h.b16 %v1165
        %v3576 = vunpack.c.l.b16 %v1166
        %v3577 = vunpack.c.h.b16 %v1166
        %v3578 = vunpack.c.l.b16 %v1167
        %v3579 = vunpack.c.h.b16 %v1167
        %v3580 = vunpack.c.l.b16 %v1168
        %v3581 = vunpack.c.h.b16 %v1168
        %v3582 = vunpack.c.l.b16 %v1169
        %v3583 = vunpack.c.h.b16 %v1169
        %v3584 = vunpack.c.l.b16 %v1170
        %v3585 = vunpack.c.h.b16 %v1170
        %v3586 = vunpack.c.l.b16 %v1171
        %v3587 = vunpack.c.h.b16 %v1171
        %v3588 = vunpack.c.l.b16 %v1172
        %v3589 = vunpack.c.h.b16 %v1172
        %v3590 = vunpack.c.l.b16 %v1173
        %v3591 = vunpack.c.h.b16 %v1173
        %v3592 = vunpack.c.l.b16 %v1174
        %v3593 = vunpack.c.h.b16 %v1174
        %v3594 = vunpack.c.l.b16 %v1175
        %v3595 = vunpack.c.h.b16 %v1175
        %v3596 = vunpack.c.l.b16 %v1176
        %v3597 = vunpack.c.h.b16 %v1176
        %v3598 = vunpack.c.l.b16 %v1177
        %v3599 = vunpack.c.h.b16 %v1177
        %v3600 = vunpack.c.l.b16 %v1178
        %v3601 = vunpack.c.h.b16 %v1178
        %v3602 = vunpack.c.l.b16 %v1179
        %v3603 = vunpack.c.h.b16 %v1179
        %v3604 = vunpack.c.l.b16 %v1180
        %v3605 = vunpack.c.h.b16 %v1180
        %v3606 = vunpack.c.l.b16 %v1181
        %v3607 = vunpack.c.h.b16 %v1181
        %v3608 = vunpack.c.l.b16 %v1182
        %v3609 = vunpack.c.h.b16 %v1182
        %v3610 = vunpack.c.l.b16 %v1183
        %v3611 = vunpack.c.h.b16 %v1183
        %v3612 = vunpack.c.l.b16 %v1184
        %v3613 = vunpack.c.h.b16 %v1184
        %v3614 = vunpack.c.l.b16 %v1185
        %v3615 = vunpack.c.h.b16 %v1185
        %v3616 = vunpack.c.l.b16 %v1186
        %v3617 = vunpack.c.h.b16 %v1186
        %v3618 = vunpack.c.l.b16 %v1187
        %v3619 = vunpack.c.h.b16 %v1187
        %v3620 = vunpack.c.l.b16 %v1188
        %v3621 = vunpack.c.h.b16 %v1188
        %v3622 = vunpack.c.l.b16 %v1189
        %v3623 = vunpack.c.h.b16 %v1189
        %v3624 = vunpack.c.l.b16 %v1190
        %v3625 = vunpack.c.h.b16 %v1190
        %v3626 = vunpack.c.l.b16 %v1191
        %v3627 = vunpack.c.h.b16 %v1191
        %v3628 = vunpack.c.l.b16 %v1192
        %v3629 = vunpack.c.h.b16 %v1192
        %v3630 = vunpack.c.l.b16 %v1193
        %v3631 = vunpack.c.h.b16 %v1193
        %v3632 = vunpack.c.l.b16 %v1194
        %v3633 = vunpack.c.h.b16 %v1194
        %v3634 = vunpack.c.l.b16 %v1195
        %v3635 = vunpack.c.h.b16 %v1195
        %v3636 = vunpack.c.l.b16 %v1196
        %v3637 = vunpack.c.h.b16 %v1196
        %v3638 = vunpack.c.l.b16 %v1197
        %v3639 = vunpack.c.h.b16 %v1197
        %v3640 = vunpack.c.l.b16 %v1198
        %v3641 = vunpack.c.h.b16 %v1198
        %v3642 = vunpack.c.l.b16 %v1199
        %v3643 = vunpack.c.h.b16 %v1199
        %v3644 = vunpack.c.l.b16 %v1200
        %v3645 = vunpack.c.h.b16 %v1200
        %v3646 = vunpack.c.l.b16 %v1201
        %v3647 = vunpack.c.h.b16 %v1201
        %v3648 = vunpack.c.l.b16 %v1202
        %v3649 = vunpack.c.h.b16 %v1202
        %v3650 = vunpack.c.l.b16 %v1203
        %v3651 = vunpack.c.h.b16 %v1203
        %v3652 = vunpack.c.l.b16 %v1204
        %v3653 = vunpack.c.h.b16 %v1204
        %v3654 = vunpack.c.l.b16 %v1205
        %v3655 = vunpack.c.h.b16 %v1205
        %v3656 = vunpack.c.l.b16 %v1206
        %v3657 = vunpack.c.h.b16 %v1206
        %v3658 = vunpack.c.l.b16 %v1207
        %v3659 = vunpack.c.h.b16 %v1207
        %v3660 = vunpack.c.l.b16 %v1208
        %v3661 = vunpack.c.h.b16 %v1208
        %v3662 = vunpack.c.l.b16 %v1209
        %v3663 = vunpack.c.h.b16 %v1209
        %v3664 = vunpack.c.l.b16 %v1210
        %v3665 = vunpack.c.h.b16 %v1210
        %v3666 = vunpack.c.l.b16 %v1211
        %v3667 = vunpack.c.h.b16 %v1211
        %v3668 = vunpack.c.l.b16 %v1212
        %v3669 = vunpack.c.h.b16 %v1212
        %v3670 = vunpack.c.l.b16 %v1213
        %v3671 = vunpack.c.h.b16 %v1213
        %v3672 = vunpack.c.l.b16 %v1214
        %v3673 = vunpack.c.h.b16 %v1214
        %v3674 = vunpack.c.l.b16 %v1215
        %v3675 = vunpack.c.h.b16 %v1215
        %v3676 = vunpack.c.l.b16 %v1216
        %v3677 = vunpack.c.h.b16 %v1216
        %v3678 = vunpack.c.l.b16 %v1217
        %v3679 = vunpack.c.h.b16 %v1217
        %v3680 = vunpack.c.l.b16 %v1218
        %v3681 = vunpack.c.h.b16 %v1218
        %v3682 = vunpack.c.l.b16 %v1219
        %v3683 = vunpack.c.h.b16 %v1219
        %v3684 = vunpack.c.l.b16 %v1220
        %v3685 = vunpack.c.h.b16 %v1220
        %v3686 = vunpack.c.l.b16 %v1221
        %v3687 = vunpack.c.h.b16 %v1221
        %v3688 = vunpack.c.l.b16 %v1222
        %v3689 = vunpack.c.h.b16 %v1222
        %v3690 = vunpack.c.l.b16 %v1223
        %v3691 = vunpack.c.h.b16 %v1223
        %v3692 = vunpack.c.l.b16 %v1224
        %v3693 = vunpack.c.h.b16 %v1224
        %v3694 = vunpack.c.l.b16 %v1225
        %v3695 = vunpack.c.h.b16 %v1225
        %v3696 = vunpack.c.l.b16 %v1226
        %v3697 = vunpack.c.h.b16 %v1226
        %v3698 = vunpack.c.l.b16 %v1227
        %v3699 = vunpack.c.h.b16 %v1227
        %v3700 = vunpack.c.l.b16 %v1228
        %v3701 = vunpack.c.h.b16 %v1228
        %v3702 = vunpack.c.l.b16 %v1229
        %v3703 = vunpack.c.h.b16 %v1229
        %v3704 = vunpack.c.l.b16 %v1230
        %v3705 = vunpack.c.h.b16 %v1230
        %v3706 = vunpack.c.l.b16 %v1231
        %v3707 = vunpack.c.h.b16 %v1231
        %v3708 = vunpack.c.l.b16 %v1232
        %v3709 = vunpack.c.h.b16 %v1232
        %v3710 = vunpack.c.l.b16 %v1233
        %v3711 = vunpack.c.h.b16 %v1233
        %v3712 = vunpack.c.l.b16 %v1234
        %v3713 = vunpack.c.h.b16 %v1234
        %v3714 = vunpack.c.l.b16 %v1235
        %v3715 = vunpack.c.h.b16 %v1235
        %v3716 = vunpack.c.l.b16 %v1236
        %v3717 = vunpack.c.h.b16 %v1236
        %v3718 = vunpack.c.l.b16 %v1237
        %v3719 = vunpack.c.h.b16 %v1237
        %v3720 = vunpack.c.l.b16 %v1238
        %v3721 = vunpack.c.h.b16 %v1238
        %v3722 = vunpack.c.l.b16 %v1239
        %v3723 = vunpack.c.h.b16 %v1239
        %v3724 = vunpack.c.l.b16 %v1240
        %v3725 = vunpack.c.h.b16 %v1240
        %v3726 = vunpack.c.l.b16 %v1241
        %v3727 = vunpack.c.h.b16 %v1241
        %v3728 = vunpack.c.l.b16 %v1242
        %v3729 = vunpack.c.h.b16 %v1242
        %v3730 = vunpack.c.l.b16 %v1243
        %v3731 = vunpack.c.h.b16 %v1243
        %v3732 = vunpack.c.l.b16 %v1244
        %v3733 = vunpack.c.h.b16 %v1244
        %v3734 = vunpack.c.l.b16 %v1245
        %v3735 = vunpack.c.h.b16 %v1245
        %v3736 = vunpack.c.l.b16 %v1246
        %v3737 = vunpack.c.h.b16 %v1246
        %v3738 = vunpack.c.l.b16 %v1247
        %v3739 = vunpack.c.h.b16 %v1247
        %v3740 = vunpack.c.l.b16 %v1248
        %v3741 = vunpack.c.h.b16 %v1248
        %v3742 = vunpack.c.l.b16 %v1249
        %v3743 = vunpack.c.h.b16 %v1249
        %v3744 = vunpack.c.l.b16 %v1250
        %v3745 = vunpack.c.h.b16 %v1250
        %v3746 = vunpack.c.l.b16 %v1251
        %v3747 = vunpack.c.h.b16 %v1251
        %v3748 = vunpack.c.l.b16 %v1252
        %v3749 = vunpack.c.h.b16 %v1252
        %v3750 = vunpack.c.l.b16 %v1253
        %v3751 = vunpack.c.h.b16 %v1253
        %v3752 = vunpack.c.l.b16 %v1254
        %v3753 = vunpack.c.h.b16 %v1254
        %v3754 = vunpack.c.l.b16 %v1255
        %v3755 = vunpack.c.h.b16 %v1255
        %v3756 = vunpack.c.l.b16 %v1256
        %v3757 = vunpack.c.h.b16 %v1256
        %v3758 = vunpack.c.l.b16 %v1257
        %v3759 = vunpack.c.h.b16 %v1257
        %v3760 = vunpack.c.l.b16 %v1258
        %v3761 = vunpack.c.h.b16 %v1258
        %v3762 = vunpack.c.l.b16 %v1259
        %v3763 = vunpack.c.h.b16 %v1259
        %v3764 = vunpack.c.l.b16 %v1260
        %v3765 = vunpack.c.h.b16 %v1260
        %v3766 = vunpack.c.l.b16 %v1261
        %v3767 = vunpack.c.h.b16 %v1261
        %v3768 = vunpack.c.l.b16 %v1262
        %v3769 = vunpack.c.h.b16 %v1262
        %v3770 = vunpack.c.l.b16 %v1263
        %v3771 = vunpack.c.h.b16 %v1263
        %v3772 = vunpack.c.l.b16 %v1264
        %v3773 = vunpack.c.h.b16 %v1264
        %v3774 = vunpack.c.l.b16 %v1265
        %v3775 = vunpack.c.h.b16 %v1265
        %v3776 = vunpack.c.l.b16 %v1266
        %v3777 = vunpack.c.h.b16 %v1266
        %v3778 = vunpack.c.l.b16 %v1267
        %v3779 = vunpack.c.h.b16 %v1267
        %v3780 = vunpack.c.l.b16 %v1268
        %v3781 = vunpack.c.h.b16 %v1268
        %v3782 = vunpack.c.l.b16 %v1269
        %v3783 = vunpack.c.h.b16 %v1269
        %v3784 = vunpack.c.l.b16 %v1270
        %v3785 = vunpack.c.h.b16 %v1270
        %v3786 = vunpack.c.l.b16 %v1271
        %v3787 = vunpack.c.h.b16 %v1271
        %v3788 = vunpack.c.l.b16 %v1272
        %v3789 = vunpack.c.h.b16 %v1272
        %v3790 = vunpack.c.l.b16 %v1273
        %v3791 = vunpack.c.h.b16 %v1273
        %v3792 = vunpack.c.l.b16 %v1274
        %v3793 = vunpack.c.h.b16 %v1274
        %v3794 = vunpack.c.l.b16 %v1275
        %v3795 = vunpack.c.h.b16 %v1275
        %v3796 = vunpack.c.l.b16 %v1276
        %v3797 = vunpack.c.h.b16 %v1276
        %v3798 = vunpack.c.l.b16 %v1277
        %v3799 = vunpack.c.h.b16 %v1277
        %v3800 = vunpack.c.l.b16 %v1278
        %v3801 = vunpack.c.h.b16 %v1278
        %v3802 = vunpack.c.l.b16 %v1279
        %v3803 = vunpack.c.h.b16 %v1279
        %v3804 = vunpack.c.l.b16 %v1280
        %v3805 = vunpack.c.h.b16 %v1280
        %v3806 = vunpack.c.l.b16 %v1281
        %v3807 = vunpack.c.h.b16 %v1281
        %v3808 = vunpack.c.l.b16 %v1282
        %v3809 = vunpack.c.h.b16 %v1282
        %v3810 = vunpack.c.l.b16 %v1283
        %v3811 = vunpack.c.h.b16 %v1283
        %v3812 = vunpack.c.l.b16 %v1284
        %v3813 = vunpack.c.h.b16 %v1284
        %v3814 = vunpack.c.l.b16 %v1285
        %v3815 = vunpack.c.h.b16 %v1285
        %v3816 = vunpack.c.l.b16 %v1286
        %v3817 = vunpack.c.h.b16 %v1286
        %v3818 = vunpack.c.l.b16 %v1287
        %v3819 = vunpack.c.h.b16 %v1287
        %v3820 = vunpack.c.l.b16 %v1288
        %v3821 = vunpack.c.h.b16 %v1288
        %v3822 = vunpack.c.l.b16 %v1289
        %v3823 = vunpack.c.h.b16 %v1289
        %v3824 = vunpack.c.l.b16 %v1290
        %v3825 = vunpack.c.h.b16 %v1290
        %v3826 = vunpack.c.l.b16 %v1291
        %v3827 = vunpack.c.h.b16 %v1291
        %v3828 = vunpack.c.l.b16 %v1292
        %v3829 = vunpack.c.h.b16 %v1292
        %v3830 = vunpack.c.l.b16 %v1293
        %v3831 = vunpack.c.h.b16 %v1293
        %v3832 = vunpack.c.l.b16 %v1294
        %v3833 = vunpack.c.h.b16 %v1294
        %v3834 = vunpack.c.l.b16 %v1295
        %v3835 = vunpack.c.h.b16 %v1295
        %v3836 = vunpack.c.l.b16 %v1296
        %v3837 = vunpack.c.h.b16 %v1296
        %v3838 = vunpack.c.l.b16 %v1297
        %v3839 = vunpack.c.h.b16 %v1297
        %v3840 = vunpack.c.l.b16 %v1298
        %v3841 = vunpack.c.h.b16 %v1298
        %v3842 = vunpack.c.l.b16 %v1299
        %v3843 = vunpack.c.h.b16 %v1299
        %v3844 = vunpack.c.l.b16 %v1300
        %v3845 = vunpack.c.h.b16 %v1300
        %v3846 = vunpack.c.l.b16 %v1301
        %v3847 = vunpack.c.h.b16 %v1301
        %v3848 = vunpack.c.l.b16 %v1302
        %v3849 = vunpack.c.h.b16 %v1302
        %v3850 = vunpack.c.l.b16 %v1303
        %v3851 = vunpack.c.h.b16 %v1303
        %v3852 = vunpack.c.l.b16 %v1304
        %v3853 = vunpack.c.h.b16 %v1304
        %v3854 = vunpack.c.l.b16 %v1305
        %v3855 = vunpack.c.h.b16 %v1305
        %v3856 = vunpack.c.l.b16 %v1306
        %v3857 = vunpack.c.h.b16 %v1306
        %v3858 = vunpack.c.l.b16 %v1307
        %v3859 = vunpack.c.h.b16 %v1307
        %v3860 = vunpack.c.l.b16 %v1308
        %v3861 = vunpack.c.h.b16 %v1308
        %v3862 = vunpack.c.l.b16 %v1309
        %v3863 = vunpack.c.h.b16 %v1309
        %v3864 = vunpack.c.l.b16 %v1310
        %v3865 = vunpack.c.h.b16 %v1310
        %v3866 = vunpack.c.l.b16 %v1311
        %v3867 = vunpack.c.h.b16 %v1311
        %v3868 = vunpack.c.l.b16 %v1312
        %v3869 = vunpack.c.h.b16 %v1312
        %v3870 = vunpack.c.l.b16 %v1313
        %v3871 = vunpack.c.h.b16 %v1313
        %v3872 = vunpack.c.l.b16 %v1314
        %v3873 = vunpack.c.h.b16 %v1314
        %v3874 = vunpack.c.l.b16 %v1315
        %v3875 = vunpack.c.h.b16 %v1315
        %v3876 = vunpack.c.l.b16 %v1316
        %v3877 = vunpack.c.h.b16 %v1316
        %v3878 = vunpack.c.l.b16 %v1317
        %v3879 = vunpack.c.h.b16 %v1317
        %v3880 = vunpack.c.l.b16 %v1318
        %v3881 = vunpack.c.h.b16 %v1318
        %v3882 = vunpack.c.l.b16 %v1319
        %v3883 = vunpack.c.h.b16 %v1319
        %v3884 = vunpack.c.l.b16 %v1320
        %v3885 = vunpack.c.h.b16 %v1320
        %v3886 = vunpack.c.l.b16 %v1321
        %v3887 = vunpack.c.h.b16 %v1321
        %v3888 = vunpack.c.l.b16 %v1322
        %v3889 = vunpack.c.h.b16 %v1322
        %v3890 = vunpack.c.l.b16 %v1323
        %v3891 = vunpack.c.h.b16 %v1323
        %v3892 = vunpack.c.l.b16 %v1324
        %v3893 = vunpack.c.h.b16 %v1324
        %v3894 = vunpack.c.l.b16 %v1325
        %v3895 = vunpack.c.h.b16 %v1325
        %v3896 = vunpack.c.l.b16 %v1326
        %v3897 = vunpack.c.h.b16 %v1326
        %v3898 = vunpack.c.l.b16 %v1327
        %v3899 = vunpack.c.h.b16 %v1327
        %v3900 = vunpack.c.l.b16 %v1328
        %v3901 = vunpack.c.h.b16 %v1328
        %v3902 = vunpack.c.l.b16 %v1329
        %v3903 = vunpack.c.h.b16 %v1329
        %v3904 = vunpack.c.l.b16 %v1330
        %v3905 = vunpack.c.h.b16 %v1330
        %v3906 = vunpack.c.l.b16 %v1331
        %v3907 = vunpack.c.h.b16 %v1331
        %v3908 = vunpack.c.l.b16 %v1332
        %v3909 = vunpack.c.h.b16 %v1332
        %v3910 = vunpack.c.l.b16 %v1333
        %v3911 = vunpack.c.h.b16 %v1333
        %v3912 = vunpack.c.l.b16 %v1334
        %v3913 = vunpack.c.h.b16 %v1334
        %v3914 = vunpack.c.l.b16 %v1335
        %v3915 = vunpack.c.h.b16 %v1335
        %v3916 = vunpack.c.l.b16 %v1336
        %v3917 = vunpack.c.h.b16 %v1336
        %v3918 = vunpack.c.l.b16 %v1337
        %v3919 = vunpack.c.h.b16 %v1337
        %v3920 = vunpack.c.l.b16 %v1338
        %v3921 = vunpack.c.h.b16 %v1338
        %v3922 = vunpack.c.l.b16 %v1339
        %v3923 = vunpack.c.h.b16 %v1339
        %v3924 = vunpack.c.l.b16 %v1340
        %v3925 = vunpack.c.h.b16 %v1340
        %v3926 = vunpack.c.l.b16 %v1341
        %v3927 = vunpack.c.h.b16 %v1341
        %v3928 = vunpack.c.l.b16 %v1342
        %v3929 = vunpack.c.h.b16 %v1342
        %v3930 = vunpack.c.l.b16 %v1343
        %v3931 = vunpack.c.h.b16 %v1343
        %v3932 = vunpack.c.l.b16 %v1344
        %v3933 = vunpack.c.h.b16 %v1344
        %v3934 = vunpack.c.l.b16 %v1345
        %v3935 = vunpack.c.h.b16 %v1345
        %v3936 = vunpack.c.l.b16 %v1346
        %v3937 = vunpack.c.h.b16 %v1346
        %v3938 = vunpack.c.l.b16 %v1347
        %v3939 = vunpack.c.h.b16 %v1347
        %v3940 = vunpack.c.l.b16 %v1348
        %v3941 = vunpack.c.h.b16 %v1348
        %v3942 = vunpack.c.l.b16 %v1349
        %v3943 = vunpack.c.h.b16 %v1349
        %v3944 = vunpack.c.l.b16 %v1350
        %v3945 = vunpack.c.h.b16 %v1350
        %v3946 = vunpack.c.l.b16 %v1351
        %v3947 = vunpack.c.h.b16 %v1351
        %v3948 = vunpack.c.l.b16 %v1352
        %v3949 = vunpack.c.h.b16 %v1352
        %v3950 = vunpack.c.l.b16 %v1353
        %v3951 = vunpack.c.h.b16 %v1353
        %v3952 = vunpack.c.l.b16 %v1354
        %v3953 = vunpack.c.h.b16 %v1354
        %v3954 = vunpack.c.l.b16 %v1355
        %v3955 = vunpack.c.h.b16 %v1355
        %v3956 = vunpack.c.l.b16 %v1356
        %v3957 = vunpack.c.h.b16 %v1356
        %v3958 = vunpack.c.l.b16 %v1357
        %v3959 = vunpack.c.h.b16 %v1357
        %v3960 = vunpack.c.l.b16 %v1358
        %v3961 = vunpack.c.h.b16 %v1358
        %v3962 = vunpack.c.l.b16 %v1359
        %v3963 = vunpack.c.h.b16 %v1359
        %v3964 = vunpack.c.l.b16 %v1360
        %v3965 = vunpack.c.h.b16 %v1360
        %v3966 = vunpack.c.l.b16 %v1361
        %v3967 = vunpack.c.h.b16 %v1361
        %v3968 = vunpack.c.l.b16 %v1362
        %v3969 = vunpack.c.h.b16 %v1362
        %v3970 = vunpack.c.l.b16 %v1363
        %v3971 = vunpack.c.h.b16 %v1363
        %v3972 = vunpack.c.l.b16 %v1364
        %v3973 = vunpack.c.h.b16 %v1364
        %v3974 = vunpack.c.l.b16 %v1365
        %v3975 = vunpack.c.h.b16 %v1365
        %v3976 = vunpack.c.l.b16 %v1366
        %v3977 = vunpack.c.h.b16 %v1366
        %v3978 = vunpack.c.l.b16 %v1367
        %v3979 = vunpack.c.h.b16 %v1367
        %v3980 = vunpack.c.l.b16 %v1368
        %v3981 = vunpack.c.h.b16 %v1368
        %v3982 = vunpack.c.l.b16 %v1369
        %v3983 = vunpack.c.h.b16 %v1369
        %v3984 = vunpack.c.l.b16 %v1370
        %v3985 = vunpack.c.h.b16 %v1370
        %v3986 = vunpack.c.l.b16 %v1371
        %v3987 = vunpack.c.h.b16 %v1371
        %v3988 = vunpack.c.l.b16 %v1372
        %v3989 = vunpack.c.h.b16 %v1372
        %v3990 = vunpack.c.l.b16 %v1373
        %v3991 = vunpack.c.h.b16 %v1373
        %v3992 = vunpack.c.l.b16 %v1374
        %v3993 = vunpack.c.h.b16 %v1374
        %v3994 = vunpack.c.l.b16 %v1375
        %v3995 = vunpack.c.h.b16 %v1375
        %v3996 = vunpack.c.l.b16 %v1376
        %v3997 = vunpack.c.h.b16 %v1376
        %v3998 = vunpack.c.l.b16 %v1377
        %v3999 = vunpack.c.h.b16 %v1377
        %v4000 = vunpack.c.l.b16 %v1378
        %v4001 = vunpack.c.h.b16 %v1378
        %v4002 = vunpack.c.l.b16 %v1379
        %v4003 = vunpack.c.h.b16 %v1379
        %v4004 = vunpack.c.l.b16 %v1380
        %v4005 = vunpack.c.h.b16 %v1380
        %v4006 = vunpack.c.l.b16 %v1381
        %v4007 = vunpack.c.h.b16 %v1381
        %v4008 = vunpack.c.l.b16 %v1382
        %v4009 = vunpack.c.h.b16 %v1382
        %v4010 = vunpack.c.l.b16 %v1383
        %v4011 = vunpack.c.h.b16 %v1383
        %v4012 = vunpack.c.l.b16 %v1384
        %v4013 = vunpack.c.h.b16 %v1384
        %v4014 = vunpack.c.l.b16 %v1385
        %v4015 = vunpack.c.h.b16 %v1385
        %v4016 = vunpack.c.l.b16 %v1386
        %v4017 = vunpack.c.h.b16 %v1386
        %v4018 = vunpack.c.l.b16 %v1387
        %v4019 = vunpack.c.h.b16 %v1387
        %v4020 = vunpack.c.l.b16 %v1388
        %v4021 = vunpack.c.h.b16 %v1388
        %v4022 = vunpack.c.l.b16 %v1389
        %v4023 = vunpack.c.h.b16 %v1389
        %v4024 = vunpack.c.l.b16 %v1390
        %v4025 = vunpack.c.h.b16 %v1390
        %v4026 = vunpack.c.l.b16 %v1391
        %v4027 = vunpack.c.h.b16 %v1391
        %v4028 = vunpack.c.l.b16 %v1392
        %v4029 = vunpack.c.h.b16 %v1392
        %v4030 = vunpack.c.l.b16 %v1393
        %v4031 = vunpack.c.h.b16 %v1393
        %v4032 = vunpack.c.l.b16 %v1394
        %v4033 = vunpack.c.h.b16 %v1394
        %v4034 = vunpack.c.l.b16 %v1395
        %v4035 = vunpack.c.h.b16 %v1395
        %v4036 = vunpack.c.l.b16 %v1396
        %v4037 = vunpack.c.h.b16 %v1396
        %v4038 = vunpack.c.l.b16 %v1397
        %v4039 = vunpack.c.h.b16 %v1397
        %v4040 = vunpack.c.l.b16 %v1398
        %v4041 = vunpack.c.h.b16 %v1398
        %v4042 = vunpack.c.l.b16 %v1399
        %v4043 = vunpack.c.h.b16 %v1399
        %v4044 = vunpack.c.l.b16 %v1400
        %v4045 = vunpack.c.h.b16 %v1400
        %v4046 = vunpack.c.l.b16 %v1401
        %v4047 = vunpack.c.h.b16 %v1401
        %v4048 = vunpack.c.l.b16 %v1402
        %v4049 = vunpack.c.h.b16 %v1402
        %v4050 = vunpack.c.l.b16 %v1403
        %v4051 = vunpack.c.h.b16 %v1403
        %v4052 = vunpack.c.l.b16 %v1404
        %v4053 = vunpack.c.h.b16 %v1404
        %v4054 = vunpack.c.l.b16 %v1405
        %v4055 = vunpack.c.h.b16 %v1405
        %v4056 = vunpack.c.l.b16 %v1406
        %v4057 = vunpack.c.h.b16 %v1406
        %v4058 = vunpack.c.l.b16 %v1407
        %v4059 = vunpack.c.h.b16 %v1407
        %v4060 = vunpack.c.l.b16 %v1408
        %v4061 = vunpack.c.h.b16 %v1408
        %v4062 = vunpack.c.l.b16 %v1409
        %v4063 = vunpack.c.h.b16 %v1409
        %v4064 = vunpack.c.l.b16 %v1410
        %v4065 = vunpack.c.h.b16 %v1410
        %v4066 = vunpack.c.l.b16 %v1411
        %v4067 = vunpack.c.h.b16 %v1411
        %v4068 = vunpack.c.l.b16 %v1412
        %v4069 = vunpack.c.h.b16 %v1412
        %v4070 = vunpack.c.l.b16 %v1413
        %v4071 = vunpack.c.h.b16 %v1413
        %v4072 = vunpack.c.l.b16 %v1414
        %v4073 = vunpack.c.h.b16 %v1414
        %v4074 = vunpack.c.l.b16 %v1415
        %v4075 = vunpack.c.h.b16 %v1415
        %v4076 = vunpack.c.l.b16 %v1416
        %v4077 = vunpack.c.h.b16 %v1416
        %v4078 = vunpack.c.l.b16 %v1417
        %v4079 = vunpack.c.h.b16 %v1417
        %v4080 = vunpack.c.l.b16 %v1418
        %v4081 = vunpack.c.h.b16 %v1418
        %v4082 = vunpack.c.l.b16 %v1419
        %v4083 = vunpack.c.h.b16 %v1419
        %v4084 = vunpack.c.l.b16 %v1420
        %v4085 = vunpack.c.h.b16 %v1420
        %v4086 = vunpack.c.l.b16 %v1421
        %v4087 = vunpack.c.h.b16 %v1421
        %v4088 = vunpack.c.l.b16 %v1422
        %v4089 = vunpack.c.h.b16 %v1422
        %v4090 = vunpack.c.l.b16 %v1423
        %v4091 = vunpack.c.h.b16 %v1423
        %v4092 = vunpack.c.l.b16 %v1424
        %v4093 = vunpack.c.h.b16 %v1424
        %v4094 = vunpack.c.l.b16 %v1425
        %v4095 = vunpack.c.h.b16 %v1425
        %v4096 = vunpack.c.l.b16 %v1426
        %v4097 = vunpack.c.h.b16 %v1426
        %v4098 = vunpack.c.l.b16 %v1427
        %v4099 = vunpack.c.h.b16 %v1427
        %v4100 = vunpack.c.l.b16 %v1428
        %v4101 = vunpack.c.h.b16 %v1428
        %v4102 = vunpack.c.l.b16 %v1429
        %v4103 = vunpack.c.h.b16 %v1429
        %v4104 = vunpack.c.l.b16 %v1430
        %v4105 = vunpack.c.h.b16 %v1430
        %v4106 = vunpack.c.l.b16 %v1431
        %v4107 = vunpack.c.h.b16 %v1431
        %v4108 = vunpack.c.l.b16 %v1432
        %v4109 = vunpack.c.h.b16 %v1432
        %v4110 = vunpack.c.l.b16 %v1433
        %v4111 = vunpack.c.h.b16 %v1433
        %v4112 = vunpack.c.l.b16 %v1434
        %v4113 = vunpack.c.h.b16 %v1434
        %v4114 = vunpack.c.l.b16 %v1435
        %v4115 = vunpack.c.h.b16 %v1435
        %v4116 = vunpack.c.l.b16 %v1436
        %v4117 = vunpack.c.h.b16 %v1436
        %v4118 = vunpack.c.l.b16 %v1437
        %v4119 = vunpack.c.h.b16 %v1437
        %v4120 = vunpack.c.l.b16 %v1438
        %v4121 = vunpack.c.h.b16 %v1438
        %v4122 = vunpack.c.l.b16 %v1439
        %v4123 = vunpack.c.h.b16 %v1439
        %v4124 = vunpack.c.l.b16 %v1440
        %v4125 = vunpack.c.h.b16 %v1440
        %v4126 = vunpack.c.l.b16 %v1441
        %v4127 = vunpack.c.h.b16 %v1441
        %v4128 = vunpack.c.l.b16 %v1442
        %v4129 = vunpack.c.h.b16 %v1442
        %v4130 = vunpack.c.l.b16 %v1443
        %v4131 = vunpack.c.h.b16 %v1443
        %v4132 = vunpack.c.l.b16 %v1444
        %v4133 = vunpack.c.h.b16 %v1444
        %v4134 = vunpack.c.l.b16 %v1445
        %v4135 = vunpack.c.h.b16 %v1445
        %v4136 = vunpack.c.l.b16 %v1446
        %v4137 = vunpack.c.h.b16 %v1446
        %v4138 = vunpack.c.l.b16 %v1447
        %v4139 = vunpack.c.h.b16 %v1447
        %v4140 = vunpack.c.l.b16 %v1448
        %v4141 = vunpack.c.h.b16 %v1448
        %v4142 = vunpack.c.l.b16 %v1449
        %v4143 = vunpack.c.h.b16 %v1449
        %v4144 = vunpack.c.l.b16 %v1450
        %v4145 = vunpack.c.h.b16 %v1450
        %v4146 = vunpack.c.l.b16 %v1451
        %v4147 = vunpack.c.h.b16 %v1451
        %v4148 = vunpack.c.l.b16 %v1452
        %v4149 = vunpack.c.h.b16 %v1452
        %v4150 = vunpack.c.l.b16 %v1453
        %v4151 = vunpack.c.h.b16 %v1453
        %v4152 = vunpack.c.l.b16 %v1454
        %v4153 = vunpack.c.h.b16 %v1454
        %v4154 = vunpack.c.l.b16 %v1455
        %v4155 = vunpack.c.h.b16 %v1455
        %v4156 = vunpack.c.l.b16 %v1456
        %v4157 = vunpack.c.h.b16 %v1456
        %v4158 = vunpack.c.l.b16 %v1457
        %v4159 = vunpack.c.h.b16 %v1457
        %v4160 = vunpack.c.l.b16 %v1458
        %v4161 = vunpack.c.h.b16 %v1458
        %v4162 = vunpack.c.l.b16 %v1459
        %v4163 = vunpack.c.h.b16 %v1459
        %v4164 = vunpack.c.l.b16 %v1460
        %v4165 = vunpack.c.h.b16 %v1460
        %v4166 = vunpack.c.l.b16 %v1461
        %v4167 = vunpack.c.h.b16 %v1461
        %v4168 = vunpack.c.l.b16 %v1462
        %v4169 = vunpack.c.h.b16 %v1462
        %v4170 = vunpack.c.l.b16 %v1463
        %v4171 = vunpack.c.h.b16 %v1463
        %v4172 = vunpack.c.l.b16 %v1464
        %v4173 = vunpack.c.h.b16 %v1464
        %v4174 = vunpack.c.l.b16 %v1465
        %v4175 = vunpack.c.h.b16 %v1465
        %v4176 = vunpack.c.l.b16 %v1466
        %v4177 = vunpack.c.h.b16 %v1466
        %v4178 = vunpack.c.l.b16 %v1467
        %v4179 = vunpack.c.h.b16 %v1467
        %v4180 = vunpack.c.l.b16 %v1468
        %v4181 = vunpack.c.h.b16 %v1468
        %v4182 = vunpack.c.l.b16 %v1469
        %v4183 = vunpack.c.h.b16 %v1469
        %v4184 = vunpack.c.l.b16 %v1470
        %v4185 = vunpack.c.h.b16 %v1470
        %v4186 = vunpack.c.l.b16 %v1471
        %v4187 = vunpack.c.h.b16 %v1471
        %v4188 = vunpack.c.l.b16 %v1472
        %v4189 = vunpack.c.h.b16 %v1472
        %v4190 = vunpack.c.l.b16 %v1473
        %v4191 = vunpack.c.h.b16 %v1473
        %v4192 = vunpack.c.l.b16 %v1474
        %v4193 = vunpack.c.h.b16 %v1474
        %v4194 = vunpack.c.l.b16 %v1475
        %v4195 = vunpack.c.h.b16 %v1475
        %v4196 = vunpack.c.l.b16 %v1476
        %v4197 = vunpack.c.h.b16 %v1476
        %v4198 = vunpack.c.l.b16 %v1477
        %v4199 = vunpack.c.h.b16 %v1477
        %v4200 = vunpack.c.l.b16 %v1478
        %v4201 = vunpack.c.h.b16 %v1478
        %v4202 = vunpack.c.l.b16 %v1479
        %v4203 = vunpack.c.h.b16 %v1479
        %v4204 = vunpack.c.l.b16 %v1480
        %v4205 = vunpack.c.h.b16 %v1480
        %v4206 = vunpack.c.l.b16 %v1481
        %v4207 = vunpack.c.h.b16 %v1481
        %v4208 = vunpack.c.l.b16 %v1482
        %v4209 = vunpack.c.h.b16 %v1482
        %v4210 = vunpack.c.l.b16 %v1483
        %v4211 = vunpack.c.h.b16 %v1483
        %v4212 = vunpack.c.l.b16 %v1484
        %v4213 = vunpack.c.h.b16 %v1484
        %v4214 = vunpack.c.l.b16 %v1485
        %v4215 = vunpack.c.h.b16 %v1485
        %v4216 = vunpack.c.l.b16 %v1486
        %v4217 = vunpack.c.h.b16 %v1486
        %v4218 = vunpack.c.l.b16 %v1487
        %v4219 = vunpack.c.h.b16 %v1487
        %v4220 = vunpack.c.l.b16 %v1488
        %v4221 = vunpack.c.h.b16 %v1488
        %v4222 = vunpack.c.l.b16 %v1489
        %v4223 = vunpack.c.h.b16 %v1489
        %v4224 = vunpack.c.l.b16 %v1490
        %v4225 = vunpack.c.h.b16 %v1490
        %v4226 = vunpack.c.l.b16 %v1491
        %v4227 = vunpack.c.h.b16 %v1491
        %v4228 = vunpack.c.l.b16 %v1492
        %v4229 = vunpack.c.h.b16 %v1492
        %v4230 = vunpack.c.l.b16 %v1493
        %v4231 = vunpack.c.h.b16 %v1493
        %v4232 = vunpack.c.l.b16 %v1494
        %v4233 = vunpack.c.h.b16 %v1494
        %v4234 = vunpack.c.l.b16 %v1495
        %v4235 = vunpack.c.h.b16 %v1495
        %v4236 = vunpack.c.l.b16 %v1496
        %v4237 = vunpack.c.h.b16 %v1496
        %v4238 = vunpack.c.l.b16 %v1497
        %v4239 = vunpack.c.h.b16 %v1497
        %v4240 = vunpack.c.l.b16 %v1498
        %v4241 = vunpack.c.h.b16 %v1498
        %v4242 = vunpack.c.l.b16 %v1499
        %v4243 = vunpack.c.h.b16 %v1499
        %v4244 = vunpack.c.l.b16 %v1500
        %v4245 = vunpack.c.h.b16 %v1500
        %v4246 = vunpack.c.l.b16 %v1501
        %v4247 = vunpack.c.h.b16 %v1501
        %v4248 = vunpack.c.l.b16 %v1502
        %v4249 = vunpack.c.h.b16 %v1502
        %v4250 = vunpack.c.l.b16 %v1503
        %v4251 = vunpack.c.h.b16 %v1503
        %v4252 = vunpack.c.l.b16 %v1504
        %v4253 = vunpack.c.h.b16 %v1504
        %v4254 = vunpack.c.l.b16 %v1505
        %v4255 = vunpack.c.h.b16 %v1505
        %v4256 = vunpack.c.l.b16 %v1506
        %v4257 = vunpack.c.h.b16 %v1506
        %v4258 = vunpack.c.l.b16 %v1507
        %v4259 = vunpack.c.h.b16 %v1507
        %v4260 = vunpack.c.l.b16 %v1508
        %v4261 = vunpack.c.h.b16 %v1508
        %v4262 = vunpack.c.l.b16 %v1509
        %v4263 = vunpack.c.h.b16 %v1509
        %v4264 = vunpack.c.l.b16 %v1510
        %v4265 = vunpack.c.h.b16 %v1510
        %v4266 = vunpack.c.l.b16 %v1511
        %v4267 = vunpack.c.h.b16 %v1511
        %v4268 = vunpack.c.l.b16 %v1512
        %v4269 = vunpack.c.h.b16 %v1512
        %v4270 = vunpack.c.l.b16 %v1513
        %v4271 = vunpack.c.h.b16 %v1513
        %v4272 = vunpack.c.l.b16 %v1514
        %v4273 = vunpack.c.h.b16 %v1514
        %v4274 = vunpack.c.l.b16 %v1515
        %v4275 = vunpack.c.h.b16 %v1515
        %v4276 = vunpack.c.l.b16 %v1516
        %v4277 = vunpack.c.h.b16 %v1516
        %v4278 = vunpack.c.l.b16 %v1517
        %v4279 = vunpack.c.h.b16 %v1517
        %v4280 = vunpack.c.l.b16 %v1518
        %v4281 = vunpack.c.h.b16 %v1518
        %v4282 = vunpack.c.l.b16 %v1519
        %v4283 = vunpack.c.h.b16 %v1519
        %v4284 = vunpack.c.l.b16 %v1520
        %v4285 = vunpack.c.h.b16 %v1520
        %v4286 = vunpack.c.l.b16 %v1521
        %v4287 = vunpack.c.h.b16 %v1521
        %v4288 = vunpack.c.l.b16 %v1522
        %v4289 = vunpack.c.h.b16 %v1522
        %v4290 = vunpack.c.l.b16 %v1523
        %v4291 = vunpack.c.h.b16 %v1523
        %v4292 = vunpack.c.l.b16 %v1524
        %v4293 = vunpack.c.h.b16 %v1524
        %v4294 = vunpack.c.l.b16 %v1525
        %v4295 = vunpack.c.h.b16 %v1525
        %v4296 = vunpack.c.l.b16 %v1526
        %v4297 = vunpack.c.h.b16 %v1526
        %v4298 = vunpack.c.l.b16 %v1527
        %v4299 = vunpack.c.h.b16 %v1527
        %v4300 = vunpack.c.l.b16 %v1528
        %v4301 = vunpack.c.h.b16 %v1528
        %v4302 = vunpack.c.l.b16 %v1529
        %v4303 = vunpack.c.h.b16 %v1529
        %v4304 = vunpack.c.l.b16 %v1530
        %v4305 = vunpack.c.h.b16 %v1530
        %v4306 = vunpack.c.l.b16 %v1531
        %v4307 = vunpack.c.h.b16 %v1531
        %v4308 = vunpack.c.l.b16 %v1532
        %v4309 = vunpack.c.h.b16 %v1532
        %v4310 = vunpack.c.l.b16 %v1533
        %v4311 = vunpack.c.h.b16 %v1533
        %v4312 = vunpack.c.l.b16 %v1534
        %v4313 = vunpack.c.h.b16 %v1534
        %v4314 = vunpack.c.l.b16 %v1535
        %v4315 = vunpack.c.h.b16 %v1535
        %v4316 = vunpack.c.l.b16 %v1536
        %v4317 = vunpack.c.h.b16 %v1536
        %v4318 = vunpack.c.l.b16 %v1537
        %v4319 = vunpack.c.h.b16 %v1537
        %v4320 = vunpack.c.l.b16 %v1538
        %v4321 = vunpack.c.h.b16 %v1538
        %v4322 = vunpack.c.l.b16 %v1539
        %v4323 = vunpack.c.h.b16 %v1539
        %v4324 = vunpack.c.l.b16 %v1540
        %v4325 = vunpack.c.h.b16 %v1540
        %v4326 = vunpack.c.l.b16 %v1541
        %v4327 = vunpack.c.h.b16 %v1541
        %v4328 = vunpack.c.l.b16 %v1542
        %v4329 = vunpack.c.h.b16 %v1542
        %v4330 = vunpack.c.l.b16 %v1543
        %v4331 = vunpack.c.h.b16 %v1543
        %v4332 = vunpack.c.l.b16 %v1544
        %v4333 = vunpack.c.h.b16 %v1544
        %v4334 = vunpack.c.l.b16 %v1545
        %v4335 = vunpack.c.h.b16 %v1545
        %v4336 = vunpack.c.l.b16 %v1546
        %v4337 = vunpack.c.h.b16 %v1546
        %v4338 = vunpack.c.l.b16 %v1547
        %v4339 = vunpack.c.h.b16 %v1547
        %v4340 = vunpack.c.l.b16 %v1548
        %v4341 = vunpack.c.h.b16 %v1548
        %v4342 = vunpack.c.l.b16 %v1549
        %v4343 = vunpack.c.h.b16 %v1549
        %v4344 = vunpack.c.l.b16 %v1550
        %v4345 = vunpack.c.h.b16 %v1550
        %v4346 = vunpack.c.l.b16 %v1551
        %v4347 = vunpack.c.h.b16 %v1551
        %v4348 = vunpack.c.l.b16 %v1552
        %v4349 = vunpack.c.h.b16 %v1552
        %v4350 = vunpack.c.l.b16 %v1553
        %v4351 = vunpack.c.h.b16 %v1553
        %v4352 = vunpack.c.l.b16 %v1554
        %v4353 = vunpack.c.h.b16 %v1554
        %v4354 = vunpack.c.l.b16 %v1555
        %v4355 = vunpack.c.h.b16 %v1555
        %v4356 = vunpack.c.l.b16 %v1556
        %v4357 = vunpack.c.h.b16 %v1556
        %v4358 = vunpack.c.l.b16 %v1557
        %v4359 = vunpack.c.h.b16 %v1557
        %v4360 = vunpack.c.l.b16 %v1558
        %v4361 = vunpack.c.h.b16 %v1558
        %v4362 = vunpack.c.l.b16 %v1559
        %v4363 = vunpack.c.h.b16 %v1559
        %v4364 = vunpack.c.l.b16 %v1560
        %v4365 = vunpack.c.h.b16 %v1560
        %v4366 = vunpack.c.l.b16 %v1561
        %v4367 = vunpack.c.h.b16 %v1561
        %v4368 = vunpack.c.l.b16 %v1562
        %v4369 = vunpack.c.h.b16 %v1562
        %v4370 = vunpack.c.l.b16 %v1563
        %v4371 = vunpack.c.h.b16 %v1563
        %v4372 = vunpack.c.l.b16 %v1564
        %v4373 = vunpack.c.h.b16 %v1564
        %v4374 = vunpack.c.l.b16 %v1565
        %v4375 = vunpack.c.h.b16 %v1565
        %v4376 = vunpack.c.l.b16 %v1566
        %v4377 = vunpack.c.h.b16 %v1566
        %v4378 = vunpack.c.l.b16 %v1567
        %v4379 = vunpack.c.h.b16 %v1567
        %v4380 = vunpack.c.l.b16 %v1568
        %v4381 = vunpack.c.h.b16 %v1568
        %v4382 = vunpack.c.l.b16 %v1569
        %v4383 = vunpack.c.h.b16 %v1569
        %v4384 = vunpack.c.l.b16 %v1570
        %v4385 = vunpack.c.h.b16 %v1570
        %v4386 = vunpack.c.l.b16 %v1571
        %v4387 = vunpack.c.h.b16 %v1571
        %v4388 = vunpack.c.l.b16 %v1572
        %v4389 = vunpack.c.h.b16 %v1572
        %v4390 = vunpack.c.l.b16 %v1573
        %v4391 = vunpack.c.h.b16 %v1573
        %v4392 = vunpack.c.l.b16 %v1574
        %v4393 = vunpack.c.h.b16 %v1574
        %v4394 = vunpack.c.l.b16 %v1575
        %v4395 = vunpack.c.h.b16 %v1575
        %v4396 = vunpack.c.l.b16 %v1576
        %v4397 = vunpack.c.h.b16 %v1576
        %v4398 = vunpack.c.l.b16 %v1577
        %v4399 = vunpack.c.h.b16 %v1577
        %v4400 = vunpack.c.l.b16 %v1578
        %v4401 = vunpack.c.h.b16 %v1578
        %v4402 = vunpack.c.l.b16 %v1579
        %v4403 = vunpack.c.h.b16 %v1579
        %v4404 = vunpack.c.l.b16 %v1580
        %v4405 = vunpack.c.h.b16 %v1580
        %v4406 = vunpack.c.l.b16 %v1581
        %v4407 = vunpack.c.h.b16 %v1581
        %v4408 = vunpack.c.l.b16 %v1582
        %v4409 = vunpack.c.h.b16 %v1582
        %v4410 = vunpack.c.l.b16 %v1583
        %v4411 = vunpack.c.h.b16 %v1583
        %v4412 = vunpack.c.l.b16 %v1584
        %v4413 = vunpack.c.h.b16 %v1584
        %v4414 = vunpack.c.l.b16 %v1585
        %v4415 = vunpack.c.h.b16 %v1585
        %v4416 = vunpack.c.l.b16 %v1586
        %v4417 = vunpack.c.h.b16 %v1586
        %v4418 = vunpack.c.l.b16 %v1587
        %v4419 = vunpack.c.h.b16 %v1587
        %v4420 = vunpack.c.l.b16 %v1588
        %v4421 = vunpack.c.h.b16 %v1588
        %v4422 = vunpack.c.l.b16 %v1589
        %v4423 = vunpack.c.h.b16 %v1589
        %v4424 = vunpack.c.l.b16 %v1590
        %v4425 = vunpack.c.h.b16 %v1590
        %v4426 = vunpack.c.l.b16 %v1591
        %v4427 = vunpack.c.h.b16 %v1591
        %v4428 = vunpack.c.l.b16 %v1592
        %v4429 = vunpack.c.h.b16 %v1592
        %v4430 = vunpack.c.l.b16 %v1593
        %v4431 = vunpack.c.h.b16 %v1593
        %v4432 = vunpack.c.l.b16 %v1594
        %v4433 = vunpack.c.h.b16 %v1594
        %v4434 = vunpack.c.l.b16 %v1595
        %v4435 = vunpack.c.h.b16 %v1595
        %v4436 = vunpack.c.l.b16 %v1596
        %v4437 = vunpack.c.h.b16 %v1596
        %v4438 = vunpack.c.l.b16 %v1597
        %v4439 = vunpack.c.h.b16 %v1597
        %v4440 = vunpack.c.l.b16 %v1598
        %v4441 = vunpack.c.h.b16 %v1598
        %v4442 = vunpack.c.l.b16 %v1599
        %v4443 = vunpack.c.h.b16 %v1599
        %v4444 = vunpack.c.l.b16 %v1600
        %v4445 = vunpack.c.h.b16 %v1600
        %v4446 = vunpack.c.l.b16 %v1601
        %v4447 = vunpack.c.h.b16 %v1601
        %v4448 = vunpack.c.l.b16 %v1602
        %v4449 = vunpack.c.h.b16 %v1602
        %v4450 = vunpack.c.l.b16 %v1603
        %v4451 = vunpack.c.h.b16 %v1603
        %v4452 = vunpack.c.l.b16 %v1604
        %v4453 = vunpack.c.h.b16 %v1604
        %v4454 = vunpack.c.l.b16 %v1605
        %v4455 = vunpack.c.h.b16 %v1605
        %v4456 = vunpack.c.l.b16 %v1606
        %v4457 = vunpack.c.h.b16 %v1606
        %v4458 = vunpack.c.l.b16 %v1607
        %v4459 = vunpack.c.h.b16 %v1607
        %v4460 = vunpack.c.l.b16 %v1608
        %v4461 = vunpack.c.h.b16 %v1608
        %v4462 = vunpack.c.l.b16 %v1609
        %v4463 = vunpack.c.h.b16 %v1609
        %v4464 = vunpack.c.l.b16 %v1610
        %v4465 = vunpack.c.h.b16 %v1610
        %v4466 = vunpack.c.l.b16 %v1611
        %v4467 = vunpack.c.h.b16 %v1611
        %v4468 = vunpack.c.l.b16 %v1612
        %v4469 = vunpack.c.h.b16 %v1612
        %v4470 = vunpack.c.l.b16 %v1613
        %v4471 = vunpack.c.h.b16 %v1613
        %v4472 = vunpack.c.l.b16 %v1614
        %v4473 = vunpack.c.h.b16 %v1614
        %v4474 = vunpack.c.l.b16 %v1615
        %v4475 = vunpack.c.h.b16 %v1615
        %v4476 = vunpack.c.l.b16 %v1616
        %v4477 = vunpack.c.h.b16 %v1616
        %v4478 = vunpack.c.l.b16 %v1617
        %v4479 = vunpack.c.h.b16 %v1617
        %v4480 = vunpack.c.l.b16 %v1618
        %v4481 = vunpack.c.h.b16 %v1618
        %v4482 = vunpack.c.l.b16 %v1619
        %v4483 = vunpack.c.h.b16 %v1619
        %v4484 = vunpack.c.l.b16 %v1620
        %v4485 = vunpack.c.h.b16 %v1620
        %v4486 = vunpack.c.l.b16 %v1621
        %v4487 = vunpack.c.h.b16 %v1621
        %v4488 = vunpack.c.l.b16 %v1622
        %v4489 = vunpack.c.h.b16 %v1622
        %v4490 = vunpack.c.l.b16 %v1623
        %v4491 = vunpack.c.h.b16 %v1623
        %v4492 = vunpack.c.l.b16 %v1624
        %v4493 = vunpack.c.h.b16 %v1624
        %v4494 = vunpack.c.l.b16 %v1625
        %v4495 = vunpack.c.h.b16 %v1625
        %v4496 = vunpack.c.l.b16 %v1626
        %v4497 = vunpack.c.h.b16 %v1626
        %v4498 = vunpack.c.l.b16 %v1627
        %v4499 = vunpack.c.h.b16 %v1627
        %v4500 = vunpack.c.l.b16 %v1628
        %v4501 = vunpack.c.h.b16 %v1628
        %v4502 = vunpack.c.l.b16 %v1629
        %v4503 = vunpack.c.h.b16 %v1629
        %v4504 = vunpack.c.l.b16 %v1630
        %v4505 = vunpack.c.h.b16 %v1630
        %v4506 = vunpack.c.l.b16 %v1631
        %v4507 = vunpack.c.h.b16 %v1631
        %v4508 = vunpack.c.l.b16 %v1632
        %v4509 = vunpack.c.h.b16 %v1632
        %v4510 = vunpack.c.l.b16 %v1633
        %v4511 = vunpack.c.h.b16 %v1633
        %v4512 = vunpack.c.l.b16 %v1634
        %v4513 = vunpack.c.h.b16 %v1634
        %v4514 = vunpack.c.l.b16 %v1635
        %v4515 = vunpack.c.h.b16 %v1635
        %v4516 = vunpack.c.l.b16 %v1636
        %v4517 = vunpack.c.h.b16 %v1636
        %v4518 = vunpack.c.l.b16 %v1637
        %v4519 = vunpack.c.h.b16 %v1637
        %v4520 = vunpack.c.l.b16 %v1638
        %v4521 = vunpack.c.h.b16 %v1638
        %v4522 = vunpack.c.l.b16 %v1639
        %v4523 = vunpack.c.h.b16 %v1639
        %v4524 = vunpack.c.l.b16 %v1640
        %v4525 = vunpack.c.h.b16 %v1640
        %v4526 = vunpack.c.l.b16 %v1641
        %v4527 = vunpack.c.h.b16 %v1641
        %v4528 = vunpack.c.l.b16 %v1642
        %v4529 = vunpack.c.h.b16 %v1642
        %v4530 = vunpack.c.l.b16 %v1643
        %v4531 = vunpack.c.h.b16 %v1643
        %v4532 = vunpack.c.l.b16 %v1644
        %v4533 = vunpack.c.h.b16 %v1644
        %v4534 = vunpack.c.l.b16 %v1645
        %v4535 = vunpack.c.h.b16 %v1645
        %v4536 = vunpack.c.l.b16 %v1646
        %v4537 = vunpack.c.h.b16 %v1646
        %v4538 = vunpack.c.l.b16 %v1647
        %v4539 = vunpack.c.h.b16 %v1647
        %v4540 = vunpack.c.l.b16 %v1648
        %v4541 = vunpack.c.h.b16 %v1648
        %v4542 = vunpack.c.l.b16 %v1649
        %v4543 = vunpack.c.h.b16 %v1649
        %v4544 = vunpack.c.l.b16 %v1650
        %v4545 = vunpack.c.h.b16 %v1650
        %v4546 = vunpack.c.l.b16 %v1651
        %v4547 = vunpack.c.h.b16 %v1651
        %v4548 = vunpack.c.l.b16 %v1652
        %v4549 = vunpack.c.h.b16 %v1652
        %v4550 = vunpack.c.l.b16 %v1653
        %v4551 = vunpack.c.h.b16 %v1653
        %v4552 = vunpack.c.l.b16 %v1654
        %v4553 = vunpack.c.h.b16 %v1654
        %v4554 = vunpack.c.l.b16 %v1655
        %v4555 = vunpack.c.h.b16 %v1655
        %v4556 = vunpack.c.l.b16 %v1656
        %v4557 = vunpack.c.h.b16 %v1656
        %v4558 = vunpack.c.l.b16 %v1657
        %v4559 = vunpack.c.h.b16 %v1657
        %v4560 = vunpack.c.l.b16 %v1658
        %v4561 = vunpack.c.h.b16 %v1658
        %v4562 = vunpack.c.l.b16 %v1659
        %v4563 = vunpack.c.h.b16 %v1659
        %v4564 = vunpack.c.l.b16 %v1660
        %v4565 = vunpack.c.h.b16 %v1660
        %v4566 = vunpack.c.l.b16 %v1661
        %v4567 = vunpack.c.h.b16 %v1661
        %v4568 = vunpack.c.l.b16 %v1662
        %v4569 = vunpack.c.h.b16 %v1662
        %v4570 = vunpack.c.l.b16 %v1663
        %v4571 = vunpack.c.h.b16 %v1663
        %v4572 = vunpack.c.l.b16 %v1664
        %v4573 = vunpack.c.h.b16 %v1664
        %v4574 = vunpack.c.l.b16 %v1665
        %v4575 = vunpack.c.h.b16 %v1665
        %v4576 = vunpack.c.l.b16 %v1666
        %v4577 = vunpack.c.h.b16 %v1666
        %v4578 = vunpack.c.l.b16 %v1667
        %v4579 = vunpack.c.h.b16 %v1667
        %v4580 = vunpack.c.l.b16 %v1668
        %v4581 = vunpack.c.h.b16 %v1668
        %v4582 = vunpack.c.l.b16 %v1669
        %v4583 = vunpack.c.h.b16 %v1669
        %v4584 = vunpack.c.l.b16 %v1670
        %v4585 = vunpack.c.h.b16 %v1670
        %v4586 = vunpack.c.l.b16 %v1671
        %v4587 = vunpack.c.h.b16 %v1671
        %v4588 = vunpack.c.l.b16 %v1672
        %v4589 = vunpack.c.h.b16 %v1672
        %v4590 = vunpack.c.l.b16 %v1673
        %v4591 = vunpack.c.h.b16 %v1673
        %v4592 = vunpack.c.l.b16 %v1674
        %v4593 = vunpack.c.h.b16 %v1674
        %v4594 = vunpack.c.l.b16 %v1675
        %v4595 = vunpack.c.h.b16 %v1675
        %v4596 = vunpack.c.l.b16 %v1676
        %v4597 = vunpack.c.h.b16 %v1676
        %v4598 = vunpack.c.l.b16 %v1677
        %v4599 = vunpack.c.h.b16 %v1677
        %v4600 = vunpack.c.l.b16 %v1678
        %v4601 = vunpack.c.h.b16 %v1678
        %v4602 = vunpack.c.l.b16 %v1679
        %v4603 = vunpack.c.h.b16 %v1679
        %v4604 = vunpack.c.l.b16 %v1680
        %v4605 = vunpack.c.h.b16 %v1680
        %v4606 = vunpack.c.l.b16 %v1681
        %v4607 = vunpack.c.h.b16 %v1681
        %v4608 = vunpack.c.l.b16 %v1682
        %v4609 = vunpack.c.h.b16 %v1682
        %v4610 = vunpack.c.l.b16 %v1683
        %v4611 = vunpack.c.h.b16 %v1683
        %v4612 = vunpack.c.l.b16 %v1684
        %v4613 = vunpack.c.h.b16 %v1684
        %v4614 = vunpack.c.l.b16 %v1685
        %v4615 = vunpack.c.h.b16 %v1685
        %v4616 = vunpack.c.l.b16 %v1686
        %v4617 = vunpack.c.h.b16 %v1686
        %v4618 = vunpack.c.l.b16 %v1687
        %v4619 = vunpack.c.h.b16 %v1687
        %v4620 = vunpack.c.l.b16 %v1688
        %v4621 = vunpack.c.h.b16 %v1688
        %v4622 = vunpack.c.l.b16 %v1689
        %v4623 = vunpack.c.h.b16 %v1689
        %v4624 = vunpack.c.l.b16 %v1690
        %v4625 = vunpack.c.h.b16 %v1690
        %v4626 = vunpack.c.l.b16 %v1691
        %v4627 = vunpack.c.h.b16 %v1691
        %v4628 = vunpack.c.l.b16 %v1692
        %v4629 = vunpack.c.h.b16 %v1692
        %v4630 = vunpack.c.l.b16 %v1693
        %v4631 = vunpack.c.h.b16 %v1693
        %v4632 = vunpack.c.l.b16 %v1694
        %v4633 = vunpack.c.h.b16 %v1694
        %v4634 = vunpack.c.l.b16 %v1695
        %v4635 = vunpack.c.h.b16 %v1695
        %v4636 = vunpack.c.l.b16 %v1696
        %v4637 = vunpack.c.h.b16 %v1696
        %v4638 = vunpack.c.l.b16 %v1697
        %v4639 = vunpack.c.h.b16 %v1697
        %v4640 = vunpack.c.l.b16 %v1698
        %v4641 = vunpack.c.h.b16 %v1698
        %v4642 = vunpack.c.l.b16 %v1699
        %v4643 = vunpack.c.h.b16 %v1699
        %v4644 = vunpack.c.l.b16 %v1700
        %v4645 = vunpack.c.h.b16 %v1700
        %v4646 = vunpack.c.l.b16 %v1701
        %v4647 = vunpack.c.h.b16 %v1701
        %v4648 = vunpack.c.l.b16 %v1702
        %v4649 = vunpack.c.h.b16 %v1702
        %v4650 = vunpack.c.l.b16 %v1703
        %v4651 = vunpack.c.h.b16 %v1703
        %v4652 = vunpack.c.l.b16 %v1704
        %v4653 = vunpack.c.h.b16 %v1704
        %v4654 = vunpack.c.l.b16 %v1705
        %v4655 = vunpack.c.h.b16 %v1705
        %v4656 = vunpack.c.l.b16 %v1706
        %v4657 = vunpack.c.h.b16 %v1706
        %v4658 = vunpack.c.l.b16 %v1707
        %v4659 = vunpack.c.h.b16 %v1707
        %v4660 = vunpack.c.l.b16 %v1708
        %v4661 = vunpack.c.h.b16 %v1708
        %v4662 = vunpack.c.l.b16 %v1709
        %v4663 = vunpack.c.h.b16 %v1709
        %v4664 = vunpack.c.l.b16 %v1710
        %v4665 = vunpack.c.h.b16 %v1710
        %v4666 = vunpack.c.l.b16 %v1711
        %v4667 = vunpack.c.h.b16 %v1711
        %v4668 = vunpack.c.l.b16 %v1712
        %v4669 = vunpack.c.h.b16 %v1712
        %v4670 = vunpack.c.l.b16 %v1713
        %v4671 = vunpack.c.h.b16 %v1713
        %v4672 = vunpack.c.l.b16 %v1714
        %v4673 = vunpack.c.h.b16 %v1714
        %v4674 = vunpack.c.l.b16 %v1715
        %v4675 = vunpack.c.h.b16 %v1715
        %v4676 = vunpack.c.l.b16 %v1716
        %v4677 = vunpack.c.h.b16 %v1716
        %v4678 = vunpack.c.l.b16 %v1717
        %v4679 = vunpack.c.h.b16 %v1717
        %v4680 = vunpack.c.l.b16 %v1718
        %v4681 = vunpack.c.h.b16 %v1718
        %v4682 = vunpack.c.l.b16 %v1719
        %v4683 = vunpack.c.h.b16 %v1719
        %v4684 = vunpack.c.l.b16 %v1720
        %v4685 = vunpack.c.h.b16 %v1720
        %v4686 = vunpack.c.l.b16 %v1721
        %v4687 = vunpack.c.h.b16 %v1721
        %v4688 = vunpack.c.l.b16 %v1722
        %v4689 = vunpack.c.h.b16 %v1722
        %v4690 = vunpack.c.l.b16 %v1723
        %v4691 = vunpack.c.h.b16 %v1723
        %v4692 = vunpack.c.l.b16 %v1724
        %v4693 = vunpack.c.h.b16 %v1724
        %v4694 = vunpack.c.l.b16 %v1725
        %v4695 = vunpack.c.h.b16 %v1725
        %v4696 = vunpack.c.l.b16 %v1726
        %v4697 = vunpack.c.h.b16 %v1726
        %v4698 = vunpack.c.l.b16 %v1727
        %v4699 = vunpack.c.h.b16 %v1727
        %v4700 = vunpack.c.l.b16 %v1728
        %v4701 = vunpack.c.h.b16 %v1728
        %v4702 = vunpack.c.l.b16 %v1729
        %v4703 = vunpack.c.h.b16 %v1729
        %v4704 = vunpack.c.l.b16 %v1730
        %v4705 = vunpack.c.h.b16 %v1730
        %v4706 = vunpack.c.l.b16 %v1731
        %v4707 = vunpack.c.h.b16 %v1731
        %v4708 = vunpack.c.l.b16 %v1732
        %v4709 = vunpack.c.h.b16 %v1732
        %v4710 = vunpack.c.l.b16 %v1733
        %v4711 = vunpack.c.h.b16 %v1733
        %v4712 = vunpack.c.l.b16 %v1734
        %v4713 = vunpack.c.h.b16 %v1734
        %v4714 = vunpack.c.l.b16 %v1735
        %v4715 = vunpack.c.h.b16 %v1735
        %v4716 = vunpack.c.l.b16 %v1736
        %v4717 = vunpack.c.h.b16 %v1736
        %v4718 = vunpack.c.l.b16 %v1737
        %v4719 = vunpack.c.h.b16 %v1737
        %v4720 = vunpack.c.l.b16 %v1738
        %v4721 = vunpack.c.h.b16 %v1738
        %v4722 = vunpack.c.l.b16 %v1739
        %v4723 = vunpack.c.h.b16 %v1739
        %v4724 = vunpack.c.l.b16 %v1740
        %v4725 = vunpack.c.h.b16 %v1740
        %v4726 = vunpack.c.l.b16 %v1741
        %v4727 = vunpack.c.h.b16 %v1741
        %v4728 = vunpack.c.l.b16 %v1742
        %v4729 = vunpack.c.h.b16 %v1742
        %v4730 = vunpack.c.l.b16 %v1743
        %v4731 = vunpack.c.h.b16 %v1743
        %v4732 = vunpack.c.l.b16 %v1744
        %v4733 = vunpack.c.h.b16 %v1744
        %v4734 = vunpack.c.l.b16 %v1745
        %v4735 = vunpack.c.h.b16 %v1745
        %v4736 = vunpack.c.l.b16 %v1746
        %v4737 = vunpack.c.h.b16 %v1746
        %v4738 = vunpack.c.l.b16 %v1747
        %v4739 = vunpack.c.h.b16 %v1747
        %v4740 = vunpack.c.l.b16 %v1748
        %v4741 = vunpack.c.h.b16 %v1748
        %v4742 = vunpack.c.l.b16 %v1749
        %v4743 = vunpack.c.h.b16 %v1749
        %v4744 = vunpack.c.l.b16 %v1750
        %v4745 = vunpack.c.h.b16 %v1750
        %v4746 = vunpack.c.l.b16 %v1751
        %v4747 = vunpack.c.h.b16 %v1751
        %v4748 = vunpack.c.l.b16 %v1752
        %v4749 = vunpack.c.h.b16 %v1752
        %v4750 = vunpack.c.l.b16 %v1753
        %v4751 = vunpack.c.h.b16 %v1753
        %v4752 = vunpack.c.l.b16 %v1754
        %v4753 = vunpack.c.h.b16 %v1754
        %v4754 = vunpack.c.l.b16 %v1755
        %v4755 = vunpack.c.h.b16 %v1755
        %v4756 = vunpack.c.l.b16 %v1756
        %v4757 = vunpack.c.h.b16 %v1756
        %v4758 = vunpack.c.l.b16 %v1757
        %v4759 = vunpack.c.h.b16 %v1757
        %v4760 = vunpack.c.l.b16 %v1758
        %v4761 = vunpack.c.h.b16 %v1758
        %v4762 = vunpack.c.l.b16 %v1759
        %v4763 = vunpack.c.h.b16 %v1759
        %v4764 = vunpack.c.l.b16 %v1760
        %v4765 = vunpack.c.h.b16 %v1760
        %v4766 = vunpack.c.l.b16 %v1761
        %v4767 = vunpack.c.h.b16 %v1761
        %v4768 = vunpack.c.l.b16 %v1762
        %v4769 = vunpack.c.h.b16 %v1762
        %v4770 = vunpack.c.l.b16 %v1763
        %v4771 = vunpack.c.h.b16 %v1763
        %v4772 = vunpack.c.l.b16 %v1764
        %v4773 = vunpack.c.h.b16 %v1764
        %v4774 = vunpack.c.l.b16 %v1765
        %v4775 = vunpack.c.h.b16 %v1765
        %v4776 = vunpack.c.l.b16 %v1766
        %v4777 = vunpack.c.h.b16 %v1766
        %v4778 = vunpack.c.l.b16 %v1767
        %v4779 = vunpack.c.h.b16 %v1767
        %v4780 = vunpack.c.l.b16 %v1768
        %v4781 = vunpack.c.h.b16 %v1768
        %v4782 = vunpack.c.l.b16 %v1769
        %v4783 = vunpack.c.h.b16 %v1769
        %v4784 = vunpack.c.l.b16 %v1770
        %v4785 = vunpack.c.h.b16 %v1770
        %v4786 = vunpack.c.l.b16 %v1771
        %v4787 = vunpack.c.h.b16 %v1771
        %v4788 = vunpack.c.l.b16 %v1772
        %v4789 = vunpack.c.h.b16 %v1772
        %v4790 = vunpack.c.l.b16 %v1773
        %v4791 = vunpack.c.h.b16 %v1773
        %v4792 = vunpack.c.l.b16 %v1774
        %v4793 = vunpack.c.h.b16 %v1774
        %v4794 = vunpack.c.l.b16 %v1775
        %v4795 = vunpack.c.h.b16 %v1775
        %v4796 = vunpack.c.l.b16 %v1776
        %v4797 = vunpack.c.h.b16 %v1776
        %v4798 = vunpack.c.l.b16 %v1777
        %v4799 = vunpack.c.h.b16 %v1777
        %v4800 = vunpack.c.l.b16 %v1778
        %v4801 = vunpack.c.h.b16 %v1778
        %v4802 = vunpack.c.l.b16 %v1779
        %v4803 = vunpack.c.h.b16 %v1779
        %v4804 = vunpack.c.l.b16 %v1780
        %v4805 = vunpack.c.h.b16 %v1780
        %v4806 = vunpack.c.l.b16 %v1781
        %v4807 = vunpack.c.h.b16 %v1781
        %v4808 = vunpack.c.l.b16 %v1782
        %v4809 = vunpack.c.h.b16 %v1782
        %v4810 = vunpack.c.l.b16 %v1783
        %v4811 = vunpack.c.h.b16 %v1783
        %v4812 = vunpack.c.l.b16 %v1784
        %v4813 = vunpack.c.h.b16 %v1784
        %v4814 = vunpack.c.l.b16 %v1785
        %v4815 = vunpack.c.h.b16 %v1785
        %v4816 = vunpack.c.l.b16 %v1786
        %v4817 = vunpack.c.h.b16 %v1786
        %v4818 = vunpack.c.l.b16 %v1787
        %v4819 = vunpack.c.h.b16 %v1787
        %v4820 = vunpack.c.l.b16 %v1788
        %v4821 = vunpack.c.h.b16 %v1788
        %v4822 = vunpack.c.l.b16 %v1789
        %v4823 = vunpack.c.h.b16 %v1789
        %v4824 = vunpack.c.l.b16 %v1790
        %v4825 = vunpack.c.h.b16 %v1790
        %v4826 = vunpack.c.l.b16 %v1791
        %v4827 = vunpack.c.h.b16 %v1791
        %v4828 = vunpack.c.l.b16 %v1792
        %v4829 = vunpack.c.h.b16 %v1792
        %v4830 = vunpack.c.l.b16 %v1793
        %v4831 = vunpack.c.h.b16 %v1793
        %v4832 = vunpack.c.l.b16 %v1794
        %v4833 = vunpack.c.h.b16 %v1794
        %v4834 = vunpack.c.l.b16 %v1795
        %v4835 = vunpack.c.h.b16 %v1795
        %v4836 = vunpack.c.l.b16 %v1796
        %v4837 = vunpack.c.h.b16 %v1796
        %v4838 = vunpack.c.l.b16 %v1797
        %v4839 = vunpack.c.h.b16 %v1797
        %v4840 = vunpack.c.l.b16 %v1798
        %v4841 = vunpack.c.h.b16 %v1798
        %v4842 = vunpack.c.l.b16 %v1799
        %v4843 = vunpack.c.h.b16 %v1799
        %v4844 = vunpack.c.l.b16 %v1800
        %v4845 = vunpack.c.h.b16 %v1800
        %v4846 = vunpack.c.l.b16 %v1801
        %v4847 = vunpack.c.h.b16 %v1801
        %v4848 = vunpack.c.l.b16 %v1802
        %v4849 = vunpack.c.h.b16 %v1802
        %v4850 = vunpack.c.l.b16 %v1803
        %v4851 = vunpack.c.h.b16 %v1803
        %v4852 = vunpack.c.l.b16 %v1804
        %v4853 = vunpack.c.h.b16 %v1804
        %v4854 = vunpack.c.l.b16 %v1805
        %v4855 = vunpack.c.h.b16 %v1805
        %v4856 = vunpack.c.l.b16 %v1806
        %v4857 = vunpack.c.h.b16 %v1806
        %v4858 = vunpack.c.l.b16 %v1807
        %v4859 = vunpack.c.h.b16 %v1807
        %v4860 = vunpack.c.l.b16 %v1808
        %v4861 = vunpack.c.h.b16 %v1808
        %v4862 = vunpack.c.l.b16 %v1809
        %v4863 = vunpack.c.h.b16 %v1809
        %v4864 = vunpack.c.l.b16 %v1810
        %v4865 = vunpack.c.h.b16 %v1810
        %v4866 = vunpack.c.l.b16 %v1811
        %v4867 = vunpack.c.h.b16 %v1811
        %v4868 = vunpack.c.l.b16 %v1812
        %v4869 = vunpack.c.h.b16 %v1812
        %v4870 = vunpack.c.l.b16 %v1813
        %v4871 = vunpack.c.h.b16 %v1813
        %v4872 = vunpack.c.l.b16 %v1814
        %v4873 = vunpack.c.h.b16 %v1814
        %v4874 = vunpack.c.l.b16 %v1815
        %v4875 = vunpack.c.h.b16 %v1815
        %v4876 = vunpack.c.l.b16 %v1816
        %v4877 = vunpack.c.h.b16 %v1816
        %v4878 = vunpack.c.l.b16 %v1817
        %v4879 = vunpack.c.h.b16 %v1817
        %v4880 = vunpack.c.l.b16 %v1818
        %v4881 = vunpack.c.h.b16 %v1818
        %v4882 = vunpack.c.l.b16 %v1819
        %v4883 = vunpack.c.h.b16 %v1819
        %v4884 = vunpack.c.l.b16 %v1820
        %v4885 = vunpack.c.h.b16 %v1820
        %v4886 = vunpack.c.l.b16 %v1821
        %v4887 = vunpack.c.h.b16 %v1821
        %v4888 = vunpack.c.l.b16 %v1822
        %v4889 = vunpack.c.h.b16 %v1822
        %v4890 = vunpack.c.l.b16 %v1823
        %v4891 = vunpack.c.h.b16 %v1823
        %v4892 = vunpack.c.l.b16 %v1824
        %v4893 = vunpack.c.h.b16 %v1824
        %v4894 = vunpack.c.l.b16 %v1825
        %v4895 = vunpack.c.h.b16 %v1825
        %v4896 = vunpack.c.l.b16 %v1826
        %v4897 = vunpack.c.h.b16 %v1826
        %v4898 = vunpack.c.l.b16 %v1827
        %v4899 = vunpack.c.h.b16 %v1827
        %v4900 = vunpack.c.l.b16 %v1828
        %v4901 = vunpack.c.h.b16 %v1828
        %v4902 = vunpack.c.l.b16 %v1829
        %v4903 = vunpack.c.h.b16 %v1829
        %v4904 = vunpack.c.l.b16 %v1830
        %v4905 = vunpack.c.h.b16 %v1830
        %v4906 = vunpack.c.l.b16 %v1831
        %v4907 = vunpack.c.h.b16 %v1831
        %v4908 = vunpack.c.l.b16 %v1832
        %v4909 = vunpack.c.h.b16 %v1832
        %v4910 = vunpack.c.l.b16 %v1833
        %v4911 = vunpack.c.h.b16 %v1833
        %v4912 = vunpack.c.l.b16 %v1834
        %v4913 = vunpack.c.h.b16 %v1834
        %v4914 = vunpack.c.l.b16 %v1835
        %v4915 = vunpack.c.h.b16 %v1835
        %v4916 = vunpack.c.l.b16 %v1836
        %v4917 = vunpack.c.h.b16 %v1836
        %v4918 = vunpack.c.l.b16 %v1837
        %v4919 = vunpack.c.h.b16 %v1837
        %v4920 = vunpack.c.l.b16 %v1838
        %v4921 = vunpack.c.h.b16 %v1838
        %v4922 = vunpack.c.l.b16 %v1839
        %v4923 = vunpack.c.h.b16 %v1839
        %v4924 = vunpack.c.l.b16 %v1840
        %v4925 = vunpack.c.h.b16 %v1840
        %v4926 = vunpack.c.l.b16 %v1841
        %v4927 = vunpack.c.h.b16 %v1841
        %v4928 = vunpack.c.l.b16 %v1842
        %v4929 = vunpack.c.h.b16 %v1842
        %v4930 = vunpack.c.l.b16 %v1843
        %v4931 = vunpack.c.h.b16 %v1843
        %v4932 = vunpack.c.l.b16 %v1844
        %v4933 = vunpack.c.h.b16 %v1844
        %v4934 = vunpack.c.l.b16 %v1845
        %v4935 = vunpack.c.h.b16 %v1845
        %v4936 = vunpack.c.l.b16 %v1846
        %v4937 = vunpack.c.h.b16 %v1846
        %v4938 = vunpack.c.l.b16 %v1847
        %v4939 = vunpack.c.h.b16 %v1847
        %v4940 = vunpack.c.l.b16 %v1848
        %v4941 = vunpack.c.h.b16 %v1848
        %v4942 = vunpack.c.l.b16 %v1849
        %v4943 = vunpack.c.h.b16 %v1849
        %v4944 = vunpack.c.l.b16 %v1850
        %v4945 = vunpack.c.h.b16 %v1850
        %v4946 = vunpack.c.l.b16 %v1851
        %v4947 = vunpack.c.h.b16 %v1851
        %v4948 = vunpack.c.l.b16 %v1852
        %v4949 = vunpack.c.h.b16 %v1852
        %v4950 = vunpack.c.l.b16 %v1853
        %v4951 = vunpack.c.h.b16 %v1853
        %v4952 = vunpack.c.l.b16 %v1854
        %v4953 = vunpack.c.h.b16 %v1854
        %v4954 = vunpack.c.l.b16 %v1855
        %v4955 = vunpack.c.h.b16 %v1855
        %v4956 = vunpack.c.l.b16 %v1856
        %v4957 = vunpack.c.h.b16 %v1856
        %v4958 = vunpack.c.l.b16 %v1857
        %v4959 = vunpack.c.h.b16 %v1857
        %v4960 = vunpack.c.l.b16 %v1858
        %v4961 = vunpack.c.h.b16 %v1858
        %v4962 = vunpack.c.l.b16 %v1859
        %v4963 = vunpack.c.h.b16 %v1859
        %v4964 = vunpack.c.l.b16 %v1860
        %v4965 = vunpack.c.h.b16 %v1860
        %v4966 = vunpack.c.l.b16 %v1861
        %v4967 = vunpack.c.h.b16 %v1861
        %v4968 = vunpack.c.l.b16 %v1862
        %v4969 = vunpack.c.h.b16 %v1862
        %v4970 = vunpack.c.l.b16 %v1863
        %v4971 = vunpack.c.h.b16 %v1863
        %v4972 = vunpack.c.l.b16 %v1864
        %v4973 = vunpack.c.h.b16 %v1864
        %v4974 = vunpack.c.l.b16 %v1865
        %v4975 = vunpack.c.h.b16 %v1865
        %v4976 = vunpack.c.l.b16 %v1866
        %v4977 = vunpack.c.h.b16 %v1866
        %v4978 = vunpack.c.l.b16 %v1867
        %v4979 = vunpack.c.h.b16 %v1867
        %v4980 = vunpack.c.l.b16 %v1868
        %v4981 = vunpack.c.h.b16 %v1868
        %v4982 = vunpack.c.l.b16 %v1869
        %v4983 = vunpack.c.h.b16 %v1869
        %v4984 = vunpack.c.l.b16 %v1870
        %v4985 = vunpack.c.h.b16 %v1870
        %v4986 = vunpack.c.l.b16 %v1871
        %v4987 = vunpack.c.h.b16 %v1871
        %v4988 = vunpack.c.l.b16 %v1872
        %v4989 = vunpack.c.h.b16 %v1872
        %v4990 = vunpack.c.l.b16 %v1873
        %v4991 = vunpack.c.h.b16 %v1873
        %v4992 = vunpack.c.l.b16 %v1874
        %v4993 = vunpack.c.h.b16 %v1874
        %v4994 = vunpack.c.l.b16 %v1875
        %v4995 = vunpack.c.h.b16 %v1875
        %v4996 = vunpack.c.l.b16 %v1876
        %v4997 = vunpack.c.h.b16 %v1876
        %v4998 = vunpack.c.l.b16 %v1877
        %v4999 = vunpack.c.h.b16 %v1877
        %v5000 = vunpack.c.l.b16 %v1878
        %v5001 = vunpack.c.h.b16 %v1878
        %v5002 = vunpack.c.l.b16 %v1879
        %v5003 = vunpack.c.h.b16 %v1879
        %v5004 = vunpack.c.l.b16 %v1880
        %v5005 = vunpack.c.h.b16 %v1880
        %v5006 = vunpack.c.l.b16 %v1881
        %v5007 = vunpack.c.h.b16 %v1881
        %v5008 = vunpack.c.l.b16 %v1882
        %v5009 = vunpack.c.h.b16 %v1882
        %v5010 = vunpack.c.l.b16 %v1883
        %v5011 = vunpack.c.h.b16 %v1883
        %v5012 = vunpack.c.l.b16 %v1884
        %v5013 = vunpack.c.h.b16 %v1884
        %v5014 = vunpack.c.l.b16 %v1885
        %v5015 = vunpack.c.h.b16 %v1885
        %v5016 = vunpack.c.l.b16 %v1886
        %v5017 = vunpack.c.h.b16 %v1886
        %v5018 = vunpack.c.l.b16 %v1887
        %v5019 = vunpack.c.h.b16 %v1887
        %v5020 = vunpack.c.l.b16 %v1888
        %v5021 = vunpack.c.h.b16 %v1888
        %v5022 = vunpack.c.l.b16 %v1889
        %v5023 = vunpack.c.h.b16 %v1889
        %v5024 = vunpack.c.l.b16 %v1890
        %v5025 = vunpack.c.h.b16 %v1890
        %v5026 = vunpack.c.l.b16 %v1891
        %v5027 = vunpack.c.h.b16 %v1891
        %v5028 = vunpack.c.l.b16 %v1892
        %v5029 = vunpack.c.h.b16 %v1892
        %v5030 = vunpack.c.l.b16 %v1893
        %v5031 = vunpack.c.h.b16 %v1893
        %v5032 = vunpack.c.l.b16 %v1894
        %v5033 = vunpack.c.h.b16 %v1894
        %v5034 = vunpack.c.l.b16 %v1895
        %v5035 = vunpack.c.h.b16 %v1895
        %v5036 = vunpack.c.l.b16 %v1896
        %v5037 = vunpack.c.h.b16 %v1896
        %v5038 = vunpack.c.l.b16 %v1897
        %v5039 = vunpack.c.h.b16 %v1897
        %v5040 = vunpack.c.l.b16 %v1898
        %v5041 = vunpack.c.h.b16 %v1898
        %v5042 = vunpack.c.l.b16 %v1899
        %v5043 = vunpack.c.h.b16 %v1899
        %v5044 = vunpack.c.l.b16 %v1900
        %v5045 = vunpack.c.h.b16 %v1900
        %v5046 = vunpack.c.l.b16 %v1901
        %v5047 = vunpack.c.h.b16 %v1901
        %v5048 = vpack.c.b16 %v3008, %v3000
        %v5049 = vpack.c.b16 %v3009, %v3001
        %v5050 = vpack.c.b16 %v3010, %v3002
        %v5051 = vpack.c.b16 %v3011, %v3003
        %v5052 = vpack.c.b16 %v3012, %v3004
        %v5053 = vpack.c.b16 %v3013, %v3005
        %v5054 = vpack.c.b16 %v3014, %v3006
        %v5055 = vpack.c.b16 %v3015, %v3007
        %v5056 = vpack.c.b16 %v3024, %v3016
        %v5057 = vpack.c.b16 %v3025, %v3017
        %v5058 = vpack.c.b16 %v3026, %v3018
        %v5059 = vpack.c.b16 %v3027, %v3019
        %v5060 = vpack.c.b16 %v3028, %v3020
        %v5061 = vpack.c.b16 %v3029, %v3021
        %v5062 = vpack.c.b16 %v3030, %v3022
        %v5063 = vpack.c.b16 %v3031, %v3023
        %v5064 = vpack.c.b16 %v3040, %v3032
        %v5065 = vpack.c.b16 %v3041, %v3033
        %v5066 = vpack.c.b16 %v3042, %v3034
        %v5067 = vpack.c.b16 %v3043, %v3035
        %v5068 = vpack.c.b16 %v3044, %v3036
        %v5069 = vpack.c.b16 %v3045, %v3037
        %v5070 = vpack.c.b16 %v3046, %v3038
        %v5071 = vpack.c.b16 %v3047, %v3039
        %v5072 = vpack.c.b16 %v3056, %v3048
        %v5073 = vpack.c.b16 %v3057, %v3049
        %v5074 = vpack.c.b16 %v3058, %v3050
        %v5075 = vpack.c.b16 %v3059, %v3051
        %v5076 = vpack.c.b16 %v3060, %v3052
        %v5077 = vpack.c.b16 %v3061, %v3053
        %v5078 = vpack.c.b16 %v3062, %v3054
        %v5079 = vpack.c.b16 %v3063, %v3055
        %v5080 = vpack.c.b16 %v3072, %v3064
        %v5081 = vpack.c.b16 %v3073, %v3065
        %v5082 = vpack.c.b16 %v3074, %v3066
        %v5083 = vpack.c.b16 %v3075, %v3067
        %v5084 = vpack.c.b16 %v3076, %v3068
        %v5085 = vpack.c.b16 %v3077, %v3069
        %v5086 = vpack.c.b16 %v3078, %v3070
        %v5087 = vpack.c.b16 %v3079, %v3071
        %v5088 = vpack.c.b16 %v3088, %v3080
        %v5089 = vpack.c.b16 %v3089, %v3081
        %v5090 = vpack.c.b16 %v3090, %v3082
        %v5091 = vpack.c.b16 %v3091, %v3083
        %v5092 = vpack.c.b16 %v3092, %v3084
        %v5093 = vpack.c.b16 %v3093, %v3085
        %v5094 = vpack.c.b16 %v3094, %v3086
        %v5095 = vpack.c.b16 %v3095, %v3087
        %v5096 = vpack.c.b16 %v3104, %v3096
        %v5097 = vpack.c.b16 %v3105, %v3097
        %v5098 = vpack.c.b16 %v3106, %v3098
        %v5099 = vpack.c.b16 %v3107, %v3099
        %v5100 = vpack.c.b16 %v3108, %v3100
        %v5101 = vpack.c.b16 %v3109, %v3101
        %v5102 = vpack.c.b16 %v3110, %v3102
        %v5103 = vpack.c.b16 %v3111, %v3103
        %v5104 = vpack.c.b16 %v3120, %v3112
        %v5105 = vpack.c.b16 %v3121, %v3113
        %v5106 = vpack.c.b16 %v3122, %v3114
        %v5107 = vpack.c.b16 %v3123, %v3115
        %v5108 = vpack.c.b16 %v3124, %v3116
        %v5109 = vpack.c.b16 %v3125, %v3117
        %v5110 = vpack.c.b16 %v3126, %v3118
        %v5111 = vpack.c.b16 %v3127, %v3119
        %v5112 = vpack.c.b16 %v3136, %v3128
        %v5113 = vpack.c.b16 %v3137, %v3129
        %v5114 = vpack.c.b16 %v3138, %v3130
        %v5115 = vpack.c.b16 %v3139, %v3131
        %v5116 = vpack.c.b16 %v3140, %v3132
        %v5117 = vpack.c.b16 %v3141, %v3133
        %v5118 = vpack.c.b16 %v3142, %v3134
        %v5119 = vpack.c.b16 %v3143, %v3135
        %v5120 = vpack.c.b16 %v3152, %v3144
        %v5121 = vpack.c.b16 %v3153, %v3145
        %v5122 = vpack.c.b16 %v3154, %v3146
        %v5123 = vpack.c.b16 %v3155, %v3147
        %v5124 = vpack.c.b16 %v3156, %v3148
        %v5125 = vpack.c.b16 %v3157, %v3149
        %v5126 = vpack.c.b16 %v3158, %v3150
        %v5127 = vpack.c.b16 %v3159, %v3151
        %v5128 = vpack.c.b16 %v3168, %v3160
        %v5129 = vpack.c.b16 %v3169, %v3161
        %v5130 = vpack.c.b16 %v3170, %v3162
        %v5131 = vpack.c.b16 %v3171, %v3163
        %v5132 = vpack.c.b16 %v3172, %v3164
        %v5133 = vpack.c.b16 %v3173, %v3165
        %v5134 = vpack.c.b16 %v3174, %v3166
        %v5135 = vpack.c.b16 %v3175, %v3167
        %v5136 = vpack.c.b16 %v3184, %v3176
        %v5137 = vpack.c.b16 %v3185, %v3177
        %v5138 = vpack.c.b16 %v3186, %v3178
        %v5139 = vpack.c.b16 %v3187, %v3179
        %v5140 = vpack.c.b16 %v3188, %v3180
        %v5141 = vpack.c.b16 %v3189, %v3181
        %v5142 = vpack.c.b16 %v3190, %v3182
        %v5143 = vpack.c.b16 %v3191, %v3183
        %v5144 = vpack.c.b16 %v3200, %v3192
        %v5145 = vpack.c.b16 %v3201, %v3193
        %v5146 = vpack.c.b16 %v3202, %v3194
        %v5147 = vpack.c.b16 %v3203, %v3195
        %v5148 = vpack.c.b16 %v3204, %v3196
        %v5149 = vpack.c.b16 %v3205, %v3197
        %v5150 = vpack.c.b16 %v3206, %v3198
        %v5151 = vpack.c.b16 %v3207, %v3199
        %v5152 = vpack.c.b16 %v3216, %v3208
        %v5153 = vpack.c.b16 %v3217, %v3209
        %v5154 = vpack.c.b16 %v3218, %v3210
        %v5155 = vpack.c.b16 %v3219, %v3211
        %v5156 = vpack.c.b16 %v3220, %v3212
        %v5157 = vpack.c.b16 %v3221, %v3213
        %v5158 = vpack.c.b16 %v3222, %v3214
        %v5159 = vpack.c.b16 %v3223, %v3215
        %v5160 = vpack.c.b16 %v3232, %v3224
        %v5161 = vpack.c.b16 %v3233, %v3225
        %v5162 = vpack.c.b16 %v3234, %v3226
        %v5163 = vpack.c.b16 %v3235, %v3227
        %v5164 = vpack.c.b16 %v3236, %v3228
        %v5165 = vpack.c.b16 %v3237, %v3229
        %v5166 = vpack.c.b16 %v3238, %v3230
        %v5167 = vpack.c.b16 %v3239, %v3231
        %v5168 = vpack.c.b16 %v3248, %v3240
        %v5169 = vpack.c.b16 %v3249, %v3241
        %v5170 = vpack.c.b16 %v3250, %v3242
        %v5171 = vpack.c.b16 %v3251, %v3243
        %v5172 = vpack.c.b16 %v3252, %v3244
        %v5173 = vpack.c.b16 %v3253, %v3245
        %v5174 = vpack.c.b16 %v3254, %v3246
        %v5175 = vpack.c.b16 %v3255, %v3247
        %v5176 = vpack.c.b16 %v3264, %v3256
        %v5177 = vpack.c.b16 %v3265, %v3257
        %v5178 = vpack.c.b16 %v3266, %v3258
        %v5179 = vpack.c.b16 %v3267, %v3259
        %v5180 = vpack.c.b16 %v3268, %v3260
        %v5181 = vpack.c.b16 %v3269, %v3261
        %v5182 = vpack.c.b16 %v3270, %v3262
        %v5183 = vpack.c.b16 %v3271, %v3263
        %v5184 = vpack.c.b16 %v3280, %v3272
        %v5185 = vpack.c.b16 %v3281, %v3273
        %v5186 = vpack.c.b16 %v3282, %v3274
        %v5187 = vpack.c.b16 %v3283, %v3275
        %v5188 = vpack.c.b16 %v3284, %v3276
        %v5189 = vpack.c.b16 %v3285, %v3277
        %v5190 = vpack.c.b16 %v3286, %v3278
        %v5191 = vpack.c.b16 %v3287, %v3279
        %v5192 = vpack.c.b16 %v3296, %v3288
        %v5193 = vpack.c.b16 %v3297, %v3289
        %v5194 = vpack.c.b16 %v3298, %v3290
        %v5195 = vpack.c.b16 %v3299, %v3291
        %v5196 = vpack.c.b16 %v3300, %v3292
        %v5197 = vpack.c.b16 %v3301, %v3293
        %v5198 = vpack.c.b16 %v3302, %v3294
        %v5199 = vpack.c.b16 %v3303, %v3295
        %v5200 = vpack.c.b16 %v3312, %v3304
        %v5201 = vpack.c.b16 %v3313, %v3305
        %v5202 = vpack.c.b16 %v3314, %v3306
        %v5203 = vpack.c.b16 %v3315, %v3307
        %v5204 = vpack.c.b16 %v3316, %v3308
        %v5205 = vpack.c.b16 %v3317, %v3309
        %v5206 = vpack.c.b16 %v3318, %v3310
        %v5207 = vpack.c.b16 %v3319, %v3311
        %v5208 = vpack.c.b16 %v3328, %v3320
        %v5209 = vpack.c.b16 %v3329, %v3321
        %v5210 = vpack.c.b16 %v3330, %v3322
        %v5211 = vpack.c.b16 %v3331, %v3323
        %v5212 = vpack.c.b16 %v3332, %v3324
        %v5213 = vpack.c.b16 %v3333, %v3325
        %v5214 = vpack.c.b16 %v3334, %v3326
        %v5215 = vpack.c.b16 %v3335, %v3327
        %v5216 = vpack.c.b16 %v3344, %v3336
        %v5217 = vpack.c.b16 %v3345, %v3337
        %v5218 = vpack.c.b16 %v3346, %v3338
        %v5219 = vpack.c.b16 %v3347, %v3339
        %v5220 = vpack.c.b16 %v3348, %v3340
        %v5221 = vpack.c.b16 %v3349, %v3341
        %v5222 = vpack.c.b16 %v3350, %v3342
        %v5223 = vpack.c.b16 %v3351, %v3343
        %v5224 = vpack.c.b16 %v3360, %v3352
        %v5225 = vpack.c.b16 %v3361, %v3353
        %v5226 = vpack.c.b16 %v3362, %v3354
        %v5227 = vpack.c.b16 %v3363, %v3355
        %v5228 = vpack.c.b16 %v3364, %v3356
        %v5229 = vpack.c.b16 %v3365, %v3357
        %v5230 = vpack.c.b16 %v3366, %v3358
        %v5231 = vpack.c.b16 %v3367, %v3359
        %v5232 = vpack.c.b16 %v3376, %v3368
        %v5233 = vpack.c.b16 %v3377, %v3369
        %v5234 = vpack.c.b16 %v3378, %v3370
        %v5235 = vpack.c.b16 %v3379, %v3371
        %v5236 = vpack.c.b16 %v3380, %v3372
        %v5237 = vpack.c.b16 %v3381, %v3373
        %v5238 = vpack.c.b16 %v3382, %v3374
        %v5239 = vpack.c.b16 %v3383, %v3375
        %v5240 = vpack.c.b16 %v3392, %v3384
        %v5241 = vpack.c.b16 %v3393, %v3385
        %v5242 = vpack.c.b16 %v3394, %v3386
        %v5243 = vpack.c.b16 %v3395, %v3387
        %v5244 = vpack.c.b16 %v3396, %v3388
        %v5245 = vpack.c.b16 %v3397, %v3389
        %v5246 = vpack.c.b16 %v3398, %v3390
        %v5247 = vpack.c.b16 %v3399, %v3391
        %v5248 = vpack.c.b16 %v3408, %v3400
        %v5249 = vpack.c.b16 %v3409, %v3401
        %v5250 = vpack.c.b16 %v3410, %v3402
        %v5251 = vpack.c.b16 %v3411, %v3403
        %v5252 = vpack.c.b16 %v3412, %v3404
        %v5253 = vpack.c.b16 %v3413, %v3405
        %v5254 = vpack.c.b16 %v3414, %v3406
        %v5255 = vpack.c.b16 %v3415, %v3407
        %v5256 = vpack.c.b16 %v3424, %v3416
        %v5257 = vpack.c.b16 %v3425, %v3417
        %v5258 = vpack.c.b16 %v3426, %v3418
        %v5259 = vpack.c.b16 %v3427, %v3419
        %v5260 = vpack.c.b16 %v3428, %v3420
        %v5261 = vpack.c.b16 %v3429, %v3421
        %v5262 = vpack.c.b16 %v3430, %v3422
        %v5263 = vpack.c.b16 %v3431, %v3423
        %v5264 = vpack.c.b16 %v3440, %v3432
        %v5265 = vpack.c.b16 %v3441, %v3433
        %v5266 = vpack.c.b16 %v3442, %v3434
        %v5267 = vpack.c.b16 %v3443, %v3435
        %v5268 = vpack.c.b16 %v3444, %v3436
        %v5269 = vpack.c.b16 %v3445, %v3437
        %v5270 = vpack.c.b16 %v3446, %v3438
        %v5271 = vpack.c.b16 %v3447, %v3439
        %v5272 = vpack.c.b16 %v3456, %v3448
        %v5273 = vpack.c.b16 %v3457, %v3449
        %v5274 = vpack.c.b16 %v3458, %v3450
        %v5275 = vpack.c.b16 %v3459, %v3451
        %v5276 = vpack.c.b16 %v3460, %v3452
        %v5277 = vpack.c.b16 %v3461, %v3453
        %v5278 = vpack.c.b16 %v3462, %v3454
        %v5279 = vpack.c.b16 %v3463, %v3455
        %v5280 = vpack.c.b16 %v3472, %v3464
        %v5281 = vpack.c.b16 %v3473, %v3465
        %v5282 = vpack.c.b16 %v3474, %v3466
        %v5283 = vpack.c.b16 %v3475, %v3467
        %v5284 = vpack.c.b16 %v3476, %v3468
        %v5285 = vpack.c.b16 %v3477, %v3469
        %v5286 = vpack.c.b16 %v3478, %v3470
        %v5287 = vpack.c.b16 %v3479, %v3471
        %v5288 = vpack.c.b16 %v3488, %v3480
        %v5289 = vpack.c.b16 %v3489, %v3481
        %v5290 = vpack.c.b16 %v3490, %v3482
        %v5291 = vpack.c.b16 %v3491, %v3483
        %v5292 = vpack.c.b16 %v3492, %v3484
        %v5293 = vpack.c.b16 %v3493, %v3485
        %v5294 = vpack.c.b16 %v3494, %v3486
        %v5295 = vpack.c.b16 %v3495, %v3487
        %v5296 = vpack.c.b16 %v3504, %v3496
        %v5297 = vpack.c.b16 %v3505, %v3497
        %v5298 = vpack.c.b16 %v3506, %v3498
        %v5299 = vpack.c.b16 %v3507, %v3499
        %v5300 = vpack.c.b16 %v3508, %v3500
        %v5301 = vpack.c.b16 %v3509, %v3501
        %v5302 = vpack.c.b16 %v3510, %v3502
        %v5303 = vpack.c.b16 %v3511, %v3503
        %v5304 = vpack.c.b16 %v3520, %v3512
        %v5305 = vpack.c.b16 %v3521, %v3513
        %v5306 = vpack.c.b16 %v3522, %v3514
        %v5307 = vpack.c.b16 %v3523, %v3515
        %v5308 = vpack.c.b16 %v3524, %v3516
        %v5309 = vpack.c.b16 %v3525, %v3517
        %v5310 = vpack.c.b16 %v3526, %v3518
        %v5311 = vpack.c.b16 %v3527, %v3519
        %v5312 = vpack.c.b16 %v3536, %v3528
        %v5313 = vpack.c.b16 %v3537, %v3529
        %v5314 = vpack.c.b16 %v3538, %v3530
        %v5315 = vpack.c.b16 %v3539, %v3531
        %v5316 = vpack.c.b16 %v3540, %v3532
        %v5317 = vpack.c.b16 %v3541, %v3533
        %v5318 = vpack.c.b16 %v3542, %v3534
        %v5319 = vpack.c.b16 %v3543, %v3535
        %v5320 = vpack.c.b16 %v3552, %v3544
        %v5321 = vpack.c.b16 %v3553, %v3545
        %v5322 = vpack.c.b16 %v3554, %v3546
        %v5323 = vpack.c.b16 %v3555, %v3547
        %v5324 = vpack.c.b16 %v3556, %v3548
        %v5325 = vpack.c.b16 %v3557, %v3549
        %v5326 = vpack.c.b16 %v3558, %v3550
        %v5327 = vpack.c.b16 %v3559, %v3551
        %v5328 = vpack.c.b16 %v3568, %v3560
        %v5329 = vpack.c.b16 %v3569, %v3561
        %v5330 = vpack.c.b16 %v3570, %v3562
        %v5331 = vpack.c.b16 %v3571, %v3563
        %v5332 = vpack.c.b16 %v3572, %v3564
        %v5333 = vpack.c.b16 %v3573, %v3565
        %v5334 = vpack.c.b16 %v3574, %v3566
        %v5335 = vpack.c.b16 %v3575, %v3567
        %v5336 = vpack.c.b16 %v3584, %v3576
        %v5337 = vpack.c.b16 %v3585, %v3577
        %v5338 = vpack.c.b16 %v3586, %v3578
        %v5339 = vpack.c.b16 %v3587, %v3579
        %v5340 = vpack.c.b16 %v3588, %v3580
        %v5341 = vpack.c.b16 %v3589, %v3581
        %v5342 = vpack.c.b16 %v3590, %v3582
        %v5343 = vpack.c.b16 %v3591, %v3583
        %v5344 = vpack.c.b16 %v3600, %v3592
        %v5345 = vpack.c.b16 %v3601, %v3593
        %v5346 = vpack.c.b16 %v3602, %v3594
        %v5347 = vpack.c.b16 %v3603, %v3595
        %v5348 = vpack.c.b16 %v3604, %v3596
        %v5349 = vpack.c.b16 %v3605, %v3597
        %v5350 = vpack.c.b16 %v3606, %v3598
        %v5351 = vpack.c.b16 %v3607, %v3599
        %v5352 = vpack.c.b16 %v3616, %v3608
        %v5353 = vpack.c.b16 %v3617, %v3609
        %v5354 = vpack.c.b16 %v3618, %v3610
        %v5355 = vpack.c.b16 %v3619, %v3611
        %v5356 = vpack.c.b16 %v3620, %v3612
        %v5357 = vpack.c.b16 %v3621, %v3613
        %v5358 = vpack.c.b16 %v3622, %v3614
        %v5359 = vpack.c.b16 %v3623, %v3615
        %v5360 = vpack.c.b16 %v3632, %v3624
        %v5361 = vpack.c.b16 %v3633, %v3625
        %v5362 = vpack.c.b16 %v3634, %v3626
        %v5363 = vpack.c.b16 %v3635, %v3627
        %v5364 = vpack.c.b16 %v3636, %v3628
        %v5365 = vpack.c.b16 %v3637, %v3629
        %v5366 = vpack.c.b16 %v3638, %v3630
        %v5367 = vpack.c.b16 %v3639, %v3631
        %v5368 = vpack.c.b16 %v3648, %v3640
        %v5369 = vpack.c.b16 %v3649, %v3641
        %v5370 = vpack.c.b16 %v3650, %v3642
        %v5371 = vpack.c.b16 %v3651, %v3643
        %v5372 = vpack.c.b16 %v3652, %v3644
        %v5373 = vpack.c.b16 %v3653, %v3645
        %v5374 = vpack.c.b16 %v3654, %v3646
        %v5375 = vpack.c.b16 %v3655, %v3647
        %v5376 = vpack.c.b16 %v3664, %v3656
        %v5377 = vpack.c.b16 %v3665, %v3657
        %v5378 = vpack.c.b16 %v3666, %v3658
        %v5379 = vpack.c.b16 %v3667, %v3659
        %v5380 = vpack.c.b16 %v3668, %v3660
        %v5381 = vpack.c.b16 %v3669, %v3661
        %v5382 = vpack.c.b16 %v3670, %v3662
        %v5383 = vpack.c.b16 %v3671, %v3663
        %v5384 = vpack.c.b16 %v3680, %v3672
        %v5385 = vpack.c.b16 %v3681, %v3673
        %v5386 = vpack.c.b16 %v3682, %v3674
        %v5387 = vpack.c.b16 %v3683, %v3675
        %v5388 = vpack.c.b16 %v3684, %v3676
        %v5389 = vpack.c.b16 %v3685, %v3677
        %v5390 = vpack.c.b16 %v3686, %v3678
        %v5391 = vpack.c.b16 %v3687, %v3679
        %v5392 = vpack.c.b16 %v3696, %v3688
        %v5393 = vpack.c.b16 %v3697, %v3689
        %v5394 = vpack.c.b16 %v3698, %v3690
        %v5395 = vpack.c.b16 %v3699, %v3691
        %v5396 = vpack.c.b16 %v3700, %v3692
        %v5397 = vpack.c.b16 %v3701, %v3693
        %v5398 = vpack.c.b16 %v3702, %v3694
        %v5399 = vpack.c.b16 %v3703, %v3695
        %v5400 = vpack.c.b16 %v3712, %v3704
        %v5401 = vpack.c.b16 %v3713, %v3705
        %v5402 = vpack.c.b16 %v3714, %v3706
        %v5403 = vpack.c.b16 %v3715, %v3707
        %v5404 = vpack.c.b16 %v3716, %v3708
        %v5405 = vpack.c.b16 %v3717, %v3709
        %v5406 = vpack.c.b16 %v3718, %v3710
        %v5407 = vpack.c.b16 %v3719, %v3711
        %v5408 = vpack.c.b16 %v3728, %v3720
        %v5409 = vpack.c.b16 %v3729, %v3721
        %v5410 = vpack.c.b16 %v3730, %v3722
        %v5411 = vpack.c.b16 %v3731, %v3723
        %v5412 = vpack.c.b16 %v3732, %v3724
        %v5413 = vpack.c.b16 %v3733, %v3725
        %v5414 = vpack.c.b16 %v3734, %v3726
        %v5415 = vpack.c.b16 %v3735, %v3727
        %v5416 = vpack.c.b16 %v3744, %v3736
        %v5417 = vpack.c.b16 %v3745, %v3737
        %v5418 = vpack.c.b16 %v3746, %v3738
        %v5419 = vpack.c.b16 %v3747, %v3739
        %v5420 = vpack.c.b16 %v3748, %v3740
        %v5421 = vpack.c.b16 %v3749, %v3741
        %v5422 = vpack.c.b16 %v3750, %v3742
        %v5423 = vpack.c.b16 %v3751, %v3743
        %v5424 = vpack.c.b16 %v3760, %v3752
        %v5425 = vpack.c.b16 %v3761, %v3753
        %v5426 = vpack.c.b16 %v3762, %v3754
        %v5427 = vpack.c.b16 %v3763, %v3755
        %v5428 = vpack.c.b16 %v3764, %v3756
        %v5429 = vpack.c.b16 %v3765, %v3757
        %v5430 = vpack.c.b16 %v3766, %v3758
        %v5431 = vpack.c.b16 %v3767, %v3759
        %v5432 = vpack.c.b16 %v3776, %v3768
        %v5433 = vpack.c.b16 %v3777, %v3769
        %v5434 = vpack.c.b16 %v3778, %v3770
        %v5435 = vpack.c.b16 %v3779, %v3771
        %v5436 = vpack.c.b16 %v3780, %v3772
        %v5437 = vpack.c.b16 %v3781, %v3773
        %v5438 = vpack.c.b16 %v3782, %v3774
        %v5439 = vpack.c.b16 %v3783, %v3775
        %v5440 = vpack.c.b16 %v3792, %v3784
        %v5441 = vpack.c.b16 %v3793, %v3785
        %v5442 = vpack.c.b16 %v3794, %v3786
        %v5443 = vpack.c.b16 %v3795, %v3787
        %v5444 = vpack.c.b16 %v3796, %v3788
        %v5445 = vpack.c.b16 %v3797, %v3789
        %v5446 = vpack.c.b16 %v3798, %v3790
        %v5447 = vpack.c.b16 %v3799, %v3791
        %v5448 = vpack.c.b16 %v3808, %v3800
        %v5449 = vpack.c.b16 %v3809, %v3801
        %v5450 = vpack.c.b16 %v3810, %v3802
        %v5451 = vpack.c.b16 %v3811, %v3803
        %v5452 = vpack.c.b16 %v3812, %v3804
        %v5453 = vpack.c.b16 %v3813, %v3805
        %v5454 = vpack.c.b16 %v3814, %v3806
        %v5455 = vpack.c.b16 %v3815, %v3807
        %v5456 = vpack.c.b16 %v3824, %v3816
        %v5457 = vpack.c.b16 %v3825, %v3817
        %v5458 = vpack.c.b16 %v3826, %v3818
        %v5459 = vpack.c.b16 %v3827, %v3819
        %v5460 = vpack.c.b16 %v3828, %v3820
        %v5461 = vpack.c.b16 %v3829, %v3821
        %v5462 = vpack.c.b16 %v3830, %v3822
        %v5463 = vpack.c.b16 %v3831, %v3823
        %v5464 = vpack.c.b16 %v3840, %v3832
        %v5465 = vpack.c.b16 %v3841, %v3833
        %v5466 = vpack.c.b16 %v3842, %v3834
        %v5467 = vpack.c.b16 %v3843, %v3835
        %v5468 = vpack.c.b16 %v3844, %v3836
        %v5469 = vpack.c.b16 %v3845, %v3837
        %v5470 = vpack.c.b16 %v3846, %v3838
        %v5471 = vpack.c.b16 %v3847, %v3839
        %v5472 = vpack.c.b16 %v3856, %v3848
        %v5473 = vpack.c.b16 %v3857, %v3849
        %v5474 = vpack.c.b16 %v3858, %v3850
        %v5475 = vpack.c.b16 %v3859, %v3851
        %v5476 = vpack.c.b16 %v3860, %v3852
        %v5477 = vpack.c.b16 %v3861, %v3853
        %v5478 = vpack.c.b16 %v3862, %v3854
        %v5479 = vpack.c.b16 %v3863, %v3855
        %v5480 = vpack.c.b16 %v3872, %v3864
        %v5481 = vpack.c.b16 %v3873, %v3865
        %v5482 = vpack.c.b16 %v3874, %v3866
        %v5483 = vpack.c.b16 %v3875, %v3867
        %v5484 = vpack.c.b16 %v3876, %v3868
        %v5485 = vpack.c.b16 %v3877, %v3869
        %v5486 = vpack.c.b16 %v3878, %v3870
        %v5487 = vpack.c.b16 %v3879, %v3871
        %v5488 = vpack.c.b16 %v3888, %v3880
        %v5489 = vpack.c.b16 %v3889, %v3881
        %v5490 = vpack.c.b16 %v3890, %v3882
        %v5491 = vpack.c.b16 %v3891, %v3883
        %v5492 = vpack.c.b16 %v3892, %v3884
        %v5493 = vpack.c.b16 %v3893, %v3885
        %v5494 = vpack.c.b16 %v3894, %v3886
        %v5495 = vpack.c.b16 %v3895, %v3887
        %v5496 = vpack.c.b16 %v3904, %v3896
        %v5497 = vpack.c.b16 %v3905, %v3897
        %v5498 = vpack.c.b16 %v3906, %v3898
        %v5499 = vpack.c.b16 %v3907, %v3899
        %v5500 = vpack.c.b16 %v3908, %v3900
        %v5501 = vpack.c.b16 %v3909, %v3901
        %v5502 = vpack.c.b16 %v3910, %v3902
        %v5503 = vpack.c.b16 %v3911, %v3903
        %v5504 = vpack.c.b16 %v3920, %v3912
        %v5505 = vpack.c.b16 %v3921, %v3913
        %v5506 = vpack.c.b16 %v3922, %v3914
        %v5507 = vpack.c.b16 %v3923, %v3915
        %v5508 = vpack.c.b16 %v3924, %v3916
        %v5509 = vpack.c.b16 %v3925, %v3917
        %v5510 = vpack.c.b16 %v3926, %v3918
        %v5511 = vpack.c.b16 %v3927, %v3919
        %v5512 = vpack.c.b16 %v3936, %v3928
        %v5513 = vpack.c.b16 %v3937, %v3929
        %v5514 = vpack.c.b16 %v3938, %v3930
        %v5515 = vpack.c.b16 %v3939, %v3931
        %v5516 = vpack.c.b16 %v3940, %v3932
        %v5517 = vpack.c.b16 %v3941, %v3933
        %v5518 = vpack.c.b16 %v3942, %v3934
        %v5519 = vpack.c.b16 %v3943, %v3935
        %v5520 = vpack.c.b16 %v3952, %v3944
        %v5521 = vpack.c.b16 %v3953, %v3945
        %v5522 = vpack.c.b16 %v3954, %v3946
        %v5523 = vpack.c.b16 %v3955, %v3947
        %v5524 = vpack.c.b16 %v3956, %v3948
        %v5525 = vpack.c.b16 %v3957, %v3949
        %v5526 = vpack.c.b16 %v3958, %v3950
        %v5527 = vpack.c.b16 %v3959, %v3951
        %v5528 = vpack.c.b16 %v3968, %v3960
        %v5529 = vpack.c.b16 %v3969, %v3961
        %v5530 = vpack.c.b16 %v3970, %v3962
        %v5531 = vpack.c.b16 %v3971, %v3963
        %v5532 = vpack.c.b16 %v3972, %v3964
        %v5533 = vpack.c.b16 %v3973, %v3965
        %v5534 = vpack.c.b16 %v3974, %v3966
        %v5535 = vpack.c.b16 %v3975, %v3967
        %v5536 = vpack.c.b16 %v3984, %v3976
        %v5537 = vpack.c.b16 %v3985, %v3977
        %v5538 = vpack.c.b16 %v3986, %v3978
        %v5539 = vpack.c.b16 %v3987, %v3979
        %v5540 = vpack.c.b16 %v3988, %v3980
        %v5541 = vpack.c.b16 %v3989, %v3981
        %v5542 = vpack.c.b16 %v3990, %v3982
        %v5543 = vpack.c.b16 %v3991, %v3983
        %v5544 = vpack.c.b16 %v4000, %v3992
        %v5545 = vpack.c.b16 %v4001, %v3993
        %v5546 = vpack.c.b16 %v4002, %v3994
        %v5547 = vpack.c.b16 %v4003, %v3995
        %v5548 = vpack.c.b16 %v4004, %v3996
        %v5549 = vpack.c.b16 %v4005, %v3997
        %v5550 = vpack.c.b16 %v4006, %v3998
        %v5551 = vpack.c.b16 %v4007, %v3999
        %v5552 = vpack.c.b16 %v4016, %v4008
        %v5553 = vpack.c.b16 %v4017, %v4009
        %v5554 = vpack.c.b16 %v4018, %v4010
        %v5555 = vpack.c.b16 %v4019, %v4011
        %v5556 = vpack.c.b16 %v4020, %v4012
        %v5557 = vpack.c.b16 %v4021, %v4013
        %v5558 = vpack.c.b16 %v4022, %v4014
        %v5559 = vpack.c.b16 %v4023, %v4015
        %v5560 = vpack.c.b16 %v4032, %v4024
        %v5561 = vpack.c.b16 %v4033, %v4025
        %v5562 = vpack.c.b16 %v4034, %v4026
        %v5563 = vpack.c.b16 %v4035, %v4027
        %v5564 = vpack.c.b16 %v4036, %v4028
        %v5565 = vpack.c.b16 %v4037, %v4029
        %v5566 = vpack.c.b16 %v4038, %v4030
        %v5567 = vpack.c.b16 %v4039, %v4031
        %v5568 = vpack.c.b16 %v4048, %v4040
        %v5569 = vpack.c.b16 %v4049, %v4041
        %v5570 = vpack.c.b16 %v4050, %v4042
        %v5571 = vpack.c.b16 %v4051, %v4043
        %v5572 = vpack.c.b16 %v4052, %v4044
        %v5573 = vpack.c.b16 %v4053, %v4045
        %v5574 = vpack.c.b16 %v4054, %v4046
        %v5575 = vpack.c.b16 %v4055, %v4047
        %v5576 = vpack.c.b16 %v4064, %v4056
        %v5577 = vpack.c.b16 %v4065, %v4057
        %v5578 = vpack.c.b16 %v4066, %v4058
        %v5579 = vpack.c.b16 %v4067, %v4059
        %v5580 = vpack.c.b16 %v4068, %v4060
        %v5581 = vpack.c.b16 %v4069, %v4061
        %v5582 = vpack.c.b16 %v4070, %v4062
        %v5583 = vpack.c.b16 %v4071, %v4063
        %v5584 = vpack.c.b16 %v4080, %v4072
        %v5585 = vpack.c.b16 %v4081, %v4073
        %v5586 = vpack.c.b16 %v4082, %v4074
        %v5587 = vpack.c.b16 %v4083, %v4075
        %v5588 = vpack.c.b16 %v4084, %v4076
        %v5589 = vpack.c.b16 %v4085, %v4077
        %v5590 = vpack.c.b16 %v4086, %v4078
        %v5591 = vpack.c.b16 %v4087, %v4079
        %v5592 = vpack.c.b16 %v4096, %v4088
        %v5593 = vpack.c.b16 %v4097, %v4089
        %v5594 = vpack.c.b16 %v4098, %v4090
        %v5595 = vpack.c.b16 %v4099, %v4091
        %v5596 = vpack.c.b16 %v4100, %v4092
        %v5597 = vpack.c.b16 %v4101, %v4093
        %v5598 = vpack.c.b16 %v4102, %v4094
        %v5599 = vpack.c.b16 %v4103, %v4095
        %v5600 = vpack.c.b16 %v4112, %v4104
        %v5601 = vpack.c.b16 %v4113, %v4105
        %v5602 = vpack.c.b16 %v4114, %v4106
        %v5603 = vpack.c.b16 %v4115, %v4107
        %v5604 = vpack.c.b16 %v4116, %v4108
        %v5605 = vpack.c.b16 %v4117, %v4109
        %v5606 = vpack.c.b16 %v4118, %v4110
        %v5607 = vpack.c.b16 %v4119, %v4111
        %v5608 = vpack.c.b16 %v4128, %v4120
        %v5609 = vpack.c.b16 %v4129, %v4121
        %v5610 = vpack.c.b16 %v4130, %v4122
        %v5611 = vpack.c.b16 %v4131, %v4123
        %v5612 = vpack.c.b16 %v4132, %v4124
        %v5613 = vpack.c.b16 %v4133, %v4125
        %v5614 = vpack.c.b16 %v4134, %v4126
        %v5615 = vpack.c.b16 %v4135, %v4127
        %v5616 = vpack.c.b16 %v4144, %v4136
        %v5617 = vpack.c.b16 %v4145, %v4137
        %v5618 = vpack.c.b16 %v4146, %v4138
        %v5619 = vpack.c.b16 %v4147, %v4139
        %v5620 = vpack.c.b16 %v4148, %v4140
        %v5621 = vpack.c.b16 %v4149, %v4141
        %v5622 = vpack.c.b16 %v4150, %v4142
        %v5623 = vpack.c.b16 %v4151, %v4143
        %v5624 = vpack.c.b16 %v4160, %v4152
        %v5625 = vpack.c.b16 %v4161, %v4153
        %v5626 = vpack.c.b16 %v4162, %v4154
        %v5627 = vpack.c.b16 %v4163, %v4155
        %v5628 = vpack.c.b16 %v4164, %v4156
        %v5629 = vpack.c.b16 %v4165, %v4157
        %v5630 = vpack.c.b16 %v4166, %v4158
        %v5631 = vpack.c.b16 %v4167, %v4159
        %v5632 = vpack.c.b16 %v4176, %v4168
        %v5633 = vpack.c.b16 %v4177, %v4169
        %v5634 = vpack.c.b16 %v4178, %v4170
        %v5635 = vpack.c.b16 %v4179, %v4171
        %v5636 = vpack.c.b16 %v4180, %v4172
        %v5637 = vpack.c.b16 %v4181, %v4173
        %v5638 = vpack.c.b16 %v4182, %v4174
        %v5639 = vpack.c.b16 %v4183, %v4175
        %v5640 = vpack.c.b16 %v4192, %v4184
        %v5641 = vpack.c.b16 %v4193, %v4185
        %v5642 = vpack.c.b16 %v4194, %v4186
        %v5643 = vpack.c.b16 %v4195, %v4187
        %v5644 = vpack.c.b16 %v4196, %v4188
        %v5645 = vpack.c.b16 %v4197, %v4189
        %v5646 = vpack.c.b16 %v4198, %v4190
        %v5647 = vpack.c.b16 %v4199, %v4191
        %v5648 = vpack.c.b16 %v4208, %v4200
        %v5649 = vpack.c.b16 %v4209, %v4201
        %v5650 = vpack.c.b16 %v4210, %v4202
        %v5651 = vpack.c.b16 %v4211, %v4203
        %v5652 = vpack.c.b16 %v4212, %v4204
        %v5653 = vpack.c.b16 %v4213, %v4205
        %v5654 = vpack.c.b16 %v4214, %v4206
        %v5655 = vpack.c.b16 %v4215, %v4207
        %v5656 = vpack.c.b16 %v4224, %v4216
        %v5657 = vpack.c.b16 %v4225, %v4217
        %v5658 = vpack.c.b16 %v4226, %v4218
        %v5659 = vpack.c.b16 %v4227, %v4219
        %v5660 = vpack.c.b16 %v4228, %v4220
        %v5661 = vpack.c.b16 %v4229, %v4221
        %v5662 = vpack.c.b16 %v4230, %v4222
        %v5663 = vpack.c.b16 %v4231, %v4223
        %v5664 = vpack.c.b16 %v4240, %v4232
        %v5665 = vpack.c.b16 %v4241, %v4233
        %v5666 = vpack.c.b16 %v4242, %v4234
        %v5667 = vpack.c.b16 %v4243, %v4235
        %v5668 = vpack.c.b16 %v4244, %v4236
        %v5669 = vpack.c.b16 %v4245, %v4237
        %v5670 = vpack.c.b16 %v4246, %v4238
        %v5671 = vpack.c.b16 %v4247, %v4239
        %v5672 = vpack.c.b16 %v4256, %v4248
        %v5673 = vpack.c.b16 %v4257, %v4249
        %v5674 = vpack.c.b16 %v4258, %v4250
        %v5675 = vpack.c.b16 %v4259, %v4251
        %v5676 = vpack.c.b16 %v4260, %v4252
        %v5677 = vpack.c.b16 %v4261, %v4253
        %v5678 = vpack.c.b16 %v4262, %v4254
        %v5679 = vpack.c.b16 %v4263, %v4255
        %v5680 = vpack.c.b16 %v4272, %v4264
        %v5681 = vpack.c.b16 %v4273, %v4265
        %v5682 = vpack.c.b16 %v4274, %v4266
        %v5683 = vpack.c.b16 %v4275, %v4267
        %v5684 = vpack.c.b16 %v4276, %v4268
        %v5685 = vpack.c.b16 %v4277, %v4269
        %v5686 = vpack.c.b16 %v4278, %v4270
        %v5687 = vpack.c.b16 %v4279, %v4271
        %v5688 = vpack.c.b16 %v4288, %v4280
        %v5689 = vpack.c.b16 %v4289, %v4281
        %v5690 = vpack.c.b16 %v4290, %v4282
        %v5691 = vpack.c.b16 %v4291, %v4283
        %v5692 = vpack.c.b16 %v4292, %v4284
        %v5693 = vpack.c.b16 %v4293, %v4285
        %v5694 = vpack.c.b16 %v4294, %v4286
        %v5695 = vpack.c.b16 %v4295, %v4287
        %v5696 = vpack.c.b16 %v4304, %v4296
        %v5697 = vpack.c.b16 %v4305, %v4297
        %v5698 = vpack.c.b16 %v4306, %v4298
        %v5699 = vpack.c.b16 %v4307, %v4299
        %v5700 = vpack.c.b16 %v4308, %v4300
        %v5701 = vpack.c.b16 %v4309, %v4301
        %v5702 = vpack.c.b16 %v4310, %v4302
        %v5703 = vpack.c.b16 %v4311, %v4303
        %v5704 = vpack.c.b16 %v4320, %v4312
        %v5705 = vpack.c.b16 %v4321, %v4313
        %v5706 = vpack.c.b16 %v4322, %v4314
        %v5707 = vpack.c.b16 %v4323, %v4315
        %v5708 = vpack.c.b16 %v4324, %v4316
        %v5709 = vpack.c.b16 %v4325, %v4317
        %v5710 = vpack.c.b16 %v4326, %v4318
        %v5711 = vpack.c.b16 %v4327, %v4319
        %v5712 = vpack.c.b16 %v4336, %v4328
        %v5713 = vpack.c.b16 %v4337, %v4329
        %v5714 = vpack.c.b16 %v4338, %v4330
        %v5715 = vpack.c.b16 %v4339, %v4331
        %v5716 = vpack.c.b16 %v4340, %v4332
        %v5717 = vpack.c.b16 %v4341, %v4333
        %v5718 = vpack.c.b16 %v4342, %v4334
        %v5719 = vpack.c.b16 %v4343, %v4335
        %v5720 = vpack.c.b16 %v4352, %v4344
        %v5721 = vpack.c.b16 %v4353, %v4345
        %v5722 = vpack.c.b16 %v4354, %v4346
        %v5723 = vpack.c.b16 %v4355, %v4347
        %v5724 = vpack.c.b16 %v4356, %v4348
        %v5725 = vpack.c.b16 %v4357, %v4349
        %v5726 = vpack.c.b16 %v4358, %v4350
        %v5727 = vpack.c.b16 %v4359, %v4351
        %v5728 = vpack.c.b16 %v4368, %v4360
        %v5729 = vpack.c.b16 %v4369, %v4361
        %v5730 = vpack.c.b16 %v4370, %v4362
        %v5731 = vpack.c.b16 %v4371, %v4363
        %v5732 = vpack.c.b16 %v4372, %v4364
        %v5733 = vpack.c.b16 %v4373, %v4365
        %v5734 = vpack.c.b16 %v4374, %v4366
        %v5735 = vpack.c.b16 %v4375, %v4367
        %v5736 = vpack.c.b16 %v4384, %v4376
        %v5737 = vpack.c.b16 %v4385, %v4377
        %v5738 = vpack.c.b16 %v4386, %v4378
        %v5739 = vpack.c.b16 %v4387, %v4379
        %v5740 = vpack.c.b16 %v4388, %v4380
        %v5741 = vpack.c.b16 %v4389, %v4381
        %v5742 = vpack.c.b16 %v4390, %v4382
        %v5743 = vpack.c.b16 %v4391, %v4383
        %v5744 = vpack.c.b16 %v4400, %v4392
        %v5745 = vpack.c.b16 %v4401, %v4393
        %v5746 = vpack.c.b16 %v4402, %v4394
        %v5747 = vpack.c.b16 %v4403, %v4395
        %v5748 = vpack.c.b16 %v4404, %v4396
        %v5749 = vpack.c.b16 %v4405, %v4397
        %v5750 = vpack.c.b16 %v4406, %v4398
        %v5751 = vpack.c.b16 %v4407, %v4399
        %v5752 = vpack.c.b16 %v4416, %v4408
        %v5753 = vpack.c.b16 %v4417, %v4409
        %v5754 = vpack.c.b16 %v4418, %v4410
        %v5755 = vpack.c.b16 %v4419, %v4411
        %v5756 = vpack.c.b16 %v4420, %v4412
        %v5757 = vpack.c.b16 %v4421, %v4413
        %v5758 = vpack.c.b16 %v4422, %v4414
        %v5759 = vpack.c.b16 %v4423, %v4415
        %v5760 = vpack.c.b16 %v4432, %v4424
        %v5761 = vpack.c.b16 %v4433, %v4425
        %v5762 = vpack.c.b16 %v4434, %v4426
        %v5763 = vpack.c.b16 %v4435, %v4427
        %v5764 = vpack.c.b16 %v4436, %v4428
        %v5765 = vpack.c.b16 %v4437, %v4429
        %v5766 = vpack.c.b16 %v4438, %v4430
        %v5767 = vpack.c.b16 %v4439, %v4431
        %v5768 = vpack.c.b16 %v4448, %v4440
        %v5769 = vpack.c.b16 %v4449, %v4441
        %v5770 = vpack.c.b16 %v4450, %v4442
        %v5771 = vpack.c.b16 %v4451, %v4443
        %v5772 = vpack.c.b16 %v4452, %v4444
        %v5773 = vpack.c.b16 %v4453, %v4445
        %v5774 = vpack.c.b16 %v4454, %v4446
        %v5775 = vpack.c.b16 %v4455, %v4447
        %v5776 = vpack.c.b16 %v4464, %v4456
        %v5777 = vpack.c.b16 %v4465, %v4457
        %v5778 = vpack.c.b16 %v4466, %v4458
        %v5779 = vpack.c.b16 %v4467, %v4459
        %v5780 = vpack.c.b16 %v4468, %v4460
        %v5781 = vpack.c.b16 %v4469, %v4461
        %v5782 = vpack.c.b16 %v4470, %v4462
        %v5783 = vpack.c.b16 %v4471, %v4463
        %v5784 = vpack.c.b16 %v4480, %v4472
        %v5785 = vpack.c.b16 %v4481, %v4473
        %v5786 = vpack.c.b16 %v4482, %v4474
        %v5787 = vpack.c.b16 %v4483, %v4475
        %v5788 = vpack.c.b16 %v4484, %v4476
        %v5789 = vpack.c.b16 %v4485, %v4477
        %v5790 = vpack.c.b16 %v4486, %v4478
        %v5791 = vpack.c.b16 %v4487, %v4479
        %v5792 = vpack.c.b16 %v4496, %v4488
        %v5793 = vpack.c.b16 %v4497, %v4489
        %v5794 = vpack.c.b16 %v4498, %v4490
        %v5795 = vpack.c.b16 %v4499, %v4491
        %v5796 = vpack.c.b16 %v4500, %v4492
        %v5797 = vpack.c.b16 %v4501, %v4493
        %v5798 = vpack.c.b16 %v4502, %v4494
        %v5799 = vpack.c.b16 %v4503, %v4495
        %v5800 = vpack.c.b16 %v4512, %v4504
        %v5801 = vpack.c.b16 %v4513, %v4505
        %v5802 = vpack.c.b16 %v4514, %v4506
        %v5803 = vpack.c.b16 %v4515, %v4507
        %v5804 = vpack.c.b16 %v4516, %v4508
        %v5805 = vpack.c.b16 %v4517, %v4509
        %v5806 = vpack.c.b16 %v4518, %v4510
        %v5807 = vpack.c.b16 %v4519, %v4511
        %v5808 = vpack.c.b16 %v4528, %v4520
        %v5809 = vpack.c.b16 %v4529, %v4521
        %v5810 = vpack.c.b16 %v4530, %v4522
        %v5811 = vpack.c.b16 %v4531, %v4523
        %v5812 = vpack.c.b16 %v4532, %v4524
        %v5813 = vpack.c.b16 %v4533, %v4525
        %v5814 = vpack.c.b16 %v4534, %v4526
        %v5815 = vpack.c.b16 %v4535, %v4527
        %v5816 = vpack.c.b16 %v4544, %v4536
        %v5817 = vpack.c.b16 %v4545, %v4537
        %v5818 = vpack.c.b16 %v4546, %v4538
        %v5819 = vpack.c.b16 %v4547, %v4539
        %v5820 = vpack.c.b16 %v4548, %v4540
        %v5821 = vpack.c.b16 %v4549, %v4541
        %v5822 = vpack.c.b16 %v4550, %v4542
        %v5823 = vpack.c.b16 %v4551, %v4543
        %v5824 = vpack.c.b16 %v4560, %v4552
        %v5825 = vpack.c.b16 %v4561, %v4553
        %v5826 = vpack.c.b16 %v4562, %v4554
        %v5827 = vpack.c.b16 %v4563, %v4555
        %v5828 = vpack.c.b16 %v4564, %v4556
        %v5829 = vpack.c.b16 %v4565, %v4557
        %v5830 = vpack.c.b16 %v4566, %v4558
        %v5831 = vpack.c.b16 %v4567, %v4559
        %v5832 = vpack.c.b16 %v4576, %v4568
        %v5833 = vpack.c.b16 %v4577, %v4569
        %v5834 = vpack.c.b16 %v4578, %v4570
        %v5835 = vpack.c.b16 %v4579, %v4571
        %v5836 = vpack.c.b16 %v4580, %v4572
        %v5837 = vpack.c.b16 %v4581, %v4573
        %v5838 = vpack.c.b16 %v4582, %v4574
        %v5839 = vpack.c.b16 %v4583, %v4575
        %v5840 = vpack.c.b16 %v4592, %v4584
        %v5841 = vpack.c.b16 %v4593, %v4585
        %v5842 = vpack.c.b16 %v4594, %v4586
        %v5843 = vpack.c.b16 %v4595, %v4587
        %v5844 = vpack.c.b16 %v4596, %v4588
        %v5845 = vpack.c.b16 %v4597, %v4589
        %v5846 = vpack.c.b16 %v4598, %v4590
        %v5847 = vpack.c.b16 %v4599, %v4591
        %v5848 = vpack.c.b16 %v4608, %v4600
        %v5849 = vpack.c.b16 %v4609, %v4601
        %v5850 = vpack.c.b16 %v4610, %v4602
        %v5851 = vpack.c.b16 %v4611, %v4603
        %v5852 = vpack.c.b16 %v4612, %v4604
        %v5853 = vpack.c.b16 %v4613, %v4605
        %v5854 = vpack.c.b16 %v4614, %v4606
        %v5855 = vpack.c.b16 %v4615, %v4607
        %v5856 = vpack.c.b16 %v4624, %v4616
        %v5857 = vpack.c.b16 %v4625, %v4617
        %v5858 = vpack.c.b16 %v4626, %v4618
        %v5859 = vpack.c.b16 %v4627, %v4619
        %v5860 = vpack.c.b16 %v4628, %v4620
        %v5861 = vpack.c.b16 %v4629, %v4621
        %v5862 = vpack.c.b16 %v4630, %v4622
        %v5863 = vpack.c.b16 %v4631, %v4623
        %v5864 = vpack.c.b16 %v4640, %v4632
        %v5865 = vpack.c.b16 %v4641, %v4633
        %v5866 = vpack.c.b16 %v4642, %v4634
        %v5867 = vpack.c.b16 %v4643, %v4635
        %v5868 = vpack.c.b16 %v4644, %v4636
        %v5869 = vpack.c.b16 %v4645, %v4637
        %v5870 = vpack.c.b16 %v4646, %v4638
        %v5871 = vpack.c.b16 %v4647, %v4639
        %v5872 = vpack.c.b16 %v4656, %v4648
        %v5873 = vpack.c.b16 %v4657, %v4649
        %v5874 = vpack.c.b16 %v4658, %v4650
        %v5875 = vpack.c.b16 %v4659, %v4651
        %v5876 = vpack.c.b16 %v4660, %v4652
        %v5877 = vpack.c.b16 %v4661, %v4653
        %v5878 = vpack.c.b16 %v4662, %v4654
        %v5879 = vpack.c.b16 %v4663, %v4655
        %v5880 = vpack.c.b16 %v4672, %v4664
        %v5881 = vpack.c.b16 %v4673, %v4665
        %v5882 = vpack.c.b16 %v4674, %v4666
        %v5883 = vpack.c.b16 %v4675, %v4667
        %v5884 = vpack.c.b16 %v4676, %v4668
        %v5885 = vpack.c.b16 %v4677, %v4669
        %v5886 = vpack.c.b16 %v4678, %v4670
        %v5887 = vpack.c.b16 %v4679, %v4671
        %v5888 = vpack.c.b16 %v4688, %v4680
        %v5889 = vpack.c.b16 %v4689, %v4681
        %v5890 = vpack.c.b16 %v4690, %v4682
        %v5891 = vpack.c.b16 %v4691, %v4683
        %v5892 = vpack.c.b16 %v4692, %v4684
        %v5893 = vpack.c.b16 %v4693, %v4685
        %v5894 = vpack.c.b16 %v4694, %v4686
        %v5895 = vpack.c.b16 %v4695, %v4687
        %v5896 = vpack.c.b16 %v4704, %v4696
        %v5897 = vpack.c.b16 %v4705, %v4697
        %v5898 = vpack.c.b16 %v4706, %v4698
        %v5899 = vpack.c.b16 %v4707, %v4699
        %v5900 = vpack.c.b16 %v4708, %v4700
        %v5901 = vpack.c.b16 %v4709, %v4701
        %v5902 = vpack.c.b16 %v4710, %v4702
        %v5903 = vpack.c.b16 %v4711, %v4703
        %v5904 = vpack.c.b16 %v4720, %v4712
        %v5905 = vpack.c.b16 %v4721, %v4713
        %v5906 = vpack.c.b16 %v4722, %v4714
        %v5907 = vpack.c.b16 %v4723, %v4715
        %v5908 = vpack.c.b16 %v4724, %v4716
        %v5909 = vpack.c.b16 %v4725, %v4717
        %v5910 = vpack.c.b16 %v4726, %v4718
        %v5911 = vpack.c.b16 %v4727, %v4719
        %v5912 = vpack.c.b16 %v4736, %v4728
        %v5913 = vpack.c.b16 %v4737, %v4729
        %v5914 = vpack.c.b16 %v4738, %v4730
        %v5915 = vpack.c.b16 %v4739, %v4731
        %v5916 = vpack.c.b16 %v4740, %v4732
        %v5917 = vpack.c.b16 %v4741, %v4733
        %v5918 = vpack.c.b16 %v4742, %v4734
        %v5919 = vpack.c.b16 %v4743, %v4735
        %v5920 = vpack.c.b16 %v4752, %v4744
        %v5921 = vpack.c.b16 %v4753, %v4745
        %v5922 = vpack.c.b16 %v4754, %v4746
        %v5923 = vpack.c.b16 %v4755, %v4747
        %v5924 = vpack.c.b16 %v4756, %v4748
        %v5925 = vpack.c.b16 %v4757, %v4749
        %v5926 = vpack.c.b16 %v4758, %v4750
        %v5927 = vpack.c.b16 %v4759, %v4751
        %v5928 = vpack.c.b16 %v4768, %v4760
        %v5929 = vpack.c.b16 %v4769, %v4761
        %v5930 = vpack.c.b16 %v4770, %v4762
        %v5931 = vpack.c.b16 %v4771, %v4763
        %v5932 = vpack.c.b16 %v4772, %v4764
        %v5933 = vpack.c.b16 %v4773, %v4765
        %v5934 = vpack.c.b16 %v4774, %v4766
        %v5935 = vpack.c.b16 %v4775, %v4767
        %v5936 = vpack.c.b16 %v4784, %v4776
        %v5937 = vpack.c.b16 %v4785, %v4777
        %v5938 = vpack.c.b16 %v4786, %v4778
        %v5939 = vpack.c.b16 %v4787, %v4779
        %v5940 = vpack.c.b16 %v4788, %v4780
        %v5941 = vpack.c.b16 %v4789, %v4781
        %v5942 = vpack.c.b16 %v4790, %v4782
        %v5943 = vpack.c.b16 %v4791, %v4783
        %v5944 = vpack.c.b16 %v4800, %v4792
        %v5945 = vpack.c.b16 %v4801, %v4793
        %v5946 = vpack.c.b16 %v4802, %v4794
        %v5947 = vpack.c.b16 %v4803, %v4795
        %v5948 = vpack.c.b16 %v4804, %v4796
        %v5949 = vpack.c.b16 %v4805, %v4797
        %v5950 = vpack.c.b16 %v4806, %v4798
        %v5951 = vpack.c.b16 %v4807, %v4799
        %v5952 = vpack.c.b16 %v4816, %v4808
        %v5953 = vpack.c.b16 %v4817, %v4809
        %v5954 = vpack.c.b16 %v4818, %v4810
        %v5955 = vpack.c.b16 %v4819, %v4811
        %v5956 = vpack.c.b16 %v4820, %v4812
        %v5957 = vpack.c.b16 %v4821, %v4813
        %v5958 = vpack.c.b16 %v4822, %v4814
        %v5959 = vpack.c.b16 %v4823, %v4815
        %v5960 = vpack.c.b16 %v4832, %v4824
        %v5961 = vpack.c.b16 %v4833, %v4825
        %v5962 = vpack.c.b16 %v4834, %v4826
        %v5963 = vpack.c.b16 %v4835, %v4827
        %v5964 = vpack.c.b16 %v4836, %v4828
        %v5965 = vpack.c.b16 %v4837, %v4829
        %v5966 = vpack.c.b16 %v4838, %v4830
        %v5967 = vpack.c.b16 %v4839, %v4831
        %v5968 = vpack.c.b16 %v4848, %v4840
        %v5969 = vpack.c.b16 %v4849, %v4841
        %v5970 = vpack.c.b16 %v4850, %v4842
        %v5971 = vpack.c.b16 %v4851, %v4843
        %v5972 = vpack.c.b16 %v4852, %v4844
        %v5973 = vpack.c.b16 %v4853, %v4845
        %v5974 = vpack.c.b16 %v4854, %v4846
        %v5975 = vpack.c.b16 %v4855, %v4847
        %v5976 = vpack.c.b16 %v4864, %v4856
        %v5977 = vpack.c.b16 %v4865, %v4857
        %v5978 = vpack.c.b16 %v4866, %v4858
        %v5979 = vpack.c.b16 %v4867, %v4859
        %v5980 = vpack.c.b16 %v4868, %v4860
        %v5981 = vpack.c.b16 %v4869, %v4861
        %v5982 = vpack.c.b16 %v4870, %v4862
        %v5983 = vpack.c.b16 %v4871, %v4863
        %v5984 = vpack.c.b16 %v4880, %v4872
        %v5985 = vpack.c.b16 %v4881, %v4873
        %v5986 = vpack.c.b16 %v4882, %v4874
        %v5987 = vpack.c.b16 %v4883, %v4875
        %v5988 = vpack.c.b16 %v4884, %v4876
        %v5989 = vpack.c.b16 %v4885, %v4877
        %v5990 = vpack.c.b16 %v4886, %v4878
        %v5991 = vpack.c.b16 %v4887, %v4879
        %v5992 = vpack.c.b16 %v4896, %v4888
        %v5993 = vpack.c.b16 %v4897, %v4889
        %v5994 = vpack.c.b16 %v4898, %v4890
        %v5995 = vpack.c.b16 %v4899, %v4891
        %v5996 = vpack.c.b16 %v4900, %v4892
        %v5997 = vpack.c.b16 %v4901, %v4893
        %v5998 = vpack.c.b16 %v4902, %v4894
        %v5999 = vpack.c.b16 %v4903, %v4895
        %v6000 = vpack.c.b16 %v4912, %v4904
        %v6001 = vpack.c.b16 %v4913, %v4905
        %v6002 = vpack.c.b16 %v4914, %v4906
        %v6003 = vpack.c.b16 %v4915, %v4907
        %v6004 = vpack.c.b16 %v4916, %v4908
        %v6005 = vpack.c.b16 %v4917, %v4909
        %v6006 = vpack.c.b16 %v4918, %v4910
        %v6007 = vpack.c.b16 %v4919, %v4911
        %v6008 = vpack.c.b16 %v4928, %v4920
        %v6009 = vpack.c.b16 %v4929, %v4921
        %v6010 = vpack.c.b16 %v4930, %v4922
        %v6011 = vpack.c.b16 %v4931, %v4923
        %v6012 = vpack.c.b16 %v4932, %v4924
        %v6013 = vpack.c.b16 %v4933, %v4925
        %v6014 = vpack.c.b16 %v4934, %v4926
        %v6015 = vpack.c.b16 %v4935, %v4927
        %v6016 = vpack.c.b16 %v4944, %v4936
        %v6017 = vpack.c.b16 %v4945, %v4937
        %v6018 = vpack.c.b16 %v4946, %v4938
        %v6019 = vpack.c.b16 %v4947, %v4939
        %v6020 = vpack.c.b16 %v4948, %v4940
        %v6021 = vpack.c.b16 %v4949, %v4941
        %v6022 = vpack.c.b16 %v4950, %v4942
        %v6023 = vpack.c.b16 %v4951, %v4943
        %v6024 = vpack.c.b16 %v4960, %v4952
        %v6025 = vpack.c.b16 %v4961, %v4953
        %v6026 = vpack.c.b16 %v4962, %v4954
        %v6027 = vpack.c.b16 %v4963, %v4955
        %v6028 = vpack.c.b16 %v4964, %v4956
        %v6029 = vpack.c.b16 %v4965, %v4957
        %v6030 = vpack.c.b16 %v4966, %v4958
        %v6031 = vpack.c.b16 %v4967, %v4959
        %v6032 = vpack.c.b16 %v4976, %v4968
        %v6033 = vpack.c.b16 %v4977, %v4969
        %v6034 = vpack.c.b16 %v4978, %v4970
        %v6035 = vpack.c.b16 %v4979, %v4971
        %v6036 = vpack.c.b16 %v4980, %v4972
        %v6037 = vpack.c.b16 %v4981, %v4973
        %v6038 = vpack.c.b16 %v4982, %v4974
        %v6039 = vpack.c.b16 %v4983, %v4975
        %v6040 = vpack.c.b16 %v4992, %v4984
        %v6041 = vpack.c.b16 %v4993, %v4985
        %v6042 = vpack.c.b16 %v4994, %v4986
        %v6043 = vpack.c.b16 %v4995, %v4987
        %v6044 = vpack.c.b16 %v4996, %v4988
        %v6045 = vpack.c.b16 %v4997, %v4989
        %v6046 = vpack.c.b16 %v4998, %v4990
        %v6047 = vpack.c.b16 %v4999, %v4991
        %v6048 = vpack.c.b16 %v5008, %v5000
        %v6049 = vpack.c.b16 %v5009, %v5001
        %v6050 = vpack.c.b16 %v5010, %v5002
        %v6051 = vpack.c.b16 %v5011, %v5003
        %v6052 = vpack.c.b16 %v5012, %v5004
        %v6053 = vpack.c.b16 %v5013, %v5005
        %v6054 = vpack.c.b16 %v5014, %v5006
        %v6055 = vpack.c.b16 %v5015, %v5007
        %v6056 = vpack.c.b16 %v5024, %v5016
        %v6057 = vpack.c.b16 %v5025, %v5017
        %v6058 = vpack.c.b16 %v5026, %v5018
        %v6059 = vpack.c.b16 %v5027, %v5019
        %v6060 = vpack.c.b16 %v5028, %v5020
        %v6061 = vpack.c.b16 %v5029, %v5021
        %v6062 = vpack.c.b16 %v5030, %v5022
        %v6063 = vpack.c.b16 %v5031, %v5023
        %v6064 = vpack.c.b16 %v5040, %v5032
        %v6065 = vpack.c.b16 %v5041, %v5033
        %v6066 = vpack.c.b16 %v5042, %v5034
        %v6067 = vpack.c.b16 %v5043, %v5035
        %v6068 = vpack.c.b16 %v5044, %v5036
        %v6069 = vpack.c.b16 %v5045, %v5037
        %v6070 = vpack.c.b16 %v5046, %v5038
        %v6071 = vpack.c.b16 %v5047, %v5039
        %7096 = vmatpush.bf16.msra.mxu0 %v5104
        %7097 = vmatpush.bf16.msra.mxu0 %v5096
        %7098 = vmatpush.bf16.msra.mxu0 %v5088
        %7099 = vmatpush.bf16.msra.mxu0 %v5080
        %7100 = vmatpush.bf16.msra.mxu0 %v5072
        %7101 = vmatpush.bf16.msra.mxu0 %v5064
        %7102 = vmatpush.bf16.msra.mxu0 %v5056
        %7103 = vmatpush.bf16.msra.mxu0 %v5048
        %7104 = vmatmul.bf16.gmra.mxu0 %v1944
        %v7105 = vpop.f32.mrf.mxu0
        %v7106 = vadd.f32 %v1904, %v7105
        %v7107 = vpop.f32.mrf.mxu0
        %7108 = vdwg.mxu0
        %7109 = vmatpush.bf16.msra.mxu0 %v5168
        %7110 = vmatpush.bf16.msra.mxu0 %v5160
        %7111 = vmatpush.bf16.msra.mxu0 %v5152
        %7112 = vmatpush.bf16.msra.mxu0 %v5144
        %7113 = vmatpush.bf16.msra.mxu0 %v5136
        %7114 = vmatpush.bf16.msra.mxu0 %v5128
        %7115 = vmatpush.bf16.msra.mxu0 %v5120
        %7116 = vmatpush.bf16.msra.mxu0 %v5112
        %7117 = vmatmul.bf16.gmra.mxu0 %v1945
        %v7118 = vpop.f32.mrf.mxu0
        %v7119 = vadd.f32 %v7106, %v7118
        %v7120 = vpop.f32.mrf.mxu0
        %7121 = vdwg.mxu0
        %7122 = vmatpush.bf16.msra.mxu0 %v5232
        %7123 = vmatpush.bf16.msra.mxu0 %v5224
        %7124 = vmatpush.bf16.msra.mxu0 %v5216
        %7125 = vmatpush.bf16.msra.mxu0 %v5208
        %7126 = vmatpush.bf16.msra.mxu0 %v5200
        %7127 = vmatpush.bf16.msra.mxu0 %v5192
        %7128 = vmatpush.bf16.msra.mxu0 %v5184
        %7129 = vmatpush.bf16.msra.mxu0 %v5176
        %7130 = vmatmul.bf16.gmra.mxu0 %v1946
        %v7131 = vpop.f32.mrf.mxu0
        %v7132 = vadd.f32 %v7119, %v7131
        %v7133 = vpop.f32.mrf.mxu0
        %7134 = vdwg.mxu0
        %7135 = vmatpush.bf16.msra.mxu0 %v5296
        %7136 = vmatpush.bf16.msra.mxu0 %v5288
        %7137 = vmatpush.bf16.msra.mxu0 %v5280
        %7138 = vmatpush.bf16.msra.mxu0 %v5272
        %7139 = vmatpush.bf16.msra.mxu0 %v5264
        %7140 = vmatpush.bf16.msra.mxu0 %v5256
        %7141 = vmatpush.bf16.msra.mxu0 %v5248
        %7142 = vmatpush.bf16.msra.mxu0 %v5240
        %7143 = vmatmul.bf16.gmra.mxu0 %v1947
        %v7144 = vpop.f32.mrf.mxu0
        %v7145 = vadd.f32 %v7132, %v7144
        %v7146 = vpop.f32.mrf.mxu0
        %7147 = vdwg.mxu0
        %7148 = vmatpush.bf16.msra.mxu0 %v5360
        %7149 = vmatpush.bf16.msra.mxu0 %v5352
        %7150 = vmatpush.bf16.msra.mxu0 %v5344
        %7151 = vmatpush.bf16.msra.mxu0 %v5336
        %7152 = vmatpush.bf16.msra.mxu0 %v5328
        %7153 = vmatpush.bf16.msra.mxu0 %v5320
        %7154 = vmatpush.bf16.msra.mxu0 %v5312
        %7155 = vmatpush.bf16.msra.mxu0 %v5304
        %7156 = vmatmul.bf16.gmra.mxu0 %v1948
        %v7157 = vpop.f32.mrf.mxu0
        %v7158 = vadd.f32 %v7145, %v7157
        %v7159 = vpop.f32.mrf.mxu0
        %7160 = vdwg.mxu0
        %7161 = vmatpush.bf16.msra.mxu0 %v5424
        %7162 = vmatpush.bf16.msra.mxu0 %v5416
        %7163 = vmatpush.bf16.msra.mxu0 %v5408
        %7164 = vmatpush.bf16.msra.mxu0 %v5400
        %7165 = vmatpush.bf16.msra.mxu0 %v5392
        %7166 = vmatpush.bf16.msra.mxu0 %v5384
        %7167 = vmatpush.bf16.msra.mxu0 %v5376
        %7168 = vmatpush.bf16.msra.mxu0 %v5368
        %7169 = vmatmul.bf16.gmra.mxu0 %v1949
        %v7170 = vpop.f32.mrf.mxu0
        %v7171 = vadd.f32 %v7158, %v7170
        %v7172 = vpop.f32.mrf.mxu0
        %7173 = vdwg.mxu0
        %7174 = vmatpush.bf16.msra.mxu0 %v5488
        %7175 = vmatpush.bf16.msra.mxu0 %v5480
        %7176 = vmatpush.bf16.msra.mxu0 %v5472
        %7177 = vmatpush.bf16.msra.mxu0 %v5464
        %7178 = vmatpush.bf16.msra.mxu0 %v5456
        %7179 = vmatpush.bf16.msra.mxu0 %v5448
        %7180 = vmatpush.bf16.msra.mxu0 %v5440
        %7181 = vmatpush.bf16.msra.mxu0 %v5432
        %7182 = vmatmul.bf16.gmra.mxu0 %v1950
        %v7183 = vpop.f32.mrf.mxu0
        %v7184 = vadd.f32 %v7171, %v7183
        %v7185 = vpop.f32.mrf.mxu0
        %7186 = vdwg.mxu0
        %7187 = vmatpush.bf16.msra.mxu0 %v5552
        %7188 = vmatpush.bf16.msra.mxu0 %v5544
        %7189 = vmatpush.bf16.msra.mxu0 %v5536
        %7190 = vmatpush.bf16.msra.mxu0 %v5528
        %7191 = vmatpush.bf16.msra.mxu0 %v5520
        %7192 = vmatpush.bf16.msra.mxu0 %v5512
        %7193 = vmatpush.bf16.msra.mxu0 %v5504
        %7194 = vmatpush.bf16.msra.mxu0 %v5496
        %7195 = vmatmul.bf16.gmra.mxu0 %v1951
        %v7196 = vpop.f32.mrf.mxu0
        %v7197 = vadd.f32 %v7184, %v7196
        %v7198 = vpop.f32.mrf.mxu0
        %7199 = vdwg.mxu0
        %7200 = vmatpush.bf16.msra.mxu0 %v5616
        %7201 = vmatpush.bf16.msra.mxu0 %v5608
        %7202 = vmatpush.bf16.msra.mxu0 %v5600
        %7203 = vmatpush.bf16.msra.mxu0 %v5592
        %7204 = vmatpush.bf16.msra.mxu0 %v5584
        %7205 = vmatpush.bf16.msra.mxu0 %v5576
        %7206 = vmatpush.bf16.msra.mxu0 %v5568
        %7207 = vmatpush.bf16.msra.mxu0 %v5560
        %7208 = vmatmul.bf16.gmra.mxu0 %v1952
        %v7209 = vpop.f32.mrf.mxu0
        %v7210 = vadd.f32 %v7197, %v7209
        %v7211 = vpop.f32.mrf.mxu0
        %7212 = vdwg.mxu0
        %7213 = vmatpush.bf16.msra.mxu0 %v5680
        %7214 = vmatpush.bf16.msra.mxu0 %v5672
        %7215 = vmatpush.bf16.msra.mxu0 %v5664
        %7216 = vmatpush.bf16.msra.mxu0 %v5656
        %7217 = vmatpush.bf16.msra.mxu0 %v5648
        %7218 = vmatpush.bf16.msra.mxu0 %v5640
        %7219 = vmatpush.bf16.msra.mxu0 %v5632
        %7220 = vmatpush.bf16.msra.mxu0 %v5624
        %7221 = vmatmul.bf16.gmra.mxu0 %v1953
        %v7222 = vpop.f32.mrf.mxu0
        %v7223 = vadd.f32 %v7210, %v7222
        %v7224 = vpop.f32.mrf.mxu0
        %7225 = vdwg.mxu0
        %7226 = vmatpush.bf16.msra.mxu0 %v5744
        %7227 = vmatpush.bf16.msra.mxu0 %v5736
        %7228 = vmatpush.bf16.msra.mxu0 %v5728
        %7229 = vmatpush.bf16.msra.mxu0 %v5720
        %7230 = vmatpush.bf16.msra.mxu0 %v5712
        %7231 = vmatpush.bf16.msra.mxu0 %v5704
        %7232 = vmatpush.bf16.msra.mxu0 %v5696
        %7233 = vmatpush.bf16.msra.mxu0 %v5688
        %7234 = vmatmul.bf16.gmra.mxu0 %v1954
        %v7235 = vpop.f32.mrf.mxu0
        %v7236 = vadd.f32 %v7223, %v7235
        %v7237 = vpop.f32.mrf.mxu0
        %7238 = vdwg.mxu0
        %7239 = vmatpush.bf16.msra.mxu0 %v5808
        %7240 = vmatpush.bf16.msra.mxu0 %v5800
        %7241 = vmatpush.bf16.msra.mxu0 %v5792
        %7242 = vmatpush.bf16.msra.mxu0 %v5784
        %7243 = vmatpush.bf16.msra.mxu0 %v5776
        %7244 = vmatpush.bf16.msra.mxu0 %v5768
        %7245 = vmatpush.bf16.msra.mxu0 %v5760
        %7246 = vmatpush.bf16.msra.mxu0 %v5752
        %7247 = vmatmul.bf16.gmra.mxu0 %v1955
        %v7248 = vpop.f32.mrf.mxu0
        %v7249 = vadd.f32 %v7236, %v7248
        %v7250 = vpop.f32.mrf.mxu0
        %7251 = vdwg.mxu0
        %7252 = vmatpush.bf16.msra.mxu0 %v5872
        %7253 = vmatpush.bf16.msra.mxu0 %v5864
        %7254 = vmatpush.bf16.msra.mxu0 %v5856
        %7255 = vmatpush.bf16.msra.mxu0 %v5848
        %7256 = vmatpush.bf16.msra.mxu0 %v5840
        %7257 = vmatpush.bf16.msra.mxu0 %v5832
        %7258 = vmatpush.bf16.msra.mxu0 %v5824
        %7259 = vmatpush.bf16.msra.mxu0 %v5816
        %7260 = vmatmul.bf16.gmra.mxu0 %v1956
        %v7261 = vpop.f32.mrf.mxu0
        %v7262 = vadd.f32 %v7249, %v7261
        %v7263 = vpop.f32.mrf.mxu0
        %7264 = vdwg.mxu0
        %7265 = vmatpush.bf16.msra.mxu0 %v5936
        %7266 = vmatpush.bf16.msra.mxu0 %v5928
        %7267 = vmatpush.bf16.msra.mxu0 %v5920
        %7268 = vmatpush.bf16.msra.mxu0 %v5912
        %7269 = vmatpush.bf16.msra.mxu0 %v5904
        %7270 = vmatpush.bf16.msra.mxu0 %v5896
        %7271 = vmatpush.bf16.msra.mxu0 %v5888
        %7272 = vmatpush.bf16.msra.mxu0 %v5880
        %7273 = vmatmul.bf16.gmra.mxu0 %v1957
        %v7274 = vpop.f32.mrf.mxu0
        %v7275 = vadd.f32 %v7262, %v7274
        %v7276 = vpop.f32.mrf.mxu0
        %7277 = vdwg.mxu0
        %7278 = vmatpush.bf16.msra.mxu0 %v6000
        %7279 = vmatpush.bf16.msra.mxu0 %v5992
        %7280 = vmatpush.bf16.msra.mxu0 %v5984
        %7281 = vmatpush.bf16.msra.mxu0 %v5976
        %7282 = vmatpush.bf16.msra.mxu0 %v5968
        %7283 = vmatpush.bf16.msra.mxu0 %v5960
        %7284 = vmatpush.bf16.msra.mxu0 %v5952
        %7285 = vmatpush.bf16.msra.mxu0 %v5944
        %7286 = vmatmul.bf16.gmra.mxu0 %v1958
        %v7287 = vpop.f32.mrf.mxu0
        %v7288 = vadd.f32 %v7275, %v7287
        %v7289 = vpop.f32.mrf.mxu0
        %7290 = vdwg.mxu0
        %7291 = vmatpush.bf16.msra.mxu0 %v6064
        %7292 = vmatpush.bf16.msra.mxu0 %v6056
        %7293 = vmatpush.bf16.msra.mxu0 %v6048
        %7294 = vmatpush.bf16.msra.mxu0 %v6040
        %7295 = vmatpush.bf16.msra.mxu0 %v6032
        %7296 = vmatpush.bf16.msra.mxu0 %v6024
        %7297 = vmatpush.bf16.msra.mxu0 %v6016
        %7298 = vmatpush.bf16.msra.mxu0 %v6008
        %7299 = vmatmul.bf16.gmra.mxu0 %v1959
        %v7300 = vpop.f32.mrf.mxu0
        %v7301 = vadd.f32 %v7288, %v7300
        %v7302 = vpop.f32.mrf.mxu0
        %7303 = vdwg.mxu0
        %7304 = vmatpush.bf16.msra.mxu0 %v5105
        %7305 = vmatpush.bf16.msra.mxu0 %v5097
        %7306 = vmatpush.bf16.msra.mxu0 %v5089
        %7307 = vmatpush.bf16.msra.mxu0 %v5081
        %7308 = vmatpush.bf16.msra.mxu0 %v5073
        %7309 = vmatpush.bf16.msra.mxu0 %v5065
        %7310 = vmatpush.bf16.msra.mxu0 %v5057
        %7311 = vmatpush.bf16.msra.mxu0 %v5049
        %7312 = vmatmul.bf16.gmra.mxu0 %v1944
        %v7313 = vpop.f32.mrf.mxu0
        %v7314 = vadd.f32 %v1905, %v7313
        %v7315 = vpop.f32.mrf.mxu0
        %7316 = vdwg.mxu0
        %7317 = vmatpush.bf16.msra.mxu0 %v5169
        %7318 = vmatpush.bf16.msra.mxu0 %v5161
        %7319 = vmatpush.bf16.msra.mxu0 %v5153
        %7320 = vmatpush.bf16.msra.mxu0 %v5145
        %7321 = vmatpush.bf16.msra.mxu0 %v5137
        %7322 = vmatpush.bf16.msra.mxu0 %v5129
        %7323 = vmatpush.bf16.msra.mxu0 %v5121
        %7324 = vmatpush.bf16.msra.mxu0 %v5113
        %7325 = vmatmul.bf16.gmra.mxu0 %v1945
        %v7326 = vpop.f32.mrf.mxu0
        %v7327 = vadd.f32 %v7314, %v7326
        %v7328 = vpop.f32.mrf.mxu0
        %7329 = vdwg.mxu0
        %7330 = vmatpush.bf16.msra.mxu0 %v5233
        %7331 = vmatpush.bf16.msra.mxu0 %v5225
        %7332 = vmatpush.bf16.msra.mxu0 %v5217
        %7333 = vmatpush.bf16.msra.mxu0 %v5209
        %7334 = vmatpush.bf16.msra.mxu0 %v5201
        %7335 = vmatpush.bf16.msra.mxu0 %v5193
        %7336 = vmatpush.bf16.msra.mxu0 %v5185
        %7337 = vmatpush.bf16.msra.mxu0 %v5177
        %7338 = vmatmul.bf16.gmra.mxu0 %v1946
        %v7339 = vpop.f32.mrf.mxu0
        %v7340 = vadd.f32 %v7327, %v7339
        %v7341 = vpop.f32.mrf.mxu0
        %7342 = vdwg.mxu0
        %7343 = vmatpush.bf16.msra.mxu0 %v5297
        %7344 = vmatpush.bf16.msra.mxu0 %v5289
        %7345 = vmatpush.bf16.msra.mxu0 %v5281
        %7346 = vmatpush.bf16.msra.mxu0 %v5273
        %7347 = vmatpush.bf16.msra.mxu0 %v5265
        %7348 = vmatpush.bf16.msra.mxu0 %v5257
        %7349 = vmatpush.bf16.msra.mxu0 %v5249
        %7350 = vmatpush.bf16.msra.mxu0 %v5241
        %7351 = vmatmul.bf16.gmra.mxu0 %v1947
        %v7352 = vpop.f32.mrf.mxu0
        %v7353 = vadd.f32 %v7340, %v7352
        %v7354 = vpop.f32.mrf.mxu0
        %7355 = vdwg.mxu0
        %7356 = vmatpush.bf16.msra.mxu0 %v5361
        %7357 = vmatpush.bf16.msra.mxu0 %v5353
        %7358 = vmatpush.bf16.msra.mxu0 %v5345
        %7359 = vmatpush.bf16.msra.mxu0 %v5337
        %7360 = vmatpush.bf16.msra.mxu0 %v5329
        %7361 = vmatpush.bf16.msra.mxu0 %v5321
        %7362 = vmatpush.bf16.msra.mxu0 %v5313
        %7363 = vmatpush.bf16.msra.mxu0 %v5305
        %7364 = vmatmul.bf16.gmra.mxu0 %v1948
        %v7365 = vpop.f32.mrf.mxu0
        %v7366 = vadd.f32 %v7353, %v7365
        %v7367 = vpop.f32.mrf.mxu0
        %7368 = vdwg.mxu0
        %7369 = vmatpush.bf16.msra.mxu0 %v5425
        %7370 = vmatpush.bf16.msra.mxu0 %v5417
        %7371 = vmatpush.bf16.msra.mxu0 %v5409
        %7372 = vmatpush.bf16.msra.mxu0 %v5401
        %7373 = vmatpush.bf16.msra.mxu0 %v5393
        %7374 = vmatpush.bf16.msra.mxu0 %v5385
        %7375 = vmatpush.bf16.msra.mxu0 %v5377
        %7376 = vmatpush.bf16.msra.mxu0 %v5369
        %7377 = vmatmul.bf16.gmra.mxu0 %v1949
        %v7378 = vpop.f32.mrf.mxu0
        %v7379 = vadd.f32 %v7366, %v7378
        %v7380 = vpop.f32.mrf.mxu0
        %7381 = vdwg.mxu0
        %7382 = vmatpush.bf16.msra.mxu0 %v5489
        %7383 = vmatpush.bf16.msra.mxu0 %v5481
        %7384 = vmatpush.bf16.msra.mxu0 %v5473
        %7385 = vmatpush.bf16.msra.mxu0 %v5465
        %7386 = vmatpush.bf16.msra.mxu0 %v5457
        %7387 = vmatpush.bf16.msra.mxu0 %v5449
        %7388 = vmatpush.bf16.msra.mxu0 %v5441
        %7389 = vmatpush.bf16.msra.mxu0 %v5433
        %7390 = vmatmul.bf16.gmra.mxu0 %v1950
        %v7391 = vpop.f32.mrf.mxu0
        %v7392 = vadd.f32 %v7379, %v7391
        %v7393 = vpop.f32.mrf.mxu0
        %7394 = vdwg.mxu0
        %7395 = vmatpush.bf16.msra.mxu0 %v5553
        %7396 = vmatpush.bf16.msra.mxu0 %v5545
        %7397 = vmatpush.bf16.msra.mxu0 %v5537
        %7398 = vmatpush.bf16.msra.mxu0 %v5529
        %7399 = vmatpush.bf16.msra.mxu0 %v5521
        %7400 = vmatpush.bf16.msra.mxu0 %v5513
        %7401 = vmatpush.bf16.msra.mxu0 %v5505
        %7402 = vmatpush.bf16.msra.mxu0 %v5497
        %7403 = vmatmul.bf16.gmra.mxu0 %v1951
        %v7404 = vpop.f32.mrf.mxu0
        %v7405 = vadd.f32 %v7392, %v7404
        %v7406 = vpop.f32.mrf.mxu0
        %7407 = vdwg.mxu0
        %7408 = vmatpush.bf16.msra.mxu0 %v5617
        %7409 = vmatpush.bf16.msra.mxu0 %v5609
        %7410 = vmatpush.bf16.msra.mxu0 %v5601
        %7411 = vmatpush.bf16.msra.mxu0 %v5593
        %7412 = vmatpush.bf16.msra.mxu0 %v5585
        %7413 = vmatpush.bf16.msra.mxu0 %v5577
        %7414 = vmatpush.bf16.msra.mxu0 %v5569
        %7415 = vmatpush.bf16.msra.mxu0 %v5561
        %7416 = vmatmul.bf16.gmra.mxu0 %v1952
        %v7417 = vpop.f32.mrf.mxu0
        %v7418 = vadd.f32 %v7405, %v7417
        %v7419 = vpop.f32.mrf.mxu0
        %7420 = vdwg.mxu0
        %7421 = vmatpush.bf16.msra.mxu0 %v5681
        %7422 = vmatpush.bf16.msra.mxu0 %v5673
        %7423 = vmatpush.bf16.msra.mxu0 %v5665
        %7424 = vmatpush.bf16.msra.mxu0 %v5657
        %7425 = vmatpush.bf16.msra.mxu0 %v5649
        %7426 = vmatpush.bf16.msra.mxu0 %v5641
        %7427 = vmatpush.bf16.msra.mxu0 %v5633
        %7428 = vmatpush.bf16.msra.mxu0 %v5625
        %7429 = vmatmul.bf16.gmra.mxu0 %v1953
        %v7430 = vpop.f32.mrf.mxu0
        %v7431 = vadd.f32 %v7418, %v7430
        %v7432 = vpop.f32.mrf.mxu0
        %7433 = vdwg.mxu0
        %7434 = vmatpush.bf16.msra.mxu0 %v5745
        %7435 = vmatpush.bf16.msra.mxu0 %v5737
        %7436 = vmatpush.bf16.msra.mxu0 %v5729
        %7437 = vmatpush.bf16.msra.mxu0 %v5721
        %7438 = vmatpush.bf16.msra.mxu0 %v5713
        %7439 = vmatpush.bf16.msra.mxu0 %v5705
        %7440 = vmatpush.bf16.msra.mxu0 %v5697
        %7441 = vmatpush.bf16.msra.mxu0 %v5689
        %7442 = vmatmul.bf16.gmra.mxu0 %v1954
        %v7443 = vpop.f32.mrf.mxu0
        %v7444 = vadd.f32 %v7431, %v7443
        %v7445 = vpop.f32.mrf.mxu0
        %7446 = vdwg.mxu0
        %7447 = vmatpush.bf16.msra.mxu0 %v5809
        %7448 = vmatpush.bf16.msra.mxu0 %v5801
        %7449 = vmatpush.bf16.msra.mxu0 %v5793
        %7450 = vmatpush.bf16.msra.mxu0 %v5785
        %7451 = vmatpush.bf16.msra.mxu0 %v5777
        %7452 = vmatpush.bf16.msra.mxu0 %v5769
        %7453 = vmatpush.bf16.msra.mxu0 %v5761
        %7454 = vmatpush.bf16.msra.mxu0 %v5753
        %7455 = vmatmul.bf16.gmra.mxu0 %v1955
        %v7456 = vpop.f32.mrf.mxu0
        %v7457 = vadd.f32 %v7444, %v7456
        %v7458 = vpop.f32.mrf.mxu0
        %7459 = vdwg.mxu0
        %7460 = vmatpush.bf16.msra.mxu0 %v5873
        %7461 = vmatpush.bf16.msra.mxu0 %v5865
        %7462 = vmatpush.bf16.msra.mxu0 %v5857
        %7463 = vmatpush.bf16.msra.mxu0 %v5849
        %7464 = vmatpush.bf16.msra.mxu0 %v5841
        %7465 = vmatpush.bf16.msra.mxu0 %v5833
        %7466 = vmatpush.bf16.msra.mxu0 %v5825
        %7467 = vmatpush.bf16.msra.mxu0 %v5817
        %7468 = vmatmul.bf16.gmra.mxu0 %v1956
        %v7469 = vpop.f32.mrf.mxu0
        %v7470 = vadd.f32 %v7457, %v7469
        %v7471 = vpop.f32.mrf.mxu0
        %7472 = vdwg.mxu0
        %7473 = vmatpush.bf16.msra.mxu0 %v5937
        %7474 = vmatpush.bf16.msra.mxu0 %v5929
        %7475 = vmatpush.bf16.msra.mxu0 %v5921
        %7476 = vmatpush.bf16.msra.mxu0 %v5913
        %7477 = vmatpush.bf16.msra.mxu0 %v5905
        %7478 = vmatpush.bf16.msra.mxu0 %v5897
        %7479 = vmatpush.bf16.msra.mxu0 %v5889
        %7480 = vmatpush.bf16.msra.mxu0 %v5881
        %7481 = vmatmul.bf16.gmra.mxu0 %v1957
        %v7482 = vpop.f32.mrf.mxu0
        %v7483 = vadd.f32 %v7470, %v7482
        %v7484 = vpop.f32.mrf.mxu0
        %7485 = vdwg.mxu0
        %7486 = vmatpush.bf16.msra.mxu0 %v6001
        %7487 = vmatpush.bf16.msra.mxu0 %v5993
        %7488 = vmatpush.bf16.msra.mxu0 %v5985
        %7489 = vmatpush.bf16.msra.mxu0 %v5977
        %7490 = vmatpush.bf16.msra.mxu0 %v5969
        %7491 = vmatpush.bf16.msra.mxu0 %v5961
        %7492 = vmatpush.bf16.msra.mxu0 %v5953
        %7493 = vmatpush.bf16.msra.mxu0 %v5945
        %7494 = vmatmul.bf16.gmra.mxu0 %v1958
        %v7495 = vpop.f32.mrf.mxu0
        %v7496 = vadd.f32 %v7483, %v7495
        %v7497 = vpop.f32.mrf.mxu0
        %7498 = vdwg.mxu0
        %7499 = vmatpush.bf16.msra.mxu0 %v6065
        %7500 = vmatpush.bf16.msra.mxu0 %v6057
        %7501 = vmatpush.bf16.msra.mxu0 %v6049
        %7502 = vmatpush.bf16.msra.mxu0 %v6041
        %7503 = vmatpush.bf16.msra.mxu0 %v6033
        %7504 = vmatpush.bf16.msra.mxu0 %v6025
        %7505 = vmatpush.bf16.msra.mxu0 %v6017
        %7506 = vmatpush.bf16.msra.mxu0 %v6009
        %7507 = vmatmul.bf16.gmra.mxu0 %v1959
        %v7508 = vpop.f32.mrf.mxu0
        %v7509 = vadd.f32 %v7496, %v7508
        %v7510 = vpop.f32.mrf.mxu0
        %7511 = vdwg.mxu0
        %7512 = vmatpush.bf16.msra.mxu0 %v5106
        %7513 = vmatpush.bf16.msra.mxu0 %v5098
        %7514 = vmatpush.bf16.msra.mxu0 %v5090
        %7515 = vmatpush.bf16.msra.mxu0 %v5082
        %7516 = vmatpush.bf16.msra.mxu0 %v5074
        %7517 = vmatpush.bf16.msra.mxu0 %v5066
        %7518 = vmatpush.bf16.msra.mxu0 %v5058
        %7519 = vmatpush.bf16.msra.mxu0 %v5050
        %7520 = vmatmul.bf16.gmra.mxu0 %v1944
        %v7521 = vpop.f32.mrf.mxu0
        %v7522 = vadd.f32 %v1906, %v7521
        %v7523 = vpop.f32.mrf.mxu0
        %7524 = vdwg.mxu0
        %7525 = vmatpush.bf16.msra.mxu0 %v5170
        %7526 = vmatpush.bf16.msra.mxu0 %v5162
        %7527 = vmatpush.bf16.msra.mxu0 %v5154
        %7528 = vmatpush.bf16.msra.mxu0 %v5146
        %7529 = vmatpush.bf16.msra.mxu0 %v5138
        %7530 = vmatpush.bf16.msra.mxu0 %v5130
        %7531 = vmatpush.bf16.msra.mxu0 %v5122
        %7532 = vmatpush.bf16.msra.mxu0 %v5114
        %7533 = vmatmul.bf16.gmra.mxu0 %v1945
        %v7534 = vpop.f32.mrf.mxu0
        %v7535 = vadd.f32 %v7522, %v7534
        %v7536 = vpop.f32.mrf.mxu0
        %7537 = vdwg.mxu0
        %7538 = vmatpush.bf16.msra.mxu0 %v5234
        %7539 = vmatpush.bf16.msra.mxu0 %v5226
        %7540 = vmatpush.bf16.msra.mxu0 %v5218
        %7541 = vmatpush.bf16.msra.mxu0 %v5210
        %7542 = vmatpush.bf16.msra.mxu0 %v5202
        %7543 = vmatpush.bf16.msra.mxu0 %v5194
        %7544 = vmatpush.bf16.msra.mxu0 %v5186
        %7545 = vmatpush.bf16.msra.mxu0 %v5178
        %7546 = vmatmul.bf16.gmra.mxu0 %v1946
        %v7547 = vpop.f32.mrf.mxu0
        %v7548 = vadd.f32 %v7535, %v7547
        %v7549 = vpop.f32.mrf.mxu0
        %7550 = vdwg.mxu0
        %7551 = vmatpush.bf16.msra.mxu0 %v5298
        %7552 = vmatpush.bf16.msra.mxu0 %v5290
        %7553 = vmatpush.bf16.msra.mxu0 %v5282
        %7554 = vmatpush.bf16.msra.mxu0 %v5274
        %7555 = vmatpush.bf16.msra.mxu0 %v5266
        %7556 = vmatpush.bf16.msra.mxu0 %v5258
        %7557 = vmatpush.bf16.msra.mxu0 %v5250
        %7558 = vmatpush.bf16.msra.mxu0 %v5242
        %7559 = vmatmul.bf16.gmra.mxu0 %v1947
        %v7560 = vpop.f32.mrf.mxu0
        %v7561 = vadd.f32 %v7548, %v7560
        %v7562 = vpop.f32.mrf.mxu0
        %7563 = vdwg.mxu0
        %7564 = vmatpush.bf16.msra.mxu0 %v5362
        %7565 = vmatpush.bf16.msra.mxu0 %v5354
        %7566 = vmatpush.bf16.msra.mxu0 %v5346
        %7567 = vmatpush.bf16.msra.mxu0 %v5338
        %7568 = vmatpush.bf16.msra.mxu0 %v5330
        %7569 = vmatpush.bf16.msra.mxu0 %v5322
        %7570 = vmatpush.bf16.msra.mxu0 %v5314
        %7571 = vmatpush.bf16.msra.mxu0 %v5306
        %7572 = vmatmul.bf16.gmra.mxu0 %v1948
        %v7573 = vpop.f32.mrf.mxu0
        %v7574 = vadd.f32 %v7561, %v7573
        %v7575 = vpop.f32.mrf.mxu0
        %7576 = vdwg.mxu0
        %7577 = vmatpush.bf16.msra.mxu0 %v5426
        %7578 = vmatpush.bf16.msra.mxu0 %v5418
        %7579 = vmatpush.bf16.msra.mxu0 %v5410
        %7580 = vmatpush.bf16.msra.mxu0 %v5402
        %7581 = vmatpush.bf16.msra.mxu0 %v5394
        %7582 = vmatpush.bf16.msra.mxu0 %v5386
        %7583 = vmatpush.bf16.msra.mxu0 %v5378
        %7584 = vmatpush.bf16.msra.mxu0 %v5370
        %7585 = vmatmul.bf16.gmra.mxu0 %v1949
        %v7586 = vpop.f32.mrf.mxu0
        %v7587 = vadd.f32 %v7574, %v7586
        %v7588 = vpop.f32.mrf.mxu0
        %7589 = vdwg.mxu0
        %7590 = vmatpush.bf16.msra.mxu0 %v5490
        %7591 = vmatpush.bf16.msra.mxu0 %v5482
        %7592 = vmatpush.bf16.msra.mxu0 %v5474
        %7593 = vmatpush.bf16.msra.mxu0 %v5466
        %7594 = vmatpush.bf16.msra.mxu0 %v5458
        %7595 = vmatpush.bf16.msra.mxu0 %v5450
        %7596 = vmatpush.bf16.msra.mxu0 %v5442
        %7597 = vmatpush.bf16.msra.mxu0 %v5434
        %7598 = vmatmul.bf16.gmra.mxu0 %v1950
        %v7599 = vpop.f32.mrf.mxu0
        %v7600 = vadd.f32 %v7587, %v7599
        %v7601 = vpop.f32.mrf.mxu0
        %7602 = vdwg.mxu0
        %7603 = vmatpush.bf16.msra.mxu0 %v5554
        %7604 = vmatpush.bf16.msra.mxu0 %v5546
        %7605 = vmatpush.bf16.msra.mxu0 %v5538
        %7606 = vmatpush.bf16.msra.mxu0 %v5530
        %7607 = vmatpush.bf16.msra.mxu0 %v5522
        %7608 = vmatpush.bf16.msra.mxu0 %v5514
        %7609 = vmatpush.bf16.msra.mxu0 %v5506
        %7610 = vmatpush.bf16.msra.mxu0 %v5498
        %7611 = vmatmul.bf16.gmra.mxu0 %v1951
        %v7612 = vpop.f32.mrf.mxu0
        %v7613 = vadd.f32 %v7600, %v7612
        %v7614 = vpop.f32.mrf.mxu0
        %7615 = vdwg.mxu0
        %7616 = vmatpush.bf16.msra.mxu0 %v5618
        %7617 = vmatpush.bf16.msra.mxu0 %v5610
        %7618 = vmatpush.bf16.msra.mxu0 %v5602
        %7619 = vmatpush.bf16.msra.mxu0 %v5594
        %7620 = vmatpush.bf16.msra.mxu0 %v5586
        %7621 = vmatpush.bf16.msra.mxu0 %v5578
        %7622 = vmatpush.bf16.msra.mxu0 %v5570
        %7623 = vmatpush.bf16.msra.mxu0 %v5562
        %7624 = vmatmul.bf16.gmra.mxu0 %v1952
        %v7625 = vpop.f32.mrf.mxu0
        %v7626 = vadd.f32 %v7613, %v7625
        %v7627 = vpop.f32.mrf.mxu0
        %7628 = vdwg.mxu0
        %7629 = vmatpush.bf16.msra.mxu0 %v5682
        %7630 = vmatpush.bf16.msra.mxu0 %v5674
        %7631 = vmatpush.bf16.msra.mxu0 %v5666
        %7632 = vmatpush.bf16.msra.mxu0 %v5658
        %7633 = vmatpush.bf16.msra.mxu0 %v5650
        %7634 = vmatpush.bf16.msra.mxu0 %v5642
        %7635 = vmatpush.bf16.msra.mxu0 %v5634
        %7636 = vmatpush.bf16.msra.mxu0 %v5626
        %7637 = vmatmul.bf16.gmra.mxu0 %v1953
        %v7638 = vpop.f32.mrf.mxu0
        %v7639 = vadd.f32 %v7626, %v7638
        %v7640 = vpop.f32.mrf.mxu0
        %7641 = vdwg.mxu0
        %7642 = vmatpush.bf16.msra.mxu0 %v5746
        %7643 = vmatpush.bf16.msra.mxu0 %v5738
        %7644 = vmatpush.bf16.msra.mxu0 %v5730
        %7645 = vmatpush.bf16.msra.mxu0 %v5722
        %7646 = vmatpush.bf16.msra.mxu0 %v5714
        %7647 = vmatpush.bf16.msra.mxu0 %v5706
        %7648 = vmatpush.bf16.msra.mxu0 %v5698
        %7649 = vmatpush.bf16.msra.mxu0 %v5690
        %7650 = vmatmul.bf16.gmra.mxu0 %v1954
        %v7651 = vpop.f32.mrf.mxu0
        %v7652 = vadd.f32 %v7639, %v7651
        %v7653 = vpop.f32.mrf.mxu0
        %7654 = vdwg.mxu0
        %7655 = vmatpush.bf16.msra.mxu0 %v5810
        %7656 = vmatpush.bf16.msra.mxu0 %v5802
        %7657 = vmatpush.bf16.msra.mxu0 %v5794
        %7658 = vmatpush.bf16.msra.mxu0 %v5786
        %7659 = vmatpush.bf16.msra.mxu0 %v5778
        %7660 = vmatpush.bf16.msra.mxu0 %v5770
        %7661 = vmatpush.bf16.msra.mxu0 %v5762
        %7662 = vmatpush.bf16.msra.mxu0 %v5754
        %7663 = vmatmul.bf16.gmra.mxu0 %v1955
        %v7664 = vpop.f32.mrf.mxu0
        %v7665 = vadd.f32 %v7652, %v7664
        %v7666 = vpop.f32.mrf.mxu0
        %7667 = vdwg.mxu0
        %7668 = vmatpush.bf16.msra.mxu0 %v5874
        %7669 = vmatpush.bf16.msra.mxu0 %v5866
        %7670 = vmatpush.bf16.msra.mxu0 %v5858
        %7671 = vmatpush.bf16.msra.mxu0 %v5850
        %7672 = vmatpush.bf16.msra.mxu0 %v5842
        %7673 = vmatpush.bf16.msra.mxu0 %v5834
        %7674 = vmatpush.bf16.msra.mxu0 %v5826
        %7675 = vmatpush.bf16.msra.mxu0 %v5818
        %7676 = vmatmul.bf16.gmra.mxu0 %v1956
        %v7677 = vpop.f32.mrf.mxu0
        %v7678 = vadd.f32 %v7665, %v7677
        %v7679 = vpop.f32.mrf.mxu0
        %7680 = vdwg.mxu0
        %7681 = vmatpush.bf16.msra.mxu0 %v5938
        %7682 = vmatpush.bf16.msra.mxu0 %v5930
        %7683 = vmatpush.bf16.msra.mxu0 %v5922
        %7684 = vmatpush.bf16.msra.mxu0 %v5914
        %7685 = vmatpush.bf16.msra.mxu0 %v5906
        %7686 = vmatpush.bf16.msra.mxu0 %v5898
        %7687 = vmatpush.bf16.msra.mxu0 %v5890
        %7688 = vmatpush.bf16.msra.mxu0 %v5882
        %7689 = vmatmul.bf16.gmra.mxu0 %v1957
        %v7690 = vpop.f32.mrf.mxu0
        %v7691 = vadd.f32 %v7678, %v7690
        %v7692 = vpop.f32.mrf.mxu0
        %7693 = vdwg.mxu0
        %7694 = vmatpush.bf16.msra.mxu0 %v6002
        %7695 = vmatpush.bf16.msra.mxu0 %v5994
        %7696 = vmatpush.bf16.msra.mxu0 %v5986
        %7697 = vmatpush.bf16.msra.mxu0 %v5978
        %7698 = vmatpush.bf16.msra.mxu0 %v5970
        %7699 = vmatpush.bf16.msra.mxu0 %v5962
        %7700 = vmatpush.bf16.msra.mxu0 %v5954
        %7701 = vmatpush.bf16.msra.mxu0 %v5946
        %7702 = vmatmul.bf16.gmra.mxu0 %v1958
        %v7703 = vpop.f32.mrf.mxu0
        %v7704 = vadd.f32 %v7691, %v7703
        %v7705 = vpop.f32.mrf.mxu0
        %7706 = vdwg.mxu0
        %7707 = vmatpush.bf16.msra.mxu0 %v6066
        %7708 = vmatpush.bf16.msra.mxu0 %v6058
        %7709 = vmatpush.bf16.msra.mxu0 %v6050
        %7710 = vmatpush.bf16.msra.mxu0 %v6042
        %7711 = vmatpush.bf16.msra.mxu0 %v6034
        %7712 = vmatpush.bf16.msra.mxu0 %v6026
        %7713 = vmatpush.bf16.msra.mxu0 %v6018
        %7714 = vmatpush.bf16.msra.mxu0 %v6010
        %7715 = vmatmul.bf16.gmra.mxu0 %v1959
        %v7716 = vpop.f32.mrf.mxu0
        %v7717 = vadd.f32 %v7704, %v7716
        %v7718 = vpop.f32.mrf.mxu0
        %7719 = vdwg.mxu0
        %7720 = vmatpush.bf16.msra.mxu0 %v5107
        %7721 = vmatpush.bf16.msra.mxu0 %v5099
        %7722 = vmatpush.bf16.msra.mxu0 %v5091
        %7723 = vmatpush.bf16.msra.mxu0 %v5083
        %7724 = vmatpush.bf16.msra.mxu0 %v5075
        %7725 = vmatpush.bf16.msra.mxu0 %v5067
        %7726 = vmatpush.bf16.msra.mxu0 %v5059
        %7727 = vmatpush.bf16.msra.mxu0 %v5051
        %7728 = vmatmul.bf16.gmra.mxu0 %v1944
        %v7729 = vpop.f32.mrf.mxu0
        %v7730 = vadd.f32 %v1907, %v7729
        %v7731 = vpop.f32.mrf.mxu0
        %7732 = vdwg.mxu0
        %7733 = vmatpush.bf16.msra.mxu0 %v5171
        %7734 = vmatpush.bf16.msra.mxu0 %v5163
        %7735 = vmatpush.bf16.msra.mxu0 %v5155
        %7736 = vmatpush.bf16.msra.mxu0 %v5147
        %7737 = vmatpush.bf16.msra.mxu0 %v5139
        %7738 = vmatpush.bf16.msra.mxu0 %v5131
        %7739 = vmatpush.bf16.msra.mxu0 %v5123
        %7740 = vmatpush.bf16.msra.mxu0 %v5115
        %7741 = vmatmul.bf16.gmra.mxu0 %v1945
        %v7742 = vpop.f32.mrf.mxu0
        %v7743 = vadd.f32 %v7730, %v7742
        %v7744 = vpop.f32.mrf.mxu0
        %7745 = vdwg.mxu0
        %7746 = vmatpush.bf16.msra.mxu0 %v5235
        %7747 = vmatpush.bf16.msra.mxu0 %v5227
        %7748 = vmatpush.bf16.msra.mxu0 %v5219
        %7749 = vmatpush.bf16.msra.mxu0 %v5211
        %7750 = vmatpush.bf16.msra.mxu0 %v5203
        %7751 = vmatpush.bf16.msra.mxu0 %v5195
        %7752 = vmatpush.bf16.msra.mxu0 %v5187
        %7753 = vmatpush.bf16.msra.mxu0 %v5179
        %7754 = vmatmul.bf16.gmra.mxu0 %v1946
        %v7755 = vpop.f32.mrf.mxu0
        %v7756 = vadd.f32 %v7743, %v7755
        %v7757 = vpop.f32.mrf.mxu0
        %7758 = vdwg.mxu0
        %7759 = vmatpush.bf16.msra.mxu0 %v5299
        %7760 = vmatpush.bf16.msra.mxu0 %v5291
        %7761 = vmatpush.bf16.msra.mxu0 %v5283
        %7762 = vmatpush.bf16.msra.mxu0 %v5275
        %7763 = vmatpush.bf16.msra.mxu0 %v5267
        %7764 = vmatpush.bf16.msra.mxu0 %v5259
        %7765 = vmatpush.bf16.msra.mxu0 %v5251
        %7766 = vmatpush.bf16.msra.mxu0 %v5243
        %7767 = vmatmul.bf16.gmra.mxu0 %v1947
        %v7768 = vpop.f32.mrf.mxu0
        %v7769 = vadd.f32 %v7756, %v7768
        %v7770 = vpop.f32.mrf.mxu0
        %7771 = vdwg.mxu0
        %7772 = vmatpush.bf16.msra.mxu0 %v5363
        %7773 = vmatpush.bf16.msra.mxu0 %v5355
        %7774 = vmatpush.bf16.msra.mxu0 %v5347
        %7775 = vmatpush.bf16.msra.mxu0 %v5339
        %7776 = vmatpush.bf16.msra.mxu0 %v5331
        %7777 = vmatpush.bf16.msra.mxu0 %v5323
        %7778 = vmatpush.bf16.msra.mxu0 %v5315
        %7779 = vmatpush.bf16.msra.mxu0 %v5307
        %7780 = vmatmul.bf16.gmra.mxu0 %v1948
        %v7781 = vpop.f32.mrf.mxu0
        %v7782 = vadd.f32 %v7769, %v7781
        %v7783 = vpop.f32.mrf.mxu0
        %7784 = vdwg.mxu0
        %7785 = vmatpush.bf16.msra.mxu0 %v5427
        %7786 = vmatpush.bf16.msra.mxu0 %v5419
        %7787 = vmatpush.bf16.msra.mxu0 %v5411
        %7788 = vmatpush.bf16.msra.mxu0 %v5403
        %7789 = vmatpush.bf16.msra.mxu0 %v5395
        %7790 = vmatpush.bf16.msra.mxu0 %v5387
        %7791 = vmatpush.bf16.msra.mxu0 %v5379
        %7792 = vmatpush.bf16.msra.mxu0 %v5371
        %7793 = vmatmul.bf16.gmra.mxu0 %v1949
        %v7794 = vpop.f32.mrf.mxu0
        %v7795 = vadd.f32 %v7782, %v7794
        %v7796 = vpop.f32.mrf.mxu0
        %7797 = vdwg.mxu0
        %7798 = vmatpush.bf16.msra.mxu0 %v5491
        %7799 = vmatpush.bf16.msra.mxu0 %v5483
        %7800 = vmatpush.bf16.msra.mxu0 %v5475
        %7801 = vmatpush.bf16.msra.mxu0 %v5467
        %7802 = vmatpush.bf16.msra.mxu0 %v5459
        %7803 = vmatpush.bf16.msra.mxu0 %v5451
        %7804 = vmatpush.bf16.msra.mxu0 %v5443
        %7805 = vmatpush.bf16.msra.mxu0 %v5435
        %7806 = vmatmul.bf16.gmra.mxu0 %v1950
        %v7807 = vpop.f32.mrf.mxu0
        %v7808 = vadd.f32 %v7795, %v7807
        %v7809 = vpop.f32.mrf.mxu0
        %7810 = vdwg.mxu0
        %7811 = vmatpush.bf16.msra.mxu0 %v5555
        %7812 = vmatpush.bf16.msra.mxu0 %v5547
        %7813 = vmatpush.bf16.msra.mxu0 %v5539
        %7814 = vmatpush.bf16.msra.mxu0 %v5531
        %7815 = vmatpush.bf16.msra.mxu0 %v5523
        %7816 = vmatpush.bf16.msra.mxu0 %v5515
        %7817 = vmatpush.bf16.msra.mxu0 %v5507
        %7818 = vmatpush.bf16.msra.mxu0 %v5499
        %7819 = vmatmul.bf16.gmra.mxu0 %v1951
        %v7820 = vpop.f32.mrf.mxu0
        %v7821 = vadd.f32 %v7808, %v7820
        %v7822 = vpop.f32.mrf.mxu0
        %7823 = vdwg.mxu0
        %7824 = vmatpush.bf16.msra.mxu0 %v5619
        %7825 = vmatpush.bf16.msra.mxu0 %v5611
        %7826 = vmatpush.bf16.msra.mxu0 %v5603
        %7827 = vmatpush.bf16.msra.mxu0 %v5595
        %7828 = vmatpush.bf16.msra.mxu0 %v5587
        %7829 = vmatpush.bf16.msra.mxu0 %v5579
        %7830 = vmatpush.bf16.msra.mxu0 %v5571
        %7831 = vmatpush.bf16.msra.mxu0 %v5563
        %7832 = vmatmul.bf16.gmra.mxu0 %v1952
        %v7833 = vpop.f32.mrf.mxu0
        %v7834 = vadd.f32 %v7821, %v7833
        %v7835 = vpop.f32.mrf.mxu0
        %7836 = vdwg.mxu0
        %7837 = vmatpush.bf16.msra.mxu0 %v5683
        %7838 = vmatpush.bf16.msra.mxu0 %v5675
        %7839 = vmatpush.bf16.msra.mxu0 %v5667
        %7840 = vmatpush.bf16.msra.mxu0 %v5659
        %7841 = vmatpush.bf16.msra.mxu0 %v5651
        %7842 = vmatpush.bf16.msra.mxu0 %v5643
        %7843 = vmatpush.bf16.msra.mxu0 %v5635
        %7844 = vmatpush.bf16.msra.mxu0 %v5627
        %7845 = vmatmul.bf16.gmra.mxu0 %v1953
        %v7846 = vpop.f32.mrf.mxu0
        %v7847 = vadd.f32 %v7834, %v7846
        %v7848 = vpop.f32.mrf.mxu0
        %7849 = vdwg.mxu0
        %7850 = vmatpush.bf16.msra.mxu0 %v5747
        %7851 = vmatpush.bf16.msra.mxu0 %v5739
        %7852 = vmatpush.bf16.msra.mxu0 %v5731
        %7853 = vmatpush.bf16.msra.mxu0 %v5723
        %7854 = vmatpush.bf16.msra.mxu0 %v5715
        %7855 = vmatpush.bf16.msra.mxu0 %v5707
        %7856 = vmatpush.bf16.msra.mxu0 %v5699
        %7857 = vmatpush.bf16.msra.mxu0 %v5691
        %7858 = vmatmul.bf16.gmra.mxu0 %v1954
        %v7859 = vpop.f32.mrf.mxu0
        %v7860 = vadd.f32 %v7847, %v7859
        %v7861 = vpop.f32.mrf.mxu0
        %7862 = vdwg.mxu0
        %7863 = vmatpush.bf16.msra.mxu0 %v5811
        %7864 = vmatpush.bf16.msra.mxu0 %v5803
        %7865 = vmatpush.bf16.msra.mxu0 %v5795
        %7866 = vmatpush.bf16.msra.mxu0 %v5787
        %7867 = vmatpush.bf16.msra.mxu0 %v5779
        %7868 = vmatpush.bf16.msra.mxu0 %v5771
        %7869 = vmatpush.bf16.msra.mxu0 %v5763
        %7870 = vmatpush.bf16.msra.mxu0 %v5755
        %7871 = vmatmul.bf16.gmra.mxu0 %v1955
        %v7872 = vpop.f32.mrf.mxu0
        %v7873 = vadd.f32 %v7860, %v7872
        %v7874 = vpop.f32.mrf.mxu0
        %7875 = vdwg.mxu0
        %7876 = vmatpush.bf16.msra.mxu0 %v5875
        %7877 = vmatpush.bf16.msra.mxu0 %v5867
        %7878 = vmatpush.bf16.msra.mxu0 %v5859
        %7879 = vmatpush.bf16.msra.mxu0 %v5851
        %7880 = vmatpush.bf16.msra.mxu0 %v5843
        %7881 = vmatpush.bf16.msra.mxu0 %v5835
        %7882 = vmatpush.bf16.msra.mxu0 %v5827
        %7883 = vmatpush.bf16.msra.mxu0 %v5819
        %7884 = vmatmul.bf16.gmra.mxu0 %v1956
        %v7885 = vpop.f32.mrf.mxu0
        %v7886 = vadd.f32 %v7873, %v7885
        %v7887 = vpop.f32.mrf.mxu0
        %7888 = vdwg.mxu0
        %7889 = vmatpush.bf16.msra.mxu0 %v5939
        %7890 = vmatpush.bf16.msra.mxu0 %v5931
        %7891 = vmatpush.bf16.msra.mxu0 %v5923
        %7892 = vmatpush.bf16.msra.mxu0 %v5915
        %7893 = vmatpush.bf16.msra.mxu0 %v5907
        %7894 = vmatpush.bf16.msra.mxu0 %v5899
        %7895 = vmatpush.bf16.msra.mxu0 %v5891
        %7896 = vmatpush.bf16.msra.mxu0 %v5883
        %7897 = vmatmul.bf16.gmra.mxu0 %v1957
        %v7898 = vpop.f32.mrf.mxu0
        %v7899 = vadd.f32 %v7886, %v7898
        %v7900 = vpop.f32.mrf.mxu0
        %7901 = vdwg.mxu0
        %7902 = vmatpush.bf16.msra.mxu0 %v6003
        %7903 = vmatpush.bf16.msra.mxu0 %v5995
        %7904 = vmatpush.bf16.msra.mxu0 %v5987
        %7905 = vmatpush.bf16.msra.mxu0 %v5979
        %7906 = vmatpush.bf16.msra.mxu0 %v5971
        %7907 = vmatpush.bf16.msra.mxu0 %v5963
        %7908 = vmatpush.bf16.msra.mxu0 %v5955
        %7909 = vmatpush.bf16.msra.mxu0 %v5947
        %7910 = vmatmul.bf16.gmra.mxu0 %v1958
        %v7911 = vpop.f32.mrf.mxu0
        %v7912 = vadd.f32 %v7899, %v7911
        %v7913 = vpop.f32.mrf.mxu0
        %7914 = vdwg.mxu0
        %7915 = vmatpush.bf16.msra.mxu0 %v6067
        %7916 = vmatpush.bf16.msra.mxu0 %v6059
        %7917 = vmatpush.bf16.msra.mxu0 %v6051
        %7918 = vmatpush.bf16.msra.mxu0 %v6043
        %7919 = vmatpush.bf16.msra.mxu0 %v6035
        %7920 = vmatpush.bf16.msra.mxu0 %v6027
        %7921 = vmatpush.bf16.msra.mxu0 %v6019
        %7922 = vmatpush.bf16.msra.mxu0 %v6011
        %7923 = vmatmul.bf16.gmra.mxu0 %v1959
        %v7924 = vpop.f32.mrf.mxu0
        %v7925 = vadd.f32 %v7912, %v7924
        %v7926 = vpop.f32.mrf.mxu0
        %7927 = vdwg.mxu0
        %7928 = vmatpush.bf16.msra.mxu0 %v5108
        %7929 = vmatpush.bf16.msra.mxu0 %v5100
        %7930 = vmatpush.bf16.msra.mxu0 %v5092
        %7931 = vmatpush.bf16.msra.mxu0 %v5084
        %7932 = vmatpush.bf16.msra.mxu0 %v5076
        %7933 = vmatpush.bf16.msra.mxu0 %v5068
        %7934 = vmatpush.bf16.msra.mxu0 %v5060
        %7935 = vmatpush.bf16.msra.mxu0 %v5052
        %7936 = vmatmul.bf16.gmra.mxu0 %v1944
        %v7937 = vpop.f32.mrf.mxu0
        %v7938 = vadd.f32 %v1908, %v7937
        %v7939 = vpop.f32.mrf.mxu0
        %7940 = vdwg.mxu0
        %7941 = vmatpush.bf16.msra.mxu0 %v5172
        %7942 = vmatpush.bf16.msra.mxu0 %v5164
        %7943 = vmatpush.bf16.msra.mxu0 %v5156
        %7944 = vmatpush.bf16.msra.mxu0 %v5148
        %7945 = vmatpush.bf16.msra.mxu0 %v5140
        %7946 = vmatpush.bf16.msra.mxu0 %v5132
        %7947 = vmatpush.bf16.msra.mxu0 %v5124
        %7948 = vmatpush.bf16.msra.mxu0 %v5116
        %7949 = vmatmul.bf16.gmra.mxu0 %v1945
        %v7950 = vpop.f32.mrf.mxu0
        %v7951 = vadd.f32 %v7938, %v7950
        %v7952 = vpop.f32.mrf.mxu0
        %7953 = vdwg.mxu0
        %7954 = vmatpush.bf16.msra.mxu0 %v5236
        %7955 = vmatpush.bf16.msra.mxu0 %v5228
        %7956 = vmatpush.bf16.msra.mxu0 %v5220
        %7957 = vmatpush.bf16.msra.mxu0 %v5212
        %7958 = vmatpush.bf16.msra.mxu0 %v5204
        %7959 = vmatpush.bf16.msra.mxu0 %v5196
        %7960 = vmatpush.bf16.msra.mxu0 %v5188
        %7961 = vmatpush.bf16.msra.mxu0 %v5180
        %7962 = vmatmul.bf16.gmra.mxu0 %v1946
        %v7963 = vpop.f32.mrf.mxu0
        %v7964 = vadd.f32 %v7951, %v7963
        %v7965 = vpop.f32.mrf.mxu0
        %7966 = vdwg.mxu0
        %7967 = vmatpush.bf16.msra.mxu0 %v5300
        %7968 = vmatpush.bf16.msra.mxu0 %v5292
        %7969 = vmatpush.bf16.msra.mxu0 %v5284
        %7970 = vmatpush.bf16.msra.mxu0 %v5276
        %7971 = vmatpush.bf16.msra.mxu0 %v5268
        %7972 = vmatpush.bf16.msra.mxu0 %v5260
        %7973 = vmatpush.bf16.msra.mxu0 %v5252
        %7974 = vmatpush.bf16.msra.mxu0 %v5244
        %7975 = vmatmul.bf16.gmra.mxu0 %v1947
        %v7976 = vpop.f32.mrf.mxu0
        %v7977 = vadd.f32 %v7964, %v7976
        %v7978 = vpop.f32.mrf.mxu0
        %7979 = vdwg.mxu0
        %7980 = vmatpush.bf16.msra.mxu0 %v5364
        %7981 = vmatpush.bf16.msra.mxu0 %v5356
        %7982 = vmatpush.bf16.msra.mxu0 %v5348
        %7983 = vmatpush.bf16.msra.mxu0 %v5340
        %7984 = vmatpush.bf16.msra.mxu0 %v5332
        %7985 = vmatpush.bf16.msra.mxu0 %v5324
        %7986 = vmatpush.bf16.msra.mxu0 %v5316
        %7987 = vmatpush.bf16.msra.mxu0 %v5308
        %7988 = vmatmul.bf16.gmra.mxu0 %v1948
        %v7989 = vpop.f32.mrf.mxu0
        %v7990 = vadd.f32 %v7977, %v7989
        %v7991 = vpop.f32.mrf.mxu0
        %7992 = vdwg.mxu0
        %7993 = vmatpush.bf16.msra.mxu0 %v5428
        %7994 = vmatpush.bf16.msra.mxu0 %v5420
        %7995 = vmatpush.bf16.msra.mxu0 %v5412
        %7996 = vmatpush.bf16.msra.mxu0 %v5404
        %7997 = vmatpush.bf16.msra.mxu0 %v5396
        %7998 = vmatpush.bf16.msra.mxu0 %v5388
        %7999 = vmatpush.bf16.msra.mxu0 %v5380
        %8000 = vmatpush.bf16.msra.mxu0 %v5372
        %8001 = vmatmul.bf16.gmra.mxu0 %v1949
        %v8002 = vpop.f32.mrf.mxu0
        %v8003 = vadd.f32 %v7990, %v8002
        %v8004 = vpop.f32.mrf.mxu0
        %8005 = vdwg.mxu0
        %8006 = vmatpush.bf16.msra.mxu0 %v5492
        %8007 = vmatpush.bf16.msra.mxu0 %v5484
        %8008 = vmatpush.bf16.msra.mxu0 %v5476
        %8009 = vmatpush.bf16.msra.mxu0 %v5468
        %8010 = vmatpush.bf16.msra.mxu0 %v5460
        %8011 = vmatpush.bf16.msra.mxu0 %v5452
        %8012 = vmatpush.bf16.msra.mxu0 %v5444
        %8013 = vmatpush.bf16.msra.mxu0 %v5436
        %8014 = vmatmul.bf16.gmra.mxu0 %v1950
        %v8015 = vpop.f32.mrf.mxu0
        %v8016 = vadd.f32 %v8003, %v8015
        %v8017 = vpop.f32.mrf.mxu0
        %8018 = vdwg.mxu0
        %8019 = vmatpush.bf16.msra.mxu0 %v5556
        %8020 = vmatpush.bf16.msra.mxu0 %v5548
        %8021 = vmatpush.bf16.msra.mxu0 %v5540
        %8022 = vmatpush.bf16.msra.mxu0 %v5532
        %8023 = vmatpush.bf16.msra.mxu0 %v5524
        %8024 = vmatpush.bf16.msra.mxu0 %v5516
        %8025 = vmatpush.bf16.msra.mxu0 %v5508
        %8026 = vmatpush.bf16.msra.mxu0 %v5500
        %8027 = vmatmul.bf16.gmra.mxu0 %v1951
        %v8028 = vpop.f32.mrf.mxu0
        %v8029 = vadd.f32 %v8016, %v8028
        %v8030 = vpop.f32.mrf.mxu0
        %8031 = vdwg.mxu0
        %8032 = vmatpush.bf16.msra.mxu0 %v5620
        %8033 = vmatpush.bf16.msra.mxu0 %v5612
        %8034 = vmatpush.bf16.msra.mxu0 %v5604
        %8035 = vmatpush.bf16.msra.mxu0 %v5596
        %8036 = vmatpush.bf16.msra.mxu0 %v5588
        %8037 = vmatpush.bf16.msra.mxu0 %v5580
        %8038 = vmatpush.bf16.msra.mxu0 %v5572
        %8039 = vmatpush.bf16.msra.mxu0 %v5564
        %8040 = vmatmul.bf16.gmra.mxu0 %v1952
        %v8041 = vpop.f32.mrf.mxu0
        %v8042 = vadd.f32 %v8029, %v8041
        %v8043 = vpop.f32.mrf.mxu0
        %8044 = vdwg.mxu0
        %8045 = vmatpush.bf16.msra.mxu0 %v5684
        %8046 = vmatpush.bf16.msra.mxu0 %v5676
        %8047 = vmatpush.bf16.msra.mxu0 %v5668
        %8048 = vmatpush.bf16.msra.mxu0 %v5660
        %8049 = vmatpush.bf16.msra.mxu0 %v5652
        %8050 = vmatpush.bf16.msra.mxu0 %v5644
        %8051 = vmatpush.bf16.msra.mxu0 %v5636
        %8052 = vmatpush.bf16.msra.mxu0 %v5628
        %8053 = vmatmul.bf16.gmra.mxu0 %v1953
        %v8054 = vpop.f32.mrf.mxu0
        %v8055 = vadd.f32 %v8042, %v8054
        %v8056 = vpop.f32.mrf.mxu0
        %8057 = vdwg.mxu0
        %8058 = vmatpush.bf16.msra.mxu0 %v5748
        %8059 = vmatpush.bf16.msra.mxu0 %v5740
        %8060 = vmatpush.bf16.msra.mxu0 %v5732
        %8061 = vmatpush.bf16.msra.mxu0 %v5724
        %8062 = vmatpush.bf16.msra.mxu0 %v5716
        %8063 = vmatpush.bf16.msra.mxu0 %v5708
        %8064 = vmatpush.bf16.msra.mxu0 %v5700
        %8065 = vmatpush.bf16.msra.mxu0 %v5692
        %8066 = vmatmul.bf16.gmra.mxu0 %v1954
        %v8067 = vpop.f32.mrf.mxu0
        %v8068 = vadd.f32 %v8055, %v8067
        %v8069 = vpop.f32.mrf.mxu0
        %8070 = vdwg.mxu0
        %8071 = vmatpush.bf16.msra.mxu0 %v5812
        %8072 = vmatpush.bf16.msra.mxu0 %v5804
        %8073 = vmatpush.bf16.msra.mxu0 %v5796
        %8074 = vmatpush.bf16.msra.mxu0 %v5788
        %8075 = vmatpush.bf16.msra.mxu0 %v5780
        %8076 = vmatpush.bf16.msra.mxu0 %v5772
        %8077 = vmatpush.bf16.msra.mxu0 %v5764
        %8078 = vmatpush.bf16.msra.mxu0 %v5756
        %8079 = vmatmul.bf16.gmra.mxu0 %v1955
        %v8080 = vpop.f32.mrf.mxu0
        %v8081 = vadd.f32 %v8068, %v8080
        %v8082 = vpop.f32.mrf.mxu0
        %8083 = vdwg.mxu0
        %8084 = vmatpush.bf16.msra.mxu0 %v5876
        %8085 = vmatpush.bf16.msra.mxu0 %v5868
        %8086 = vmatpush.bf16.msra.mxu0 %v5860
        %8087 = vmatpush.bf16.msra.mxu0 %v5852
        %8088 = vmatpush.bf16.msra.mxu0 %v5844
        %8089 = vmatpush.bf16.msra.mxu0 %v5836
        %8090 = vmatpush.bf16.msra.mxu0 %v5828
        %8091 = vmatpush.bf16.msra.mxu0 %v5820
        %8092 = vmatmul.bf16.gmra.mxu0 %v1956
        %v8093 = vpop.f32.mrf.mxu0
        %v8094 = vadd.f32 %v8081, %v8093
        %v8095 = vpop.f32.mrf.mxu0
        %8096 = vdwg.mxu0
        %8097 = vmatpush.bf16.msra.mxu0 %v5940
        %8098 = vmatpush.bf16.msra.mxu0 %v5932
        %8099 = vmatpush.bf16.msra.mxu0 %v5924
        %8100 = vmatpush.bf16.msra.mxu0 %v5916
        %8101 = vmatpush.bf16.msra.mxu0 %v5908
        %8102 = vmatpush.bf16.msra.mxu0 %v5900
        %8103 = vmatpush.bf16.msra.mxu0 %v5892
        %8104 = vmatpush.bf16.msra.mxu0 %v5884
        %8105 = vmatmul.bf16.gmra.mxu0 %v1957
        %v8106 = vpop.f32.mrf.mxu0
        %v8107 = vadd.f32 %v8094, %v8106
        %v8108 = vpop.f32.mrf.mxu0
        %8109 = vdwg.mxu0
        %8110 = vmatpush.bf16.msra.mxu0 %v6004
        %8111 = vmatpush.bf16.msra.mxu0 %v5996
        %8112 = vmatpush.bf16.msra.mxu0 %v5988
        %8113 = vmatpush.bf16.msra.mxu0 %v5980
        %8114 = vmatpush.bf16.msra.mxu0 %v5972
        %8115 = vmatpush.bf16.msra.mxu0 %v5964
        %8116 = vmatpush.bf16.msra.mxu0 %v5956
        %8117 = vmatpush.bf16.msra.mxu0 %v5948
        %8118 = vmatmul.bf16.gmra.mxu0 %v1958
        %v8119 = vpop.f32.mrf.mxu0
        %v8120 = vadd.f32 %v8107, %v8119
        %v8121 = vpop.f32.mrf.mxu0
        %8122 = vdwg.mxu0
        %8123 = vmatpush.bf16.msra.mxu0 %v6068
        %8124 = vmatpush.bf16.msra.mxu0 %v6060
        %8125 = vmatpush.bf16.msra.mxu0 %v6052
        %8126 = vmatpush.bf16.msra.mxu0 %v6044
        %8127 = vmatpush.bf16.msra.mxu0 %v6036
        %8128 = vmatpush.bf16.msra.mxu0 %v6028
        %8129 = vmatpush.bf16.msra.mxu0 %v6020
        %8130 = vmatpush.bf16.msra.mxu0 %v6012
        %8131 = vmatmul.bf16.gmra.mxu0 %v1959
        %v8132 = vpop.f32.mrf.mxu0
        %v8133 = vadd.f32 %v8120, %v8132
        %v8134 = vpop.f32.mrf.mxu0
        %8135 = vdwg.mxu0
        %8136 = vmatpush.bf16.msra.mxu0 %v5109
        %8137 = vmatpush.bf16.msra.mxu0 %v5101
        %8138 = vmatpush.bf16.msra.mxu0 %v5093
        %8139 = vmatpush.bf16.msra.mxu0 %v5085
        %8140 = vmatpush.bf16.msra.mxu0 %v5077
        %8141 = vmatpush.bf16.msra.mxu0 %v5069
        %8142 = vmatpush.bf16.msra.mxu0 %v5061
        %8143 = vmatpush.bf16.msra.mxu0 %v5053
        %8144 = vmatmul.bf16.gmra.mxu0 %v1944
        %v8145 = vpop.f32.mrf.mxu0
        %v8146 = vadd.f32 %v1909, %v8145
        %v8147 = vpop.f32.mrf.mxu0
        %8148 = vdwg.mxu0
        %8149 = vmatpush.bf16.msra.mxu0 %v5173
        %8150 = vmatpush.bf16.msra.mxu0 %v5165
        %8151 = vmatpush.bf16.msra.mxu0 %v5157
        %8152 = vmatpush.bf16.msra.mxu0 %v5149
        %8153 = vmatpush.bf16.msra.mxu0 %v5141
        %8154 = vmatpush.bf16.msra.mxu0 %v5133
        %8155 = vmatpush.bf16.msra.mxu0 %v5125
        %8156 = vmatpush.bf16.msra.mxu0 %v5117
        %8157 = vmatmul.bf16.gmra.mxu0 %v1945
        %v8158 = vpop.f32.mrf.mxu0
        %v8159 = vadd.f32 %v8146, %v8158
        %v8160 = vpop.f32.mrf.mxu0
        %8161 = vdwg.mxu0
        %8162 = vmatpush.bf16.msra.mxu0 %v5237
        %8163 = vmatpush.bf16.msra.mxu0 %v5229
        %8164 = vmatpush.bf16.msra.mxu0 %v5221
        %8165 = vmatpush.bf16.msra.mxu0 %v5213
        %8166 = vmatpush.bf16.msra.mxu0 %v5205
        %8167 = vmatpush.bf16.msra.mxu0 %v5197
        %8168 = vmatpush.bf16.msra.mxu0 %v5189
        %8169 = vmatpush.bf16.msra.mxu0 %v5181
        %8170 = vmatmul.bf16.gmra.mxu0 %v1946
        %v8171 = vpop.f32.mrf.mxu0
        %v8172 = vadd.f32 %v8159, %v8171
        %v8173 = vpop.f32.mrf.mxu0
        %8174 = vdwg.mxu0
        %8175 = vmatpush.bf16.msra.mxu0 %v5301
        %8176 = vmatpush.bf16.msra.mxu0 %v5293
        %8177 = vmatpush.bf16.msra.mxu0 %v5285
        %8178 = vmatpush.bf16.msra.mxu0 %v5277
        %8179 = vmatpush.bf16.msra.mxu0 %v5269
        %8180 = vmatpush.bf16.msra.mxu0 %v5261
        %8181 = vmatpush.bf16.msra.mxu0 %v5253
        %8182 = vmatpush.bf16.msra.mxu0 %v5245
        %8183 = vmatmul.bf16.gmra.mxu0 %v1947
        %v8184 = vpop.f32.mrf.mxu0
        %v8185 = vadd.f32 %v8172, %v8184
        %v8186 = vpop.f32.mrf.mxu0
        %8187 = vdwg.mxu0
        %8188 = vmatpush.bf16.msra.mxu0 %v5365
        %8189 = vmatpush.bf16.msra.mxu0 %v5357
        %8190 = vmatpush.bf16.msra.mxu0 %v5349
        %8191 = vmatpush.bf16.msra.mxu0 %v5341
        %8192 = vmatpush.bf16.msra.mxu0 %v5333
        %8193 = vmatpush.bf16.msra.mxu0 %v5325
        %8194 = vmatpush.bf16.msra.mxu0 %v5317
        %8195 = vmatpush.bf16.msra.mxu0 %v5309
        %8196 = vmatmul.bf16.gmra.mxu0 %v1948
        %v8197 = vpop.f32.mrf.mxu0
        %v8198 = vadd.f32 %v8185, %v8197
        %v8199 = vpop.f32.mrf.mxu0
        %8200 = vdwg.mxu0
        %8201 = vmatpush.bf16.msra.mxu0 %v5429
        %8202 = vmatpush.bf16.msra.mxu0 %v5421
        %8203 = vmatpush.bf16.msra.mxu0 %v5413
        %8204 = vmatpush.bf16.msra.mxu0 %v5405
        %8205 = vmatpush.bf16.msra.mxu0 %v5397
        %8206 = vmatpush.bf16.msra.mxu0 %v5389
        %8207 = vmatpush.bf16.msra.mxu0 %v5381
        %8208 = vmatpush.bf16.msra.mxu0 %v5373
        %8209 = vmatmul.bf16.gmra.mxu0 %v1949
        %v8210 = vpop.f32.mrf.mxu0
        %v8211 = vadd.f32 %v8198, %v8210
        %v8212 = vpop.f32.mrf.mxu0
        %8213 = vdwg.mxu0
        %8214 = vmatpush.bf16.msra.mxu0 %v5493
        %8215 = vmatpush.bf16.msra.mxu0 %v5485
        %8216 = vmatpush.bf16.msra.mxu0 %v5477
        %8217 = vmatpush.bf16.msra.mxu0 %v5469
        %8218 = vmatpush.bf16.msra.mxu0 %v5461
        %8219 = vmatpush.bf16.msra.mxu0 %v5453
        %8220 = vmatpush.bf16.msra.mxu0 %v5445
        %8221 = vmatpush.bf16.msra.mxu0 %v5437
        %8222 = vmatmul.bf16.gmra.mxu0 %v1950
        %v8223 = vpop.f32.mrf.mxu0
        %v8224 = vadd.f32 %v8211, %v8223
        %v8225 = vpop.f32.mrf.mxu0
        %8226 = vdwg.mxu0
        %8227 = vmatpush.bf16.msra.mxu0 %v5557
        %8228 = vmatpush.bf16.msra.mxu0 %v5549
        %8229 = vmatpush.bf16.msra.mxu0 %v5541
        %8230 = vmatpush.bf16.msra.mxu0 %v5533
        %8231 = vmatpush.bf16.msra.mxu0 %v5525
        %8232 = vmatpush.bf16.msra.mxu0 %v5517
        %8233 = vmatpush.bf16.msra.mxu0 %v5509
        %8234 = vmatpush.bf16.msra.mxu0 %v5501
        %8235 = vmatmul.bf16.gmra.mxu0 %v1951
        %v8236 = vpop.f32.mrf.mxu0
        %v8237 = vadd.f32 %v8224, %v8236
        %v8238 = vpop.f32.mrf.mxu0
        %8239 = vdwg.mxu0
        %8240 = vmatpush.bf16.msra.mxu0 %v5621
        %8241 = vmatpush.bf16.msra.mxu0 %v5613
        %8242 = vmatpush.bf16.msra.mxu0 %v5605
        %8243 = vmatpush.bf16.msra.mxu0 %v5597
        %8244 = vmatpush.bf16.msra.mxu0 %v5589
        %8245 = vmatpush.bf16.msra.mxu0 %v5581
        %8246 = vmatpush.bf16.msra.mxu0 %v5573
        %8247 = vmatpush.bf16.msra.mxu0 %v5565
        %8248 = vmatmul.bf16.gmra.mxu0 %v1952
        %v8249 = vpop.f32.mrf.mxu0
        %v8250 = vadd.f32 %v8237, %v8249
        %v8251 = vpop.f32.mrf.mxu0
        %8252 = vdwg.mxu0
        %8253 = vmatpush.bf16.msra.mxu0 %v5685
        %8254 = vmatpush.bf16.msra.mxu0 %v5677
        %8255 = vmatpush.bf16.msra.mxu0 %v5669
        %8256 = vmatpush.bf16.msra.mxu0 %v5661
        %8257 = vmatpush.bf16.msra.mxu0 %v5653
        %8258 = vmatpush.bf16.msra.mxu0 %v5645
        %8259 = vmatpush.bf16.msra.mxu0 %v5637
        %8260 = vmatpush.bf16.msra.mxu0 %v5629
        %8261 = vmatmul.bf16.gmra.mxu0 %v1953
        %v8262 = vpop.f32.mrf.mxu0
        %v8263 = vadd.f32 %v8250, %v8262
        %v8264 = vpop.f32.mrf.mxu0
        %8265 = vdwg.mxu0
        %8266 = vmatpush.bf16.msra.mxu0 %v5749
        %8267 = vmatpush.bf16.msra.mxu0 %v5741
        %8268 = vmatpush.bf16.msra.mxu0 %v5733
        %8269 = vmatpush.bf16.msra.mxu0 %v5725
        %8270 = vmatpush.bf16.msra.mxu0 %v5717
        %8271 = vmatpush.bf16.msra.mxu0 %v5709
        %8272 = vmatpush.bf16.msra.mxu0 %v5701
        %8273 = vmatpush.bf16.msra.mxu0 %v5693
        %8274 = vmatmul.bf16.gmra.mxu0 %v1954
        %v8275 = vpop.f32.mrf.mxu0
        %v8276 = vadd.f32 %v8263, %v8275
        %v8277 = vpop.f32.mrf.mxu0
        %8278 = vdwg.mxu0
        %8279 = vmatpush.bf16.msra.mxu0 %v5813
        %8280 = vmatpush.bf16.msra.mxu0 %v5805
        %8281 = vmatpush.bf16.msra.mxu0 %v5797
        %8282 = vmatpush.bf16.msra.mxu0 %v5789
        %8283 = vmatpush.bf16.msra.mxu0 %v5781
        %8284 = vmatpush.bf16.msra.mxu0 %v5773
        %8285 = vmatpush.bf16.msra.mxu0 %v5765
        %8286 = vmatpush.bf16.msra.mxu0 %v5757
        %8287 = vmatmul.bf16.gmra.mxu0 %v1955
        %v8288 = vpop.f32.mrf.mxu0
        %v8289 = vadd.f32 %v8276, %v8288
        %v8290 = vpop.f32.mrf.mxu0
        %8291 = vdwg.mxu0
        %8292 = vmatpush.bf16.msra.mxu0 %v5877
        %8293 = vmatpush.bf16.msra.mxu0 %v5869
        %8294 = vmatpush.bf16.msra.mxu0 %v5861
        %8295 = vmatpush.bf16.msra.mxu0 %v5853
        %8296 = vmatpush.bf16.msra.mxu0 %v5845
        %8297 = vmatpush.bf16.msra.mxu0 %v5837
        %8298 = vmatpush.bf16.msra.mxu0 %v5829
        %8299 = vmatpush.bf16.msra.mxu0 %v5821
        %8300 = vmatmul.bf16.gmra.mxu0 %v1956
        %v8301 = vpop.f32.mrf.mxu0
        %v8302 = vadd.f32 %v8289, %v8301
        %v8303 = vpop.f32.mrf.mxu0
        %8304 = vdwg.mxu0
        %8305 = vmatpush.bf16.msra.mxu0 %v5941
        %8306 = vmatpush.bf16.msra.mxu0 %v5933
        %8307 = vmatpush.bf16.msra.mxu0 %v5925
        %8308 = vmatpush.bf16.msra.mxu0 %v5917
        %8309 = vmatpush.bf16.msra.mxu0 %v5909
        %8310 = vmatpush.bf16.msra.mxu0 %v5901
        %8311 = vmatpush.bf16.msra.mxu0 %v5893
        %8312 = vmatpush.bf16.msra.mxu0 %v5885
        %8313 = vmatmul.bf16.gmra.mxu0 %v1957
        %v8314 = vpop.f32.mrf.mxu0
        %v8315 = vadd.f32 %v8302, %v8314
        %v8316 = vpop.f32.mrf.mxu0
        %8317 = vdwg.mxu0
        %8318 = vmatpush.bf16.msra.mxu0 %v6005
        %8319 = vmatpush.bf16.msra.mxu0 %v5997
        %8320 = vmatpush.bf16.msra.mxu0 %v5989
        %8321 = vmatpush.bf16.msra.mxu0 %v5981
        %8322 = vmatpush.bf16.msra.mxu0 %v5973
        %8323 = vmatpush.bf16.msra.mxu0 %v5965
        %8324 = vmatpush.bf16.msra.mxu0 %v5957
        %8325 = vmatpush.bf16.msra.mxu0 %v5949
        %8326 = vmatmul.bf16.gmra.mxu0 %v1958
        %v8327 = vpop.f32.mrf.mxu0
        %v8328 = vadd.f32 %v8315, %v8327
        %v8329 = vpop.f32.mrf.mxu0
        %8330 = vdwg.mxu0
        %8331 = vmatpush.bf16.msra.mxu0 %v6069
        %8332 = vmatpush.bf16.msra.mxu0 %v6061
        %8333 = vmatpush.bf16.msra.mxu0 %v6053
        %8334 = vmatpush.bf16.msra.mxu0 %v6045
        %8335 = vmatpush.bf16.msra.mxu0 %v6037
        %8336 = vmatpush.bf16.msra.mxu0 %v6029
        %8337 = vmatpush.bf16.msra.mxu0 %v6021
        %8338 = vmatpush.bf16.msra.mxu0 %v6013
        %8339 = vmatmul.bf16.gmra.mxu0 %v1959
        %v8340 = vpop.f32.mrf.mxu0
        %v8341 = vadd.f32 %v8328, %v8340
        %v8342 = vpop.f32.mrf.mxu0
        %8343 = vdwg.mxu0
        %8344 = vmatpush.bf16.msra.mxu0 %v5110
        %8345 = vmatpush.bf16.msra.mxu0 %v5102
        %8346 = vmatpush.bf16.msra.mxu0 %v5094
        %8347 = vmatpush.bf16.msra.mxu0 %v5086
        %8348 = vmatpush.bf16.msra.mxu0 %v5078
        %8349 = vmatpush.bf16.msra.mxu0 %v5070
        %8350 = vmatpush.bf16.msra.mxu0 %v5062
        %8351 = vmatpush.bf16.msra.mxu0 %v5054
        %8352 = vmatmul.bf16.gmra.mxu0 %v1944
        %v8353 = vpop.f32.mrf.mxu0
        %v8354 = vadd.f32 %v1910, %v8353
        %v8355 = vpop.f32.mrf.mxu0
        %8356 = vdwg.mxu0
        %8357 = vmatpush.bf16.msra.mxu0 %v5174
        %8358 = vmatpush.bf16.msra.mxu0 %v5166
        %8359 = vmatpush.bf16.msra.mxu0 %v5158
        %8360 = vmatpush.bf16.msra.mxu0 %v5150
        %8361 = vmatpush.bf16.msra.mxu0 %v5142
        %8362 = vmatpush.bf16.msra.mxu0 %v5134
        %8363 = vmatpush.bf16.msra.mxu0 %v5126
        %8364 = vmatpush.bf16.msra.mxu0 %v5118
        %8365 = vmatmul.bf16.gmra.mxu0 %v1945
        %v8366 = vpop.f32.mrf.mxu0
        %v8367 = vadd.f32 %v8354, %v8366
        %v8368 = vpop.f32.mrf.mxu0
        %8369 = vdwg.mxu0
        %8370 = vmatpush.bf16.msra.mxu0 %v5238
        %8371 = vmatpush.bf16.msra.mxu0 %v5230
        %8372 = vmatpush.bf16.msra.mxu0 %v5222
        %8373 = vmatpush.bf16.msra.mxu0 %v5214
        %8374 = vmatpush.bf16.msra.mxu0 %v5206
        %8375 = vmatpush.bf16.msra.mxu0 %v5198
        %8376 = vmatpush.bf16.msra.mxu0 %v5190
        %8377 = vmatpush.bf16.msra.mxu0 %v5182
        %8378 = vmatmul.bf16.gmra.mxu0 %v1946
        %v8379 = vpop.f32.mrf.mxu0
        %v8380 = vadd.f32 %v8367, %v8379
        %v8381 = vpop.f32.mrf.mxu0
        %8382 = vdwg.mxu0
        %8383 = vmatpush.bf16.msra.mxu0 %v5302
        %8384 = vmatpush.bf16.msra.mxu0 %v5294
        %8385 = vmatpush.bf16.msra.mxu0 %v5286
        %8386 = vmatpush.bf16.msra.mxu0 %v5278
        %8387 = vmatpush.bf16.msra.mxu0 %v5270
        %8388 = vmatpush.bf16.msra.mxu0 %v5262
        %8389 = vmatpush.bf16.msra.mxu0 %v5254
        %8390 = vmatpush.bf16.msra.mxu0 %v5246
        %8391 = vmatmul.bf16.gmra.mxu0 %v1947
        %v8392 = vpop.f32.mrf.mxu0
        %v8393 = vadd.f32 %v8380, %v8392
        %v8394 = vpop.f32.mrf.mxu0
        %8395 = vdwg.mxu0
        %8396 = vmatpush.bf16.msra.mxu0 %v5366
        %8397 = vmatpush.bf16.msra.mxu0 %v5358
        %8398 = vmatpush.bf16.msra.mxu0 %v5350
        %8399 = vmatpush.bf16.msra.mxu0 %v5342
        %8400 = vmatpush.bf16.msra.mxu0 %v5334
        %8401 = vmatpush.bf16.msra.mxu0 %v5326
        %8402 = vmatpush.bf16.msra.mxu0 %v5318
        %8403 = vmatpush.bf16.msra.mxu0 %v5310
        %8404 = vmatmul.bf16.gmra.mxu0 %v1948
        %v8405 = vpop.f32.mrf.mxu0
        %v8406 = vadd.f32 %v8393, %v8405
        %v8407 = vpop.f32.mrf.mxu0
        %8408 = vdwg.mxu0
        %8409 = vmatpush.bf16.msra.mxu0 %v5430
        %8410 = vmatpush.bf16.msra.mxu0 %v5422
        %8411 = vmatpush.bf16.msra.mxu0 %v5414
        %8412 = vmatpush.bf16.msra.mxu0 %v5406
        %8413 = vmatpush.bf16.msra.mxu0 %v5398
        %8414 = vmatpush.bf16.msra.mxu0 %v5390
        %8415 = vmatpush.bf16.msra.mxu0 %v5382
        %8416 = vmatpush.bf16.msra.mxu0 %v5374
        %8417 = vmatmul.bf16.gmra.mxu0 %v1949
        %v8418 = vpop.f32.mrf.mxu0
        %v8419 = vadd.f32 %v8406, %v8418
        %v8420 = vpop.f32.mrf.mxu0
        %8421 = vdwg.mxu0
        %8422 = vmatpush.bf16.msra.mxu0 %v5494
        %8423 = vmatpush.bf16.msra.mxu0 %v5486
        %8424 = vmatpush.bf16.msra.mxu0 %v5478
        %8425 = vmatpush.bf16.msra.mxu0 %v5470
        %8426 = vmatpush.bf16.msra.mxu0 %v5462
        %8427 = vmatpush.bf16.msra.mxu0 %v5454
        %8428 = vmatpush.bf16.msra.mxu0 %v5446
        %8429 = vmatpush.bf16.msra.mxu0 %v5438
        %8430 = vmatmul.bf16.gmra.mxu0 %v1950
        %v8431 = vpop.f32.mrf.mxu0
        %v8432 = vadd.f32 %v8419, %v8431
        %v8433 = vpop.f32.mrf.mxu0
        %8434 = vdwg.mxu0
        %8435 = vmatpush.bf16.msra.mxu0 %v5558
        %8436 = vmatpush.bf16.msra.mxu0 %v5550
        %8437 = vmatpush.bf16.msra.mxu0 %v5542
        %8438 = vmatpush.bf16.msra.mxu0 %v5534
        %8439 = vmatpush.bf16.msra.mxu0 %v5526
        %8440 = vmatpush.bf16.msra.mxu0 %v5518
        %8441 = vmatpush.bf16.msra.mxu0 %v5510
        %8442 = vmatpush.bf16.msra.mxu0 %v5502
        %8443 = vmatmul.bf16.gmra.mxu0 %v1951
        %v8444 = vpop.f32.mrf.mxu0
        %v8445 = vadd.f32 %v8432, %v8444
        %v8446 = vpop.f32.mrf.mxu0
        %8447 = vdwg.mxu0
        %8448 = vmatpush.bf16.msra.mxu0 %v5622
        %8449 = vmatpush.bf16.msra.mxu0 %v5614
        %8450 = vmatpush.bf16.msra.mxu0 %v5606
        %8451 = vmatpush.bf16.msra.mxu0 %v5598
        %8452 = vmatpush.bf16.msra.mxu0 %v5590
        %8453 = vmatpush.bf16.msra.mxu0 %v5582
        %8454 = vmatpush.bf16.msra.mxu0 %v5574
        %8455 = vmatpush.bf16.msra.mxu0 %v5566
        %8456 = vmatmul.bf16.gmra.mxu0 %v1952
        %v8457 = vpop.f32.mrf.mxu0
        %v8458 = vadd.f32 %v8445, %v8457
        %v8459 = vpop.f32.mrf.mxu0
        %8460 = vdwg.mxu0
        %8461 = vmatpush.bf16.msra.mxu0 %v5686
        %8462 = vmatpush.bf16.msra.mxu0 %v5678
        %8463 = vmatpush.bf16.msra.mxu0 %v5670
        %8464 = vmatpush.bf16.msra.mxu0 %v5662
        %8465 = vmatpush.bf16.msra.mxu0 %v5654
        %8466 = vmatpush.bf16.msra.mxu0 %v5646
        %8467 = vmatpush.bf16.msra.mxu0 %v5638
        %8468 = vmatpush.bf16.msra.mxu0 %v5630
        %8469 = vmatmul.bf16.gmra.mxu0 %v1953
        %v8470 = vpop.f32.mrf.mxu0
        %v8471 = vadd.f32 %v8458, %v8470
        %v8472 = vpop.f32.mrf.mxu0
        %8473 = vdwg.mxu0
        %8474 = vmatpush.bf16.msra.mxu0 %v5750
        %8475 = vmatpush.bf16.msra.mxu0 %v5742
        %8476 = vmatpush.bf16.msra.mxu0 %v5734
        %8477 = vmatpush.bf16.msra.mxu0 %v5726
        %8478 = vmatpush.bf16.msra.mxu0 %v5718
        %8479 = vmatpush.bf16.msra.mxu0 %v5710
        %8480 = vmatpush.bf16.msra.mxu0 %v5702
        %8481 = vmatpush.bf16.msra.mxu0 %v5694
        %8482 = vmatmul.bf16.gmra.mxu0 %v1954
        %v8483 = vpop.f32.mrf.mxu0
        %v8484 = vadd.f32 %v8471, %v8483
        %v8485 = vpop.f32.mrf.mxu0
        %8486 = vdwg.mxu0
        %8487 = vmatpush.bf16.msra.mxu0 %v5814
        %8488 = vmatpush.bf16.msra.mxu0 %v5806
        %8489 = vmatpush.bf16.msra.mxu0 %v5798
        %8490 = vmatpush.bf16.msra.mxu0 %v5790
        %8491 = vmatpush.bf16.msra.mxu0 %v5782
        %8492 = vmatpush.bf16.msra.mxu0 %v5774
        %8493 = vmatpush.bf16.msra.mxu0 %v5766
        %8494 = vmatpush.bf16.msra.mxu0 %v5758
        %8495 = vmatmul.bf16.gmra.mxu0 %v1955
        %v8496 = vpop.f32.mrf.mxu0
        %v8497 = vadd.f32 %v8484, %v8496
        %v8498 = vpop.f32.mrf.mxu0
        %8499 = vdwg.mxu0
        %8500 = vmatpush.bf16.msra.mxu0 %v5878
        %8501 = vmatpush.bf16.msra.mxu0 %v5870
        %8502 = vmatpush.bf16.msra.mxu0 %v5862
        %8503 = vmatpush.bf16.msra.mxu0 %v5854
        %8504 = vmatpush.bf16.msra.mxu0 %v5846
        %8505 = vmatpush.bf16.msra.mxu0 %v5838
        %8506 = vmatpush.bf16.msra.mxu0 %v5830
        %8507 = vmatpush.bf16.msra.mxu0 %v5822
        %8508 = vmatmul.bf16.gmra.mxu0 %v1956
        %v8509 = vpop.f32.mrf.mxu0
        %v8510 = vadd.f32 %v8497, %v8509
        %v8511 = vpop.f32.mrf.mxu0
        %8512 = vdwg.mxu0
        %8513 = vmatpush.bf16.msra.mxu0 %v5942
        %8514 = vmatpush.bf16.msra.mxu0 %v5934
        %8515 = vmatpush.bf16.msra.mxu0 %v5926
        %8516 = vmatpush.bf16.msra.mxu0 %v5918
        %8517 = vmatpush.bf16.msra.mxu0 %v5910
        %8518 = vmatpush.bf16.msra.mxu0 %v5902
        %8519 = vmatpush.bf16.msra.mxu0 %v5894
        %8520 = vmatpush.bf16.msra.mxu0 %v5886
        %8521 = vmatmul.bf16.gmra.mxu0 %v1957
        %v8522 = vpop.f32.mrf.mxu0
        %v8523 = vadd.f32 %v8510, %v8522
        %v8524 = vpop.f32.mrf.mxu0
        %8525 = vdwg.mxu0
        %8526 = vmatpush.bf16.msra.mxu0 %v6006
        %8527 = vmatpush.bf16.msra.mxu0 %v5998
        %8528 = vmatpush.bf16.msra.mxu0 %v5990
        %8529 = vmatpush.bf16.msra.mxu0 %v5982
        %8530 = vmatpush.bf16.msra.mxu0 %v5974
        %8531 = vmatpush.bf16.msra.mxu0 %v5966
        %8532 = vmatpush.bf16.msra.mxu0 %v5958
        %8533 = vmatpush.bf16.msra.mxu0 %v5950
        %8534 = vmatmul.bf16.gmra.mxu0 %v1958
        %v8535 = vpop.f32.mrf.mxu0
        %v8536 = vadd.f32 %v8523, %v8535
        %v8537 = vpop.f32.mrf.mxu0
        %8538 = vdwg.mxu0
        %8539 = vmatpush.bf16.msra.mxu0 %v6070
        %8540 = vmatpush.bf16.msra.mxu0 %v6062
        %8541 = vmatpush.bf16.msra.mxu0 %v6054
        %8542 = vmatpush.bf16.msra.mxu0 %v6046
        %8543 = vmatpush.bf16.msra.mxu0 %v6038
        %8544 = vmatpush.bf16.msra.mxu0 %v6030
        %8545 = vmatpush.bf16.msra.mxu0 %v6022
        %8546 = vmatpush.bf16.msra.mxu0 %v6014
        %8547 = vmatmul.bf16.gmra.mxu0 %v1959
        %v8548 = vpop.f32.mrf.mxu0
        %v8549 = vadd.f32 %v8536, %v8548
        %v8550 = vpop.f32.mrf.mxu0
        %8551 = vdwg.mxu0
        %8552 = vmatpush.bf16.msra.mxu0 %v5111
        %8553 = vmatpush.bf16.msra.mxu0 %v5103
        %8554 = vmatpush.bf16.msra.mxu0 %v5095
        %8555 = vmatpush.bf16.msra.mxu0 %v5087
        %8556 = vmatpush.bf16.msra.mxu0 %v5079
        %8557 = vmatpush.bf16.msra.mxu0 %v5071
        %8558 = vmatpush.bf16.msra.mxu0 %v5063
        %8559 = vmatpush.bf16.msra.mxu0 %v5055
        %8560 = vmatmul.bf16.gmra.mxu0 %v1944
        %v8561 = vpop.f32.mrf.mxu0
        %v8562 = vadd.f32 %v1911, %v8561
        %v8563 = vpop.f32.mrf.mxu0
        %8564 = vdwg.mxu0
        %8565 = vmatpush.bf16.msra.mxu0 %v5175
        %8566 = vmatpush.bf16.msra.mxu0 %v5167
        %8567 = vmatpush.bf16.msra.mxu0 %v5159
        %8568 = vmatpush.bf16.msra.mxu0 %v5151
        %8569 = vmatpush.bf16.msra.mxu0 %v5143
        %8570 = vmatpush.bf16.msra.mxu0 %v5135
        %8571 = vmatpush.bf16.msra.mxu0 %v5127
        %8572 = vmatpush.bf16.msra.mxu0 %v5119
        %8573 = vmatmul.bf16.gmra.mxu0 %v1945
        %v8574 = vpop.f32.mrf.mxu0
        %v8575 = vadd.f32 %v8562, %v8574
        %v8576 = vpop.f32.mrf.mxu0
        %8577 = vdwg.mxu0
        %8578 = vmatpush.bf16.msra.mxu0 %v5239
        %8579 = vmatpush.bf16.msra.mxu0 %v5231
        %8580 = vmatpush.bf16.msra.mxu0 %v5223
        %8581 = vmatpush.bf16.msra.mxu0 %v5215
        %8582 = vmatpush.bf16.msra.mxu0 %v5207
        %8583 = vmatpush.bf16.msra.mxu0 %v5199
        %8584 = vmatpush.bf16.msra.mxu0 %v5191
        %8585 = vmatpush.bf16.msra.mxu0 %v5183
        %8586 = vmatmul.bf16.gmra.mxu0 %v1946
        %v8587 = vpop.f32.mrf.mxu0
        %v8588 = vadd.f32 %v8575, %v8587
        %v8589 = vpop.f32.mrf.mxu0
        %8590 = vdwg.mxu0
        %8591 = vmatpush.bf16.msra.mxu0 %v5303
        %8592 = vmatpush.bf16.msra.mxu0 %v5295
        %8593 = vmatpush.bf16.msra.mxu0 %v5287
        %8594 = vmatpush.bf16.msra.mxu0 %v5279
        %8595 = vmatpush.bf16.msra.mxu0 %v5271
        %8596 = vmatpush.bf16.msra.mxu0 %v5263
        %8597 = vmatpush.bf16.msra.mxu0 %v5255
        %8598 = vmatpush.bf16.msra.mxu0 %v5247
        %8599 = vmatmul.bf16.gmra.mxu0 %v1947
        %v8600 = vpop.f32.mrf.mxu0
        %v8601 = vadd.f32 %v8588, %v8600
        %v8602 = vpop.f32.mrf.mxu0
        %8603 = vdwg.mxu0
        %8604 = vmatpush.bf16.msra.mxu0 %v5367
        %8605 = vmatpush.bf16.msra.mxu0 %v5359
        %8606 = vmatpush.bf16.msra.mxu0 %v5351
        %8607 = vmatpush.bf16.msra.mxu0 %v5343
        %8608 = vmatpush.bf16.msra.mxu0 %v5335
        %8609 = vmatpush.bf16.msra.mxu0 %v5327
        %8610 = vmatpush.bf16.msra.mxu0 %v5319
        %8611 = vmatpush.bf16.msra.mxu0 %v5311
        %8612 = vmatmul.bf16.gmra.mxu0 %v1948
        %v8613 = vpop.f32.mrf.mxu0
        %v8614 = vadd.f32 %v8601, %v8613
        %v8615 = vpop.f32.mrf.mxu0
        %8616 = vdwg.mxu0
        %8617 = vmatpush.bf16.msra.mxu0 %v5431
        %8618 = vmatpush.bf16.msra.mxu0 %v5423
        %8619 = vmatpush.bf16.msra.mxu0 %v5415
        %8620 = vmatpush.bf16.msra.mxu0 %v5407
        %8621 = vmatpush.bf16.msra.mxu0 %v5399
        %8622 = vmatpush.bf16.msra.mxu0 %v5391
        %8623 = vmatpush.bf16.msra.mxu0 %v5383
        %8624 = vmatpush.bf16.msra.mxu0 %v5375
        %8625 = vmatmul.bf16.gmra.mxu0 %v1949
        %v8626 = vpop.f32.mrf.mxu0
        %v8627 = vadd.f32 %v8614, %v8626
        %v8628 = vpop.f32.mrf.mxu0
        %8629 = vdwg.mxu0
        %8630 = vmatpush.bf16.msra.mxu0 %v5495
        %8631 = vmatpush.bf16.msra.mxu0 %v5487
        %8632 = vmatpush.bf16.msra.mxu0 %v5479
        %8633 = vmatpush.bf16.msra.mxu0 %v5471
        %8634 = vmatpush.bf16.msra.mxu0 %v5463
        %8635 = vmatpush.bf16.msra.mxu0 %v5455
        %8636 = vmatpush.bf16.msra.mxu0 %v5447
        %8637 = vmatpush.bf16.msra.mxu0 %v5439
        %8638 = vmatmul.bf16.gmra.mxu0 %v1950
        %v8639 = vpop.f32.mrf.mxu0
        %v8640 = vadd.f32 %v8627, %v8639
        %v8641 = vpop.f32.mrf.mxu0
        %8642 = vdwg.mxu0
        %8643 = vmatpush.bf16.msra.mxu0 %v5559
        %8644 = vmatpush.bf16.msra.mxu0 %v5551
        %8645 = vmatpush.bf16.msra.mxu0 %v5543
        %8646 = vmatpush.bf16.msra.mxu0 %v5535
        %8647 = vmatpush.bf16.msra.mxu0 %v5527
        %8648 = vmatpush.bf16.msra.mxu0 %v5519
        %8649 = vmatpush.bf16.msra.mxu0 %v5511
        %8650 = vmatpush.bf16.msra.mxu0 %v5503
        %8651 = vmatmul.bf16.gmra.mxu0 %v1951
        %v8652 = vpop.f32.mrf.mxu0
        %v8653 = vadd.f32 %v8640, %v8652
        %v8654 = vpop.f32.mrf.mxu0
        %8655 = vdwg.mxu0
        %8656 = vmatpush.bf16.msra.mxu0 %v5623
        %8657 = vmatpush.bf16.msra.mxu0 %v5615
        %8658 = vmatpush.bf16.msra.mxu0 %v5607
        %8659 = vmatpush.bf16.msra.mxu0 %v5599
        %8660 = vmatpush.bf16.msra.mxu0 %v5591
        %8661 = vmatpush.bf16.msra.mxu0 %v5583
        %8662 = vmatpush.bf16.msra.mxu0 %v5575
        %8663 = vmatpush.bf16.msra.mxu0 %v5567
        %8664 = vmatmul.bf16.gmra.mxu0 %v1952
        %v8665 = vpop.f32.mrf.mxu0
        %v8666 = vadd.f32 %v8653, %v8665
        %v8667 = vpop.f32.mrf.mxu0
        %8668 = vdwg.mxu0
        %8669 = vmatpush.bf16.msra.mxu0 %v5687
        %8670 = vmatpush.bf16.msra.mxu0 %v5679
        %8671 = vmatpush.bf16.msra.mxu0 %v5671
        %8672 = vmatpush.bf16.msra.mxu0 %v5663
        %8673 = vmatpush.bf16.msra.mxu0 %v5655
        %8674 = vmatpush.bf16.msra.mxu0 %v5647
        %8675 = vmatpush.bf16.msra.mxu0 %v5639
        %8676 = vmatpush.bf16.msra.mxu0 %v5631
        %8677 = vmatmul.bf16.gmra.mxu0 %v1953
        %v8678 = vpop.f32.mrf.mxu0
        %v8679 = vadd.f32 %v8666, %v8678
        %v8680 = vpop.f32.mrf.mxu0
        %8681 = vdwg.mxu0
        %8682 = vmatpush.bf16.msra.mxu0 %v5751
        %8683 = vmatpush.bf16.msra.mxu0 %v5743
        %8684 = vmatpush.bf16.msra.mxu0 %v5735
        %8685 = vmatpush.bf16.msra.mxu0 %v5727
        %8686 = vmatpush.bf16.msra.mxu0 %v5719
        %8687 = vmatpush.bf16.msra.mxu0 %v5711
        %8688 = vmatpush.bf16.msra.mxu0 %v5703
        %8689 = vmatpush.bf16.msra.mxu0 %v5695
        %8690 = vmatmul.bf16.gmra.mxu0 %v1954
        %v8691 = vpop.f32.mrf.mxu0
        %v8692 = vadd.f32 %v8679, %v8691
        %v8693 = vpop.f32.mrf.mxu0
        %8694 = vdwg.mxu0
        %8695 = vmatpush.bf16.msra.mxu0 %v5815
        %8696 = vmatpush.bf16.msra.mxu0 %v5807
        %8697 = vmatpush.bf16.msra.mxu0 %v5799
        %8698 = vmatpush.bf16.msra.mxu0 %v5791
        %8699 = vmatpush.bf16.msra.mxu0 %v5783
        %8700 = vmatpush.bf16.msra.mxu0 %v5775
        %8701 = vmatpush.bf16.msra.mxu0 %v5767
        %8702 = vmatpush.bf16.msra.mxu0 %v5759
        %8703 = vmatmul.bf16.gmra.mxu0 %v1955
        %v8704 = vpop.f32.mrf.mxu0
        %v8705 = vadd.f32 %v8692, %v8704
        %v8706 = vpop.f32.mrf.mxu0
        %8707 = vdwg.mxu0
        %8708 = vmatpush.bf16.msra.mxu0 %v5879
        %8709 = vmatpush.bf16.msra.mxu0 %v5871
        %8710 = vmatpush.bf16.msra.mxu0 %v5863
        %8711 = vmatpush.bf16.msra.mxu0 %v5855
        %8712 = vmatpush.bf16.msra.mxu0 %v5847
        %8713 = vmatpush.bf16.msra.mxu0 %v5839
        %8714 = vmatpush.bf16.msra.mxu0 %v5831
        %8715 = vmatpush.bf16.msra.mxu0 %v5823
        %8716 = vmatmul.bf16.gmra.mxu0 %v1956
        %v8717 = vpop.f32.mrf.mxu0
        %v8718 = vadd.f32 %v8705, %v8717
        %v8719 = vpop.f32.mrf.mxu0
        %8720 = vdwg.mxu0
        %8721 = vmatpush.bf16.msra.mxu0 %v5943
        %8722 = vmatpush.bf16.msra.mxu0 %v5935
        %8723 = vmatpush.bf16.msra.mxu0 %v5927
        %8724 = vmatpush.bf16.msra.mxu0 %v5919
        %8725 = vmatpush.bf16.msra.mxu0 %v5911
        %8726 = vmatpush.bf16.msra.mxu0 %v5903
        %8727 = vmatpush.bf16.msra.mxu0 %v5895
        %8728 = vmatpush.bf16.msra.mxu0 %v5887
        %8729 = vmatmul.bf16.gmra.mxu0 %v1957
        %v8730 = vpop.f32.mrf.mxu0
        %v8731 = vadd.f32 %v8718, %v8730
        %v8732 = vpop.f32.mrf.mxu0
        %8733 = vdwg.mxu0
        %8734 = vmatpush.bf16.msra.mxu0 %v6007
        %8735 = vmatpush.bf16.msra.mxu0 %v5999
        %8736 = vmatpush.bf16.msra.mxu0 %v5991
        %8737 = vmatpush.bf16.msra.mxu0 %v5983
        %8738 = vmatpush.bf16.msra.mxu0 %v5975
        %8739 = vmatpush.bf16.msra.mxu0 %v5967
        %8740 = vmatpush.bf16.msra.mxu0 %v5959
        %8741 = vmatpush.bf16.msra.mxu0 %v5951
        %8742 = vmatmul.bf16.gmra.mxu0 %v1958
        %v8743 = vpop.f32.mrf.mxu0
        %v8744 = vadd.f32 %v8731, %v8743
        %v8745 = vpop.f32.mrf.mxu0
        %8746 = vdwg.mxu0
        %8747 = vmatpush.bf16.msra.mxu0 %v6071
        %8748 = vmatpush.bf16.msra.mxu0 %v6063
        %8749 = vmatpush.bf16.msra.mxu0 %v6055
        %8750 = vmatpush.bf16.msra.mxu0 %v6047
        %8751 = vmatpush.bf16.msra.mxu0 %v6039
        %8752 = vmatpush.bf16.msra.mxu0 %v6031
        %8753 = vmatpush.bf16.msra.mxu0 %v6023
        %8754 = vmatpush.bf16.msra.mxu0 %v6015
        %8755 = vmatmul.bf16.gmra.mxu0 %v1959
        %v8756 = vpop.f32.mrf.mxu0
        %v8757 = vadd.f32 %v8744, %v8756
        %v8758 = vpop.f32.mrf.mxu0
        %8759 = vdwg.mxu0
        %v8760 = vld [vmem:[%s403] sm:$0xff]
        %v8761 = vpack.c.bf16 %v7301, %v7301
        %v8762 = vpack.c.bf16 %v7509, %v7509
        %v8763 = vpack.c.bf16 %v7717, %v7717
        %v8764 = vpack.c.bf16 %v7925, %v7925
        %v8765 = vpack.c.bf16 %v8133, %v8133
        %v8766 = vpack.c.bf16 %v8341, %v8341
        %v8767 = vpack.c.bf16 %v8549, %v8549
        %v8768 = vpack.c.bf16 %v8757, %v8757
        %v8769 = vld [vmem:[%s397] sm:$0xf]
        %v8770 = vld [vmem:[%s397 + $0x4] sm:$0xf]
        %v8771 = vld [vmem:[%s397 + $0x8] sm:$0xf]
        %v8772 = vld [vmem:[%s397 + $0xc] sm:$0xf]
        %v8773 = vld [vmem:[%s397 + $0x10] sm:$0xf]
        %v8774 = vld [vmem:[%s397 + $0x14] sm:$0xf]
        %v8775 = vld [vmem:[%s397 + $0x18] sm:$0xf]
        %v8776 = vld [vmem:[%s397 + $0x1c] sm:$0xf]
        %v8777 = vld [vmem:[%s397 + $0x20] sm:$0xf]
        %v8778 = vld [vmem:[%s397 + $0x24] sm:$0xf]
        %v8779 = vld [vmem:[%s397 + $0x28] sm:$0xf]
        %v8780 = vld [vmem:[%s397 + $0x2c] sm:$0xf]
        %v8781 = vld [vmem:[%s397 + $0x30] sm:$0xf]
        %v8782 = vld [vmem:[%s397 + $0x34] sm:$0xf]
        %v8783 = vld [vmem:[%s397 + $0x38] sm:$0xf]
        %v8784 = vld [vmem:[%s397 + $0x3c] sm:$0xf]
        %v8785 = vld [vmem:[%s397 + $0x40] sm:$0xf]
        %v8786 = vld [vmem:[%s397 + $0x44] sm:$0xf]
        %v8787 = vld [vmem:[%s397 + $0x48] sm:$0xf]
        %v8788 = vld [vmem:[%s397 + $0x4c] sm:$0xf]
        %v8789 = vld [vmem:[%s397 + $0x50] sm:$0xf]
        %v8790 = vld [vmem:[%s397 + $0x54] sm:$0xf]
        %v8791 = vld [vmem:[%s397 + $0x58] sm:$0xf]
        %v8792 = vld [vmem:[%s397 + $0x5c] sm:$0xf]
        %v8793 = vld [vmem:[%s397 + $0x60] sm:$0xf]
        %v8794 = vld [vmem:[%s397 + $0x64] sm:$0xf]
        %v8795 = vld [vmem:[%s397 + $0x68] sm:$0xf]
        %v8796 = vld [vmem:[%s397 + $0x6c] sm:$0xf]
        %v8797 = vld [vmem:[%s397 + $0x70] sm:$0xf]
        %v8798 = vld [vmem:[%s397 + $0x74] sm:$0xf]
        %v8799 = vld [vmem:[%s397 + $0x78] sm:$0xf]
        %v8800 = vld [vmem:[%s397 + $0x7c] sm:$0xf]
        %v8801 = vld [vmem:[%s397 + $0x80] sm:$0xf]
        %v8802 = vld [vmem:[%s397 + $0x84] sm:$0xf]
        %v8803 = vld [vmem:[%s397 + $0x88] sm:$0xf]
        %v8804 = vld [vmem:[%s397 + $0x8c] sm:$0xf]
        %v8805 = vld [vmem:[%s397 + $0x90] sm:$0xf]
        %v8806 = vld [vmem:[%s397 + $0x94] sm:$0xf]
        %v8807 = vld [vmem:[%s397 + $0x98] sm:$0xf]
        %v8808 = vld [vmem:[%s397 + $0x9c] sm:$0xf]
        %v8809 = vld [vmem:[%s397 + $0xa0] sm:$0xf]
        %v8810 = vld [vmem:[%s397 + $0xa4] sm:$0xf]
        %v8811 = vld [vmem:[%s397 + $0xa8] sm:$0xf]
        %v8812 = vld [vmem:[%s397 + $0xac] sm:$0xf]
        %v8813 = vld [vmem:[%s397 + $0xb0] sm:$0xf]
        %v8814 = vld [vmem:[%s397 + $0xb4] sm:$0xf]
        %v8815 = vld [vmem:[%s397 + $0xb8] sm:$0xf]
        %v8816 = vld [vmem:[%s397 + $0xbc] sm:$0xf]
        %v8817 = vld [vmem:[%s397 + $0xc0] sm:$0xf]
        %v8818 = vld [vmem:[%s397 + $0xc4] sm:$0xf]
        %v8819 = vld [vmem:[%s397 + $0xc8] sm:$0xf]
        %v8820 = vld [vmem:[%s397 + $0xcc] sm:$0xf]
        %v8821 = vld [vmem:[%s397 + $0xd0] sm:$0xf]
        %v8822 = vld [vmem:[%s397 + $0xd4] sm:$0xf]
        %v8823 = vld [vmem:[%s397 + $0xd8] sm:$0xf]
        %v8824 = vld [vmem:[%s397 + $0xdc] sm:$0xf]
        %v8825 = vld [vmem:[%s397 + $0xe0] sm:$0xf]
        %v8826 = vld [vmem:[%s397 + $0xe4] sm:$0xf]
        %v8827 = vld [vmem:[%s397 + $0xe8] sm:$0xf]
        %v8828 = vld [vmem:[%s397 + $0xec] sm:$0xf]
        %v8829 = vld [vmem:[%s397 + $0xf0] sm:$0xf]
        %v8830 = vld [vmem:[%s397 + $0xf4] sm:$0xf]
        %v8831 = vld [vmem:[%s397 + $0xf8] sm:$0xf]
        %v8832 = vld [vmem:[%s397 + $0xfc] sm:$0xf]
        %v8833 = vld [vmem:[%s397 + $0x100] sm:$0xf]
        %v8834 = vld [vmem:[%s397 + $0x104] sm:$0xf]
        %v8835 = vld [vmem:[%s397 + $0x108] sm:$0xf]
        %v8836 = vld [vmem:[%s397 + $0x10c] sm:$0xf]
        %v8837 = vld [vmem:[%s397 + $0x110] sm:$0xf]
        %v8838 = vld [vmem:[%s397 + $0x114] sm:$0xf]
        %v8839 = vld [vmem:[%s397 + $0x118] sm:$0xf]
        %v8840 = vld [vmem:[%s397 + $0x11c] sm:$0xf]
        %v8841 = vld [vmem:[%s397 + $0x120] sm:$0xf]
        %v8842 = vld [vmem:[%s397 + $0x124] sm:$0xf]
        %v8843 = vld [vmem:[%s397 + $0x128] sm:$0xf]
        %v8844 = vld [vmem:[%s397 + $0x12c] sm:$0xf]
        %v8845 = vld [vmem:[%s397 + $0x130] sm:$0xf]
        %v8846 = vld [vmem:[%s397 + $0x134] sm:$0xf]
        %v8847 = vld [vmem:[%s397 + $0x138] sm:$0xf]
        %v8848 = vld [vmem:[%s397 + $0x13c] sm:$0xf]
        %v8849 = vld [vmem:[%s397 + $0x140] sm:$0xf]
        %v8850 = vld [vmem:[%s397 + $0x144] sm:$0xf]
        %v8851 = vld [vmem:[%s397 + $0x148] sm:$0xf]
        %v8852 = vld [vmem:[%s397 + $0x14c] sm:$0xf]
        %v8853 = vld [vmem:[%s397 + $0x150] sm:$0xf]
        %v8854 = vld [vmem:[%s397 + $0x154] sm:$0xf]
        %v8855 = vld [vmem:[%s397 + $0x158] sm:$0xf]
        %v8856 = vld [vmem:[%s397 + $0x15c] sm:$0xf]
        %v8857 = vld [vmem:[%s397 + $0x160] sm:$0xf]
        %v8858 = vld [vmem:[%s397 + $0x164] sm:$0xf]
        %v8859 = vld [vmem:[%s397 + $0x168] sm:$0xf]
        %v8860 = vld [vmem:[%s397 + $0x16c] sm:$0xf]
        %v8861 = vld [vmem:[%s397 + $0x170] sm:$0xf]
        %v8862 = vld [vmem:[%s397 + $0x174] sm:$0xf]
        %v8863 = vld [vmem:[%s397 + $0x178] sm:$0xf]
        %v8864 = vld [vmem:[%s397 + $0x17c] sm:$0xf]
        %v8865 = vld [vmem:[%s397 + $0x180] sm:$0xf]
        %v8866 = vld [vmem:[%s397 + $0x184] sm:$0xf]
        %v8867 = vld [vmem:[%s397 + $0x188] sm:$0xf]
        %v8868 = vld [vmem:[%s397 + $0x18c] sm:$0xf]
        %v8869 = vld [vmem:[%s397 + $0x190] sm:$0xf]
        %v8870 = vld [vmem:[%s397 + $0x194] sm:$0xf]
        %v8871 = vld [vmem:[%s397 + $0x198] sm:$0xf]
        %v8872 = vld [vmem:[%s397 + $0x19c] sm:$0xf]
        %v8873 = vld [vmem:[%s397 + $0x1a0] sm:$0xf]
        %v8874 = vld [vmem:[%s397 + $0x1a4] sm:$0xf]
        %v8875 = vld [vmem:[%s397 + $0x1a8] sm:$0xf]
        %v8876 = vld [vmem:[%s397 + $0x1ac] sm:$0xf]
        %v8877 = vld [vmem:[%s397 + $0x1b0] sm:$0xf]
        %v8878 = vld [vmem:[%s397 + $0x1b4] sm:$0xf]
        %v8879 = vld [vmem:[%s397 + $0x1b8] sm:$0xf]
        %v8880 = vld [vmem:[%s397 + $0x1bc] sm:$0xf]
        %v8881 = vld [vmem:[%s397 + $0x1c0] sm:$0xf]
        %v8882 = vld [vmem:[%s397 + $0x1c4] sm:$0xf]
        %v8883 = vld [vmem:[%s397 + $0x1c8] sm:$0xf]
        %v8884 = vld [vmem:[%s397 + $0x1cc] sm:$0xf]
        %v8885 = vld [vmem:[%s397 + $0x1d0] sm:$0xf]
        %v8886 = vld [vmem:[%s397 + $0x1d4] sm:$0xf]
        %v8887 = vld [vmem:[%s397 + $0x1d8] sm:$0xf]
        %v8888 = vld [vmem:[%s397 + $0x1dc] sm:$0xf]
        %v8889 = vld [vmem:[%s397 + $0x1e0] sm:$0xf]
        %v8890 = vld [vmem:[%s397 + $0x1e4] sm:$0xf]
        %v8891 = vld [vmem:[%s397 + $0x1e8] sm:$0xf]
        %v8892 = vld [vmem:[%s397 + $0x1ec] sm:$0xf]
        %v8893 = vld [vmem:[%s397 + $0x1f0] sm:$0xf]
        %v8894 = vld [vmem:[%s397 + $0x1f4] sm:$0xf]
        %v8895 = vld [vmem:[%s397 + $0x1f8] sm:$0xf]
        %v8896 = vld [vmem:[%s397 + $0x1fc] sm:$0xf]
        %v9025 = vunpack.c.l.b16 %v8769
        %v9026 = vunpack.c.l.b16 %v8770
        %v9027 = vunpack.c.l.b16 %v8771
        %v9028 = vunpack.c.l.b16 %v8772
        %v9029 = vunpack.c.l.b16 %v8773
        %v9030 = vunpack.c.l.b16 %v8774
        %v9031 = vunpack.c.l.b16 %v8775
        %v9032 = vunpack.c.l.b16 %v8776
        %v9033 = vunpack.c.l.b16 %v8777
        %v9034 = vunpack.c.l.b16 %v8778
        %v9035 = vunpack.c.l.b16 %v8779
        %v9036 = vunpack.c.l.b16 %v8780
        %v9037 = vunpack.c.l.b16 %v8781
        %v9038 = vunpack.c.l.b16 %v8782
        %v9039 = vunpack.c.l.b16 %v8783
        %v9040 = vunpack.c.l.b16 %v8784
        %v9041 = vunpack.c.l.b16 %v8785
        %v9042 = vunpack.c.l.b16 %v8786
        %v9043 = vunpack.c.l.b16 %v8787
        %v9044 = vunpack.c.l.b16 %v8788
        %v9045 = vunpack.c.l.b16 %v8789
        %v9046 = vunpack.c.l.b16 %v8790
        %v9047 = vunpack.c.l.b16 %v8791
        %v9048 = vunpack.c.l.b16 %v8792
        %v9049 = vunpack.c.l.b16 %v8793
        %v9050 = vunpack.c.l.b16 %v8794
        %v9051 = vunpack.c.l.b16 %v8795
        %v9052 = vunpack.c.l.b16 %v8796
        %v9053 = vunpack.c.l.b16 %v8797
        %v9054 = vunpack.c.l.b16 %v8798
        %v9055 = vunpack.c.l.b16 %v8799
        %v9056 = vunpack.c.l.b16 %v8800
        %v9057 = vunpack.c.l.b16 %v8801
        %v9058 = vunpack.c.l.b16 %v8802
        %v9059 = vunpack.c.l.b16 %v8803
        %v9060 = vunpack.c.l.b16 %v8804
        %v9061 = vunpack.c.l.b16 %v8805
        %v9062 = vunpack.c.l.b16 %v8806
        %v9063 = vunpack.c.l.b16 %v8807
        %v9064 = vunpack.c.l.b16 %v8808
        %v9065 = vunpack.c.l.b16 %v8809
        %v9066 = vunpack.c.l.b16 %v8810
        %v9067 = vunpack.c.l.b16 %v8811
        %v9068 = vunpack.c.l.b16 %v8812
        %v9069 = vunpack.c.l.b16 %v8813
        %v9070 = vunpack.c.l.b16 %v8814
        %v9071 = vunpack.c.l.b16 %v8815
        %v9072 = vunpack.c.l.b16 %v8816
        %v9073 = vunpack.c.l.b16 %v8817
        %v9074 = vunpack.c.l.b16 %v8818
        %v9075 = vunpack.c.l.b16 %v8819
        %v9076 = vunpack.c.l.b16 %v8820
        %v9077 = vunpack.c.l.b16 %v8821
        %v9078 = vunpack.c.l.b16 %v8822
        %v9079 = vunpack.c.l.b16 %v8823
        %v9080 = vunpack.c.l.b16 %v8824
        %v9081 = vunpack.c.l.b16 %v8825
        %v9082 = vunpack.c.l.b16 %v8826
        %v9083 = vunpack.c.l.b16 %v8827
        %v9084 = vunpack.c.l.b16 %v8828
        %v9085 = vunpack.c.l.b16 %v8829
        %v9086 = vunpack.c.l.b16 %v8830
        %v9087 = vunpack.c.l.b16 %v8831
        %v9088 = vunpack.c.l.b16 %v8832
        %v9089 = vunpack.c.l.b16 %v8833
        %v9090 = vunpack.c.l.b16 %v8834
        %v9091 = vunpack.c.l.b16 %v8835
        %v9092 = vunpack.c.l.b16 %v8836
        %v9093 = vunpack.c.l.b16 %v8837
        %v9094 = vunpack.c.l.b16 %v8838
        %v9095 = vunpack.c.l.b16 %v8839
        %v9096 = vunpack.c.l.b16 %v8840
        %v9097 = vunpack.c.l.b16 %v8841
        %v9098 = vunpack.c.l.b16 %v8842
        %v9099 = vunpack.c.l.b16 %v8843
        %v9100 = vunpack.c.l.b16 %v8844
        %v9101 = vunpack.c.l.b16 %v8845
        %v9102 = vunpack.c.l.b16 %v8846
        %v9103 = vunpack.c.l.b16 %v8847
        %v9104 = vunpack.c.l.b16 %v8848
        %v9105 = vunpack.c.l.b16 %v8849
        %v9106 = vunpack.c.l.b16 %v8850
        %v9107 = vunpack.c.l.b16 %v8851
        %v9108 = vunpack.c.l.b16 %v8852
        %v9109 = vunpack.c.l.b16 %v8853
        %v9110 = vunpack.c.l.b16 %v8854
        %v9111 = vunpack.c.l.b16 %v8855
        %v9112 = vunpack.c.l.b16 %v8856
        %v9113 = vunpack.c.l.b16 %v8857
        %v9114 = vunpack.c.l.b16 %v8858
        %v9115 = vunpack.c.l.b16 %v8859
        %v9116 = vunpack.c.l.b16 %v8860
        %v9117 = vunpack.c.l.b16 %v8861
        %v9118 = vunpack.c.l.b16 %v8862
        %v9119 = vunpack.c.l.b16 %v8863
        %v9120 = vunpack.c.l.b16 %v8864
        %v9121 = vunpack.c.l.b16 %v8865
        %v9122 = vunpack.c.l.b16 %v8866
        %v9123 = vunpack.c.l.b16 %v8867
        %v9124 = vunpack.c.l.b16 %v8868
        %v9125 = vunpack.c.l.b16 %v8869
        %v9126 = vunpack.c.l.b16 %v8870
        %v9127 = vunpack.c.l.b16 %v8871
        %v9128 = vunpack.c.l.b16 %v8872
        %v9129 = vunpack.c.l.b16 %v8873
        %v9130 = vunpack.c.l.b16 %v8874
        %v9131 = vunpack.c.l.b16 %v8875
        %v9132 = vunpack.c.l.b16 %v8876
        %v9133 = vunpack.c.l.b16 %v8877
        %v9134 = vunpack.c.l.b16 %v8878
        %v9135 = vunpack.c.l.b16 %v8879
        %v9136 = vunpack.c.l.b16 %v8880
        %v9137 = vunpack.c.l.b16 %v8881
        %v9138 = vunpack.c.l.b16 %v8882
        %v9139 = vunpack.c.l.b16 %v8883
        %v9140 = vunpack.c.l.b16 %v8884
        %v9141 = vunpack.c.l.b16 %v8885
        %v9142 = vunpack.c.l.b16 %v8886
        %v9143 = vunpack.c.l.b16 %v8887
        %v9144 = vunpack.c.l.b16 %v8888
        %v9145 = vunpack.c.l.b16 %v8889
        %v9146 = vunpack.c.l.b16 %v8890
        %v9147 = vunpack.c.l.b16 %v8891
        %v9148 = vunpack.c.l.b16 %v8892
        %v9149 = vunpack.c.l.b16 %v8893
        %v9150 = vunpack.c.l.b16 %v8894
        %v9151 = vunpack.c.l.b16 %v8895
        %v9152 = vunpack.c.l.b16 %v8896
        %v9153 = vpack.c.b16 %v9026, %v9025
        %v9154 = vpack.c.b16 %v9028, %v9027
        %v9155 = vpack.c.b16 %v9030, %v9029
        %v9156 = vpack.c.b16 %v9032, %v9031
        %v9157 = vpack.c.b16 %v9034, %v9033
        %v9158 = vpack.c.b16 %v9036, %v9035
        %v9159 = vpack.c.b16 %v9038, %v9037
        %v9160 = vpack.c.b16 %v9040, %v9039
        %v9161 = vpack.c.b16 %v9042, %v9041
        %v9162 = vpack.c.b16 %v9044, %v9043
        %v9163 = vpack.c.b16 %v9046, %v9045
        %v9164 = vpack.c.b16 %v9048, %v9047
        %v9165 = vpack.c.b16 %v9050, %v9049
        %v9166 = vpack.c.b16 %v9052, %v9051
        %v9167 = vpack.c.b16 %v9054, %v9053
        %v9168 = vpack.c.b16 %v9056, %v9055
        %v9169 = vpack.c.b16 %v9058, %v9057
        %v9170 = vpack.c.b16 %v9060, %v9059
        %v9171 = vpack.c.b16 %v9062, %v9061
        %v9172 = vpack.c.b16 %v9064, %v9063
        %v9173 = vpack.c.b16 %v9066, %v9065
        %v9174 = vpack.c.b16 %v9068, %v9067
        %v9175 = vpack.c.b16 %v9070, %v9069
        %v9176 = vpack.c.b16 %v9072, %v9071
        %v9177 = vpack.c.b16 %v9074, %v9073
        %v9178 = vpack.c.b16 %v9076, %v9075
        %v9179 = vpack.c.b16 %v9078, %v9077
        %v9180 = vpack.c.b16 %v9080, %v9079
        %v9181 = vpack.c.b16 %v9082, %v9081
        %v9182 = vpack.c.b16 %v9084, %v9083
        %v9183 = vpack.c.b16 %v9086, %v9085
        %v9184 = vpack.c.b16 %v9088, %v9087
        %v9185 = vpack.c.b16 %v9090, %v9089
        %v9186 = vpack.c.b16 %v9092, %v9091
        %v9187 = vpack.c.b16 %v9094, %v9093
        %v9188 = vpack.c.b16 %v9096, %v9095
        %v9189 = vpack.c.b16 %v9098, %v9097
        %v9190 = vpack.c.b16 %v9100, %v9099
        %v9191 = vpack.c.b16 %v9102, %v9101
        %v9192 = vpack.c.b16 %v9104, %v9103
        %v9193 = vpack.c.b16 %v9106, %v9105
        %v9194 = vpack.c.b16 %v9108, %v9107
        %v9195 = vpack.c.b16 %v9110, %v9109
        %v9196 = vpack.c.b16 %v9112, %v9111
        %v9197 = vpack.c.b16 %v9114, %v9113
        %v9198 = vpack.c.b16 %v9116, %v9115
        %v9199 = vpack.c.b16 %v9118, %v9117
        %v9200 = vpack.c.b16 %v9120, %v9119
        %v9201 = vpack.c.b16 %v9122, %v9121
        %v9202 = vpack.c.b16 %v9124, %v9123
        %v9203 = vpack.c.b16 %v9126, %v9125
        %v9204 = vpack.c.b16 %v9128, %v9127
        %v9205 = vpack.c.b16 %v9130, %v9129
        %v9206 = vpack.c.b16 %v9132, %v9131
        %v9207 = vpack.c.b16 %v9134, %v9133
        %v9208 = vpack.c.b16 %v9136, %v9135
        %v9209 = vpack.c.b16 %v9138, %v9137
        %v9210 = vpack.c.b16 %v9140, %v9139
        %v9211 = vpack.c.b16 %v9142, %v9141
        %v9212 = vpack.c.b16 %v9144, %v9143
        %v9213 = vpack.c.b16 %v9146, %v9145
        %v9214 = vpack.c.b16 %v9148, %v9147
        %v9215 = vpack.c.b16 %v9150, %v9149
        %v9216 = vpack.c.b16 %v9152, %v9151
        %9281 = vmatpush.bf16.msra.mxu0 %v9160
        %9282 = vmatpush.bf16.msra.mxu0 %v9159
        %9283 = vmatpush.bf16.msra.mxu0 %v9158
        %9284 = vmatpush.bf16.msra.mxu0 %v9157
        %9285 = vmatpush.bf16.msra.mxu0 %v9156
        %9286 = vmatpush.bf16.msra.mxu0 %v9155
        %9287 = vmatpush.bf16.msra.mxu0 %v9154
        %9288 = vmatpush.bf16.msra.mxu0 %v9153
        %9289 = vmatmul.bf16.gmra.mxu0 %v8761
        %v9290 = vpop.f32.mrf.mxu0
        %v9291 = vadd.f32 0.0, %v9290
        %v9292 = vpop.f32.mrf.mxu0
        %9293 = vdwg.mxu0
        %9294 = vmatpush.bf16.msra.mxu0 %v9168
        %9295 = vmatpush.bf16.msra.mxu0 %v9167
        %9296 = vmatpush.bf16.msra.mxu0 %v9166
        %9297 = vmatpush.bf16.msra.mxu0 %v9165
        %9298 = vmatpush.bf16.msra.mxu0 %v9164
        %9299 = vmatpush.bf16.msra.mxu0 %v9163
        %9300 = vmatpush.bf16.msra.mxu0 %v9162
        %9301 = vmatpush.bf16.msra.mxu0 %v9161
        %9302 = vmatmul.bf16.gmra.mxu0 %v8762
        %v9303 = vpop.f32.mrf.mxu0
        %v9304 = vadd.f32 %v9291, %v9303
        %v9305 = vpop.f32.mrf.mxu0
        %9306 = vdwg.mxu0
        %9307 = vmatpush.bf16.msra.mxu0 %v9176
        %9308 = vmatpush.bf16.msra.mxu0 %v9175
        %9309 = vmatpush.bf16.msra.mxu0 %v9174
        %9310 = vmatpush.bf16.msra.mxu0 %v9173
        %9311 = vmatpush.bf16.msra.mxu0 %v9172
        %9312 = vmatpush.bf16.msra.mxu0 %v9171
        %9313 = vmatpush.bf16.msra.mxu0 %v9170
        %9314 = vmatpush.bf16.msra.mxu0 %v9169
        %9315 = vmatmul.bf16.gmra.mxu0 %v8763
        %v9316 = vpop.f32.mrf.mxu0
        %v9317 = vadd.f32 %v9304, %v9316
        %v9318 = vpop.f32.mrf.mxu0
        %9319 = vdwg.mxu0
        %9320 = vmatpush.bf16.msra.mxu0 %v9184
        %9321 = vmatpush.bf16.msra.mxu0 %v9183
        %9322 = vmatpush.bf16.msra.mxu0 %v9182
        %9323 = vmatpush.bf16.msra.mxu0 %v9181
        %9324 = vmatpush.bf16.msra.mxu0 %v9180
        %9325 = vmatpush.bf16.msra.mxu0 %v9179
        %9326 = vmatpush.bf16.msra.mxu0 %v9178
        %9327 = vmatpush.bf16.msra.mxu0 %v9177
        %9328 = vmatmul.bf16.gmra.mxu0 %v8764
        %v9329 = vpop.f32.mrf.mxu0
        %v9330 = vadd.f32 %v9317, %v9329
        %v9331 = vpop.f32.mrf.mxu0
        %9332 = vdwg.mxu0
        %9333 = vmatpush.bf16.msra.mxu0 %v9192
        %9334 = vmatpush.bf16.msra.mxu0 %v9191
        %9335 = vmatpush.bf16.msra.mxu0 %v9190
        %9336 = vmatpush.bf16.msra.mxu0 %v9189
        %9337 = vmatpush.bf16.msra.mxu0 %v9188
        %9338 = vmatpush.bf16.msra.mxu0 %v9187
        %9339 = vmatpush.bf16.msra.mxu0 %v9186
        %9340 = vmatpush.bf16.msra.mxu0 %v9185
        %9341 = vmatmul.bf16.gmra.mxu0 %v8765
        %v9342 = vpop.f32.mrf.mxu0
        %v9343 = vadd.f32 %v9330, %v9342
        %v9344 = vpop.f32.mrf.mxu0
        %9345 = vdwg.mxu0
        %9346 = vmatpush.bf16.msra.mxu0 %v9200
        %9347 = vmatpush.bf16.msra.mxu0 %v9199
        %9348 = vmatpush.bf16.msra.mxu0 %v9198
        %9349 = vmatpush.bf16.msra.mxu0 %v9197
        %9350 = vmatpush.bf16.msra.mxu0 %v9196
        %9351 = vmatpush.bf16.msra.mxu0 %v9195
        %9352 = vmatpush.bf16.msra.mxu0 %v9194
        %9353 = vmatpush.bf16.msra.mxu0 %v9193
        %9354 = vmatmul.bf16.gmra.mxu0 %v8766
        %v9355 = vpop.f32.mrf.mxu0
        %v9356 = vadd.f32 %v9343, %v9355
        %v9357 = vpop.f32.mrf.mxu0
        %9358 = vdwg.mxu0
        %9359 = vmatpush.bf16.msra.mxu0 %v9208
        %9360 = vmatpush.bf16.msra.mxu0 %v9207
        %9361 = vmatpush.bf16.msra.mxu0 %v9206
        %9362 = vmatpush.bf16.msra.mxu0 %v9205
        %9363 = vmatpush.bf16.msra.mxu0 %v9204
        %9364 = vmatpush.bf16.msra.mxu0 %v9203
        %9365 = vmatpush.bf16.msra.mxu0 %v9202
        %9366 = vmatpush.bf16.msra.mxu0 %v9201
        %9367 = vmatmul.bf16.gmra.mxu0 %v8767
        %v9368 = vpop.f32.mrf.mxu0
        %v9369 = vadd.f32 %v9356, %v9368
        %v9370 = vpop.f32.mrf.mxu0
        %9371 = vdwg.mxu0
        %9372 = vmatpush.bf16.msra.mxu0 %v9216
        %9373 = vmatpush.bf16.msra.mxu0 %v9215
        %9374 = vmatpush.bf16.msra.mxu0 %v9214
        %9375 = vmatpush.bf16.msra.mxu0 %v9213
        %9376 = vmatpush.bf16.msra.mxu0 %v9212
        %9377 = vmatpush.bf16.msra.mxu0 %v9211
        %9378 = vmatpush.bf16.msra.mxu0 %v9210
        %9379 = vmatpush.bf16.msra.mxu0 %v9209
        %9380 = vmatmul.bf16.gmra.mxu0 %v8768
        %v9381 = vpop.f32.mrf.mxu0
        %v9382 = vadd.f32 %v9369, %v9381
        %v9383 = vpop.f32.mrf.mxu0
        %9384 = vdwg.mxu0
        %v9385 = vadd.f32 %v8760, %v9382
        %vm9386 = vcmask 31744
        %9387 = vst.msk [vmem:[%s403] sm:$0xff] %vm9386, %v9385
        %p9388 = scmp.lt.s32.totalorder %s26, 1
        %s9389 = scalar_select %p9388, %s26, 1
        %s9390 = smul.addr %s9389, 8
        %s9391 = scalar_lea.vmem %s6, %s9390
        // Predicated region
        $region69: #{tpu_custom_call.1} parent=43 // pred_check
          %p9392 = pneg %p199
        $region70: #{tpu_custom_call.1} parent=43 // pred_check_branch
          %9394 = sbr.rel (%p9392) target = $region72
        $region71: #{tpu_custom_call.1} parent=43 // pred_region
          _
        $region72: #{tpu_custom_call.1} parent=43 // pred_fallthru
          _
      $region44: #{tpu_custom_call.1} parent=5 // pred_fallthru
        _
      %p9395 = scmp.le.s32.totalorder 2, %s17
      // Predicated region
      $region73: #{tpu_custom_call.1} parent=5 // pred_check
        %p9396 = pneg %p9395
      $region74: #{tpu_custom_call.1} parent=5 // pred_check_branch
        %9398 = sbr.rel (%p9396) target = $region76
      $region75: #{tpu_custom_call.1} parent=5 // pred_region
        %s9399 = ssub.s32 %s17, 2
        // Predicated region
        $region77: #{tpu_custom_call.1} parent=75 // pred_check
          %p9400 = pneg %p205
        $region78: #{tpu_custom_call.1} parent=75 // pred_check_branch
          %9402 = sbr.rel (%p9400) target = $region80
        $region79: #{tpu_custom_call.1} parent=75 // pred_region
          %p9403 = scmp.lt.s32.totalorder %s28, 1
          %s9404 = scalar_select %p9403, %s28, 1
          %s9405 = smul.addr %s9404, 8
          %s9406 = scalar_lea.vmem %s6, %s9405
        $region80: #{tpu_custom_call.1} parent=75 // pred_fallthru
          _
      $region76: #{tpu_custom_call.1} parent=5 // pred_fallthru
        _
    $region6: #{tpu_custom_call.1} parent=1 // loop_footer
      %s21 = sadd.s32 1, %s17
    $region7: #{tpu_custom_call.1} parent=1 // loop_footer_branch
      %16 = sbr.rel target = $region3
    $region8: #{tpu_custom_call.1} parent=1 // loop_exit
      _
    %9407 = vsyncpa [#allocation4], 1
    %s9408 = scalar_lea.sflag [#allocation4], 1
    %9409 = vsyncpa %s9408, 1
    %9410 = vsyncpa [#allocation6], 1
    %9411 = vsyncpa [#allocation9], 1
    %s9412 = scalar_lea.sflag [#allocation9], 1
    %9413 = vsyncpa %s9412, 1

</llo_original>
